<compile_context>
chip_gen: v6e
topology: v6e:2x2x1
jax: 0.10.0
libtpu: 0.0.40
codegen_flags: <defaults>
</compile_context>

<pallas_src>
import functools

import jax
import jax.numpy as jnp
from jax.experimental import pallas as pl
from jax.experimental.pallas import tpu as pltpu


# ----------------------------------------------------------------------------
# Pallas kernels: K-tiled  acc += patches @ W ; epilogue scale/bias[/res]/relu
# ----------------------------------------------------------------------------
def _mm_bn_act_kernel(p_ref, w_ref, s_ref, b_ref, o_ref, acc_ref, *, relu):
    k = pl.program_id(2)

    @pl.when(k == 0)
    def _():
        acc_ref[...] = jnp.zeros_like(acc_ref)

    acc_ref[...] += jnp.dot(p_ref[...], w_ref[...],
                            preferred_element_type=jnp.float32)

    @pl.when(k == pl.num_programs(2) - 1)
    def _():
        y = acc_ref[...] * s_ref[...] + b_ref[...]
        if relu:
            y = jnp.maximum(y, 0.0)
        o_ref[...] = y.astype(o_ref.dtype)


def _mm_bn_act_res_kernel(p_ref, w_ref, s_ref, b_ref, r_ref, o_ref, acc_ref,
                          *, relu):
    k = pl.program_id(2)

    @pl.when(k == 0)
    def _():
        acc_ref[...] = jnp.zeros_like(acc_ref)

    acc_ref[...] += jnp.dot(p_ref[...], w_ref[...],
                            preferred_element_type=jnp.float32)

    @pl.when(k == pl.num_programs(2) - 1)
    def _():
        y = acc_ref[...] * s_ref[...] + b_ref[...] + r_ref[...].astype(jnp.float32)
        if relu:
            y = jnp.maximum(y, 0.0)
        o_ref[...] = y.astype(o_ref.dtype)


def _round_up(x, m):
    return ((x + m - 1) // m) * m


def _tile_limits():
    """Generation-aware tile caps (TM, TN_max, TK_max)."""
    try:
        kind = jax.devices()[0].device_kind.lower()
    except Exception:  # pragma: no cover - CPU fallback / interpret mode
        kind = ""
    if "v5 lite" in kind or "v5e" in kind or "v5lite" in kind:
        # v5e: 128x128 MXU, 16 MiB default scoped VMEM -> narrower N tile.
        return 512, 128, 512
    return 512, 256, 512


def matmul_bn_act(patches, weight, scale, bias, residual=None, relu=True,
                  out_dtype=jnp.bfloat16):
    """patches:(M,K)  weight:(K,N)  scale/bias:(N,)  residual:(M,N) or None."""
    M, K = patches.shape
    Kw, N = weight.shape
    assert K == Kw

    tm_max, tn_max, tk_max = _tile_limits()

    # ---- tile selection (lane/sublane aligned, VMEM bounded) ----
    TM = min(tm_max, _round_up(M, 8))
    Mp = _round_up(M, TM)

    Np = _round_up(N, 128)
    TN = 128
    for cand in (256,):
        if cand <= tn_max and Np % cand == 0:
            TN = cand

    Kp = _round_up(K, 128)
    TK = 128
    for cand in (512, 256):
        if cand <= tk_max and Kp % cand == 0:
            TK = cand
            break

    # ---- pad operands (zero padding contributes nothing to the reduction) --
    patches = patches.astype(jnp.bfloat16)
    if (Mp, Kp) != (M, K):
        patches = jnp.pad(patches, ((0, Mp - M), (0, Kp - K)))
    weight = weight.astype(jnp.bfloat16)
    if (Kp, Np) != (K, N):
        weight = jnp.pad(weight, ((0, Kp - K), (0, Np - N)))
    scale2 = jnp.pad(scale.astype(jnp.float32), (0, Np - N)).reshape(1, Np)
    bias2 = jnp.pad(bias.astype(jnp.float32), (0, Np - N)).reshape(1, Np)

    grid = (Mp // TM, Np // TN, Kp // TK)

    in_specs = [
        pl.BlockSpec((TM, TK), lambda i, j, k: (i, k)),
        pl.BlockSpec((TK, TN), lambda i, j, k: (k, j)),
        pl.BlockSpec((1, TN), lambda i, j, k: (0, j)),
        pl.BlockSpec((1, TN), lambda i, j, k: (0, j)),
    ]
    args = [patches, weight, scale2, bias2]

    if residual is not None:
        r = residual.astype(jnp.bfloat16)
        if (Mp, Np) != r.shape:
            r = jnp.pad(r, ((0, Mp - r.shape[0]), (0, Np - r.shape[1])))
        in_specs.append(pl.BlockSpec((TM, TN), lambda i, j, k: (i, j)))
        args.append(r)
        kernel = functools.partial(_mm_bn_act_res_kernel, relu=relu)
    else:
        kernel = functools.partial(_mm_bn_act_kernel, relu=relu)

    out = pl.pallas_call(
        kernel,
        out_shape=jax.ShapeDtypeStruct((Mp, Np), out_dtype),
        grid=grid,
        in_specs=in_specs,
        out_specs=pl.BlockSpec((TM, TN), lambda i, j, k: (i, j)),
        scratch_shapes=[pltpu.VMEM((TM, TN), jnp.float32)],
        compiler_params=pltpu.CompilerParams(
            dimension_semantics=("parallel", "parallel", "arbitrary"),
            vmem_limit_bytes=48 * 1024 * 1024,
        ),
    )(*args)

    if (Mp, Np) != (M, N):
        out = out[:M, :N]
    return out


# ----------------------------------------------------------------------------
# JAX glue: im2col, conv / transposed-conv wrappers, BN folding
# ----------------------------------------------------------------------------
def fold_bn(gamma, beta, mean, var, eps=1e-5):
    scale = gamma / jnp.sqrt(var + eps)
    bias = beta - mean * scale
    return scale, bias


def _extract_patches(xp, kh, kw, out_h, out_w):
    """xp: (N, Hp, Wp, C) already padded, stride-1 conv patches."""
    cols = []
    for i in range(kh):
        for j in range(kw):
            cols.append(xp[:, i:i + out_h, j:j + out_w, :])
    patches = jnp.concatenate(cols, axis=-1)          # (N, oh, ow, kh*kw*C)
    return patches.reshape(-1, kh * kw * xp.shape[-1])


def conv2d(x, w_oihw, scale, bias, pad, residual=None, relu=True,
           out_dtype=jnp.bfloat16):
    """x: NHWC.  w: (O, I, kh, kw) (PyTorch Conv2d layout).  stride 1."""
    N, H, W, C = x.shape
    O, I, kh, kw = w_oihw.shape
    xp = jnp.pad(x, ((0, 0), (pad, pad), (pad, pad), (0, 0)))
    out_h = H + 2 * pad - kh + 1
    out_w = W + 2 * pad - kw + 1
    patches = _extract_patches(xp, kh, kw, out_h, out_w)
    w_mat = jnp.transpose(w_oihw, (2, 3, 1, 0)).reshape(kh * kw * I, O)
    r = residual.reshape(-1, O) if residual is not None else None
    y = matmul_bn_act(patches, w_mat, scale, bias, residual=r, relu=relu,
                      out_dtype=out_dtype)
    return y.reshape(N, out_h, out_w, O)


def conv_transpose2d(x, w_iohw, scale, bias, relu=True, out_dtype=jnp.bfloat16):
    """x: NHWC.  w: (I, O, 4, 4) (PyTorch ConvTranspose2d layout).
    stride=2, padding=1 -> output spatial = 2x input spatial.

    Sub-pixel (phase) decomposition: each output-parity phase (ry, rx) is a
    2x2 stride-1 convolution over the (pad=1) input; the four phase outputs
    are interleaved.  No multiplies against dilation zeros."""
    N, H, W, C = x.shape
    I, O, kh, kw = w_iohw.shape
    assert (kh, kw) == (4, 4) and I == C
    xp = jnp.pad(x, ((0, 0), (1, 1), (1, 1), (0, 0)))

    # output index o = 2*p + r, r in {0,1};  tap offset t in {0,1} maps to the
    # original 4-tap kernel index:
    tap = {0: (3, 1), 1: (2, 0)}

    phase = {}
    for ry in (0, 1):
        for rx in (0, 1):
            cols, wsel = [], []
            for ty in (0, 1):
                for tx in (0, 1):
                    cols.append(xp[:, ry + ty:ry + ty + H,
                                   rx + tx:rx + tx + W, :])
                    wsel.append(w_iohw[:, :, tap[ry][ty], tap[rx][tx]])  # (I,O)
            patches = jnp.concatenate(cols, axis=-1).reshape(-1, 4 * C)
            w_mat = jnp.concatenate(wsel, axis=0)                        # (4I,O)
            y = matmul_bn_act(patches, w_mat, scale, bias, relu=relu,
                              out_dtype=out_dtype)
            phase[(ry, rx)] = y.reshape(N, H, W, O)

    top = jnp.stack([phase[(0, 0)], phase[(0, 1)]], axis=3).reshape(N, H, 2 * W, O)
    bot = jnp.stack([phase[(1, 0)], phase[(1, 1)]], axis=3).reshape(N, H, 2 * W, O)
    out = jnp.stack([top, bot], axis=2).reshape(N, 2 * H, 2 * W, O)
    return out


# ----------------------------------------------------------------------------
# Model: parameters + forward
# ----------------------------------------------------------------------------
def init_params(key, in_channels, hidden, num_channels, num_classes):
    channels = [in_channels] + list(hidden)
    state = {"key": key}

    def nxt():
        state["key"], sub = jax.random.split(state["key"])
        return sub

    def conv_w(shape):
        return 0.05 * jax.random.normal(nxt(), shape, jnp.float32)

    def bn(c):
        return {
            "gamma": 1.0 + 0.1 * jax.random.normal(nxt(), (c,), jnp.float32),
            "beta": 0.1 * jax.random.normal(nxt(), (c,), jnp.float32),
            "mean": 0.1 * jax.random.normal(nxt(), (c,), jnp.float32),
            "var": jnp.abs(1.0 + 0.1 * jax.random.normal(nxt(), (c,), jnp.float32)),
        }

    def block_params(cin, cout):
        p = {
            "conv1": conv_w((cout, cin, 3, 3)), "bn1": bn(cout),
            "conv2": conv_w((cout, cout, 3, 3)), "bn2": bn(cout),
        }
        if cin != cout:  # stride is always 1 in this decoder
            p["id_conv"] = conv_w((cout, cin, 1, 1))
            p["id_bn"] = bn(cout)
        return p

    def layer_params(cin, cout, n):
        blocks = [block_params(cin, cout)]
        for _ in range(1, n):
            blocks.append(block_params(cout, cout))
        return blocks

    params = {
        "initial": {"w": conv_w((channels[0], channels[1], 4, 4)), "bn": bn(channels[1])},
        "layer1": layer_params(channels[1], channels[1], 3),
        "layer2": layer_params(channels[1], channels[2], 4),
        "layer3": layer_params(channels[2], channels[3], 6),
        "layer4": layer_params(channels[3], channels[4], 3),
        "layer5": layer_params(channels[4], channels[5], 3),
        "upsample1": {"w": conv_w((channels[-1], channels[-2], 4, 4)), "bn": bn(channels[-2])},
        "upsample2": {"w": conv_w((channels[-2], channels[-3], 4, 4)), "bn": bn(channels[-3])},
        "upsample3": {"w": conv_w((channels[-3], channels[-4], 4, 4)), "bn": bn(channels[-4])},
        "upsample4": {"w": conv_w((channels[-4], num_channels, 4, 4)), "bn": bn(num_channels)},
        "final": conv_w((num_classes, num_channels, 3, 3)),
    }
    return params


def residual_block(x, p):
    identity = x
    if "id_conv" in p:
        si, bi = fold_bn(**p["id_bn"])
        identity = conv2d(x, p["id_conv"], si, bi, pad=0, relu=False)
    s1, b1 = fold_bn(**p["bn1"])
    h = conv2d(x, p["conv1"], s1, b1, pad=1, relu=True)
    s2, b2 = fold_bn(**p["bn2"])
    out = conv2d(h, p["conv2"], s2, b2, pad=1, residual=identity, relu=True)
    return out


def decoder_forward(params, x_nchw):
    x = jnp.transpose(x_nchw, (0, 2, 3, 1))  # NCHW -> NHWC

    def up(p, x):
        s, b = fold_bn(**p["bn"])
        return conv_transpose2d(x, p["w"], s, b, relu=True)

    x = up(params["initial"], x)
    for name in ("layer1", "layer2", "layer3", "layer4", "layer5"):
        for bp in params[name]:
            x = residual_block(x, bp)
    for name in ("upsample1", "upsample2", "upsample3", "upsample4"):
        x = up(params[name], x)

    w_final = params["final"]
    O = w_final.shape[0]
    x = conv2d(x, w_final, jnp.ones((O,), jnp.float32), jnp.zeros((O,), jnp.float32),
               pad=1, relu=False, out_dtype=jnp.float32)
    return jnp.transpose(x, (0, 3, 1, 2))  # NHWC -> NCHW


# ----------------------------------------------------------------------------
if __name__ == "__main__":
    key = jax.random.PRNGKey(0)
    pkey, xkey = jax.random.split(key)

    # Small but structure-preserving configuration (same block counts / strides
    # / kernel sizes as ResNet102Decoder; channel widths scaled down).
    in_channels = 64
    hidden = (32, 16, 16, 8, 8)     # stands in for (1024, 512, 256, 128, 64)
    num_channels = 8                # stands in for 64
    num_classes = 1
    batch, spatial = 2, 2           # input is the bottleneck feature map

    params = init_params(pkey, in_channels, hidden, num_channels, num_classes)
    x = jax.random.normal(xkey, (batch, in_channels, spatial, spatial), jnp.float32)

    fwd = jax.jit(decoder_forward)
    y = fwd(params, x)
    y = jax.block_until_ready(y)

    # 5 x2-upsamplings total (initial + upsample1..4): 2 -> 64
    assert y.shape == (batch, num_classes, spatial * 32, spatial * 32), y.shape
    assert jnp.all(jnp.isfinite(y))
    print("KERNEL_OK")
</pallas_src>

<mosaic_0001>
module attributes {stable_mosaic.version = 11 : i64} {
  func.func @_mm_bn_act_kernel(%arg0: i32, %arg1: i32, %arg2: i32, %arg3: memref<8x256xbf16, #tpu.memory_space<vmem>>, %arg4: memref<256x128xbf16, #tpu.memory_space<vmem>>, %arg5: memref<1x128xf32, #tpu.memory_space<vmem>>, %arg6: memref<1x128xf32, #tpu.memory_space<vmem>>, %arg7: memref<8x128xbf16, #tpu.memory_space<vmem>>, %arg8: memref<8x128xf32, #tpu.memory_space<vmem>>) attributes {dimension_semantics = [#tpu.dimension_semantics<parallel>, #tpu.dimension_semantics<parallel>, #tpu.dimension_semantics<arbitrary>], iteration_bounds = array<i64: 1, 1, 1>, scalar_prefetch = 0 : i64, scratch_operands = 1 : i64, tpu.core_type = #tpu.core_type<tc>, window_params = [{transform_indices = @transform_0, window_bounds = array<i64: 8, 256>}, {transform_indices = @transform_1, window_bounds = array<i64: 256, 128>}, {transform_indices = @transform_2, window_bounds = array<i64: 1, 128>}, {transform_indices = @transform_3, window_bounds = array<i64: 1, 128>}, {transform_indices = @transform_4, window_bounds = array<i64: 8, 128>}]} {
    %c0_i32 = arith.constant 0 : i32
    %0 = arith.cmpi eq, %arg2, %c0_i32 : i32
    %1 = arith.extui %0 : i1 to i32
    %c0_i32_0 = arith.constant 0 : i32
    %2 = arith.cmpi ne, %1, %c0_i32_0 : i32
    scf.if %2 {
      %cst_10 = arith.constant 0.000000e+00 : f32
      %12 = vector.broadcast %cst_10 : f32 to vector<8x128xf32>
      %c0_11 = arith.constant 0 : index
      %c0_12 = arith.constant 0 : index
      %13 = vector.load %arg8[%c0_11, %c0_12] : memref<8x128xf32, #tpu.memory_space<vmem>>, vector<8x128xf32>
      tpu.vector_store %arg8[%c0_11, %c0_12], %12 {strides = array<i32>} : memref<8x128xf32, #tpu.memory_space<vmem>>, vector<8x128xf32>,
    } else {
    }
    %c0 = arith.constant 0 : index
    %c0_1 = arith.constant 0 : index
    %3 = vector.load %arg8[%c0, %c0_1] : memref<8x128xf32, #tpu.memory_space<vmem>>, vector<8x128xf32>
    %c0_2 = arith.constant 0 : index
    %c0_3 = arith.constant 0 : index
    %4 = vector.load %arg3[%c0_2, %c0_3] : memref<8x256xbf16, #tpu.memory_space<vmem>>, vector<8x256xbf16>
    %c0_4 = arith.constant 0 : index
    %c0_5 = arith.constant 0 : index
    %5 = vector.load %arg4[%c0_4, %c0_5] : memref<256x128xbf16, #tpu.memory_space<vmem>>, vector<256x128xbf16>
    %cst = arith.constant dense<0.000000e+00> : vector<8x128xf32>
    %6 = tpu.matmul %4, %5, %cst {dimension_numbers = #tpu.dot_dimension_numbers<[1], [0], [0], [1], [0, 0, 1, 1], [], []>} : vector<8x256xbf16>, vector<256x128xbf16>, vector<8x128xf32> -> vector<8x128xf32>
    %7 = arith.addf %3, %6 : vector<8x128xf32>
    %c0_6 = arith.constant 0 : index
    %c0_7 = arith.constant 0 : index
    %8 = vector.load %arg8[%c0_6, %c0_7] : memref<8x128xf32, #tpu.memory_space<vmem>>, vector<8x128xf32>
    tpu.vector_store %arg8[%c0_6, %c0_7], %7 {strides = array<i32>} : memref<8x128xf32, #tpu.memory_space<vmem>>, vector<8x128xf32>,
    %c0_i32_8 = arith.constant 0 : i32
    %9 = arith.cmpi eq, %arg2, %c0_i32_8 : i32
    %10 = arith.extui %9 : i1 to i32
    %c0_i32_9 = arith.constant 0 : i32
    %11 = arith.cmpi ne, %10, %c0_i32_9 : i32
    scf.if %11 {
      %c0_10 = arith.constant 0 : index
      %c0_11 = arith.constant 0 : index
      %12 = vector.load %arg8[%c0_10, %c0_11] : memref<8x128xf32, #tpu.memory_space<vmem>>, vector<8x128xf32>
      %c0_12 = arith.constant 0 : index
      %c0_13 = arith.constant 0 : index
      %13 = vector.load %arg5[%c0_12, %c0_13] : memref<1x128xf32, #tpu.memory_space<vmem>>, vector<1x128xf32>
      %14 = vector.broadcast %13 : vector<1x128xf32> to vector<8x128xf32>
      %15 = arith.mulf %12, %14 : vector<8x128xf32>
      %c0_14 = arith.constant 0 : index
      %c0_15 = arith.constant 0 : index
      %16 = vector.load %arg6[%c0_14, %c0_15] : memref<1x128xf32, #tpu.memory_space<vmem>>, vector<1x128xf32>
      %17 = vector.broadcast %16 : vector<1x128xf32> to vector<8x128xf32>
      %18 = arith.addf %15, %17 : vector<8x128xf32>
      %cst_16 = arith.constant 0.000000e+00 : f32
      %19 = vector.broadcast %cst_16 : f32 to vector<8x128xf32>
      %20 = arith.maximumf %18, %19 : vector<8x128xf32>
      %21 = arith.truncf %20 : vector<8x128xf32> to vector<8x128xbf16>
      %c0_17 = arith.constant 0 : index
      %c0_18 = arith.constant 0 : index
      %22 = vector.load %arg7[%c0_17, %c0_18] : memref<8x128xbf16, #tpu.memory_space<vmem>>, vector<8x128xbf16>
      tpu.vector_store %arg7[%c0_17, %c0_18], %21 {strides = array<i32>} : memref<8x128xbf16, #tpu.memory_space<vmem>>, vector<8x128xbf16>,
    } else {
    }
    return
  }
  func.func @transform_0(%arg0: i32, %arg1: i32, %arg2: i32) -> (i32, i32) {
    %c0_i32 = arith.constant 0 : i32
    return %arg0, %arg2 : i32, i32
  }
  func.func @transform_1(%arg0: i32, %arg1: i32, %arg2: i32) -> (i32, i32) {
    %c0_i32 = arith.constant 0 : i32
    return %arg2, %arg1 : i32, i32
  }
  func.func @transform_2(%arg0: i32, %arg1: i32, %arg2: i32) -> (i32, i32) {
    %c0_i32 = arith.constant 0 : i32
    %c0_i32_0 = arith.constant 0 : i32
    return %c0_i32, %arg1 : i32, i32
  }
  func.func @transform_3(%arg0: i32, %arg1: i32, %arg2: i32) -> (i32, i32) {
    %c0_i32 = arith.constant 0 : i32
    %c0_i32_0 = arith.constant 0 : i32
    return %c0_i32, %arg1 : i32, i32
  }
  func.func @transform_4(%arg0: i32, %arg1: i32, %arg2: i32) -> (i32, i32) {
    %c0_i32 = arith.constant 0 : i32
    return %arg0, %arg1 : i32, i32
  }
}

module attributes {stable_mosaic.version = 11 : i64} {
  func.func @_mm_bn_act_kernel(%arg0: i32, %arg1: i32, %arg2: i32, %arg3: memref<32x128xbf16, #tpu.memory_space<vmem>>, %arg4: memref<128x128xbf16, #tpu.memory_space<vmem>>, %arg5: memref<1x128xf32, #tpu.memory_space<vmem>>, %arg6: memref<1x128xf32, #tpu.memory_space<vmem>>, %arg7: memref<32x128xbf16, #tpu.memory_space<vmem>>, %arg8: memref<32x128xf32, #tpu.memory_space<vmem>>) attributes {dimension_semantics = [#tpu.dimension_semantics<parallel>, #tpu.dimension_semantics<parallel>, #tpu.dimension_semantics<arbitrary>], iteration_bounds = array<i64: 1, 1, 3>, scalar_prefetch = 0 : i64, scratch_operands = 1 : i64, tpu.core_type = #tpu.core_type<tc>, window_params = [{transform_indices = @transform_0, window_bounds = array<i64: 32, 128>}, {transform_indices = @transform_1, window_bounds = array<i64: 128, 128>}, {transform_indices = @transform_2, window_bounds = array<i64: 1, 128>}, {transform_indices = @transform_3, window_bounds = array<i64: 1, 128>}, {transform_indices = @transform_4, window_bounds = array<i64: 32, 128>}]} {
    %c0_i32 = arith.constant 0 : i32
    %0 = arith.cmpi eq, %arg2, %c0_i32 : i32
    %1 = arith.extui %0 : i1 to i32
    %c0_i32_0 = arith.constant 0 : i32
    %2 = arith.cmpi ne, %1, %c0_i32_0 : i32
    scf.if %2 {
      %cst_9 = arith.constant 0.000000e+00 : f32
      %12 = vector.broadcast %cst_9 : f32 to vector<32x128xf32>
      %c0_10 = arith.constant 0 : index
      %c0_11 = arith.constant 0 : index
      %13 = vector.load %arg8[%c0_10, %c0_11] : memref<32x128xf32, #tpu.memory_space<vmem>>, vector<32x128xf32>
      tpu.vector_store %arg8[%c0_10, %c0_11], %12 {strides = array<i32>} : memref<32x128xf32, #tpu.memory_space<vmem>>, vector<32x128xf32>,
    } else {
    }
    %c0 = arith.constant 0 : index
    %c0_1 = arith.constant 0 : index
    %3 = vector.load %arg8[%c0, %c0_1] : memref<32x128xf32, #tpu.memory_space<vmem>>, vector<32x128xf32>
    %c0_2 = arith.constant 0 : index
    %c0_3 = arith.constant 0 : index
    %4 = vector.load %arg3[%c0_2, %c0_3] : memref<32x128xbf16, #tpu.memory_space<vmem>>, vector<32x128xbf16>
    %c0_4 = arith.constant 0 : index
    %c0_5 = arith.constant 0 : index
    %5 = vector.load %arg4[%c0_4, %c0_5] : memref<128x128xbf16, #tpu.memory_space<vmem>>, vector<128x128xbf16>
    %cst = arith.constant dense<0.000000e+00> : vector<32x128xf32>
    %6 = tpu.matmul %4, %5, %cst {dimension_numbers = #tpu.dot_dimension_numbers<[1], [0], [0], [1], [0, 0, 1, 1], [], []>} : vector<32x128xbf16>, vector<128x128xbf16>, vector<32x128xf32> -> vector<32x128xf32>
    %7 = arith.addf %3, %6 : vector<32x128xf32>
    %c0_6 = arith.constant 0 : index
    %c0_7 = arith.constant 0 : index
    %8 = vector.load %arg8[%c0_6, %c0_7] : memref<32x128xf32, #tpu.memory_space<vmem>>, vector<32x128xf32>
    tpu.vector_store %arg8[%c0_6, %c0_7], %7 {strides = array<i32>} : memref<32x128xf32, #tpu.memory_space<vmem>>, vector<32x128xf32>,
    %c2_i32 = arith.constant 2 : i32
    %9 = arith.cmpi eq, %arg2, %c2_i32 : i32
    %10 = arith.extui %9 : i1 to i32
    %c0_i32_8 = arith.constant 0 : i32
    %11 = arith.cmpi ne, %10, %c0_i32_8 : i32
    scf.if %11 {
      %c0_9 = arith.constant 0 : index
      %c0_10 = arith.constant 0 : index
      %12 = vector.load %arg8[%c0_9, %c0_10] : memref<32x128xf32, #tpu.memory_space<vmem>>, vector<32x128xf32>
      %c0_11 = arith.constant 0 : index
      %c0_12 = arith.constant 0 : index
      %13 = vector.load %arg5[%c0_11, %c0_12] : memref<1x128xf32, #tpu.memory_space<vmem>>, vector<1x128xf32>
      %14 = vector.broadcast %13 : vector<1x128xf32> to vector<32x128xf32>
      %15 = arith.mulf %12, %14 : vector<32x128xf32>
      %c0_13 = arith.constant 0 : index
      %c0_14 = arith.constant 0 : index
      %16 = vector.load %arg6[%c0_13, %c0_14] : memref<1x128xf32, #tpu.memory_space<vmem>>, vector<1x128xf32>
      %17 = vector.broadcast %16 : vector<1x128xf32> to vector<32x128xf32>
      %18 = arith.addf %15, %17 : vector<32x128xf32>
      %cst_15 = arith.constant 0.000000e+00 : f32
      %19 = vector.broadcast %cst_15 : f32 to vector<32x128xf32>
      %20 = arith.maximumf %18, %19 : vector<32x128xf32>
      %21 = arith.truncf %20 : vector<32x128xf32> to vector<32x128xbf16>
      %c0_16 = arith.constant 0 : index
      %c0_17 = arith.constant 0 : index
      %22 = vector.load %arg7[%c0_16, %c0_17] : memref<32x128xbf16, #tpu.memory_space<vmem>>, vector<32x128xbf16>
      tpu.vector_store %arg7[%c0_16, %c0_17], %21 {strides = array<i32>} : memref<32x128xbf16, #tpu.memory_space<vmem>>, vector<32x128xbf16>,
    } else {
    }
    return
  }
  func.func @transform_0(%arg0: i32, %arg1: i32, %arg2: i32) -> (i32, i32) {
    %c0_i32 = arith.constant 0 : i32
    return %arg0, %arg2 : i32, i32
  }
  func.func @transform_1(%arg0: i32, %arg1: i32, %arg2: i32) -> (i32, i32) {
    %c0_i32 = arith.constant 0 : i32
    return %arg2, %arg1 : i32, i32
  }
  func.func @transform_2(%arg0: i32, %arg1: i32, %arg2: i32) -> (i32, i32) {
    %c0_i32 = arith.constant 0 : i32
    %c0_i32_0 = arith.constant 0 : i32
    return %c0_i32, %arg1 : i32, i32
  }
  func.func @transform_3(%arg0: i32, %arg1: i32, %arg2: i32) -> (i32, i32) {
    %c0_i32 = arith.constant 0 : i32
    %c0_i32_0 = arith.constant 0 : i32
    return %c0_i32, %arg1 : i32, i32
  }
  func.func @transform_4(%arg0: i32, %arg1: i32, %arg2: i32) -> (i32, i32) {
    %c0_i32 = arith.constant 0 : i32
    return %arg0, %arg1 : i32, i32
  }
}

module attributes {stable_mosaic.version = 11 : i64} {
  func.func @_mm_bn_act_res_kernel(%arg0: i32, %arg1: i32, %arg2: i32, %arg3: memref<32x128xbf16, #tpu.memory_space<vmem>>, %arg4: memref<128x128xbf16, #tpu.memory_space<vmem>>, %arg5: memref<1x128xf32, #tpu.memory_space<vmem>>, %arg6: memref<1x128xf32, #tpu.memory_space<vmem>>, %arg7: memref<32x128xbf16, #tpu.memory_space<vmem>>, %arg8: memref<32x128xbf16, #tpu.memory_space<vmem>>, %arg9: memref<32x128xf32, #tpu.memory_space<vmem>>) attributes {dimension_semantics = [#tpu.dimension_semantics<parallel>, #tpu.dimension_semantics<parallel>, #tpu.dimension_semantics<arbitrary>], iteration_bounds = array<i64: 1, 1, 3>, scalar_prefetch = 0 : i64, scratch_operands = 1 : i64, tpu.core_type = #tpu.core_type<tc>, window_params = [{transform_indices = @transform_0, window_bounds = array<i64: 32, 128>}, {transform_indices = @transform_1, window_bounds = array<i64: 128, 128>}, {transform_indices = @transform_2, window_bounds = array<i64: 1, 128>}, {transform_indices = @transform_3, window_bounds = array<i64: 1, 128>}, {transform_indices = @transform_4, window_bounds = array<i64: 32, 128>}, {transform_indices = @transform_5, window_bounds = array<i64: 32, 128>}]} {
    %c0_i32 = arith.constant 0 : i32
    %0 = arith.cmpi eq, %arg2, %c0_i32 : i32
    %1 = arith.extui %0 : i1 to i32
    %c0_i32_0 = arith.constant 0 : i32
    %2 = arith.cmpi ne, %1, %c0_i32_0 : i32
    scf.if %2 {
      %cst_9 = arith.constant 0.000000e+00 : f32
      %12 = vector.broadcast %cst_9 : f32 to vector<32x128xf32>
      %c0_10 = arith.constant 0 : index
      %c0_11 = arith.constant 0 : index
      %13 = vector.load %arg9[%c0_10, %c0_11] : memref<32x128xf32, #tpu.memory_space<vmem>>, vector<32x128xf32>
      tpu.vector_store %arg9[%c0_10, %c0_11], %12 {strides = array<i32>} : memref<32x128xf32, #tpu.memory_space<vmem>>, vector<32x128xf32>,
    } else {
    }
    %c0 = arith.constant 0 : index
    %c0_1 = arith.constant 0 : index
    %3 = vector.load %arg9[%c0, %c0_1] : memref<32x128xf32, #tpu.memory_space<vmem>>, vector<32x128xf32>
    %c0_2 = arith.constant 0 : index
    %c0_3 = arith.constant 0 : index
    %4 = vector.load %arg3[%c0_2, %c0_3] : memref<32x128xbf16, #tpu.memory_space<vmem>>, vector<32x128xbf16>
    %c0_4 = arith.constant 0 : index
    %c0_5 = arith.constant 0 : index
    %5 = vector.load %arg4[%c0_4, %c0_5] : memref<128x128xbf16, #tpu.memory_space<vmem>>, vector<128x128xbf16>
    %cst = arith.constant dense<0.000000e+00> : vector<32x128xf32>
    %6 = tpu.matmul %4, %5, %cst {dimension_numbers = #tpu.dot_dimension_numbers<[1], [0], [0], [1], [0, 0, 1, 1], [], []>} : vector<32x128xbf16>, vector<128x128xbf16>, vector<32x128xf32> -> vector<32x128xf32>
    %7 = arith.addf %3, %6 : vector<32x128xf32>
    %c0_6 = arith.constant 0 : index
    %c0_7 = arith.constant 0 : index
    %8 = vector.load %arg9[%c0_6, %c0_7] : memref<32x128xf32, #tpu.memory_space<vmem>>, vector<32x128xf32>
    tpu.vector_store %arg9[%c0_6, %c0_7], %7 {strides = array<i32>} : memref<32x128xf32, #tpu.memory_space<vmem>>, vector<32x128xf32>,
    %c2_i32 = arith.constant 2 : i32
    %9 = arith.cmpi eq, %arg2, %c2_i32 : i32
    %10 = arith.extui %9 : i1 to i32
    %c0_i32_8 = arith.constant 0 : i32
    %11 = arith.cmpi ne, %10, %c0_i32_8 : i32
    scf.if %11 {
      %c0_9 = arith.constant 0 : index
      %c0_10 = arith.constant 0 : index
      %12 = vector.load %arg9[%c0_9, %c0_10] : memref<32x128xf32, #tpu.memory_space<vmem>>, vector<32x128xf32>
      %c0_11 = arith.constant 0 : index
      %c0_12 = arith.constant 0 : index
      %13 = vector.load %arg5[%c0_11, %c0_12] : memref<1x128xf32, #tpu.memory_space<vmem>>, vector<1x128xf32>
      %14 = vector.broadcast %13 : vector<1x128xf32> to vector<32x128xf32>
      %15 = arith.mulf %12, %14 : vector<32x128xf32>
      %c0_13 = arith.constant 0 : index
      %c0_14 = arith.constant 0 : index
      %16 = vector.load %arg6[%c0_13, %c0_14] : memref<1x128xf32, #tpu.memory_space<vmem>>, vector<1x128xf32>
      %17 = vector.broadcast %16 : vector<1x128xf32> to vector<32x128xf32>
      %18 = arith.addf %15, %17 : vector<32x128xf32>
      %c0_15 = arith.constant 0 : index
      %c0_16 = arith.constant 0 : index
      %19 = vector.load %arg7[%c0_15, %c0_16] : memref<32x128xbf16, #tpu.memory_space<vmem>>, vector<32x128xbf16>
      %20 = arith.extf %19 : vector<32x128xbf16> to vector<32x128xf32>
      %21 = arith.addf %18, %20 : vector<32x128xf32>
      %cst_17 = arith.constant 0.000000e+00 : f32
      %22 = vector.broadcast %cst_17 : f32 to vector<32x128xf32>
      %23 = arith.maximumf %21, %22 : vector<32x128xf32>
      %24 = arith.truncf %23 : vector<32x128xf32> to vector<32x128xbf16>
      %c0_18 = arith.constant 0 : index
      %c0_19 = arith.constant 0 : index
      %25 = vector.load %arg8[%c0_18, %c0_19] : memref<32x128xbf16, #tpu.memory_space<vmem>>, vector<32x128xbf16>
      tpu.vector_store %arg8[%c0_18, %c0_19], %24 {strides = array<i32>} : memref<32x128xbf16, #tpu.memory_space<vmem>>, vector<32x128xbf16>,
    } else {
    }
    return
  }
  func.func @transform_0(%arg0: i32, %arg1: i32, %arg2: i32) -> (i32, i32) {
    %c0_i32 = arith.constant 0 : i32
    return %arg0, %arg2 : i32, i32
  }
  func.func @transform_1(%arg0: i32, %arg1: i32, %arg2: i32) -> (i32, i32) {
    %c0_i32 = arith.constant 0 : i32
    return %arg2, %arg1 : i32, i32
  }
  func.func @transform_2(%arg0: i32, %arg1: i32, %arg2: i32) -> (i32, i32) {
    %c0_i32 = arith.constant 0 : i32
    %c0_i32_0 = arith.constant 0 : i32
    return %c0_i32, %arg1 : i32, i32
  }
  func.func @transform_3(%arg0: i32, %arg1: i32, %arg2: i32) -> (i32, i32) {
    %c0_i32 = arith.constant 0 : i32
    %c0_i32_0 = arith.constant 0 : i32
    return %c0_i32, %arg1 : i32, i32
  }
  func.func @transform_4(%arg0: i32, %arg1: i32, %arg2: i32) -> (i32, i32) {
    %c0_i32 = arith.constant 0 : i32
    return %arg0, %arg1 : i32, i32
  }
  func.func @transform_5(%arg0: i32, %arg1: i32, %arg2: i32) -> (i32, i32) {
    %c0_i32 = arith.constant 0 : i32
    return %arg0, %arg1 : i32, i32
  }
}

module attributes {stable_mosaic.version = 11 : i64} {
  func.func @_mm_bn_act_kernel(%arg0: i32, %arg1: i32, %arg2: i32, %arg3: memref<32x128xbf16, #tpu.memory_space<vmem>>, %arg4: memref<128x128xbf16, #tpu.memory_space<vmem>>, %arg5: memref<1x128xf32, #tpu.memory_space<vmem>>, %arg6: memref<1x128xf32, #tpu.memory_space<vmem>>, %arg7: memref<32x128xbf16, #tpu.memory_space<vmem>>, %arg8: memref<32x128xf32, #tpu.memory_space<vmem>>) attributes {dimension_semantics = [#tpu.dimension_semantics<parallel>, #tpu.dimension_semantics<parallel>, #tpu.dimension_semantics<arbitrary>], iteration_bounds = array<i64: 1, 1, 1>, scalar_prefetch = 0 : i64, scratch_operands = 1 : i64, tpu.core_type = #tpu.core_type<tc>, window_params = [{transform_indices = @transform_0, window_bounds = array<i64: 32, 128>}, {transform_indices = @transform_1, window_bounds = array<i64: 128, 128>}, {transform_indices = @transform_2, window_bounds = array<i64: 1, 128>}, {transform_indices = @transform_3, window_bounds = array<i64: 1, 128>}, {transform_indices = @transform_4, window_bounds = array<i64: 32, 128>}]} {
    %c0_i32 = arith.constant 0 : i32
    %0 = arith.cmpi eq, %arg2, %c0_i32 : i32
    %1 = arith.extui %0 : i1 to i32
    %c0_i32_0 = arith.constant 0 : i32
    %2 = arith.cmpi ne, %1, %c0_i32_0 : i32
    scf.if %2 {
      %cst_10 = arith.constant 0.000000e+00 : f32
      %12 = vector.broadcast %cst_10 : f32 to vector<32x128xf32>
      %c0_11 = arith.constant 0 : index
      %c0_12 = arith.constant 0 : index
      %13 = vector.load %arg8[%c0_11, %c0_12] : memref<32x128xf32, #tpu.memory_space<vmem>>, vector<32x128xf32>
      tpu.vector_store %arg8[%c0_11, %c0_12], %12 {strides = array<i32>} : memref<32x128xf32, #tpu.memory_space<vmem>>, vector<32x128xf32>,
    } else {
    }
    %c0 = arith.constant 0 : index
    %c0_1 = arith.constant 0 : index
    %3 = vector.load %arg8[%c0, %c0_1] : memref<32x128xf32, #tpu.memory_space<vmem>>, vector<32x128xf32>
    %c0_2 = arith.constant 0 : index
    %c0_3 = arith.constant 0 : index
    %4 = vector.load %arg3[%c0_2, %c0_3] : memref<32x128xbf16, #tpu.memory_space<vmem>>, vector<32x128xbf16>
    %c0_4 = arith.constant 0 : index
    %c0_5 = arith.constant 0 : index
    %5 = vector.load %arg4[%c0_4, %c0_5] : memref<128x128xbf16, #tpu.memory_space<vmem>>, vector<128x128xbf16>
    %cst = arith.constant dense<0.000000e+00> : vector<32x128xf32>
    %6 = tpu.matmul %4, %5, %cst {dimension_numbers = #tpu.dot_dimension_numbers<[1], [0], [0], [1], [0, 0, 1, 1], [], []>} : vector<32x128xbf16>, vector<128x128xbf16>, vector<32x128xf32> -> vector<32x128xf32>
    %7 = arith.addf %3, %6 : vector<32x128xf32>
    %c0_6 = arith.constant 0 : index
    %c0_7 = arith.constant 0 : index
    %8 = vector.load %arg8[%c0_6, %c0_7] : memref<32x128xf32, #tpu.memory_space<vmem>>, vector<32x128xf32>
    tpu.vector_store %arg8[%c0_6, %c0_7], %7 {strides = array<i32>} : memref<32x128xf32, #tpu.memory_space<vmem>>, vector<32x128xf32>,
    %c0_i32_8 = arith.constant 0 : i32
    %9 = arith.cmpi eq, %arg2, %c0_i32_8 : i32
    %10 = arith.extui %9 : i1 to i32
    %c0_i32_9 = arith.constant 0 : i32
    %11 = arith.cmpi ne, %10, %c0_i32_9 : i32
    scf.if %11 {
      %c0_10 = arith.constant 0 : index
      %c0_11 = arith.constant 0 : index
      %12 = vector.load %arg8[%c0_10, %c0_11] : memref<32x128xf32, #tpu.memory_space<vmem>>, vector<32x128xf32>
      %c0_12 = arith.constant 0 : index
      %c0_13 = arith.constant 0 : index
      %13 = vector.load %arg5[%c0_12, %c0_13] : memref<1x128xf32, #tpu.memory_space<vmem>>, vector<1x128xf32>
      %14 = vector.broadcast %13 : vector<1x128xf32> to vector<32x128xf32>
      %15 = arith.mulf %12, %14 : vector<32x128xf32>
      %c0_14 = arith.constant 0 : index
      %c0_15 = arith.constant 0 : index
      %16 = vector.load %arg6[%c0_14, %c0_15] : memref<1x128xf32, #tpu.memory_space<vmem>>, vector<1x128xf32>
      %17 = vector.broadcast %16 : vector<1x128xf32> to vector<32x128xf32>
      %18 = arith.addf %15, %17 : vector<32x128xf32>
      %19 = arith.truncf %18 : vector<32x128xf32> to vector<32x128xbf16>
      %c0_16 = arith.constant 0 : index
      %c0_17 = arith.constant 0 : index
      %20 = vector.load %arg7[%c0_16, %c0_17] : memref<32x128xbf16, #tpu.memory_space<vmem>>, vector<32x128xbf16>
      tpu.vector_store %arg7[%c0_16, %c0_17], %19 {strides = array<i32>} : memref<32x128xbf16, #tpu.memory_space<vmem>>, vector<32x128xbf16>,
    } else {
    }
    return
  }
  func.func @transform_0(%arg0: i32, %arg1: i32, %arg2: i32) -> (i32, i32) {
    %c0_i32 = arith.constant 0 : i32
    return %arg0, %arg2 : i32, i32
  }
  func.func @transform_1(%arg0: i32, %arg1: i32, %arg2: i32) -> (i32, i32) {
    %c0_i32 = arith.constant 0 : i32
    return %arg2, %arg1 : i32, i32
  }
  func.func @transform_2(%arg0: i32, %arg1: i32, %arg2: i32) -> (i32, i32) {
    %c0_i32 = arith.constant 0 : i32
    %c0_i32_0 = arith.constant 0 : i32
    return %c0_i32, %arg1 : i32, i32
  }
  func.func @transform_3(%arg0: i32, %arg1: i32, %arg2: i32) -> (i32, i32) {
    %c0_i32 = arith.constant 0 : i32
    %c0_i32_0 = arith.constant 0 : i32
    return %c0_i32, %arg1 : i32, i32
  }
  func.func @transform_4(%arg0: i32, %arg1: i32, %arg2: i32) -> (i32, i32) {
    %c0_i32 = arith.constant 0 : i32
    return %arg0, %arg1 : i32, i32
  }
}

module attributes {stable_mosaic.version = 11 : i64} {
  func.func @_mm_bn_act_res_kernel(%arg0: i32, %arg1: i32, %arg2: i32, %arg3: memref<32x256xbf16, #tpu.memory_space<vmem>>, %arg4: memref<256x128xbf16, #tpu.memory_space<vmem>>, %arg5: memref<1x128xf32, #tpu.memory_space<vmem>>, %arg6: memref<1x128xf32, #tpu.memory_space<vmem>>, %arg7: memref<32x128xbf16, #tpu.memory_space<vmem>>, %arg8: memref<32x128xbf16, #tpu.memory_space<vmem>>, %arg9: memref<32x128xf32, #tpu.memory_space<vmem>>) attributes {dimension_semantics = [#tpu.dimension_semantics<parallel>, #tpu.dimension_semantics<parallel>, #tpu.dimension_semantics<arbitrary>], iteration_bounds = array<i64: 1, 1, 1>, scalar_prefetch = 0 : i64, scratch_operands = 1 : i64, tpu.core_type = #tpu.core_type<tc>, window_params = [{transform_indices = @transform_0, window_bounds = array<i64: 32, 256>}, {transform_indices = @transform_1, window_bounds = array<i64: 256, 128>}, {transform_indices = @transform_2, window_bounds = array<i64: 1, 128>}, {transform_indices = @transform_3, window_bounds = array<i64: 1, 128>}, {transform_indices = @transform_4, window_bounds = array<i64: 32, 128>}, {transform_indices = @transform_5, window_bounds = array<i64: 32, 128>}]} {
    %c0_i32 = arith.constant 0 : i32
    %0 = arith.cmpi eq, %arg2, %c0_i32 : i32
    %1 = arith.extui %0 : i1 to i32
    %c0_i32_0 = arith.constant 0 : i32
    %2 = arith.cmpi ne, %1, %c0_i32_0 : i32
    scf.if %2 {
      %cst_10 = arith.constant 0.000000e+00 : f32
      %12 = vector.broadcast %cst_10 : f32 to vector<32x128xf32>
      %c0_11 = arith.constant 0 : index
      %c0_12 = arith.constant 0 : index
      %13 = vector.load %arg9[%c0_11, %c0_12] : memref<32x128xf32, #tpu.memory_space<vmem>>, vector<32x128xf32>
      tpu.vector_store %arg9[%c0_11, %c0_12], %12 {strides = array<i32>} : memref<32x128xf32, #tpu.memory_space<vmem>>, vector<32x128xf32>,
    } else {
    }
    %c0 = arith.constant 0 : index
    %c0_1 = arith.constant 0 : index
    %3 = vector.load %arg9[%c0, %c0_1] : memref<32x128xf32, #tpu.memory_space<vmem>>, vector<32x128xf32>
    %c0_2 = arith.constant 0 : index
    %c0_3 = arith.constant 0 : index
    %4 = vector.load %arg3[%c0_2, %c0_3] : memref<32x256xbf16, #tpu.memory_space<vmem>>, vector<32x256xbf16>
    %c0_4 = arith.constant 0 : index
    %c0_5 = arith.constant 0 : index
    %5 = vector.load %arg4[%c0_4, %c0_5] : memref<256x128xbf16, #tpu.memory_space<vmem>>, vector<256x128xbf16>
    %cst = arith.constant dense<0.000000e+00> : vector<32x128xf32>
    %6 = tpu.matmul %4, %5, %cst {dimension_numbers = #tpu.dot_dimension_numbers<[1], [0], [0], [1], [0, 0, 1, 1], [], []>} : vector<32x256xbf16>, vector<256x128xbf16>, vector<32x128xf32> -> vector<32x128xf32>
    %7 = arith.addf %3, %6 : vector<32x128xf32>
    %c0_6 = arith.constant 0 : index
    %c0_7 = arith.constant 0 : index
    %8 = vector.load %arg9[%c0_6, %c0_7] : memref<32x128xf32, #tpu.memory_space<vmem>>, vector<32x128xf32>
    tpu.vector_store %arg9[%c0_6, %c0_7], %7 {strides = array<i32>} : memref<32x128xf32, #tpu.memory_space<vmem>>, vector<32x128xf32>,
    %c0_i32_8 = arith.constant 0 : i32
    %9 = arith.cmpi eq, %arg2, %c0_i32_8 : i32
    %10 = arith.extui %9 : i1 to i32
    %c0_i32_9 = arith.constant 0 : i32
    %11 = arith.cmpi ne, %10, %c0_i32_9 : i32
    scf.if %11 {
      %c0_10 = arith.constant 0 : index
      %c0_11 = arith.constant 0 : index
      %12 = vector.load %arg9[%c0_10, %c0_11] : memref<32x128xf32, #tpu.memory_space<vmem>>, vector<32x128xf32>
      %c0_12 = arith.constant 0 : index
      %c0_13 = arith.constant 0 : index
      %13 = vector.load %arg5[%c0_12, %c0_13] : memref<1x128xf32, #tpu.memory_space<vmem>>, vector<1x128xf32>
      %14 = vector.broadcast %13 : vector<1x128xf32> to vector<32x128xf32>
      %15 = arith.mulf %12, %14 : vector<32x128xf32>
      %c0_14 = arith.constant 0 : index
      %c0_15 = arith.constant 0 : index
      %16 = vector.load %arg6[%c0_14, %c0_15] : memref<1x128xf32, #tpu.memory_space<vmem>>, vector<1x128xf32>
      %17 = vector.broadcast %16 : vector<1x128xf32> to vector<32x128xf32>
      %18 = arith.addf %15, %17 : vector<32x128xf32>
      %c0_16 = arith.constant 0 : index
      %c0_17 = arith.constant 0 : index
      %19 = vector.load %arg7[%c0_16, %c0_17] : memref<32x128xbf16, #tpu.memory_space<vmem>>, vector<32x128xbf16>
      %20 = arith.extf %19 : vector<32x128xbf16> to vector<32x128xf32>
      %21 = arith.addf %18, %20 : vector<32x128xf32>
      %cst_18 = arith.constant 0.000000e+00 : f32
      %22 = vector.broadcast %cst_18 : f32 to vector<32x128xf32>
      %23 = arith.maximumf %21, %22 : vector<32x128xf32>
      %24 = arith.truncf %23 : vector<32x128xf32> to vector<32x128xbf16>
      %c0_19 = arith.constant 0 : index
      %c0_20 = arith.constant 0 : index
      %25 = vector.load %arg8[%c0_19, %c0_20] : memref<32x128xbf16, #tpu.memory_space<vmem>>, vector<32x128xbf16>
      tpu.vector_store %arg8[%c0_19, %c0_20], %24 {strides = array<i32>} : memref<32x128xbf16, #tpu.memory_space<vmem>>, vector<32x128xbf16>,
    } else {
    }
    return
  }
  func.func @transform_0(%arg0: i32, %arg1: i32, %arg2: i32) -> (i32, i32) {
    %c0_i32 = arith.constant 0 : i32
    return %arg0, %arg2 : i32, i32
  }
  func.func @transform_1(%arg0: i32, %arg1: i32, %arg2: i32) -> (i32, i32) {
    %c0_i32 = arith.constant 0 : i32
    return %arg2, %arg1 : i32, i32
  }
  func.func @transform_2(%arg0: i32, %arg1: i32, %arg2: i32) -> (i32, i32) {
    %c0_i32 = arith.constant 0 : i32
    %c0_i32_0 = arith.constant 0 : i32
    return %c0_i32, %arg1 : i32, i32
  }
  func.func @transform_3(%arg0: i32, %arg1: i32, %arg2: i32) -> (i32, i32) {
    %c0_i32 = arith.constant 0 : i32
    %c0_i32_0 = arith.constant 0 : i32
    return %c0_i32, %arg1 : i32, i32
  }
  func.func @transform_4(%arg0: i32, %arg1: i32, %arg2: i32) -> (i32, i32) {
    %c0_i32 = arith.constant 0 : i32
    return %arg0, %arg1 : i32, i32
  }
  func.func @transform_5(%arg0: i32, %arg1: i32, %arg2: i32) -> (i32, i32) {
    %c0_i32 = arith.constant 0 : i32
    return %arg0, %arg1 : i32, i32
  }
}

module attributes {stable_mosaic.version = 11 : i64} {
  func.func @_mm_bn_act_kernel(%arg0: i32, %arg1: i32, %arg2: i32, %arg3: memref<32x256xbf16, #tpu.memory_space<vmem>>, %arg4: memref<256x128xbf16, #tpu.memory_space<vmem>>, %arg5: memref<1x128xf32, #tpu.memory_space<vmem>>, %arg6: memref<1x128xf32, #tpu.memory_space<vmem>>, %arg7: memref<32x128xbf16, #tpu.memory_space<vmem>>, %arg8: memref<32x128xf32, #tpu.memory_space<vmem>>) attributes {dimension_semantics = [#tpu.dimension_semantics<parallel>, #tpu.dimension_semantics<parallel>, #tpu.dimension_semantics<arbitrary>], iteration_bounds = array<i64: 1, 1, 1>, scalar_prefetch = 0 : i64, scratch_operands = 1 : i64, tpu.core_type = #tpu.core_type<tc>, window_params = [{transform_indices = @transform_0, window_bounds = array<i64: 32, 256>}, {transform_indices = @transform_1, window_bounds = array<i64: 256, 128>}, {transform_indices = @transform_2, window_bounds = array<i64: 1, 128>}, {transform_indices = @transform_3, window_bounds = array<i64: 1, 128>}, {transform_indices = @transform_4, window_bounds = array<i64: 32, 128>}]} {
    %c0_i32 = arith.constant 0 : i32
    %0 = arith.cmpi eq, %arg2, %c0_i32 : i32
    %1 = arith.extui %0 : i1 to i32
    %c0_i32_0 = arith.constant 0 : i32
    %2 = arith.cmpi ne, %1, %c0_i32_0 : i32
    scf.if %2 {
      %cst_10 = arith.constant 0.000000e+00 : f32
      %12 = vector.broadcast %cst_10 : f32 to vector<32x128xf32>
      %c0_11 = arith.constant 0 : index
      %c0_12 = arith.constant 0 : index
      %13 = vector.load %arg8[%c0_11, %c0_12] : memref<32x128xf32, #tpu.memory_space<vmem>>, vector<32x128xf32>
      tpu.vector_store %arg8[%c0_11, %c0_12], %12 {strides = array<i32>} : memref<32x128xf32, #tpu.memory_space<vmem>>, vector<32x128xf32>,
    } else {
    }
    %c0 = arith.constant 0 : index
    %c0_1 = arith.constant 0 : index
    %3 = vector.load %arg8[%c0, %c0_1] : memref<32x128xf32, #tpu.memory_space<vmem>>, vector<32x128xf32>
    %c0_2 = arith.constant 0 : index
    %c0_3 = arith.constant 0 : index
    %4 = vector.load %arg3[%c0_2, %c0_3] : memref<32x256xbf16, #tpu.memory_space<vmem>>, vector<32x256xbf16>
    %c0_4 = arith.constant 0 : index
    %c0_5 = arith.constant 0 : index
    %5 = vector.load %arg4[%c0_4, %c0_5] : memref<256x128xbf16, #tpu.memory_space<vmem>>, vector<256x128xbf16>
    %cst = arith.constant dense<0.000000e+00> : vector<32x128xf32>
    %6 = tpu.matmul %4, %5, %cst {dimension_numbers = #tpu.dot_dimension_numbers<[1], [0], [0], [1], [0, 0, 1, 1], [], []>} : vector<32x256xbf16>, vector<256x128xbf16>, vector<32x128xf32> -> vector<32x128xf32>
    %7 = arith.addf %3, %6 : vector<32x128xf32>
    %c0_6 = arith.constant 0 : index
    %c0_7 = arith.constant 0 : index
    %8 = vector.load %arg8[%c0_6, %c0_7] : memref<32x128xf32, #tpu.memory_space<vmem>>, vector<32x128xf32>
    tpu.vector_store %arg8[%c0_6, %c0_7], %7 {strides = array<i32>} : memref<32x128xf32, #tpu.memory_space<vmem>>, vector<32x128xf32>,
    %c0_i32_8 = arith.constant 0 : i32
    %9 = arith.cmpi eq, %arg2, %c0_i32_8 : i32
    %10 = arith.extui %9 : i1 to i32
    %c0_i32_9 = arith.constant 0 : i32
    %11 = arith.cmpi ne, %10, %c0_i32_9 : i32
    scf.if %11 {
      %c0_10 = arith.constant 0 : index
      %c0_11 = arith.constant 0 : index
      %12 = vector.load %arg8[%c0_10, %c0_11] : memref<32x128xf32, #tpu.memory_space<vmem>>, vector<32x128xf32>
      %c0_12 = arith.constant 0 : index
      %c0_13 = arith.constant 0 : index
      %13 = vector.load %arg5[%c0_12, %c0_13] : memref<1x128xf32, #tpu.memory_space<vmem>>, vector<1x128xf32>
      %14 = vector.broadcast %13 : vector<1x128xf32> to vector<32x128xf32>
      %15 = arith.mulf %12, %14 : vector<32x128xf32>
      %c0_14 = arith.constant 0 : index
      %c0_15 = arith.constant 0 : index
      %16 = vector.load %arg6[%c0_14, %c0_15] : memref<1x128xf32, #tpu.memory_space<vmem>>, vector<1x128xf32>
      %17 = vector.broadcast %16 : vector<1x128xf32> to vector<32x128xf32>
      %18 = arith.addf %15, %17 : vector<32x128xf32>
      %cst_16 = arith.constant 0.000000e+00 : f32
      %19 = vector.broadcast %cst_16 : f32 to vector<32x128xf32>
      %20 = arith.maximumf %18, %19 : vector<32x128xf32>
      %21 = arith.truncf %20 : vector<32x128xf32> to vector<32x128xbf16>
      %c0_17 = arith.constant 0 : index
      %c0_18 = arith.constant 0 : index
      %22 = vector.load %arg7[%c0_17, %c0_18] : memref<32x128xbf16, #tpu.memory_space<vmem>>, vector<32x128xbf16>
      tpu.vector_store %arg7[%c0_17, %c0_18], %21 {strides = array<i32>} : memref<32x128xbf16, #tpu.memory_space<vmem>>, vector<32x128xbf16>,
    } else {
    }
    return
  }
  func.func @transform_0(%arg0: i32, %arg1: i32, %arg2: i32) -> (i32, i32) {
    %c0_i32 = arith.constant 0 : i32
    return %arg0, %arg2 : i32, i32
  }
  func.func @transform_1(%arg0: i32, %arg1: i32, %arg2: i32) -> (i32, i32) {
    %c0_i32 = arith.constant 0 : i32
    return %arg2, %arg1 : i32, i32
  }
  func.func @transform_2(%arg0: i32, %arg1: i32, %arg2: i32) -> (i32, i32) {
    %c0_i32 = arith.constant 0 : i32
    %c0_i32_0 = arith.constant 0 : i32
    return %c0_i32, %arg1 : i32, i32
  }
  func.func @transform_3(%arg0: i32, %arg1: i32, %arg2: i32) -> (i32, i32) {
    %c0_i32 = arith.constant 0 : i32
    %c0_i32_0 = arith.constant 0 : i32
    return %c0_i32, %arg1 : i32, i32
  }
  func.func @transform_4(%arg0: i32, %arg1: i32, %arg2: i32) -> (i32, i32) {
    %c0_i32 = arith.constant 0 : i32
    return %arg0, %arg1 : i32, i32
  }
}

module attributes {stable_mosaic.version = 11 : i64} {
  func.func @_mm_bn_act_res_kernel(%arg0: i32, %arg1: i32, %arg2: i32, %arg3: memref<32x128xbf16, #tpu.memory_space<vmem>>, %arg4: memref<128x128xbf16, #tpu.memory_space<vmem>>, %arg5: memref<1x128xf32, #tpu.memory_space<vmem>>, %arg6: memref<1x128xf32, #tpu.memory_space<vmem>>, %arg7: memref<32x128xbf16, #tpu.memory_space<vmem>>, %arg8: memref<32x128xbf16, #tpu.memory_space<vmem>>, %arg9: memref<32x128xf32, #tpu.memory_space<vmem>>) attributes {dimension_semantics = [#tpu.dimension_semantics<parallel>, #tpu.dimension_semantics<parallel>, #tpu.dimension_semantics<arbitrary>], iteration_bounds = array<i64: 1, 1, 1>, scalar_prefetch = 0 : i64, scratch_operands = 1 : i64, tpu.core_type = #tpu.core_type<tc>, window_params = [{transform_indices = @transform_0, window_bounds = array<i64: 32, 128>}, {transform_indices = @transform_1, window_bounds = array<i64: 128, 128>}, {transform_indices = @transform_2, window_bounds = array<i64: 1, 128>}, {transform_indices = @transform_3, window_bounds = array<i64: 1, 128>}, {transform_indices = @transform_4, window_bounds = array<i64: 32, 128>}, {transform_indices = @transform_5, window_bounds = array<i64: 32, 128>}]} {
    %c0_i32 = arith.constant 0 : i32
    %0 = arith.cmpi eq, %arg2, %c0_i32 : i32
    %1 = arith.extui %0 : i1 to i32
    %c0_i32_0 = arith.constant 0 : i32
    %2 = arith.cmpi ne, %1, %c0_i32_0 : i32
    scf.if %2 {
      %cst_10 = arith.constant 0.000000e+00 : f32
      %12 = vector.broadcast %cst_10 : f32 to vector<32x128xf32>
      %c0_11 = arith.constant 0 : index
      %c0_12 = arith.constant 0 : index
      %13 = vector.load %arg9[%c0_11, %c0_12] : memref<32x128xf32, #tpu.memory_space<vmem>>, vector<32x128xf32>
      tpu.vector_store %arg9[%c0_11, %c0_12], %12 {strides = array<i32>} : memref<32x128xf32, #tpu.memory_space<vmem>>, vector<32x128xf32>,
    } else {
    }
    %c0 = arith.constant 0 : index
    %c0_1 = arith.constant 0 : index
    %3 = vector.load %arg9[%c0, %c0_1] : memref<32x128xf32, #tpu.memory_space<vmem>>, vector<32x128xf32>
    %c0_2 = arith.constant 0 : index
    %c0_3 = arith.constant 0 : index
    %4 = vector.load %arg3[%c0_2, %c0_3] : memref<32x128xbf16, #tpu.memory_space<vmem>>, vector<32x128xbf16>
    %c0_4 = arith.constant 0 : index
    %c0_5 = arith.constant 0 : index
    %5 = vector.load %arg4[%c0_4, %c0_5] : memref<128x128xbf16, #tpu.memory_space<vmem>>, vector<128x128xbf16>
    %cst = arith.constant dense<0.000000e+00> : vector<32x128xf32>
    %6 = tpu.matmul %4, %5, %cst {dimension_numbers = #tpu.dot_dimension_numbers<[1], [0], [0], [1], [0, 0, 1, 1], [], []>} : vector<32x128xbf16>, vector<128x128xbf16>, vector<32x128xf32> -> vector<32x128xf32>
    %7 = arith.addf %3, %6 : vector<32x128xf32>
    %c0_6 = arith.constant 0 : index
    %c0_7 = arith.constant 0 : index
    %8 = vector.load %arg9[%c0_6, %c0_7] : memref<32x128xf32, #tpu.memory_space<vmem>>, vector<32x128xf32>
    tpu.vector_store %arg9[%c0_6, %c0_7], %7 {strides = array<i32>} : memref<32x128xf32, #tpu.memory_space<vmem>>, vector<32x128xf32>,
    %c0_i32_8 = arith.constant 0 : i32
    %9 = arith.cmpi eq, %arg2, %c0_i32_8 : i32
    %10 = arith.extui %9 : i1 to i32
    %c0_i32_9 = arith.constant 0 : i32
    %11 = arith.cmpi ne, %10, %c0_i32_9 : i32
    scf.if %11 {
      %c0_10 = arith.constant 0 : index
      %c0_11 = arith.constant 0 : index
      %12 = vector.load %arg9[%c0_10, %c0_11] : memref<32x128xf32, #tpu.memory_space<vmem>>, vector<32x128xf32>
      %c0_12 = arith.constant 0 : index
      %c0_13 = arith.constant 0 : index
      %13 = vector.load %arg5[%c0_12, %c0_13] : memref<1x128xf32, #tpu.memory_space<vmem>>, vector<1x128xf32>
      %14 = vector.broadcast %13 : vector<1x128xf32> to vector<32x128xf32>
      %15 = arith.mulf %12, %14 : vector<32x128xf32>
      %c0_14 = arith.constant 0 : index
      %c0_15 = arith.constant 0 : index
      %16 = vector.load %arg6[%c0_14, %c0_15] : memref<1x128xf32, #tpu.memory_space<vmem>>, vector<1x128xf32>
      %17 = vector.broadcast %16 : vector<1x128xf32> to vector<32x128xf32>
      %18 = arith.addf %15, %17 : vector<32x128xf32>
      %c0_16 = arith.constant 0 : index
      %c0_17 = arith.constant 0 : index
      %19 = vector.load %arg7[%c0_16, %c0_17] : memref<32x128xbf16, #tpu.memory_space<vmem>>, vector<32x128xbf16>
      %20 = arith.extf %19 : vector<32x128xbf16> to vector<32x128xf32>
      %21 = arith.addf %18, %20 : vector<32x128xf32>
      %cst_18 = arith.constant 0.000000e+00 : f32
      %22 = vector.broadcast %cst_18 : f32 to vector<32x128xf32>
      %23 = arith.maximumf %21, %22 : vector<32x128xf32>
      %24 = arith.truncf %23 : vector<32x128xf32> to vector<32x128xbf16>
      %c0_19 = arith.constant 0 : index
      %c0_20 = arith.constant 0 : index
      %25 = vector.load %arg8[%c0_19, %c0_20] : memref<32x128xbf16, #tpu.memory_space<vmem>>, vector<32x128xbf16>
      tpu.vector_store %arg8[%c0_19, %c0_20], %24 {strides = array<i32>} : memref<32x128xbf16, #tpu.memory_space<vmem>>, vector<32x128xbf16>,
    } else {
    }
    return
  }
  func.func @transform_0(%arg0: i32, %arg1: i32, %arg2: i32) -> (i32, i32) {
    %c0_i32 = arith.constant 0 : i32
    return %arg0, %arg2 : i32, i32
  }
  func.func @transform_1(%arg0: i32, %arg1: i32, %arg2: i32) -> (i32, i32) {
    %c0_i32 = arith.constant 0 : i32
    return %arg2, %arg1 : i32, i32
  }
  func.func @transform_2(%arg0: i32, %arg1: i32, %arg2: i32) -> (i32, i32) {
    %c0_i32 = arith.constant 0 : i32
    %c0_i32_0 = arith.constant 0 : i32
    return %c0_i32, %arg1 : i32, i32
  }
  func.func @transform_3(%arg0: i32, %arg1: i32, %arg2: i32) -> (i32, i32) {
    %c0_i32 = arith.constant 0 : i32
    %c0_i32_0 = arith.constant 0 : i32
    return %c0_i32, %arg1 : i32, i32
  }
  func.func @transform_4(%arg0: i32, %arg1: i32, %arg2: i32) -> (i32, i32) {
    %c0_i32 = arith.constant 0 : i32
    return %arg0, %arg1 : i32, i32
  }
  func.func @transform_5(%arg0: i32, %arg1: i32, %arg2: i32) -> (i32, i32) {
    %c0_i32 = arith.constant 0 : i32
    return %arg0, %arg1 : i32, i32
  }
}

module attributes {stable_mosaic.version = 11 : i64} {
  func.func @_mm_bn_act_kernel(%arg0: i32, %arg1: i32, %arg2: i32, %arg3: memref<32x128xbf16, #tpu.memory_space<vmem>>, %arg4: memref<128x128xbf16, #tpu.memory_space<vmem>>, %arg5: memref<1x128xf32, #tpu.memory_space<vmem>>, %arg6: memref<1x128xf32, #tpu.memory_space<vmem>>, %arg7: memref<32x128xbf16, #tpu.memory_space<vmem>>, %arg8: memref<32x128xf32, #tpu.memory_space<vmem>>) attributes {dimension_semantics = [#tpu.dimension_semantics<parallel>, #tpu.dimension_semantics<parallel>, #tpu.dimension_semantics<arbitrary>], iteration_bounds = array<i64: 1, 1, 1>, scalar_prefetch = 0 : i64, scratch_operands = 1 : i64, tpu.core_type = #tpu.core_type<tc>, window_params = [{transform_indices = @transform_0, window_bounds = array<i64: 32, 128>}, {transform_indices = @transform_1, window_bounds = array<i64: 128, 128>}, {transform_indices = @transform_2, window_bounds = array<i64: 1, 128>}, {transform_indices = @transform_3, window_bounds = array<i64: 1, 128>}, {transform_indices = @transform_4, window_bounds = array<i64: 32, 128>}]} {
    %c0_i32 = arith.constant 0 : i32
    %0 = arith.cmpi eq, %arg2, %c0_i32 : i32
    %1 = arith.extui %0 : i1 to i32
    %c0_i32_0 = arith.constant 0 : i32
    %2 = arith.cmpi ne, %1, %c0_i32_0 : i32
    scf.if %2 {
      %cst_10 = arith.constant 0.000000e+00 : f32
      %12 = vector.broadcast %cst_10 : f32 to vector<32x128xf32>
      %c0_11 = arith.constant 0 : index
      %c0_12 = arith.constant 0 : index
      %13 = vector.load %arg8[%c0_11, %c0_12] : memref<32x128xf32, #tpu.memory_space<vmem>>, vector<32x128xf32>
      tpu.vector_store %arg8[%c0_11, %c0_12], %12 {strides = array<i32>} : memref<32x128xf32, #tpu.memory_space<vmem>>, vector<32x128xf32>,
    } else {
    }
    %c0 = arith.constant 0 : index
    %c0_1 = arith.constant 0 : index
    %3 = vector.load %arg8[%c0, %c0_1] : memref<32x128xf32, #tpu.memory_space<vmem>>, vector<32x128xf32>
    %c0_2 = arith.constant 0 : index
    %c0_3 = arith.constant 0 : index
    %4 = vector.load %arg3[%c0_2, %c0_3] : memref<32x128xbf16, #tpu.memory_space<vmem>>, vector<32x128xbf16>
    %c0_4 = arith.constant 0 : index
    %c0_5 = arith.constant 0 : index
    %5 = vector.load %arg4[%c0_4, %c0_5] : memref<128x128xbf16, #tpu.memory_space<vmem>>, vector<128x128xbf16>
    %cst = arith.constant dense<0.000000e+00> : vector<32x128xf32>
    %6 = tpu.matmul %4, %5, %cst {dimension_numbers = #tpu.dot_dimension_numbers<[1], [0], [0], [1], [0, 0, 1, 1], [], []>} : vector<32x128xbf16>, vector<128x128xbf16>, vector<32x128xf32> -> vector<32x128xf32>
    %7 = arith.addf %3, %6 : vector<32x128xf32>
    %c0_6 = arith.constant 0 : index
    %c0_7 = arith.constant 0 : index
    %8 = vector.load %arg8[%c0_6, %c0_7] : memref<32x128xf32, #tpu.memory_space<vmem>>, vector<32x128xf32>
    tpu.vector_store %arg8[%c0_6, %c0_7], %7 {strides = array<i32>} : memref<32x128xf32, #tpu.memory_space<vmem>>, vector<32x128xf32>,
    %c0_i32_8 = arith.constant 0 : i32
    %9 = arith.cmpi eq, %arg2, %c0_i32_8 : i32
    %10 = arith.extui %9 : i1 to i32
    %c0_i32_9 = arith.constant 0 : i32
    %11 = arith.cmpi ne, %10, %c0_i32_9 : i32
    scf.if %11 {
      %c0_10 = arith.constant 0 : index
      %c0_11 = arith.constant 0 : index
      %12 = vector.load %arg8[%c0_10, %c0_11] : memref<32x128xf32, #tpu.memory_space<vmem>>, vector<32x128xf32>
      %c0_12 = arith.constant 0 : index
      %c0_13 = arith.constant 0 : index
      %13 = vector.load %arg5[%c0_12, %c0_13] : memref<1x128xf32, #tpu.memory_space<vmem>>, vector<1x128xf32>
      %14 = vector.broadcast %13 : vector<1x128xf32> to vector<32x128xf32>
      %15 = arith.mulf %12, %14 : vector<32x128xf32>
      %c0_14 = arith.constant 0 : index
      %c0_15 = arith.constant 0 : index
      %16 = vector.load %arg6[%c0_14, %c0_15] : memref<1x128xf32, #tpu.memory_space<vmem>>, vector<1x128xf32>
      %17 = vector.broadcast %16 : vector<1x128xf32> to vector<32x128xf32>
      %18 = arith.addf %15, %17 : vector<32x128xf32>
      %cst_16 = arith.constant 0.000000e+00 : f32
      %19 = vector.broadcast %cst_16 : f32 to vector<32x128xf32>
      %20 = arith.maximumf %18, %19 : vector<32x128xf32>
      %21 = arith.truncf %20 : vector<32x128xf32> to vector<32x128xbf16>
      %c0_17 = arith.constant 0 : index
      %c0_18 = arith.constant 0 : index
      %22 = vector.load %arg7[%c0_17, %c0_18] : memref<32x128xbf16, #tpu.memory_space<vmem>>, vector<32x128xbf16>
      tpu.vector_store %arg7[%c0_17, %c0_18], %21 {strides = array<i32>} : memref<32x128xbf16, #tpu.memory_space<vmem>>, vector<32x128xbf16>,
    } else {
    }
    return
  }
  func.func @transform_0(%arg0: i32, %arg1: i32, %arg2: i32) -> (i32, i32) {
    %c0_i32 = arith.constant 0 : i32
    return %arg0, %arg2 : i32, i32
  }
  func.func @transform_1(%arg0: i32, %arg1: i32, %arg2: i32) -> (i32, i32) {
    %c0_i32 = arith.constant 0 : i32
    return %arg2, %arg1 : i32, i32
  }
  func.func @transform_2(%arg0: i32, %arg1: i32, %arg2: i32) -> (i32, i32) {
    %c0_i32 = arith.constant 0 : i32
    %c0_i32_0 = arith.constant 0 : i32
    return %c0_i32, %arg1 : i32, i32
  }
  func.func @transform_3(%arg0: i32, %arg1: i32, %arg2: i32) -> (i32, i32) {
    %c0_i32 = arith.constant 0 : i32
    %c0_i32_0 = arith.constant 0 : i32
    return %c0_i32, %arg1 : i32, i32
  }
  func.func @transform_4(%arg0: i32, %arg1: i32, %arg2: i32) -> (i32, i32) {
    %c0_i32 = arith.constant 0 : i32
    return %arg0, %arg1 : i32, i32
  }
}

module attributes {stable_mosaic.version = 11 : i64} {
  func.func @_mm_bn_act_kernel(%arg0: i32, %arg1: i32, %arg2: i32, %arg3: memref<128x128xbf16, #tpu.memory_space<vmem>>, %arg4: memref<128x128xbf16, #tpu.memory_space<vmem>>, %arg5: memref<1x128xf32, #tpu.memory_space<vmem>>, %arg6: memref<1x128xf32, #tpu.memory_space<vmem>>, %arg7: memref<128x128xbf16, #tpu.memory_space<vmem>>, %arg8: memref<128x128xf32, #tpu.memory_space<vmem>>) attributes {dimension_semantics = [#tpu.dimension_semantics<parallel>, #tpu.dimension_semantics<parallel>, #tpu.dimension_semantics<arbitrary>], iteration_bounds = array<i64: 1, 1, 1>, scalar_prefetch = 0 : i64, scratch_operands = 1 : i64, tpu.core_type = #tpu.core_type<tc>, window_params = [{transform_indices = @transform_0, window_bounds = array<i64: 128, 128>}, {transform_indices = @transform_1, window_bounds = array<i64: 128, 128>}, {transform_indices = @transform_2, window_bounds = array<i64: 1, 128>}, {transform_indices = @transform_3, window_bounds = array<i64: 1, 128>}, {transform_indices = @transform_4, window_bounds = array<i64: 128, 128>}]} {
    %c0_i32 = arith.constant 0 : i32
    %0 = arith.cmpi eq, %arg2, %c0_i32 : i32
    %1 = arith.extui %0 : i1 to i32
    %c0_i32_0 = arith.constant 0 : i32
    %2 = arith.cmpi ne, %1, %c0_i32_0 : i32
    scf.if %2 {
      %cst_10 = arith.constant 0.000000e+00 : f32
      %12 = vector.broadcast %cst_10 : f32 to vector<128x128xf32>
      %c0_11 = arith.constant 0 : index
      %c0_12 = arith.constant 0 : index
      %13 = vector.load %arg8[%c0_11, %c0_12] : memref<128x128xf32, #tpu.memory_space<vmem>>, vector<128x128xf32>
      tpu.vector_store %arg8[%c0_11, %c0_12], %12 {strides = array<i32>} : memref<128x128xf32, #tpu.memory_space<vmem>>, vector<128x128xf32>,
    } else {
    }
    %c0 = arith.constant 0 : index
    %c0_1 = arith.constant 0 : index
    %3 = vector.load %arg8[%c0, %c0_1] : memref<128x128xf32, #tpu.memory_space<vmem>>, vector<128x128xf32>
    %c0_2 = arith.constant 0 : index
    %c0_3 = arith.constant 0 : index
    %4 = vector.load %arg3[%c0_2, %c0_3] : memref<128x128xbf16, #tpu.memory_space<vmem>>, vector<128x128xbf16>
    %c0_4 = arith.constant 0 : index
    %c0_5 = arith.constant 0 : index
    %5 = vector.load %arg4[%c0_4, %c0_5] : memref<128x128xbf16, #tpu.memory_space<vmem>>, vector<128x128xbf16>
    %cst = arith.constant dense<0.000000e+00> : vector<128x128xf32>
    %6 = tpu.matmul %4, %5, %cst {dimension_numbers = #tpu.dot_dimension_numbers<[1], [0], [0], [1], [0, 0, 1, 1], [], []>} : vector<128x128xbf16>, vector<128x128xbf16>, vector<128x128xf32> -> vector<128x128xf32>
    %7 = arith.addf %3, %6 : vector<128x128xf32>
    %c0_6 = arith.constant 0 : index
    %c0_7 = arith.constant 0 : index
    %8 = vector.load %arg8[%c0_6, %c0_7] : memref<128x128xf32, #tpu.memory_space<vmem>>, vector<128x128xf32>
    tpu.vector_store %arg8[%c0_6, %c0_7], %7 {strides = array<i32>} : memref<128x128xf32, #tpu.memory_space<vmem>>, vector<128x128xf32>,
    %c0_i32_8 = arith.constant 0 : i32
    %9 = arith.cmpi eq, %arg2, %c0_i32_8 : i32
    %10 = arith.extui %9 : i1 to i32
    %c0_i32_9 = arith.constant 0 : i32
    %11 = arith.cmpi ne, %10, %c0_i32_9 : i32
    scf.if %11 {
      %c0_10 = arith.constant 0 : index
      %c0_11 = arith.constant 0 : index
      %12 = vector.load %arg8[%c0_10, %c0_11] : memref<128x128xf32, #tpu.memory_space<vmem>>, vector<128x128xf32>
      %c0_12 = arith.constant 0 : index
      %c0_13 = arith.constant 0 : index
      %13 = vector.load %arg5[%c0_12, %c0_13] : memref<1x128xf32, #tpu.memory_space<vmem>>, vector<1x128xf32>
      %14 = vector.broadcast %13 : vector<1x128xf32> to vector<128x128xf32>
      %15 = arith.mulf %12, %14 : vector<128x128xf32>
      %c0_14 = arith.constant 0 : index
      %c0_15 = arith.constant 0 : index
      %16 = vector.load %arg6[%c0_14, %c0_15] : memref<1x128xf32, #tpu.memory_space<vmem>>, vector<1x128xf32>
      %17 = vector.broadcast %16 : vector<1x128xf32> to vector<128x128xf32>
      %18 = arith.addf %15, %17 : vector<128x128xf32>
      %cst_16 = arith.constant 0.000000e+00 : f32
      %19 = vector.broadcast %cst_16 : f32 to vector<128x128xf32>
      %20 = arith.maximumf %18, %19 : vector<128x128xf32>
      %21 = arith.truncf %20 : vector<128x128xf32> to vector<128x128xbf16>
      %c0_17 = arith.constant 0 : index
      %c0_18 = arith.constant 0 : index
      %22 = vector.load %arg7[%c0_17, %c0_18] : memref<128x128xbf16, #tpu.memory_space<vmem>>, vector<128x128xbf16>
      tpu.vector_store %arg7[%c0_17, %c0_18], %21 {strides = array<i32>} : memref<128x128xbf16, #tpu.memory_space<vmem>>, vector<128x128xbf16>,
    } else {
    }
    return
  }
  func.func @transform_0(%arg0: i32, %arg1: i32, %arg2: i32) -> (i32, i32) {
    %c0_i32 = arith.constant 0 : i32
    return %arg0, %arg2 : i32, i32
  }
  func.func @transform_1(%arg0: i32, %arg1: i32, %arg2: i32) -> (i32, i32) {
    %c0_i32 = arith.constant 0 : i32
    return %arg2, %arg1 : i32, i32
  }
  func.func @transform_2(%arg0: i32, %arg1: i32, %arg2: i32) -> (i32, i32) {
    %c0_i32 = arith.constant 0 : i32
    %c0_i32_0 = arith.constant 0 : i32
    return %c0_i32, %arg1 : i32, i32
  }
  func.func @transform_3(%arg0: i32, %arg1: i32, %arg2: i32) -> (i32, i32) {
    %c0_i32 = arith.constant 0 : i32
    %c0_i32_0 = arith.constant 0 : i32
    return %c0_i32, %arg1 : i32, i32
  }
  func.func @transform_4(%arg0: i32, %arg1: i32, %arg2: i32) -> (i32, i32) {
    %c0_i32 = arith.constant 0 : i32
    return %arg0, %arg1 : i32, i32
  }
}

module attributes {stable_mosaic.version = 11 : i64} {
  func.func @_mm_bn_act_kernel(%arg0: i32, %arg1: i32, %arg2: i32, %arg3: memref<512x128xbf16, #tpu.memory_space<vmem>>, %arg4: memref<128x128xbf16, #tpu.memory_space<vmem>>, %arg5: memref<1x128xf32, #tpu.memory_space<vmem>>, %arg6: memref<1x128xf32, #tpu.memory_space<vmem>>, %arg7: memref<512x128xbf16, #tpu.memory_space<vmem>>, %arg8: memref<512x128xf32, #tpu.memory_space<vmem>>) attributes {dimension_semantics = [#tpu.dimension_semantics<parallel>, #tpu.dimension_semantics<parallel>, #tpu.dimension_semantics<arbitrary>], iteration_bounds = array<i64: 1, 1, 1>, scalar_prefetch = 0 : i64, scratch_operands = 1 : i64, tpu.core_type = #tpu.core_type<tc>, window_params = [{transform_indices = @transform_0, window_bounds = array<i64: 512, 128>}, {transform_indices = @transform_1, window_bounds = array<i64: 128, 128>}, {transform_indices = @transform_2, window_bounds = array<i64: 1, 128>}, {transform_indices = @transform_3, window_bounds = array<i64: 1, 128>}, {transform_indices = @transform_4, window_bounds = array<i64: 512, 128>}]} {
    %c0_i32 = arith.constant 0 : i32
    %0 = arith.cmpi eq, %arg2, %c0_i32 : i32
    %1 = arith.extui %0 : i1 to i32
    %c0_i32_0 = arith.constant 0 : i32
    %2 = arith.cmpi ne, %1, %c0_i32_0 : i32
    scf.if %2 {
      %cst_10 = arith.constant 0.000000e+00 : f32
      %12 = vector.broadcast %cst_10 : f32 to vector<512x128xf32>
      %c0_11 = arith.constant 0 : index
      %c0_12 = arith.constant 0 : index
      %13 = vector.load %arg8[%c0_11, %c0_12] : memref<512x128xf32, #tpu.memory_space<vmem>>, vector<512x128xf32>
      tpu.vector_store %arg8[%c0_11, %c0_12], %12 {strides = array<i32>} : memref<512x128xf32, #tpu.memory_space<vmem>>, vector<512x128xf32>,
    } else {
    }
    %c0 = arith.constant 0 : index
    %c0_1 = arith.constant 0 : index
    %3 = vector.load %arg8[%c0, %c0_1] : memref<512x128xf32, #tpu.memory_space<vmem>>, vector<512x128xf32>
    %c0_2 = arith.constant 0 : index
    %c0_3 = arith.constant 0 : index
    %4 = vector.load %arg3[%c0_2, %c0_3] : memref<512x128xbf16, #tpu.memory_space<vmem>>, vector<512x128xbf16>
    %c0_4 = arith.constant 0 : index
    %c0_5 = arith.constant 0 : index
    %5 = vector.load %arg4[%c0_4, %c0_5] : memref<128x128xbf16, #tpu.memory_space<vmem>>, vector<128x128xbf16>
    %cst = arith.constant dense<0.000000e+00> : vector<512x128xf32>
    %6 = tpu.matmul %4, %5, %cst {dimension_numbers = #tpu.dot_dimension_numbers<[1], [0], [0], [1], [0, 0, 1, 1], [], []>} : vector<512x128xbf16>, vector<128x128xbf16>, vector<512x128xf32> -> vector<512x128xf32>
    %7 = arith.addf %3, %6 : vector<512x128xf32>
    %c0_6 = arith.constant 0 : index
    %c0_7 = arith.constant 0 : index
    %8 = vector.load %arg8[%c0_6, %c0_7] : memref<512x128xf32, #tpu.memory_space<vmem>>, vector<512x128xf32>
    tpu.vector_store %arg8[%c0_6, %c0_7], %7 {strides = array<i32>} : memref<512x128xf32, #tpu.memory_space<vmem>>, vector<512x128xf32>,
    %c0_i32_8 = arith.constant 0 : i32
    %9 = arith.cmpi eq, %arg2, %c0_i32_8 : i32
    %10 = arith.extui %9 : i1 to i32
    %c0_i32_9 = arith.constant 0 : i32
    %11 = arith.cmpi ne, %10, %c0_i32_9 : i32
    scf.if %11 {
      %c0_10 = arith.constant 0 : index
      %c0_11 = arith.constant 0 : index
      %12 = vector.load %arg8[%c0_10, %c0_11] : memref<512x128xf32, #tpu.memory_space<vmem>>, vector<512x128xf32>
      %c0_12 = arith.constant 0 : index
      %c0_13 = arith.constant 0 : index
      %13 = vector.load %arg5[%c0_12, %c0_13] : memref<1x128xf32, #tpu.memory_space<vmem>>, vector<1x128xf32>
      %14 = vector.broadcast %13 : vector<1x128xf32> to vector<512x128xf32>
      %15 = arith.mulf %12, %14 : vector<512x128xf32>
      %c0_14 = arith.constant 0 : index
      %c0_15 = arith.constant 0 : index
      %16 = vector.load %arg6[%c0_14, %c0_15] : memref<1x128xf32, #tpu.memory_space<vmem>>, vector<1x128xf32>
      %17 = vector.broadcast %16 : vector<1x128xf32> to vector<512x128xf32>
      %18 = arith.addf %15, %17 : vector<512x128xf32>
      %cst_16 = arith.constant 0.000000e+00 : f32
      %19 = vector.broadcast %cst_16 : f32 to vector<512x128xf32>
      %20 = arith.maximumf %18, %19 : vector<512x128xf32>
      %21 = arith.truncf %20 : vector<512x128xf32> to vector<512x128xbf16>
      %c0_17 = arith.constant 0 : index
      %c0_18 = arith.constant 0 : index
      %22 = vector.load %arg7[%c0_17, %c0_18] : memref<512x128xbf16, #tpu.memory_space<vmem>>, vector<512x128xbf16>
      tpu.vector_store %arg7[%c0_17, %c0_18], %21 {strides = array<i32>} : memref<512x128xbf16, #tpu.memory_space<vmem>>, vector<512x128xbf16>,
    } else {
    }
    return
  }
  func.func @transform_0(%arg0: i32, %arg1: i32, %arg2: i32) -> (i32, i32) {
    %c0_i32 = arith.constant 0 : i32
    return %arg0, %arg2 : i32, i32
  }
  func.func @transform_1(%arg0: i32, %arg1: i32, %arg2: i32) -> (i32, i32) {
    %c0_i32 = arith.constant 0 : i32
    return %arg2, %arg1 : i32, i32
  }
  func.func @transform_2(%arg0: i32, %arg1: i32, %arg2: i32) -> (i32, i32) {
    %c0_i32 = arith.constant 0 : i32
    %c0_i32_0 = arith.constant 0 : i32
    return %c0_i32, %arg1 : i32, i32
  }
  func.func @transform_3(%arg0: i32, %arg1: i32, %arg2: i32) -> (i32, i32) {
    %c0_i32 = arith.constant 0 : i32
    %c0_i32_0 = arith.constant 0 : i32
    return %c0_i32, %arg1 : i32, i32
  }
  func.func @transform_4(%arg0: i32, %arg1: i32, %arg2: i32) -> (i32, i32) {
    %c0_i32 = arith.constant 0 : i32
    return %arg0, %arg1 : i32, i32
  }
}

module attributes {stable_mosaic.version = 11 : i64} {
  func.func @_mm_bn_act_kernel(%arg0: i32, %arg1: i32, %arg2: i32, %arg3: memref<512x128xbf16, #tpu.memory_space<vmem>>, %arg4: memref<128x128xbf16, #tpu.memory_space<vmem>>, %arg5: memref<1x128xf32, #tpu.memory_space<vmem>>, %arg6: memref<1x128xf32, #tpu.memory_space<vmem>>, %arg7: memref<512x128xbf16, #tpu.memory_space<vmem>>, %arg8: memref<512x128xf32, #tpu.memory_space<vmem>>) attributes {dimension_semantics = [#tpu.dimension_semantics<parallel>, #tpu.dimension_semantics<parallel>, #tpu.dimension_semantics<arbitrary>], iteration_bounds = array<i64: 4, 1, 1>, scalar_prefetch = 0 : i64, scratch_operands = 1 : i64, tpu.core_type = #tpu.core_type<tc>, window_params = [{transform_indices = @transform_0, window_bounds = array<i64: 512, 128>}, {transform_indices = @transform_1, window_bounds = array<i64: 128, 128>}, {transform_indices = @transform_2, window_bounds = array<i64: 1, 128>}, {transform_indices = @transform_3, window_bounds = array<i64: 1, 128>}, {transform_indices = @transform_4, window_bounds = array<i64: 512, 128>}]} {
    %c0_i32 = arith.constant 0 : i32
    %0 = arith.cmpi eq, %arg2, %c0_i32 : i32
    %1 = arith.extui %0 : i1 to i32
    %c0_i32_0 = arith.constant 0 : i32
    %2 = arith.cmpi ne, %1, %c0_i32_0 : i32
    scf.if %2 {
      %cst_10 = arith.constant 0.000000e+00 : f32
      %12 = vector.broadcast %cst_10 : f32 to vector<512x128xf32>
      %c0_11 = arith.constant 0 : index
      %c0_12 = arith.constant 0 : index
      %13 = vector.load %arg8[%c0_11, %c0_12] : memref<512x128xf32, #tpu.memory_space<vmem>>, vector<512x128xf32>
      tpu.vector_store %arg8[%c0_11, %c0_12], %12 {strides = array<i32>} : memref<512x128xf32, #tpu.memory_space<vmem>>, vector<512x128xf32>,
    } else {
    }
    %c0 = arith.constant 0 : index
    %c0_1 = arith.constant 0 : index
    %3 = vector.load %arg8[%c0, %c0_1] : memref<512x128xf32, #tpu.memory_space<vmem>>, vector<512x128xf32>
    %c0_2 = arith.constant 0 : index
    %c0_3 = arith.constant 0 : index
    %4 = vector.load %arg3[%c0_2, %c0_3] : memref<512x128xbf16, #tpu.memory_space<vmem>>, vector<512x128xbf16>
    %c0_4 = arith.constant 0 : index
    %c0_5 = arith.constant 0 : index
    %5 = vector.load %arg4[%c0_4, %c0_5] : memref<128x128xbf16, #tpu.memory_space<vmem>>, vector<128x128xbf16>
    %cst = arith.constant dense<0.000000e+00> : vector<512x128xf32>
    %6 = tpu.matmul %4, %5, %cst {dimension_numbers = #tpu.dot_dimension_numbers<[1], [0], [0], [1], [0, 0, 1, 1], [], []>} : vector<512x128xbf16>, vector<128x128xbf16>, vector<512x128xf32> -> vector<512x128xf32>
    %7 = arith.addf %3, %6 : vector<512x128xf32>
    %c0_6 = arith.constant 0 : index
    %c0_7 = arith.constant 0 : index
    %8 = vector.load %arg8[%c0_6, %c0_7] : memref<512x128xf32, #tpu.memory_space<vmem>>, vector<512x128xf32>
    tpu.vector_store %arg8[%c0_6, %c0_7], %7 {strides = array<i32>} : memref<512x128xf32, #tpu.memory_space<vmem>>, vector<512x128xf32>,
    %c0_i32_8 = arith.constant 0 : i32
    %9 = arith.cmpi eq, %arg2, %c0_i32_8 : i32
    %10 = arith.extui %9 : i1 to i32
    %c0_i32_9 = arith.constant 0 : i32
    %11 = arith.cmpi ne, %10, %c0_i32_9 : i32
    scf.if %11 {
      %c0_10 = arith.constant 0 : index
      %c0_11 = arith.constant 0 : index
      %12 = vector.load %arg8[%c0_10, %c0_11] : memref<512x128xf32, #tpu.memory_space<vmem>>, vector<512x128xf32>
      %c0_12 = arith.constant 0 : index
      %c0_13 = arith.constant 0 : index
      %13 = vector.load %arg5[%c0_12, %c0_13] : memref<1x128xf32, #tpu.memory_space<vmem>>, vector<1x128xf32>
      %14 = vector.broadcast %13 : vector<1x128xf32> to vector<512x128xf32>
      %15 = arith.mulf %12, %14 : vector<512x128xf32>
      %c0_14 = arith.constant 0 : index
      %c0_15 = arith.constant 0 : index
      %16 = vector.load %arg6[%c0_14, %c0_15] : memref<1x128xf32, #tpu.memory_space<vmem>>, vector<1x128xf32>
      %17 = vector.broadcast %16 : vector<1x128xf32> to vector<512x128xf32>
      %18 = arith.addf %15, %17 : vector<512x128xf32>
      %cst_16 = arith.constant 0.000000e+00 : f32
      %19 = vector.broadcast %cst_16 : f32 to vector<512x128xf32>
      %20 = arith.maximumf %18, %19 : vector<512x128xf32>
      %21 = arith.truncf %20 : vector<512x128xf32> to vector<512x128xbf16>
      %c0_17 = arith.constant 0 : index
      %c0_18 = arith.constant 0 : index
      %22 = vector.load %arg7[%c0_17, %c0_18] : memref<512x128xbf16, #tpu.memory_space<vmem>>, vector<512x128xbf16>
      tpu.vector_store %arg7[%c0_17, %c0_18], %21 {strides = array<i32>} : memref<512x128xbf16, #tpu.memory_space<vmem>>, vector<512x128xbf16>,
    } else {
    }
    return
  }
  func.func @transform_0(%arg0: i32, %arg1: i32, %arg2: i32) -> (i32, i32) {
    %c0_i32 = arith.constant 0 : i32
    return %arg0, %arg2 : i32, i32
  }
  func.func @transform_1(%arg0: i32, %arg1: i32, %arg2: i32) -> (i32, i32) {
    %c0_i32 = arith.constant 0 : i32
    return %arg2, %arg1 : i32, i32
  }
  func.func @transform_2(%arg0: i32, %arg1: i32, %arg2: i32) -> (i32, i32) {
    %c0_i32 = arith.constant 0 : i32
    %c0_i32_0 = arith.constant 0 : i32
    return %c0_i32, %arg1 : i32, i32
  }
  func.func @transform_3(%arg0: i32, %arg1: i32, %arg2: i32) -> (i32, i32) {
    %c0_i32 = arith.constant 0 : i32
    %c0_i32_0 = arith.constant 0 : i32
    return %c0_i32, %arg1 : i32, i32
  }
  func.func @transform_4(%arg0: i32, %arg1: i32, %arg2: i32) -> (i32, i32) {
    %c0_i32 = arith.constant 0 : i32
    return %arg0, %arg1 : i32, i32
  }
}

module attributes {stable_mosaic.version = 11 : i64} {
  func.func @_mm_bn_act_kernel(%arg0: i32, %arg1: i32, %arg2: i32, %arg3: memref<512x128xbf16, #tpu.memory_space<vmem>>, %arg4: memref<128x128xbf16, #tpu.memory_space<vmem>>, %arg5: memref<1x128xf32, #tpu.memory_space<vmem>>, %arg6: memref<1x128xf32, #tpu.memory_space<vmem>>, %arg7: memref<512x128xf32, #tpu.memory_space<vmem>>, %arg8: memref<512x128xf32, #tpu.memory_space<vmem>>) attributes {dimension_semantics = [#tpu.dimension_semantics<parallel>, #tpu.dimension_semantics<parallel>, #tpu.dimension_semantics<arbitrary>], iteration_bounds = array<i64: 16, 1, 1>, scalar_prefetch = 0 : i64, scratch_operands = 1 : i64, tpu.core_type = #tpu.core_type<tc>, window_params = [{transform_indices = @transform_0, window_bounds = array<i64: 512, 128>}, {transform_indices = @transform_1, window_bounds = array<i64: 128, 128>}, {transform_indices = @transform_2, window_bounds = array<i64: 1, 128>}, {transform_indices = @transform_3, window_bounds = array<i64: 1, 128>}, {transform_indices = @transform_4, window_bounds = array<i64: 512, 128>}]} {
    %c0_i32 = arith.constant 0 : i32
    %0 = arith.cmpi eq, %arg2, %c0_i32 : i32
    %1 = arith.extui %0 : i1 to i32
    %c0_i32_0 = arith.constant 0 : i32
    %2 = arith.cmpi ne, %1, %c0_i32_0 : i32
    scf.if %2 {
      %cst_10 = arith.constant 0.000000e+00 : f32
      %12 = vector.broadcast %cst_10 : f32 to vector<512x128xf32>
      %c0_11 = arith.constant 0 : index
      %c0_12 = arith.constant 0 : index
      %13 = vector.load %arg8[%c0_11, %c0_12] : memref<512x128xf32, #tpu.memory_space<vmem>>, vector<512x128xf32>
      tpu.vector_store %arg8[%c0_11, %c0_12], %12 {strides = array<i32>} : memref<512x128xf32, #tpu.memory_space<vmem>>, vector<512x128xf32>,
    } else {
    }
    %c0 = arith.constant 0 : index
    %c0_1 = arith.constant 0 : index
    %3 = vector.load %arg8[%c0, %c0_1] : memref<512x128xf32, #tpu.memory_space<vmem>>, vector<512x128xf32>
    %c0_2 = arith.constant 0 : index
    %c0_3 = arith.constant 0 : index
    %4 = vector.load %arg3[%c0_2, %c0_3] : memref<512x128xbf16, #tpu.memory_space<vmem>>, vector<512x128xbf16>
    %c0_4 = arith.constant 0 : index
    %c0_5 = arith.constant 0 : index
    %5 = vector.load %arg4[%c0_4, %c0_5] : memref<128x128xbf16, #tpu.memory_space<vmem>>, vector<128x128xbf16>
    %cst = arith.constant dense<0.000000e+00> : vector<512x128xf32>
    %6 = tpu.matmul %4, %5, %cst {dimension_numbers = #tpu.dot_dimension_numbers<[1], [0], [0], [1], [0, 0, 1, 1], [], []>} : vector<512x128xbf16>, vector<128x128xbf16>, vector<512x128xf32> -> vector<512x128xf32>
    %7 = arith.addf %3, %6 : vector<512x128xf32>
    %c0_6 = arith.constant 0 : index
    %c0_7 = arith.constant 0 : index
    %8 = vector.load %arg8[%c0_6, %c0_7] : memref<512x128xf32, #tpu.memory_space<vmem>>, vector<512x128xf32>
    tpu.vector_store %arg8[%c0_6, %c0_7], %7 {strides = array<i32>} : memref<512x128xf32, #tpu.memory_space<vmem>>, vector<512x128xf32>,
    %c0_i32_8 = arith.constant 0 : i32
    %9 = arith.cmpi eq, %arg2, %c0_i32_8 : i32
    %10 = arith.extui %9 : i1 to i32
    %c0_i32_9 = arith.constant 0 : i32
    %11 = arith.cmpi ne, %10, %c0_i32_9 : i32
    scf.if %11 {
      %c0_10 = arith.constant 0 : index
      %c0_11 = arith.constant 0 : index
      %12 = vector.load %arg8[%c0_10, %c0_11] : memref<512x128xf32, #tpu.memory_space<vmem>>, vector<512x128xf32>
      %c0_12 = arith.constant 0 : index
      %c0_13 = arith.constant 0 : index
      %13 = vector.load %arg5[%c0_12, %c0_13] : memref<1x128xf32, #tpu.memory_space<vmem>>, vector<1x128xf32>
      %14 = vector.broadcast %13 : vector<1x128xf32> to vector<512x128xf32>
      %15 = arith.mulf %12, %14 : vector<512x128xf32>
      %c0_14 = arith.constant 0 : index
      %c0_15 = arith.constant 0 : index
      %16 = vector.load %arg6[%c0_14, %c0_15] : memref<1x128xf32, #tpu.memory_space<vmem>>, vector<1x128xf32>
      %17 = vector.broadcast %16 : vector<1x128xf32> to vector<512x128xf32>
      %18 = arith.addf %15, %17 : vector<512x128xf32>
      %c0_16 = arith.constant 0 : index
      %c0_17 = arith.constant 0 : index
      %19 = vector.load %arg7[%c0_16, %c0_17] : memref<512x128xf32, #tpu.memory_space<vmem>>, vector<512x128xf32>
      tpu.vector_store %arg7[%c0_16, %c0_17], %18 {strides = array<i32>} : memref<512x128xf32, #tpu.memory_space<vmem>>, vector<512x128xf32>,
    } else {
    }
    return
  }
  func.func @transform_0(%arg0: i32, %arg1: i32, %arg2: i32) -> (i32, i32) {
    %c0_i32 = arith.constant 0 : i32
    return %arg0, %arg2 : i32, i32
  }
  func.func @transform_1(%arg0: i32, %arg1: i32, %arg2: i32) -> (i32, i32) {
    %c0_i32 = arith.constant 0 : i32
    return %arg2, %arg1 : i32, i32
  }
  func.func @transform_2(%arg0: i32, %arg1: i32, %arg2: i32) -> (i32, i32) {
    %c0_i32 = arith.constant 0 : i32
    %c0_i32_0 = arith.constant 0 : i32
    return %c0_i32, %arg1 : i32, i32
  }
  func.func @transform_3(%arg0: i32, %arg1: i32, %arg2: i32) -> (i32, i32) {
    %c0_i32 = arith.constant 0 : i32
    %c0_i32_0 = arith.constant 0 : i32
    return %c0_i32, %arg1 : i32, i32
  }
  func.func @transform_4(%arg0: i32, %arg1: i32, %arg2: i32) -> (i32, i32) {
    %c0_i32 = arith.constant 0 : i32
    return %arg0, %arg1 : i32, i32
  }
}

</mosaic_0001>

<llo_original>
// kernel: decoder_forward.61
$region0: #{decoder_forward.61}
  #allocation0 [shape = 'u32[]', space=smem, size = 0x4, offset = 0x4, fixed_abs, tag = 'smem constant byte address 0x4 - core index']
  #allocation1 [shape = 'u32[144,128]{1,0:T(1,128)}', space=vmem, size = 0x12000, scoped, tag = 'internal scratch']
  #allocation2 [shape = 'f32[8,128]{1,0:T(8,128)}', space=vmem, size = 0x1000, scoped, tag = 'scratch operand']
  %s0 = inlined_call_operand.vmem [shape: bf16[8,256], index: 0, kind: input, shape index: {}]
  %s1 = inlined_call_operand.vmem [shape: bf16[256,128], index: 1, kind: input, shape index: {}]
  %s2 = inlined_call_operand.vmem [shape: f32[1,128], index: 2, kind: input, shape index: {}]
  %s3 = inlined_call_operand.vmem [shape: f32[1,128], index: 3, kind: input, shape index: {}]
  %s4 = inlined_call_operand.vmem [shape: bf16[8,128], index: 4, kind: output, shape index: {}]
  %s5 = sld [smem:[#allocation0]]
  $region34: #{decoder_forward.61} parent=0
    _
  %s7 = ssub.s32 1, %s5
  %s8 = scalar_select 0, %s7, %s5
  // Predicated region
  $region2: #{decoder_forward.61} parent=0 // pred_check
    _
  $region3: #{decoder_forward.61} parent=0 // pred_check_branch
    %10 = sbr.rel (0) target = $region5
  $region4: #{decoder_forward.61} parent=0 // pred_region
    _
  $region5: #{decoder_forward.61} parent=0 // pred_fallthru
    _
  // Predicated region
  $region6: #{decoder_forward.61} parent=0 // pred_check
    _
  $region7: #{decoder_forward.61} parent=0 // pred_check_branch
    %12 = sbr.rel (0) target = $region9
  $region8: #{decoder_forward.61} parent=0 // pred_region
    _
  $region9: #{decoder_forward.61} parent=0 // pred_fallthru
    _
  // Predicated region
  $region10: #{decoder_forward.61} parent=0 // pred_check
    _
  $region11: #{decoder_forward.61} parent=0 // pred_check_branch
    %14 = sbr.rel (0) target = $region13
  $region12: #{decoder_forward.61} parent=0 // pred_region
    _
  $region13: #{decoder_forward.61} parent=0 // pred_fallthru
    _
  // Predicated region
  $region14: #{decoder_forward.61} parent=0 // pred_check
    _
  $region15: #{decoder_forward.61} parent=0 // pred_check_branch
    %16 = sbr.rel (0) target = $region17
  $region16: #{decoder_forward.61} parent=0 // pred_region
    _
  $region17: #{decoder_forward.61} parent=0 // pred_fallthru
    _
  %p18 = scmp.eq.s32.totalorder 0, 0
  // Predicated region
  $region18: #{decoder_forward.61} parent=0 // pred_check
    %p19 = pneg %p18
  $region19: #{decoder_forward.61} parent=0 // pred_check_branch
    %21 = sbr.rel (%p19) target = $region21
  $region20: #{decoder_forward.61} parent=0 // pred_region
    %22 = vst [vmem:[#allocation2] sm:$0xff] 0.0
  $region21: #{decoder_forward.61} parent=0 // pred_fallthru
    _
  %v23 = vld [vmem:[#allocation2] sm:$0xff]
  %v24 = vld [vmem:[%s0] sm:$0xff]
  %v25 = vld [vmem:[%s1] sm:$0xf]
  %v26 = vld [vmem:[%s1 + $0x4] sm:$0xf]
  %v27 = vld [vmem:[%s1 + $0x8] sm:$0xf]
  %v28 = vld [vmem:[%s1 + $0xc] sm:$0xf]
  %v29 = vld [vmem:[%s1 + $0x10] sm:$0xf]
  %v30 = vld [vmem:[%s1 + $0x14] sm:$0xf]
  %v31 = vld [vmem:[%s1 + $0x18] sm:$0xf]
  %v32 = vld [vmem:[%s1 + $0x1c] sm:$0xf]
  %v33 = vld [vmem:[%s1 + $0x20] sm:$0xf]
  %v34 = vld [vmem:[%s1 + $0x24] sm:$0xf]
  %v35 = vld [vmem:[%s1 + $0x28] sm:$0xf]
  %v36 = vld [vmem:[%s1 + $0x2c] sm:$0xf]
  %v37 = vld [vmem:[%s1 + $0x30] sm:$0xf]
  %v38 = vld [vmem:[%s1 + $0x34] sm:$0xf]
  %v39 = vld [vmem:[%s1 + $0x38] sm:$0xf]
  %v40 = vld [vmem:[%s1 + $0x3c] sm:$0xf]
  %v41 = vld [vmem:[%s1 + $0x40] sm:$0xf]
  %v42 = vld [vmem:[%s1 + $0x44] sm:$0xf]
  %v43 = vld [vmem:[%s1 + $0x48] sm:$0xf]
  %v44 = vld [vmem:[%s1 + $0x4c] sm:$0xf]
  %v45 = vld [vmem:[%s1 + $0x50] sm:$0xf]
  %v46 = vld [vmem:[%s1 + $0x54] sm:$0xf]
  %v47 = vld [vmem:[%s1 + $0x58] sm:$0xf]
  %v48 = vld [vmem:[%s1 + $0x5c] sm:$0xf]
  %v49 = vld [vmem:[%s1 + $0x60] sm:$0xf]
  %v50 = vld [vmem:[%s1 + $0x64] sm:$0xf]
  %v51 = vld [vmem:[%s1 + $0x68] sm:$0xf]
  %v52 = vld [vmem:[%s1 + $0x6c] sm:$0xf]
  %v53 = vld [vmem:[%s1 + $0x70] sm:$0xf]
  %v54 = vld [vmem:[%s1 + $0x74] sm:$0xf]
  %v55 = vld [vmem:[%s1 + $0x78] sm:$0xf]
  %v56 = vld [vmem:[%s1 + $0x7c] sm:$0xf]
  %v58 = vunpack.c.l.b16 %v24
  %v59 = vunpack.c.h.b16 %v24
  %v60 = vpack.c.b16 %v58, %v58
  %v61 = vpack.c.b16 %v59, %v59
  %v96 = vunpack.c.l.b16 %v25
  %v97 = vunpack.c.l.b16 %v26
  %v98 = vunpack.c.l.b16 %v27
  %v99 = vunpack.c.l.b16 %v28
  %v100 = vunpack.c.l.b16 %v29
  %v101 = vunpack.c.l.b16 %v30
  %v102 = vunpack.c.l.b16 %v31
  %v103 = vunpack.c.l.b16 %v32
  %v104 = vunpack.c.l.b16 %v33
  %v105 = vunpack.c.l.b16 %v34
  %v106 = vunpack.c.l.b16 %v35
  %v107 = vunpack.c.l.b16 %v36
  %v108 = vunpack.c.l.b16 %v37
  %v109 = vunpack.c.l.b16 %v38
  %v110 = vunpack.c.l.b16 %v39
  %v111 = vunpack.c.l.b16 %v40
  %v112 = vunpack.c.l.b16 %v41
  %v113 = vunpack.c.l.b16 %v42
  %v114 = vunpack.c.l.b16 %v43
  %v115 = vunpack.c.l.b16 %v44
  %v116 = vunpack.c.l.b16 %v45
  %v117 = vunpack.c.l.b16 %v46
  %v118 = vunpack.c.l.b16 %v47
  %v119 = vunpack.c.l.b16 %v48
  %v120 = vunpack.c.l.b16 %v49
  %v121 = vunpack.c.l.b16 %v50
  %v122 = vunpack.c.l.b16 %v51
  %v123 = vunpack.c.l.b16 %v52
  %v124 = vunpack.c.l.b16 %v53
  %v125 = vunpack.c.l.b16 %v54
  %v126 = vunpack.c.l.b16 %v55
  %v127 = vunpack.c.l.b16 %v56
  %v128 = vpack.c.b16 %v97, %v96
  %v129 = vpack.c.b16 %v99, %v98
  %v130 = vpack.c.b16 %v101, %v100
  %v131 = vpack.c.b16 %v103, %v102
  %v132 = vpack.c.b16 %v105, %v104
  %v133 = vpack.c.b16 %v107, %v106
  %v134 = vpack.c.b16 %v109, %v108
  %v135 = vpack.c.b16 %v111, %v110
  %v136 = vpack.c.b16 %v113, %v112
  %v137 = vpack.c.b16 %v115, %v114
  %v138 = vpack.c.b16 %v117, %v116
  %v139 = vpack.c.b16 %v119, %v118
  %v140 = vpack.c.b16 %v121, %v120
  %v141 = vpack.c.b16 %v123, %v122
  %v142 = vpack.c.b16 %v125, %v124
  %v143 = vpack.c.b16 %v127, %v126
  %160 = vmatprep.subr.bf16.mxu0 0
  %161 = vmatpush1.bf16.msra.mxu0 %v135
  %162 = vmatprep.subr.bf16.mxu0 0
  %163 = vmatpush1.bf16.msra.mxu0 %v134
  %164 = vmatprep.subr.bf16.mxu0 0
  %165 = vmatpush1.bf16.msra.mxu0 %v133
  %166 = vmatprep.subr.bf16.mxu0 0
  %167 = vmatpush1.bf16.msra.mxu0 %v132
  %168 = vmatprep.subr.bf16.mxu0 0
  %169 = vmatpush1.bf16.msra.mxu0 %v131
  %170 = vmatprep.subr.bf16.mxu0 0
  %171 = vmatpush1.bf16.msra.mxu0 %v130
  %172 = vmatprep.subr.bf16.mxu0 0
  %173 = vmatpush1.bf16.msra.mxu0 %v129
  %174 = vmatprep.subr.bf16.mxu0 0
  %175 = vmatpush1.bf16.msra.mxu0 %v128
  %176 = vmatprep.subr.bf16.mxu0 0
  %177 = vmatpush2.bf16.msra.mxu0 %v143
  %178 = vmatprep.subr.bf16.mxu0 0
  %179 = vmatpush2.bf16.msra.mxu0 %v142
  %180 = vmatprep.subr.bf16.mxu0 0
  %181 = vmatpush2.bf16.msra.mxu0 %v141
  %182 = vmatprep.subr.bf16.mxu0 0
  %183 = vmatpush2.bf16.msra.mxu0 %v140
  %184 = vmatprep.subr.bf16.mxu0 0
  %185 = vmatpush2.bf16.msra.mxu0 %v139
  %186 = vmatprep.subr.bf16.mxu0 0
  %187 = vmatpush2.bf16.msra.mxu0 %v138
  %188 = vmatprep.subr.bf16.mxu0 0
  %189 = vmatpush2.bf16.msra.mxu0 %v137
  %190 = vmatprep.subr.bf16.mxu0 0
  %191 = vmatpush2.bf16.msra.mxu0 %v136
  %192 = vmatprep.mubr.bf16.mxu0 %v61
  %193 = vmatmul.mubr.bf16.gmra.mxu0 %v60
  %v194 = vpop.f32.mrf.mxu0
  %v195 = vadd.f32 0.0, %v194
  %v196 = vpop.f32.mrf.mxu0
  %v197 = vpop.f32.mrf.mxu0
  %v198 = vpop.f32.mrf.mxu0
  %199 = vdwg.mxu0
  %v200 = vadd.f32 %v23, %v195
  %201 = vst [vmem:[#allocation2] sm:$0xff] %v200
  // Predicated region
  $region22: #{decoder_forward.61} parent=0 // pred_check
    %p202 = pneg %p18
  $region23: #{decoder_forward.61} parent=0 // pred_check_branch
    %204 = sbr.rel (%p202) target = $region25
  $region24: #{decoder_forward.61} parent=0 // pred_region
    %v205 = vld [vmem:[#allocation2] sm:$0xff]
    %v206 = vld [vmem:[%s2] sm:$0x1]
    %v208 = vlaneseq
    %v209 = vshrl.u32 %v208, 7
    %v210 = vsub.s32 0, %v209
    %v211 = vrot.slane %v206, %v210
    %v213 = vmul.f32 %v205, %v211
    %v214 = vld [vmem:[%s3] sm:$0x1]
    %v216 = vlaneseq
    %v217 = vshrl.u32 %v216, 7
    %v218 = vsub.s32 0, %v217
    %v219 = vrot.slane %v214, %v218
    %v221 = vadd.f32 %v213, %v219
    %v222 = vmax.f32 %v221, 0.0
    %v223 = vpack.c.bf16 %v222, %v222
    %224 = vst [vmem:[%s4] sm:$0xf] %v223
  $region25: #{decoder_forward.61} parent=0 // pred_fallthru
    _
  // Predicated region
  $region26: #{decoder_forward.61} parent=0 // pred_check
    _
  $region27: #{decoder_forward.61} parent=0 // pred_check_branch
    %226 = sbr.rel (0) target = $region29
  $region28: #{decoder_forward.61} parent=0 // pred_region
    _
  $region29: #{decoder_forward.61} parent=0 // pred_fallthru
    _
  // Predicated region
  $region30: #{decoder_forward.61} parent=0 // pred_check
    _
  $region31: #{decoder_forward.61} parent=0 // pred_check_branch
    %228 = sbr.rel (0) target = $region33
  $region32: #{decoder_forward.61} parent=0 // pred_region
    _
  $region33: #{decoder_forward.61} parent=0 // pred_fallthru
    _

// kernel: decoder_forward.65
$region0: #{decoder_forward.65}
  #allocation0 [shape = 'u32[]', space=smem, size = 0x4, offset = 0x4, fixed_abs, tag = 'smem constant byte address 0x4 - core index']
  #allocation1 [shape = 'u32[144,128]{1,0:T(1,128)}', space=vmem, size = 0x12000, scoped, tag = 'internal scratch']
  #allocation2 [shape = 'f32[32,128]{1,0:T(8,128)}', space=vmem, size = 0x4000, scoped, tag = 'scratch operand']
  %s0 = inlined_call_operand.vmem [shape: bf16[32,384], index: 0, kind: input, shape index: {}]
  %s1 = inlined_call_operand.vmem [shape: bf16[384,128], index: 1, kind: input, shape index: {}]
  %s2 = inlined_call_operand.vmem [shape: f32[1,128], index: 2, kind: input, shape index: {}]
  %s3 = inlined_call_operand.vmem [shape: f32[1,128], index: 3, kind: input, shape index: {}]
  %s4 = inlined_call_operand.vmem [shape: bf16[32,128], index: 4, kind: output, shape index: {}]
  %s5 = sld [smem:[#allocation0]]
  $region98: #{decoder_forward.65} parent=0
    _
  %s7 = ssub.s32 1, %s5
  %s8 = scalar_select 0, %s7, %s5
  $region1: #{decoder_forward.65} parent=0
    #allocation3 [shape = 'u8[16384]{0}', space=vmem, size = 0x4000, scoped, tag = 'input window, operand 0']
    loop: start=0, step=1, limit=5
    $region2: #{decoder_forward.65} parent=1 // loop_pre_header
      _
    $region3: #{decoder_forward.65} parent=1 // loop_header
      %s10 = sphi 0, %s14
      %p11 = scmp.ge.s32.totalorder %s10, 5
      %s17 = sphi 0, %s36
      %s18 = sphi 0, %s32
      %s19 = sphi 0, %s28
      %s20 = sphi 0, %s17
      %s21 = sphi 0, %s18
      %s22 = sphi 0, %s19
      %s23 = sphi 0, %s20
      %s24 = sphi 0, %s21
      %s25 = sphi 0, %s22
      %s41 = sphi 0, %s43
      %s44 = sphi 0, %s41
      %s45 = sphi 0, %s44
      %s61 = sphi 0, %s45
      %s69 = sphi 0, %s71
      %s72 = sphi 0, %s69
      %s73 = sphi 0, %s72
      %s89 = sphi 0, %s73
      %s95 = sphi 0, %s97
      %s98 = sphi 0, %s95
      %s99 = sphi 0, %s98
      %s115 = sphi 0, %s99
      %s121 = sphi 0, %s123
      %s124 = sphi 0, %s121
      %s125 = sphi 0, %s124
      %s141 = sphi 0, %s125
      %s149 = sphi 0, %s151
      %s152 = sphi 0, %s149
      %s153 = sphi 0, %s152
      %s169 = sphi 0, %s153
    $region4: #{decoder_forward.65} parent=1 // loop_header_branch
      %13 = sbr.rel (%p11) target = $region8
    $region5: #{decoder_forward.65} parent=1 // loop_body
      %s15 = ssub.s32 %s10, 1
      %s16 = ssub.s32 %s10, 2
      %s26 = sadd.s32 1, %s19
      %p27 = scmp.ge.s32.totalorder %s26, 3
      %s28 = scalar_select %p27, 0, %s26
      %s29 = sadd.s32 1, %s18
      %s30 = scalar_select %p27, %s29, %s18
      %p31 = scmp.ge.s32.totalorder %s30, 1
      %s32 = scalar_select %p31, 0, %s30
      %s33 = sadd.s32 1, %s17
      %s34 = scalar_select %p31, %s33, %s17
      %p35 = scmp.ge.s32.totalorder %s34, 1
      %s36 = scalar_select %p35, 0, %s34
      %s37 = ssub.s32 %s17, %s36
      %s38 = ssub.s32 %s19, %s28
      %s39 = sor.u32 %s37, %s38
      %p40 = scmp.eq.s32.totalorder %s39, 0
      %s42 = sadd.s32 %s41, 1
      %s43 = scalar_select %p40, %s41, %s42
      %p46 = pneg %p40
      %p47 = scmp.eq.s32.totalorder %s10, 2
      %p48 = por %p46, %p47
      %p49 = scmp.ne.s32.totalorder %s41, %s44
      %p50 = scmp.eq.s32.totalorder %s10, 0
      %p51 = por %p49, %p50
      %p52 = scmp.ne.s32.totalorder %s41, %s44
      %p53 = scmp.eq.s32.totalorder %s15, 2
      %p54 = por %p52, %p53
      %p55 = scmp.ne.s32.totalorder %s44, %s45
      %p56 = scmp.eq.s32.totalorder %s15, 0
      %p57 = por %p55, %p56
      %p58 = scmp.ne.s32.totalorder %s44, %s45
      %p59 = scmp.eq.s32.totalorder %s16, 2
      %p60 = por %p58, %p59
      %p62 = scmp.ne.s32.totalorder %s45, %s61
      %p63 = scmp.eq.s32.totalorder %s16, 0
      %p64 = por %p62, %p63
      %s65 = ssub.s32 %s19, %s28
      %s66 = ssub.s32 %s18, %s32
      %s67 = sor.u32 %s65, %s66
      %p68 = scmp.eq.s32.totalorder %s67, 0
      %s70 = sadd.s32 %s69, 1
      %s71 = scalar_select %p68, %s69, %s70
      %p74 = pneg %p68
      %p75 = scmp.eq.s32.totalorder %s10, 2
      %p76 = por %p74, %p75
      %p77 = scmp.ne.s32.totalorder %s69, %s72
      %p78 = scmp.eq.s32.totalorder %s10, 0
      %p79 = por %p77, %p78
      %p80 = scmp.ne.s32.totalorder %s69, %s72
      %p81 = scmp.eq.s32.totalorder %s15, 2
      %p82 = por %p80, %p81
      %p83 = scmp.ne.s32.totalorder %s72, %s73
      %p84 = scmp.eq.s32.totalorder %s15, 0
      %p85 = por %p83, %p84
      %p86 = scmp.ne.s32.totalorder %s72, %s73
      %p87 = scmp.eq.s32.totalorder %s16, 2
      %p88 = por %p86, %p87
      %p90 = scmp.ne.s32.totalorder %s73, %s89
      %p91 = scmp.eq.s32.totalorder %s16, 0
      %p92 = por %p90, %p91
      %s93 = ssub.s32 %s18, %s32
      %p94 = scmp.eq.s32.totalorder %s93, 0
      %s96 = sadd.s32 %s95, 1
      %s97 = scalar_select %p94, %s95, %s96
      %p100 = pneg %p94
      %p101 = scmp.eq.s32.totalorder %s10, 2
      %p102 = por %p100, %p101
      %p103 = scmp.ne.s32.totalorder %s95, %s98
      %p104 = scmp.eq.s32.totalorder %s10, 0
      %p105 = por %p103, %p104
      %p106 = scmp.ne.s32.totalorder %s95, %s98
      %p107 = scmp.eq.s32.totalorder %s15, 2
      %p108 = por %p106, %p107
      %p109 = scmp.ne.s32.totalorder %s98, %s99
      %p110 = scmp.eq.s32.totalorder %s15, 0
      %p111 = por %p109, %p110
      %p112 = scmp.ne.s32.totalorder %s98, %s99
      %p113 = scmp.eq.s32.totalorder %s16, 2
      %p114 = por %p112, %p113
      %p116 = scmp.ne.s32.totalorder %s99, %s115
      %p117 = scmp.eq.s32.totalorder %s16, 0
      %p118 = por %p116, %p117
      %s119 = ssub.s32 %s18, %s32
      %p120 = scmp.eq.s32.totalorder %s119, 0
      %s122 = sadd.s32 %s121, 1
      %s123 = scalar_select %p120, %s121, %s122
      %p126 = pneg %p120
      %p127 = scmp.eq.s32.totalorder %s10, 2
      %p128 = por %p126, %p127
      %p129 = scmp.ne.s32.totalorder %s121, %s124
      %p130 = scmp.eq.s32.totalorder %s10, 0
      %p131 = por %p129, %p130
      %p132 = scmp.ne.s32.totalorder %s121, %s124
      %p133 = scmp.eq.s32.totalorder %s15, 2
      %p134 = por %p132, %p133
      %p135 = scmp.ne.s32.totalorder %s124, %s125
      %p136 = scmp.eq.s32.totalorder %s15, 0
      %p137 = por %p135, %p136
      %p138 = scmp.ne.s32.totalorder %s124, %s125
      %p139 = scmp.eq.s32.totalorder %s16, 2
      %p140 = por %p138, %p139
      %p142 = scmp.ne.s32.totalorder %s125, %s141
      %p143 = scmp.eq.s32.totalorder %s16, 0
      %p144 = por %p142, %p143
      %s145 = ssub.s32 %s17, %s36
      %s146 = ssub.s32 %s18, %s32
      %s147 = sor.u32 %s145, %s146
      %p148 = scmp.eq.s32.totalorder %s147, 0
      %s150 = sadd.s32 %s149, 1
      %s151 = scalar_select %p148, %s149, %s150
      %p154 = pneg %p148
      %p155 = scmp.eq.s32.totalorder %s10, 2
      %p156 = por %p154, %p155
      %p157 = scmp.ne.s32.totalorder %s149, %s152
      %p158 = scmp.eq.s32.totalorder %s10, 0
      %p159 = por %p157, %p158
      %p160 = scmp.ne.s32.totalorder %s149, %s152
      %p161 = scmp.eq.s32.totalorder %s15, 2
      %p162 = por %p160, %p161
      %p163 = scmp.ne.s32.totalorder %s152, %s153
      %p164 = scmp.eq.s32.totalorder %s15, 0
      %p165 = por %p163, %p164
      %p166 = scmp.ne.s32.totalorder %s152, %s153
      %p167 = scmp.eq.s32.totalorder %s16, 2
      %p168 = por %p166, %p167
      %p170 = scmp.ne.s32.totalorder %s153, %s169
      %p171 = scmp.eq.s32.totalorder %s16, 0
      %p172 = por %p170, %p171
      %p173 = scmp.le.s32.totalorder 1, %s10
      %p174 = scmp.lt.s32.totalorder %s10, 4
      %p175 = pnand %p173, %p174
      %p176 = pneg %p175
      // Predicated region
      $region9: #{decoder_forward.65} parent=5 // pred_check
        _
      $region10: #{decoder_forward.65} parent=5 // pred_check_branch
        %178 = sbr.rel (%p175) target = $region12
      $region11: #{decoder_forward.65} parent=5 // pred_region
        %s179 = ssub.s32 %s10, 1
        // Predicated region
        $region13: #{decoder_forward.65} parent=11 // pred_check
          %p180 = pneg %p111
        $region14: #{decoder_forward.65} parent=11 // pred_check_branch
          %182 = sbr.rel (%p180) target = $region16
        $region15: #{decoder_forward.65} parent=11 // pred_region
          %p183 = scmp.lt.s32.totalorder %s21, 0
          %s184 = scalar_select %p183, %s21, 0
          %s185 = scalar_lea.vmem %s2, %s184
        $region16: #{decoder_forward.65} parent=11 // pred_fallthru
          _
        // Predicated region
        $region17: #{decoder_forward.65} parent=11 // pred_check
          %p186 = pneg %p137
        $region18: #{decoder_forward.65} parent=11 // pred_check_branch
          %188 = sbr.rel (%p186) target = $region20
        $region19: #{decoder_forward.65} parent=11 // pred_region
          %p189 = scmp.lt.s32.totalorder %s21, 0
          %s190 = scalar_select %p189, %s21, 0
          %s191 = scalar_lea.vmem %s3, %s190
        $region20: #{decoder_forward.65} parent=11 // pred_fallthru
          _
      $region12: #{decoder_forward.65} parent=5 // pred_fallthru
        _
      %p192 = scmp.lt.s32.totalorder %s10, 3
      // Predicated region
      $region21: #{decoder_forward.65} parent=5 // pred_check
        %p193 = pneg %p192
      $region22: #{decoder_forward.65} parent=5 // pred_check_branch
        %195 = sbr.rel (%p193) target = $region24
      $region23: #{decoder_forward.65} parent=5 // pred_region
        // Predicated region
        $region25: #{decoder_forward.65} parent=23 // pred_check
          %p196 = pneg %p51
        $region26: #{decoder_forward.65} parent=23 // pred_check_branch
          %198 = sbr.rel (%p196) target = $region28
        $region27: #{decoder_forward.65} parent=23 // pred_region
          %s199 = sand.u32 %s41, 1
          %s200 = sand.u32 %s41, 1
          %s201 = smul.addr %s200, 16
          %s202 = scalar_lea.vmem [#allocation3], %s201
          %s203 = smul.u32 4, %s17
          %s204 = smul.addr %s203, 3
          %s205 = sadd.s32 %s19, %s204
          %s206 = smul.addr %s205, 4
          %s207 = scalar_lea.vmem %s0, %s206
          // Predicated region
          $region29: #{decoder_forward.65} parent=27 // pred_check
            _
          $region30: #{decoder_forward.65} parent=27 // pred_check_branch
            %209 = sbr.rel (0) target = $region32
          $region31: #{decoder_forward.65} parent=27 // pred_region
            // Predicated region
            $region33: #{decoder_forward.65} parent=31 // pred_check
              _
            $region34: #{decoder_forward.65} parent=31 // pred_check_branch
              %211 = sbr.rel target = $region36
            $region35: #{decoder_forward.65} parent=31 // pred_region
              // Predicated region
              $region48: #{decoder_forward.65} parent=35 // pred_check
                _
              $region49: #{decoder_forward.65} parent=35 // pred_check_branch
                %233 = sbr.rel (0) target = $region51
              $region50: #{decoder_forward.65} parent=35 // pred_region
                loop: start=0, step=1, limit=1
                $region52: #{decoder_forward.65} parent=50 // loop_pre_header
                  _
                $region53: #{decoder_forward.65} parent=50 // loop_header
                  %s235 = sphi 0, %s239
                  %p236 = scmp.ge.s32.totalorder %s235, 1
                  %s240 = sphi %s207, %s207
                  %s241 = sphi %s202, %s202
                $region54: #{decoder_forward.65} parent=50 // loop_header_branch
                  %238 = sbr.rel (%p236) target = $region58
                $region55: #{decoder_forward.65} parent=50 // loop_body
                  _
                $region56: #{decoder_forward.65} parent=50 // loop_footer
                  %s239 = sadd.s32 1, %s235
                $region57: #{decoder_forward.65} parent=50 // loop_footer_branch
                  %234 = sbr.rel target = $region53
                $region58: #{decoder_forward.65} parent=50 // loop_exit
                  _
                %s243 = ssub.s32 16, 1
                loop: start=0, step=1, limit=1
                $region59: #{decoder_forward.65} parent=50 // loop_pre_header
                  _
                $region60: #{decoder_forward.65} parent=50 // loop_header
                  %s245 = sphi 0, %s249
                  %p246 = scmp.ge.s32.totalorder %s245, 1
                  %s250 = sphi %s207, %s207
                  %s251 = sphi %s202, %s202
                $region61: #{decoder_forward.65} parent=50 // loop_header_branch
                  %248 = sbr.rel (%p246) target = $region65
                $region62: #{decoder_forward.65} parent=50 // loop_body
                  %v252 = vld [vmem:[%s250] sm:%s243]
                  %253 = vst [vmem:[%s251] sm:%s243] %v252
                  %v254 = vld [vmem:[%s250 + $0xc] sm:%s243]
                  %255 = vst [vmem:[%s251 + $0x4] sm:%s243] %v254
                  %v256 = vld [vmem:[%s250 + $0x18] sm:%s243]
                  %257 = vst [vmem:[%s251 + $0x8] sm:%s243] %v256
                  %v258 = vld [vmem:[%s250 + $0x24] sm:%s243]
                  %259 = vst [vmem:[%s251 + $0xc] sm:%s243] %v258
                $region63: #{decoder_forward.65} parent=50 // loop_footer
                  %s249 = sadd.s32 1, %s245
                $region64: #{decoder_forward.65} parent=50 // loop_footer_branch
                  %244 = sbr.rel target = $region60
                $region65: #{decoder_forward.65} parent=50 // loop_exit
                  _
              $region51: #{decoder_forward.65} parent=35 // pred_fallthru
                _
            $region36: #{decoder_forward.65} parent=31 // pred_fallthru
              _
            // Predicated region
            $region37: #{decoder_forward.65} parent=31 // pred_check
              _
            $region38: #{decoder_forward.65} parent=31 // pred_check_branch
              %213 = sbr.rel (0) target = $region40
            $region39: #{decoder_forward.65} parent=31 // pred_region
              %s215 = ssub.s32 16, 1
              loop: start=0, step=1, limit=1
              $region41: #{decoder_forward.65} parent=39 // loop_pre_header
                _
              $region42: #{decoder_forward.65} parent=39 // loop_header
                %s217 = sphi 0, %s221
                %p218 = scmp.ge.s32.totalorder %s217, 1
                %s222 = sphi %s207, %s207
                %s223 = sphi %s202, %s202
              $region43: #{decoder_forward.65} parent=39 // loop_header_branch
                %220 = sbr.rel (%p218) target = $region47
              $region44: #{decoder_forward.65} parent=39 // loop_body
                %v224 = vld [vmem:[%s222] sm:%s215]
                %225 = vst [vmem:[%s223] sm:%s215] %v224
                %v226 = vld [vmem:[%s222 + $0xc] sm:%s215]
                %227 = vst [vmem:[%s223 + $0x4] sm:%s215] %v226
                %v228 = vld [vmem:[%s222 + $0x18] sm:%s215]
                %229 = vst [vmem:[%s223 + $0x8] sm:%s215] %v228
                %v230 = vld [vmem:[%s222 + $0x24] sm:%s215]
                %231 = vst [vmem:[%s223 + $0xc] sm:%s215] %v230
              $region45: #{decoder_forward.65} parent=39 // loop_footer
                %s221 = sadd.s32 1, %s217
              $region46: #{decoder_forward.65} parent=39 // loop_footer_branch
                %216 = sbr.rel target = $region42
              $region47: #{decoder_forward.65} parent=39 // loop_exit
                _
            $region40: #{decoder_forward.65} parent=31 // pred_fallthru
              _
          $region32: #{decoder_forward.65} parent=27 // pred_fallthru
            _
          %260 = vnop
        $region28: #{decoder_forward.65} parent=23 // pred_fallthru
          _
        // Predicated region
        $region66: #{decoder_forward.65} parent=23 // pred_check
          %p261 = pneg %p79
        $region67: #{decoder_forward.65} parent=23 // pred_check_branch
          %263 = sbr.rel (%p261) target = $region69
        $region68: #{decoder_forward.65} parent=23 // pred_region
          %s264 = smul.u32 16, %s19
          %p265 = scmp.lt.s32.totalorder %s264, 47
          %s266 = scalar_select %p265, %s264, 47
          %p267 = scmp.lt.s32.totalorder %s18, 0
          %s268 = scalar_select %p267, %s18, 0
          %s269 = sadd.s32 %s268, %s266
          %s270 = smul.addr %s269, 4
          %s271 = scalar_lea.vmem %s1, %s270
          %s272 = smul.u32 16, %s19
        $region69: #{decoder_forward.65} parent=23 // pred_fallthru
          _
      $region24: #{decoder_forward.65} parent=5 // pred_fallthru
        _
      %p273 = scmp.le.s32.totalorder 1, %s10
      %p274 = scmp.lt.s32.totalorder %s10, 4
      %p275 = pnand %p273, %p274
      %p276 = pneg %p275
      // Predicated region
      $region70: #{decoder_forward.65} parent=5 // pred_check
        _
      $region71: #{decoder_forward.65} parent=5 // pred_check_branch
        %278 = sbr.rel (%p275) target = $region73
      $region72: #{decoder_forward.65} parent=5 // pred_region
        %s279 = ssub.s32 %s10, 1
        %s280 = sand.u32 %s44, 1
        %s281 = sand.u32 %s44, 1
        %s282 = smul.addr %s281, 16
        %s283 = scalar_lea.vmem [#allocation3], %s282
        // Predicated region
        $region74: #{decoder_forward.65} parent=72 // pred_check
          %p284 = pneg %p57
        $region75: #{decoder_forward.65} parent=72 // pred_check_branch
          %286 = sbr.rel (%p284) target = $region77
        $region76: #{decoder_forward.65} parent=72 // pred_region
          _
        $region77: #{decoder_forward.65} parent=72 // pred_fallthru
          _
        %s287 = sand.u32 %s44, 1
        %s288 = sand.u32 %s44, 1
        %s289 = smul.addr %s288, 16
        %s290 = scalar_lea.vmem [#allocation3], %s289
        %p291 = pneg %p57
        %p292 = pneg %p54
        %s293 = smul.u32 16, %s22
        %p294 = scmp.lt.s32.totalorder %s293, 47
        %s295 = scalar_select %p294, %s293, 47
        %p296 = scmp.lt.s32.totalorder %s21, 0
        %s297 = scalar_select %p296, %s21, 0
        %s298 = sadd.s32 %s297, %s295
        %s299 = smul.addr %s298, 4
        %s300 = scalar_lea.vmem %s1, %s299
        %p301 = pneg %p85
        %p302 = pneg %p82
        %p303 = scmp.lt.s32.totalorder %s21, 0
        %s304 = scalar_select %p303, %s21, 0
        %s305 = scalar_lea.vmem %s2, %s304
        %p306 = pneg %p111
        %p307 = pneg %p108
        %p308 = scmp.lt.s32.totalorder %s21, 0
        %s309 = scalar_select %p308, %s21, 0
        %s310 = scalar_lea.vmem %s3, %s309
        %p311 = pneg %p137
        %p312 = pneg %p134
        %p313 = pneg %p165
        %p314 = pneg %p162
        %s315 = smul.u32 4, %s20
        %p316 = scmp.lt.s32.totalorder %s315, 3
        %s317 = scalar_select %p316, %s315, 3
        %p318 = scmp.lt.s32.totalorder %s21, 0
        %s319 = scalar_select %p318, %s21, 0
        %s320 = sadd.s32 %s319, %s317
        %s321 = smul.addr %s320, 4
        %s322 = scalar_lea.vmem %s4, %s321
        %s323 = smul.u32 4, %s20
        %s324 = smul.u32 16, %s22
        %p325 = scmp.lt.s32.totalorder %s324, 47
        %s326 = scalar_select %p325, %s324, 47
        %p327 = scmp.lt.s32.totalorder %s21, 0
        %s328 = scalar_select %p327, %s21, 0
        %s329 = sadd.s32 %s328, %s326
        %s330 = smul.addr %s329, 4
        %s331 = scalar_lea.vmem %s1, %s330
        %s332 = smul.u32 16, %s22
        %p333 = scmp.lt.s32.totalorder %s21, 0
        %s334 = scalar_select %p333, %s21, 0
        %s335 = scalar_lea.vmem %s2, %s334
        %p336 = scmp.lt.s32.totalorder %s21, 0
        %s337 = scalar_select %p336, %s21, 0
        %s338 = scalar_lea.vmem %s3, %s337
        %s339 = smul.u32 4, %s20
        %p340 = scmp.lt.s32.totalorder %s339, 3
        %s341 = scalar_select %p340, %s339, 3
        %p342 = scmp.lt.s32.totalorder %s21, 0
        %s343 = scalar_select %p342, %s21, 0
        %s344 = sadd.s32 %s343, %s341
        %s345 = smul.addr %s344, 4
        %s346 = scalar_lea.vmem %s4, %s345
        %s347 = smul.u32 4, %s20
        %p349 = scmp.eq.s32.totalorder %s22, 0
        // Predicated region
        $region78: #{decoder_forward.65} parent=72 // pred_check
          %p350 = pneg %p349
        $region79: #{decoder_forward.65} parent=72 // pred_check_branch
          %352 = sbr.rel (%p350) target = $region81
        $region80: #{decoder_forward.65} parent=72 // pred_region
          %353 = vst [vmem:[#allocation2] sm:$0xff] 0.0
          %354 = vst [vmem:[#allocation2 + $0x8] sm:$0xff] 0.0
          %355 = vst [vmem:[#allocation2 + $0x10] sm:$0xff] 0.0
          %356 = vst [vmem:[#allocation2 + $0x18] sm:$0xff] 0.0
        $region81: #{decoder_forward.65} parent=72 // pred_fallthru
          _
        %v357 = vld [vmem:[#allocation2] sm:$0xff]
        %v358 = vld [vmem:[#allocation2 + $0x8] sm:$0xff]
        %v359 = vld [vmem:[#allocation2 + $0x10] sm:$0xff]
        %v360 = vld [vmem:[#allocation2 + $0x18] sm:$0xff]
        %v361 = vld [vmem:[%s283] sm:$0xf]
        %v362 = vld [vmem:[%s283 + $0x4] sm:$0xf]
        %v363 = vld [vmem:[%s283 + $0x8] sm:$0xf]
        %v364 = vld [vmem:[%s283 + $0xc] sm:$0xf]
        %v365 = vld [vmem:[%s331] sm:$0xf]
        %v366 = vld [vmem:[%s331 + $0x4] sm:$0xf]
        %v367 = vld [vmem:[%s331 + $0x8] sm:$0xf]
        %v368 = vld [vmem:[%s331 + $0xc] sm:$0xf]
        %v369 = vld [vmem:[%s331 + $0x10] sm:$0xf]
        %v370 = vld [vmem:[%s331 + $0x14] sm:$0xf]
        %v371 = vld [vmem:[%s331 + $0x18] sm:$0xf]
        %v372 = vld [vmem:[%s331 + $0x1c] sm:$0xf]
        %v373 = vld [vmem:[%s331 + $0x20] sm:$0xf]
        %v374 = vld [vmem:[%s331 + $0x24] sm:$0xf]
        %v375 = vld [vmem:[%s331 + $0x28] sm:$0xf]
        %v376 = vld [vmem:[%s331 + $0x2c] sm:$0xf]
        %v377 = vld [vmem:[%s331 + $0x30] sm:$0xf]
        %v378 = vld [vmem:[%s331 + $0x34] sm:$0xf]
        %v379 = vld [vmem:[%s331 + $0x38] sm:$0xf]
        %v380 = vld [vmem:[%s331 + $0x3c] sm:$0xf]
        %v385 = vunpack.c.l.b16 %v361
        %v386 = vunpack.c.l.b16 %v362
        %v387 = vunpack.c.l.b16 %v363
        %v388 = vunpack.c.l.b16 %v364
        %v389 = vpack.c.b16 %v386, %v385
        %v390 = vpack.c.b16 %v388, %v387
        %v409 = vunpack.c.l.b16 %v365
        %v410 = vunpack.c.l.b16 %v366
        %v411 = vunpack.c.l.b16 %v367
        %v412 = vunpack.c.l.b16 %v368
        %v413 = vunpack.c.l.b16 %v369
        %v414 = vunpack.c.l.b16 %v370
        %v415 = vunpack.c.l.b16 %v371
        %v416 = vunpack.c.l.b16 %v372
        %v417 = vunpack.c.l.b16 %v373
        %v418 = vunpack.c.l.b16 %v374
        %v419 = vunpack.c.l.b16 %v375
        %v420 = vunpack.c.l.b16 %v376
        %v421 = vunpack.c.l.b16 %v377
        %v422 = vunpack.c.l.b16 %v378
        %v423 = vunpack.c.l.b16 %v379
        %v424 = vunpack.c.l.b16 %v380
        %v425 = vpack.c.b16 %v410, %v409
        %v426 = vpack.c.b16 %v412, %v411
        %v427 = vpack.c.b16 %v414, %v413
        %v428 = vpack.c.b16 %v416, %v415
        %v429 = vpack.c.b16 %v418, %v417
        %v430 = vpack.c.b16 %v420, %v419
        %v431 = vpack.c.b16 %v422, %v421
        %v432 = vpack.c.b16 %v424, %v423
        %441 = vmatprep.subr.bf16.mxu0 0
        %442 = vmatpush1.bf16.msra.mxu0 %v432
        %443 = vmatprep.subr.bf16.mxu0 0
        %444 = vmatpush1.bf16.msra.mxu0 %v431
        %445 = vmatprep.subr.bf16.mxu0 0
        %446 = vmatpush1.bf16.msra.mxu0 %v430
        %447 = vmatprep.subr.bf16.mxu0 0
        %448 = vmatpush1.bf16.msra.mxu0 %v429
        %449 = vmatprep.subr.bf16.mxu0 0
        %450 = vmatpush1.bf16.msra.mxu0 %v428
        %451 = vmatprep.subr.bf16.mxu0 0
        %452 = vmatpush1.bf16.msra.mxu0 %v427
        %453 = vmatprep.subr.bf16.mxu0 0
        %454 = vmatpush1.bf16.msra.mxu0 %v426
        %455 = vmatprep.subr.bf16.mxu0 0
        %456 = vmatpush1.bf16.msra.mxu0 %v425
        %457 = vmatprep.subr.bf16.mxu0 0
        %458 = vmatpush2.bf16.msra.mxu0 0
        %459 = vmatprep.subr.bf16.mxu0 0
        %460 = vmatpush2.bf16.msra.mxu0 0
        %461 = vmatprep.subr.bf16.mxu0 0
        %462 = vmatpush2.bf16.msra.mxu0 0
        %463 = vmatprep.subr.bf16.mxu0 0
        %464 = vmatpush2.bf16.msra.mxu0 0
        %465 = vmatprep.subr.bf16.mxu0 0
        %466 = vmatpush2.bf16.msra.mxu0 0
        %467 = vmatprep.subr.bf16.mxu0 0
        %468 = vmatpush2.bf16.msra.mxu0 0
        %469 = vmatprep.subr.bf16.mxu0 0
        %470 = vmatpush2.bf16.msra.mxu0 0
        %471 = vmatprep.subr.bf16.mxu0 0
        %472 = vmatpush2.bf16.msra.mxu0 0
        %473 = vmatprep.mubr.bf16.mxu0 0
        %474 = vmatmul.mubr.bf16.gmra.mxu0 %v389
        %v475 = vpop.f32.mrf.mxu0
        %v476 = vadd.f32 0.0, %v475
        %v477 = vpop.f32.mrf.mxu0
        %v478 = vpop.f32.mrf.mxu0
        %v479 = vadd.f32 0.0, %v478
        %v480 = vpop.f32.mrf.mxu0
        %481 = vmatprep.mubr.bf16.mxu0 0
        %482 = vmatmul.mubr.bf16.gmra.mxu0 %v390
        %v483 = vpop.f32.mrf.mxu0
        %v484 = vadd.f32 0.0, %v483
        %v485 = vpop.f32.mrf.mxu0
        %v486 = vpop.f32.mrf.mxu0
        %v487 = vadd.f32 0.0, %v486
        %v488 = vpop.f32.mrf.mxu0
        %489 = vdwg.mxu0
        %v490 = vadd.f32 %v357, %v476
        %v491 = vadd.f32 %v358, %v479
        %v492 = vadd.f32 %v359, %v484
        %v493 = vadd.f32 %v360, %v487
        %494 = vst [vmem:[#allocation2] sm:$0xff] %v490
        %495 = vst [vmem:[#allocation2 + $0x8] sm:$0xff] %v491
        %496 = vst [vmem:[#allocation2 + $0x10] sm:$0xff] %v492
        %497 = vst [vmem:[#allocation2 + $0x18] sm:$0xff] %v493
        %p498 = scmp.eq.s32.totalorder %s22, 2
        // Predicated region
        $region82: #{decoder_forward.65} parent=72 // pred_check
          %p499 = pneg %p498
        $region83: #{decoder_forward.65} parent=72 // pred_check_branch
          %501 = sbr.rel (%p499) target = $region85
        $region84: #{decoder_forward.65} parent=72 // pred_region
          %v502 = vld [vmem:[#allocation2] sm:$0xff]
          %v503 = vld [vmem:[#allocation2 + $0x8] sm:$0xff]
          %v504 = vld [vmem:[#allocation2 + $0x10] sm:$0xff]
          %v505 = vld [vmem:[#allocation2 + $0x18] sm:$0xff]
          %v506 = vld [vmem:[%s335] sm:$0x1]
          %v508 = vlaneseq
          %v509 = vshrl.u32 %v508, 7
          %v510 = vsub.s32 0, %v509
          %v511 = vrot.slane %v506, %v510
          %v513 = vmul.f32 %v502, %v511
          %v514 = vmul.f32 %v503, %v511
          %v515 = vmul.f32 %v504, %v511
          %v516 = vmul.f32 %v505, %v511
          %v517 = vld [vmem:[%s338] sm:$0x1]
          %v519 = vlaneseq
          %v520 = vshrl.u32 %v519, 7
          %v521 = vsub.s32 0, %v520
          %v522 = vrot.slane %v517, %v521
          %v524 = vadd.f32 %v513, %v522
          %v525 = vadd.f32 %v514, %v522
          %v526 = vadd.f32 %v515, %v522
          %v527 = vadd.f32 %v516, %v522
          %v528 = vmax.f32 %v524, 0.0
          %v529 = vmax.f32 %v525, 0.0
          %v530 = vmax.f32 %v526, 0.0
          %v531 = vmax.f32 %v527, 0.0
          %v532 = vpack.c.bf16 %v529, %v528
          %v533 = vpack.c.bf16 %v531, %v530
          %v536 = vunpack.c.l.b16 %v532
          %v537 = vunpack.c.h.b16 %v532
          %v538 = vunpack.c.l.b16 %v533
          %v539 = vunpack.c.h.b16 %v533
          %v540 = vpack.c.b16 %v536, %v536
          %v541 = vpack.c.b16 %v537, %v537
          %v542 = vpack.c.b16 %v538, %v538
          %v543 = vpack.c.b16 %v539, %v539
          %548 = vst [vmem:[%s346] sm:$0xf] %v540
          %549 = vst [vmem:[%s346 + $0x4] sm:$0xf] %v541
          %550 = vst [vmem:[%s346 + $0x8] sm:$0xf] %v542
          %551 = vst [vmem:[%s346 + $0xc] sm:$0xf] %v543
        $region85: #{decoder_forward.65} parent=72 // pred_fallthru
          _
        %s552 = smul.u32 4, %s20
        %p553 = scmp.lt.s32.totalorder %s552, 3
        %s554 = scalar_select %p553, %s552, 3
        %p555 = scmp.lt.s32.totalorder %s21, 0
        %s556 = scalar_select %p555, %s21, 0
        %s557 = sadd.s32 %s556, %s554
        %s558 = smul.addr %s557, 4
        %s559 = scalar_lea.vmem %s4, %s558
        // Predicated region
        $region86: #{decoder_forward.65} parent=72 // pred_check
          %p560 = pneg %p162
        $region87: #{decoder_forward.65} parent=72 // pred_check_branch
          %562 = sbr.rel (%p560) target = $region89
        $region88: #{decoder_forward.65} parent=72 // pred_region
          %s563 = smul.u32 4, %s20
        $region89: #{decoder_forward.65} parent=72 // pred_fallthru
          _
        // Predicated region
        $region90: #{decoder_forward.65} parent=72 // pred_check
          %p564 = pneg %p162
        $region91: #{decoder_forward.65} parent=72 // pred_check_branch
          %566 = sbr.rel (%p564) target = $region93
        $region92: #{decoder_forward.65} parent=72 // pred_region
          %s567 = smul.u32 4, %s20
          %p568 = scmp.lt.s32.totalorder %s567, 3
          %s569 = scalar_select %p568, %s567, 3
          %p570 = scmp.lt.s32.totalorder %s21, 0
          %s571 = scalar_select %p570, %s21, 0
          %s572 = sadd.s32 %s571, %s569
          %s573 = smul.addr %s572, 4
          %s574 = scalar_lea.vmem %s4, %s573
        $region93: #{decoder_forward.65} parent=72 // pred_fallthru
          _
      $region73: #{decoder_forward.65} parent=5 // pred_fallthru
        _
      %p575 = scmp.le.s32.totalorder 2, %s10
      // Predicated region
      $region94: #{decoder_forward.65} parent=5 // pred_check
        %p576 = pneg %p575
      $region95: #{decoder_forward.65} parent=5 // pred_check_branch
        %578 = sbr.rel (%p576) target = $region97
      $region96: #{decoder_forward.65} parent=5 // pred_region
        %s579 = ssub.s32 %s10, 2
      $region97: #{decoder_forward.65} parent=5 // pred_fallthru
        _
    $region6: #{decoder_forward.65} parent=1 // loop_footer
      %s14 = sadd.s32 1, %s10
    $region7: #{decoder_forward.65} parent=1 // loop_footer_branch
      %9 = sbr.rel target = $region3
    $region8: #{decoder_forward.65} parent=1 // loop_exit
      _

// kernel: decoder_forward.66
$region0: #{decoder_forward.66}
  #allocation0 [shape = 'u32[]', space=smem, size = 0x4, offset = 0x4, fixed_abs, tag = 'smem constant byte address 0x4 - core index']
  #allocation1 [shape = 'u32[144,128]{1,0:T(1,128)}', space=vmem, size = 0x12000, scoped, tag = 'internal scratch']
  #allocation2 [shape = 'f32[32,128]{1,0:T(8,128)}', space=vmem, size = 0x4000, scoped, tag = 'scratch operand']
  %s0 = inlined_call_operand.vmem [shape: bf16[32,384], index: 0, kind: input, shape index: {}]
  %s1 = inlined_call_operand.vmem [shape: bf16[384,128], index: 1, kind: input, shape index: {}]
  %s2 = inlined_call_operand.vmem [shape: f32[1,128], index: 2, kind: input, shape index: {}]
  %s3 = inlined_call_operand.vmem [shape: f32[1,128], index: 3, kind: input, shape index: {}]
  %s4 = inlined_call_operand.vmem [shape: bf16[32,128], index: 4, kind: input, shape index: {}]
  %s5 = inlined_call_operand.vmem [shape: bf16[32,128], index: 5, kind: output, shape index: {}]
  %s6 = sld [smem:[#allocation0]]
  $region102: #{decoder_forward.66} parent=0
    _
  %s8 = ssub.s32 1, %s6
  %s9 = scalar_select 0, %s8, %s6
  $region1: #{decoder_forward.66} parent=0
    #allocation3 [shape = 'u8[16384]{0}', space=vmem, size = 0x4000, scoped, tag = 'input window, operand 0']
    loop: start=0, step=1, limit=5
    $region2: #{decoder_forward.66} parent=1 // loop_pre_header
      _
    $region3: #{decoder_forward.66} parent=1 // loop_header
      %s11 = sphi 0, %s15
      %p12 = scmp.ge.s32.totalorder %s11, 5
      %s18 = sphi 0, %s37
      %s19 = sphi 0, %s33
      %s20 = sphi 0, %s29
      %s21 = sphi 0, %s18
      %s22 = sphi 0, %s19
      %s23 = sphi 0, %s20
      %s24 = sphi 0, %s21
      %s25 = sphi 0, %s22
      %s26 = sphi 0, %s23
      %s42 = sphi 0, %s44
      %s45 = sphi 0, %s42
      %s46 = sphi 0, %s45
      %s62 = sphi 0, %s46
      %s70 = sphi 0, %s72
      %s73 = sphi 0, %s70
      %s74 = sphi 0, %s73
      %s90 = sphi 0, %s74
      %s96 = sphi 0, %s98
      %s99 = sphi 0, %s96
      %s100 = sphi 0, %s99
      %s116 = sphi 0, %s100
      %s122 = sphi 0, %s124
      %s125 = sphi 0, %s122
      %s126 = sphi 0, %s125
      %s142 = sphi 0, %s126
      %s150 = sphi 0, %s152
      %s153 = sphi 0, %s150
      %s154 = sphi 0, %s153
      %s170 = sphi 0, %s154
      %s178 = sphi 0, %s180
      %s181 = sphi 0, %s178
      %s182 = sphi 0, %s181
      %s198 = sphi 0, %s182
    $region4: #{decoder_forward.66} parent=1 // loop_header_branch
      %14 = sbr.rel (%p12) target = $region8
    $region5: #{decoder_forward.66} parent=1 // loop_body
      %s16 = ssub.s32 %s11, 1
      %s17 = ssub.s32 %s11, 2
      %s27 = sadd.s32 1, %s20
      %p28 = scmp.ge.s32.totalorder %s27, 3
      %s29 = scalar_select %p28, 0, %s27
      %s30 = sadd.s32 1, %s19
      %s31 = scalar_select %p28, %s30, %s19
      %p32 = scmp.ge.s32.totalorder %s31, 1
      %s33 = scalar_select %p32, 0, %s31
      %s34 = sadd.s32 1, %s18
      %s35 = scalar_select %p32, %s34, %s18
      %p36 = scmp.ge.s32.totalorder %s35, 1
      %s37 = scalar_select %p36, 0, %s35
      %s38 = ssub.s32 %s18, %s37
      %s39 = ssub.s32 %s20, %s29
      %s40 = sor.u32 %s38, %s39
      %p41 = scmp.eq.s32.totalorder %s40, 0
      %s43 = sadd.s32 %s42, 1
      %s44 = scalar_select %p41, %s42, %s43
      %p47 = pneg %p41
      %p48 = scmp.eq.s32.totalorder %s11, 2
      %p49 = por %p47, %p48
      %p50 = scmp.ne.s32.totalorder %s42, %s45
      %p51 = scmp.eq.s32.totalorder %s11, 0
      %p52 = por %p50, %p51
      %p53 = scmp.ne.s32.totalorder %s42, %s45
      %p54 = scmp.eq.s32.totalorder %s16, 2
      %p55 = por %p53, %p54
      %p56 = scmp.ne.s32.totalorder %s45, %s46
      %p57 = scmp.eq.s32.totalorder %s16, 0
      %p58 = por %p56, %p57
      %p59 = scmp.ne.s32.totalorder %s45, %s46
      %p60 = scmp.eq.s32.totalorder %s17, 2
      %p61 = por %p59, %p60
      %p63 = scmp.ne.s32.totalorder %s46, %s62
      %p64 = scmp.eq.s32.totalorder %s17, 0
      %p65 = por %p63, %p64
      %s66 = ssub.s32 %s20, %s29
      %s67 = ssub.s32 %s19, %s33
      %s68 = sor.u32 %s66, %s67
      %p69 = scmp.eq.s32.totalorder %s68, 0
      %s71 = sadd.s32 %s70, 1
      %s72 = scalar_select %p69, %s70, %s71
      %p75 = pneg %p69
      %p76 = scmp.eq.s32.totalorder %s11, 2
      %p77 = por %p75, %p76
      %p78 = scmp.ne.s32.totalorder %s70, %s73
      %p79 = scmp.eq.s32.totalorder %s11, 0
      %p80 = por %p78, %p79
      %p81 = scmp.ne.s32.totalorder %s70, %s73
      %p82 = scmp.eq.s32.totalorder %s16, 2
      %p83 = por %p81, %p82
      %p84 = scmp.ne.s32.totalorder %s73, %s74
      %p85 = scmp.eq.s32.totalorder %s16, 0
      %p86 = por %p84, %p85
      %p87 = scmp.ne.s32.totalorder %s73, %s74
      %p88 = scmp.eq.s32.totalorder %s17, 2
      %p89 = por %p87, %p88
      %p91 = scmp.ne.s32.totalorder %s74, %s90
      %p92 = scmp.eq.s32.totalorder %s17, 0
      %p93 = por %p91, %p92
      %s94 = ssub.s32 %s19, %s33
      %p95 = scmp.eq.s32.totalorder %s94, 0
      %s97 = sadd.s32 %s96, 1
      %s98 = scalar_select %p95, %s96, %s97
      %p101 = pneg %p95
      %p102 = scmp.eq.s32.totalorder %s11, 2
      %p103 = por %p101, %p102
      %p104 = scmp.ne.s32.totalorder %s96, %s99
      %p105 = scmp.eq.s32.totalorder %s11, 0
      %p106 = por %p104, %p105
      %p107 = scmp.ne.s32.totalorder %s96, %s99
      %p108 = scmp.eq.s32.totalorder %s16, 2
      %p109 = por %p107, %p108
      %p110 = scmp.ne.s32.totalorder %s99, %s100
      %p111 = scmp.eq.s32.totalorder %s16, 0
      %p112 = por %p110, %p111
      %p113 = scmp.ne.s32.totalorder %s99, %s100
      %p114 = scmp.eq.s32.totalorder %s17, 2
      %p115 = por %p113, %p114
      %p117 = scmp.ne.s32.totalorder %s100, %s116
      %p118 = scmp.eq.s32.totalorder %s17, 0
      %p119 = por %p117, %p118
      %s120 = ssub.s32 %s19, %s33
      %p121 = scmp.eq.s32.totalorder %s120, 0
      %s123 = sadd.s32 %s122, 1
      %s124 = scalar_select %p121, %s122, %s123
      %p127 = pneg %p121
      %p128 = scmp.eq.s32.totalorder %s11, 2
      %p129 = por %p127, %p128
      %p130 = scmp.ne.s32.totalorder %s122, %s125
      %p131 = scmp.eq.s32.totalorder %s11, 0
      %p132 = por %p130, %p131
      %p133 = scmp.ne.s32.totalorder %s122, %s125
      %p134 = scmp.eq.s32.totalorder %s16, 2
      %p135 = por %p133, %p134
      %p136 = scmp.ne.s32.totalorder %s125, %s126
      %p137 = scmp.eq.s32.totalorder %s16, 0
      %p138 = por %p136, %p137
      %p139 = scmp.ne.s32.totalorder %s125, %s126
      %p140 = scmp.eq.s32.totalorder %s17, 2
      %p141 = por %p139, %p140
      %p143 = scmp.ne.s32.totalorder %s126, %s142
      %p144 = scmp.eq.s32.totalorder %s17, 0
      %p145 = por %p143, %p144
      %s146 = ssub.s32 %s18, %s37
      %s147 = ssub.s32 %s19, %s33
      %s148 = sor.u32 %s146, %s147
      %p149 = scmp.eq.s32.totalorder %s148, 0
      %s151 = sadd.s32 %s150, 1
      %s152 = scalar_select %p149, %s150, %s151
      %p155 = pneg %p149
      %p156 = scmp.eq.s32.totalorder %s11, 2
      %p157 = por %p155, %p156
      %p158 = scmp.ne.s32.totalorder %s150, %s153
      %p159 = scmp.eq.s32.totalorder %s11, 0
      %p160 = por %p158, %p159
      %p161 = scmp.ne.s32.totalorder %s150, %s153
      %p162 = scmp.eq.s32.totalorder %s16, 2
      %p163 = por %p161, %p162
      %p164 = scmp.ne.s32.totalorder %s153, %s154
      %p165 = scmp.eq.s32.totalorder %s16, 0
      %p166 = por %p164, %p165
      %p167 = scmp.ne.s32.totalorder %s153, %s154
      %p168 = scmp.eq.s32.totalorder %s17, 2
      %p169 = por %p167, %p168
      %p171 = scmp.ne.s32.totalorder %s154, %s170
      %p172 = scmp.eq.s32.totalorder %s17, 0
      %p173 = por %p171, %p172
      %s174 = ssub.s32 %s18, %s37
      %s175 = ssub.s32 %s19, %s33
      %s176 = sor.u32 %s174, %s175
      %p177 = scmp.eq.s32.totalorder %s176, 0
      %s179 = sadd.s32 %s178, 1
      %s180 = scalar_select %p177, %s178, %s179
      %p183 = pneg %p177
      %p184 = scmp.eq.s32.totalorder %s11, 2
      %p185 = por %p183, %p184
      %p186 = scmp.ne.s32.totalorder %s178, %s181
      %p187 = scmp.eq.s32.totalorder %s11, 0
      %p188 = por %p186, %p187
      %p189 = scmp.ne.s32.totalorder %s178, %s181
      %p190 = scmp.eq.s32.totalorder %s16, 2
      %p191 = por %p189, %p190
      %p192 = scmp.ne.s32.totalorder %s181, %s182
      %p193 = scmp.eq.s32.totalorder %s16, 0
      %p194 = por %p192, %p193
      %p195 = scmp.ne.s32.totalorder %s181, %s182
      %p196 = scmp.eq.s32.totalorder %s17, 2
      %p197 = por %p195, %p196
      %p199 = scmp.ne.s32.totalorder %s182, %s198
      %p200 = scmp.eq.s32.totalorder %s17, 0
      %p201 = por %p199, %p200
      %p202 = scmp.le.s32.totalorder 1, %s11
      %p203 = scmp.lt.s32.totalorder %s11, 4
      %p204 = pnand %p202, %p203
      %p205 = pneg %p204
      // Predicated region
      $region9: #{decoder_forward.66} parent=5 // pred_check
        _
      $region10: #{decoder_forward.66} parent=5 // pred_check_branch
        %207 = sbr.rel (%p204) target = $region12
      $region11: #{decoder_forward.66} parent=5 // pred_region
        %s208 = ssub.s32 %s11, 1
        // Predicated region
        $region13: #{decoder_forward.66} parent=11 // pred_check
          %p209 = pneg %p112
        $region14: #{decoder_forward.66} parent=11 // pred_check_branch
          %211 = sbr.rel (%p209) target = $region16
        $region15: #{decoder_forward.66} parent=11 // pred_region
          %p212 = scmp.lt.s32.totalorder %s22, 0
          %s213 = scalar_select %p212, %s22, 0
          %s214 = scalar_lea.vmem %s2, %s213
        $region16: #{decoder_forward.66} parent=11 // pred_fallthru
          _
        // Predicated region
        $region17: #{decoder_forward.66} parent=11 // pred_check
          %p215 = pneg %p138
        $region18: #{decoder_forward.66} parent=11 // pred_check_branch
          %217 = sbr.rel (%p215) target = $region20
        $region19: #{decoder_forward.66} parent=11 // pred_region
          %p218 = scmp.lt.s32.totalorder %s22, 0
          %s219 = scalar_select %p218, %s22, 0
          %s220 = scalar_lea.vmem %s3, %s219
        $region20: #{decoder_forward.66} parent=11 // pred_fallthru
          _
        // Predicated region
        $region21: #{decoder_forward.66} parent=11 // pred_check
          %p221 = pneg %p166
        $region22: #{decoder_forward.66} parent=11 // pred_check_branch
          %223 = sbr.rel (%p221) target = $region24
        $region23: #{decoder_forward.66} parent=11 // pred_region
          %s224 = smul.u32 4, %s21
          %p225 = scmp.lt.s32.totalorder %s224, 3
          %s226 = scalar_select %p225, %s224, 3
          %p227 = scmp.lt.s32.totalorder %s22, 0
          %s228 = scalar_select %p227, %s22, 0
          %s229 = sadd.s32 %s228, %s226
          %s230 = smul.addr %s229, 4
          %s231 = scalar_lea.vmem %s4, %s230
          %s232 = smul.u32 4, %s21
        $region24: #{decoder_forward.66} parent=11 // pred_fallthru
          _
      $region12: #{decoder_forward.66} parent=5 // pred_fallthru
        _
      %p233 = scmp.lt.s32.totalorder %s11, 3
      // Predicated region
      $region25: #{decoder_forward.66} parent=5 // pred_check
        %p234 = pneg %p233
      $region26: #{decoder_forward.66} parent=5 // pred_check_branch
        %236 = sbr.rel (%p234) target = $region28
      $region27: #{decoder_forward.66} parent=5 // pred_region
        // Predicated region
        $region29: #{decoder_forward.66} parent=27 // pred_check
          %p237 = pneg %p52
        $region30: #{decoder_forward.66} parent=27 // pred_check_branch
          %239 = sbr.rel (%p237) target = $region32
        $region31: #{decoder_forward.66} parent=27 // pred_region
          %s240 = sand.u32 %s42, 1
          %s241 = sand.u32 %s42, 1
          %s242 = smul.addr %s241, 16
          %s243 = scalar_lea.vmem [#allocation3], %s242
          %s244 = smul.u32 4, %s18
          %s245 = smul.addr %s244, 3
          %s246 = sadd.s32 %s20, %s245
          %s247 = smul.addr %s246, 4
          %s248 = scalar_lea.vmem %s0, %s247
          // Predicated region
          $region33: #{decoder_forward.66} parent=31 // pred_check
            _
          $region34: #{decoder_forward.66} parent=31 // pred_check_branch
            %250 = sbr.rel (0) target = $region36
          $region35: #{decoder_forward.66} parent=31 // pred_region
            // Predicated region
            $region37: #{decoder_forward.66} parent=35 // pred_check
              _
            $region38: #{decoder_forward.66} parent=35 // pred_check_branch
              %252 = sbr.rel target = $region40
            $region39: #{decoder_forward.66} parent=35 // pred_region
              // Predicated region
              $region52: #{decoder_forward.66} parent=39 // pred_check
                _
              $region53: #{decoder_forward.66} parent=39 // pred_check_branch
                %274 = sbr.rel (0) target = $region55
              $region54: #{decoder_forward.66} parent=39 // pred_region
                loop: start=0, step=1, limit=1
                $region56: #{decoder_forward.66} parent=54 // loop_pre_header
                  _
                $region57: #{decoder_forward.66} parent=54 // loop_header
                  %s276 = sphi 0, %s280
                  %p277 = scmp.ge.s32.totalorder %s276, 1
                  %s281 = sphi %s248, %s248
                  %s282 = sphi %s243, %s243
                $region58: #{decoder_forward.66} parent=54 // loop_header_branch
                  %279 = sbr.rel (%p277) target = $region62
                $region59: #{decoder_forward.66} parent=54 // loop_body
                  _
                $region60: #{decoder_forward.66} parent=54 // loop_footer
                  %s280 = sadd.s32 1, %s276
                $region61: #{decoder_forward.66} parent=54 // loop_footer_branch
                  %275 = sbr.rel target = $region57
                $region62: #{decoder_forward.66} parent=54 // loop_exit
                  _
                %s284 = ssub.s32 16, 1
                loop: start=0, step=1, limit=1
                $region63: #{decoder_forward.66} parent=54 // loop_pre_header
                  _
                $region64: #{decoder_forward.66} parent=54 // loop_header
                  %s286 = sphi 0, %s290
                  %p287 = scmp.ge.s32.totalorder %s286, 1
                  %s291 = sphi %s248, %s248
                  %s292 = sphi %s243, %s243
                $region65: #{decoder_forward.66} parent=54 // loop_header_branch
                  %289 = sbr.rel (%p287) target = $region69
                $region66: #{decoder_forward.66} parent=54 // loop_body
                  %v293 = vld [vmem:[%s291] sm:%s284]
                  %294 = vst [vmem:[%s292] sm:%s284] %v293
                  %v295 = vld [vmem:[%s291 + $0xc] sm:%s284]
                  %296 = vst [vmem:[%s292 + $0x4] sm:%s284] %v295
                  %v297 = vld [vmem:[%s291 + $0x18] sm:%s284]
                  %298 = vst [vmem:[%s292 + $0x8] sm:%s284] %v297
                  %v299 = vld [vmem:[%s291 + $0x24] sm:%s284]
                  %300 = vst [vmem:[%s292 + $0xc] sm:%s284] %v299
                $region67: #{decoder_forward.66} parent=54 // loop_footer
                  %s290 = sadd.s32 1, %s286
                $region68: #{decoder_forward.66} parent=54 // loop_footer_branch
                  %285 = sbr.rel target = $region64
                $region69: #{decoder_forward.66} parent=54 // loop_exit
                  _
              $region55: #{decoder_forward.66} parent=39 // pred_fallthru
                _
            $region40: #{decoder_forward.66} parent=35 // pred_fallthru
              _
            // Predicated region
            $region41: #{decoder_forward.66} parent=35 // pred_check
              _
            $region42: #{decoder_forward.66} parent=35 // pred_check_branch
              %254 = sbr.rel (0) target = $region44
            $region43: #{decoder_forward.66} parent=35 // pred_region
              %s256 = ssub.s32 16, 1
              loop: start=0, step=1, limit=1
              $region45: #{decoder_forward.66} parent=43 // loop_pre_header
                _
              $region46: #{decoder_forward.66} parent=43 // loop_header
                %s258 = sphi 0, %s262
                %p259 = scmp.ge.s32.totalorder %s258, 1
                %s263 = sphi %s248, %s248
                %s264 = sphi %s243, %s243
              $region47: #{decoder_forward.66} parent=43 // loop_header_branch
                %261 = sbr.rel (%p259) target = $region51
              $region48: #{decoder_forward.66} parent=43 // loop_body
                %v265 = vld [vmem:[%s263] sm:%s256]
                %266 = vst [vmem:[%s264] sm:%s256] %v265
                %v267 = vld [vmem:[%s263 + $0xc] sm:%s256]
                %268 = vst [vmem:[%s264 + $0x4] sm:%s256] %v267
                %v269 = vld [vmem:[%s263 + $0x18] sm:%s256]
                %270 = vst [vmem:[%s264 + $0x8] sm:%s256] %v269
                %v271 = vld [vmem:[%s263 + $0x24] sm:%s256]
                %272 = vst [vmem:[%s264 + $0xc] sm:%s256] %v271
              $region49: #{decoder_forward.66} parent=43 // loop_footer
                %s262 = sadd.s32 1, %s258
              $region50: #{decoder_forward.66} parent=43 // loop_footer_branch
                %257 = sbr.rel target = $region46
              $region51: #{decoder_forward.66} parent=43 // loop_exit
                _
            $region44: #{decoder_forward.66} parent=35 // pred_fallthru
              _
          $region36: #{decoder_forward.66} parent=31 // pred_fallthru
            _
          %301 = vnop
        $region32: #{decoder_forward.66} parent=27 // pred_fallthru
          _
        // Predicated region
        $region70: #{decoder_forward.66} parent=27 // pred_check
          %p302 = pneg %p80
        $region71: #{decoder_forward.66} parent=27 // pred_check_branch
          %304 = sbr.rel (%p302) target = $region73
        $region72: #{decoder_forward.66} parent=27 // pred_region
          %s305 = smul.u32 16, %s20
          %p306 = scmp.lt.s32.totalorder %s305, 47
          %s307 = scalar_select %p306, %s305, 47
          %p308 = scmp.lt.s32.totalorder %s19, 0
          %s309 = scalar_select %p308, %s19, 0
          %s310 = sadd.s32 %s309, %s307
          %s311 = smul.addr %s310, 4
          %s312 = scalar_lea.vmem %s1, %s311
          %s313 = smul.u32 16, %s20
        $region73: #{decoder_forward.66} parent=27 // pred_fallthru
          _
      $region28: #{decoder_forward.66} parent=5 // pred_fallthru
        _
      %p314 = scmp.le.s32.totalorder 1, %s11
      %p315 = scmp.lt.s32.totalorder %s11, 4
      %p316 = pnand %p314, %p315
      %p317 = pneg %p316
      // Predicated region
      $region74: #{decoder_forward.66} parent=5 // pred_check
        _
      $region75: #{decoder_forward.66} parent=5 // pred_check_branch
        %319 = sbr.rel (%p316) target = $region77
      $region76: #{decoder_forward.66} parent=5 // pred_region
        %s320 = ssub.s32 %s11, 1
        %s321 = sand.u32 %s45, 1
        %s322 = sand.u32 %s45, 1
        %s323 = smul.addr %s322, 16
        %s324 = scalar_lea.vmem [#allocation3], %s323
        // Predicated region
        $region78: #{decoder_forward.66} parent=76 // pred_check
          %p325 = pneg %p58
        $region79: #{decoder_forward.66} parent=76 // pred_check_branch
          %327 = sbr.rel (%p325) target = $region81
        $region80: #{decoder_forward.66} parent=76 // pred_region
          _
        $region81: #{decoder_forward.66} parent=76 // pred_fallthru
          _
        %s328 = sand.u32 %s45, 1
        %s329 = sand.u32 %s45, 1
        %s330 = smul.addr %s329, 16
        %s331 = scalar_lea.vmem [#allocation3], %s330
        %p332 = pneg %p58
        %p333 = pneg %p55
        %s334 = smul.u32 16, %s23
        %p335 = scmp.lt.s32.totalorder %s334, 47
        %s336 = scalar_select %p335, %s334, 47
        %p337 = scmp.lt.s32.totalorder %s22, 0
        %s338 = scalar_select %p337, %s22, 0
        %s339 = sadd.s32 %s338, %s336
        %s340 = smul.addr %s339, 4
        %s341 = scalar_lea.vmem %s1, %s340
        %p342 = pneg %p86
        %p343 = pneg %p83
        %p344 = scmp.lt.s32.totalorder %s22, 0
        %s345 = scalar_select %p344, %s22, 0
        %s346 = scalar_lea.vmem %s2, %s345
        %p347 = pneg %p112
        %p348 = pneg %p109
        %p349 = scmp.lt.s32.totalorder %s22, 0
        %s350 = scalar_select %p349, %s22, 0
        %s351 = scalar_lea.vmem %s3, %s350
        %p352 = pneg %p138
        %p353 = pneg %p135
        %s354 = smul.u32 4, %s21
        %p355 = scmp.lt.s32.totalorder %s354, 3
        %s356 = scalar_select %p355, %s354, 3
        %p357 = scmp.lt.s32.totalorder %s22, 0
        %s358 = scalar_select %p357, %s22, 0
        %s359 = sadd.s32 %s358, %s356
        %s360 = smul.addr %s359, 4
        %s361 = scalar_lea.vmem %s4, %s360
        %p362 = pneg %p166
        %p363 = pneg %p163
        %p364 = pneg %p194
        %p365 = pneg %p191
        %s366 = smul.u32 4, %s21
        %p367 = scmp.lt.s32.totalorder %s366, 3
        %s368 = scalar_select %p367, %s366, 3
        %p369 = scmp.lt.s32.totalorder %s22, 0
        %s370 = scalar_select %p369, %s22, 0
        %s371 = sadd.s32 %s370, %s368
        %s372 = smul.addr %s371, 4
        %s373 = scalar_lea.vmem %s5, %s372
        %s374 = smul.u32 4, %s21
        %s375 = smul.u32 16, %s23
        %p376 = scmp.lt.s32.totalorder %s375, 47
        %s377 = scalar_select %p376, %s375, 47
        %p378 = scmp.lt.s32.totalorder %s22, 0
        %s379 = scalar_select %p378, %s22, 0
        %s380 = sadd.s32 %s379, %s377
        %s381 = smul.addr %s380, 4
        %s382 = scalar_lea.vmem %s1, %s381
        %s383 = smul.u32 16, %s23
        %p384 = scmp.lt.s32.totalorder %s22, 0
        %s385 = scalar_select %p384, %s22, 0
        %s386 = scalar_lea.vmem %s2, %s385
        %p387 = scmp.lt.s32.totalorder %s22, 0
        %s388 = scalar_select %p387, %s22, 0
        %s389 = scalar_lea.vmem %s3, %s388
        %s390 = smul.u32 4, %s21
        %p391 = scmp.lt.s32.totalorder %s390, 3
        %s392 = scalar_select %p391, %s390, 3
        %p393 = scmp.lt.s32.totalorder %s22, 0
        %s394 = scalar_select %p393, %s22, 0
        %s395 = sadd.s32 %s394, %s392
        %s396 = smul.addr %s395, 4
        %s397 = scalar_lea.vmem %s4, %s396
        %s398 = smul.u32 4, %s21
        %s399 = smul.u32 4, %s21
        %p400 = scmp.lt.s32.totalorder %s399, 3
        %s401 = scalar_select %p400, %s399, 3
        %p402 = scmp.lt.s32.totalorder %s22, 0
        %s403 = scalar_select %p402, %s22, 0
        %s404 = sadd.s32 %s403, %s401
        %s405 = smul.addr %s404, 4
        %s406 = scalar_lea.vmem %s5, %s405
        %s407 = smul.u32 4, %s21
        %p409 = scmp.eq.s32.totalorder %s23, 0
        // Predicated region
        $region82: #{decoder_forward.66} parent=76 // pred_check
          %p410 = pneg %p409
        $region83: #{decoder_forward.66} parent=76 // pred_check_branch
          %412 = sbr.rel (%p410) target = $region85
        $region84: #{decoder_forward.66} parent=76 // pred_region
          %413 = vst [vmem:[#allocation2] sm:$0xff] 0.0
          %414 = vst [vmem:[#allocation2 + $0x8] sm:$0xff] 0.0
          %415 = vst [vmem:[#allocation2 + $0x10] sm:$0xff] 0.0
          %416 = vst [vmem:[#allocation2 + $0x18] sm:$0xff] 0.0
        $region85: #{decoder_forward.66} parent=76 // pred_fallthru
          _
        %v417 = vld [vmem:[#allocation2] sm:$0xff]
        %v418 = vld [vmem:[#allocation2 + $0x8] sm:$0xff]
        %v419 = vld [vmem:[#allocation2 + $0x10] sm:$0xff]
        %v420 = vld [vmem:[#allocation2 + $0x18] sm:$0xff]
        %v421 = vld [vmem:[%s324] sm:$0xf]
        %v422 = vld [vmem:[%s324 + $0x4] sm:$0xf]
        %v423 = vld [vmem:[%s324 + $0x8] sm:$0xf]
        %v424 = vld [vmem:[%s324 + $0xc] sm:$0xf]
        %v425 = vld [vmem:[%s382] sm:$0xf]
        %v426 = vld [vmem:[%s382 + $0x4] sm:$0xf]
        %v427 = vld [vmem:[%s382 + $0x8] sm:$0xf]
        %v428 = vld [vmem:[%s382 + $0xc] sm:$0xf]
        %v429 = vld [vmem:[%s382 + $0x10] sm:$0xf]
        %v430 = vld [vmem:[%s382 + $0x14] sm:$0xf]
        %v431 = vld [vmem:[%s382 + $0x18] sm:$0xf]
        %v432 = vld [vmem:[%s382 + $0x1c] sm:$0xf]
        %v433 = vld [vmem:[%s382 + $0x20] sm:$0xf]
        %v434 = vld [vmem:[%s382 + $0x24] sm:$0xf]
        %v435 = vld [vmem:[%s382 + $0x28] sm:$0xf]
        %v436 = vld [vmem:[%s382 + $0x2c] sm:$0xf]
        %v437 = vld [vmem:[%s382 + $0x30] sm:$0xf]
        %v438 = vld [vmem:[%s382 + $0x34] sm:$0xf]
        %v439 = vld [vmem:[%s382 + $0x38] sm:$0xf]
        %v440 = vld [vmem:[%s382 + $0x3c] sm:$0xf]
        %v445 = vunpack.c.l.b16 %v421
        %v446 = vunpack.c.l.b16 %v422
        %v447 = vunpack.c.l.b16 %v423
        %v448 = vunpack.c.l.b16 %v424
        %v449 = vpack.c.b16 %v446, %v445
        %v450 = vpack.c.b16 %v448, %v447
        %v469 = vunpack.c.l.b16 %v425
        %v470 = vunpack.c.l.b16 %v426
        %v471 = vunpack.c.l.b16 %v427
        %v472 = vunpack.c.l.b16 %v428
        %v473 = vunpack.c.l.b16 %v429
        %v474 = vunpack.c.l.b16 %v430
        %v475 = vunpack.c.l.b16 %v431
        %v476 = vunpack.c.l.b16 %v432
        %v477 = vunpack.c.l.b16 %v433
        %v478 = vunpack.c.l.b16 %v434
        %v479 = vunpack.c.l.b16 %v435
        %v480 = vunpack.c.l.b16 %v436
        %v481 = vunpack.c.l.b16 %v437
        %v482 = vunpack.c.l.b16 %v438
        %v483 = vunpack.c.l.b16 %v439
        %v484 = vunpack.c.l.b16 %v440
        %v485 = vpack.c.b16 %v470, %v469
        %v486 = vpack.c.b16 %v472, %v471
        %v487 = vpack.c.b16 %v474, %v473
        %v488 = vpack.c.b16 %v476, %v475
        %v489 = vpack.c.b16 %v478, %v477
        %v490 = vpack.c.b16 %v480, %v479
        %v491 = vpack.c.b16 %v482, %v481
        %v492 = vpack.c.b16 %v484, %v483
        %501 = vmatprep.subr.bf16.mxu0 0
        %502 = vmatpush1.bf16.msra.mxu0 %v492
        %503 = vmatprep.subr.bf16.mxu0 0
        %504 = vmatpush1.bf16.msra.mxu0 %v491
        %505 = vmatprep.subr.bf16.mxu0 0
        %506 = vmatpush1.bf16.msra.mxu0 %v490
        %507 = vmatprep.subr.bf16.mxu0 0
        %508 = vmatpush1.bf16.msra.mxu0 %v489
        %509 = vmatprep.subr.bf16.mxu0 0
        %510 = vmatpush1.bf16.msra.mxu0 %v488
        %511 = vmatprep.subr.bf16.mxu0 0
        %512 = vmatpush1.bf16.msra.mxu0 %v487
        %513 = vmatprep.subr.bf16.mxu0 0
        %514 = vmatpush1.bf16.msra.mxu0 %v486
        %515 = vmatprep.subr.bf16.mxu0 0
        %516 = vmatpush1.bf16.msra.mxu0 %v485
        %517 = vmatprep.subr.bf16.mxu0 0
        %518 = vmatpush2.bf16.msra.mxu0 0
        %519 = vmatprep.subr.bf16.mxu0 0
        %520 = vmatpush2.bf16.msra.mxu0 0
        %521 = vmatprep.subr.bf16.mxu0 0
        %522 = vmatpush2.bf16.msra.mxu0 0
        %523 = vmatprep.subr.bf16.mxu0 0
        %524 = vmatpush2.bf16.msra.mxu0 0
        %525 = vmatprep.subr.bf16.mxu0 0
        %526 = vmatpush2.bf16.msra.mxu0 0
        %527 = vmatprep.subr.bf16.mxu0 0
        %528 = vmatpush2.bf16.msra.mxu0 0
        %529 = vmatprep.subr.bf16.mxu0 0
        %530 = vmatpush2.bf16.msra.mxu0 0
        %531 = vmatprep.subr.bf16.mxu0 0
        %532 = vmatpush2.bf16.msra.mxu0 0
        %533 = vmatprep.mubr.bf16.mxu0 0
        %534 = vmatmul.mubr.bf16.gmra.mxu0 %v449
        %v535 = vpop.f32.mrf.mxu0
        %v536 = vadd.f32 0.0, %v535
        %v537 = vpop.f32.mrf.mxu0
        %v538 = vpop.f32.mrf.mxu0
        %v539 = vadd.f32 0.0, %v538
        %v540 = vpop.f32.mrf.mxu0
        %541 = vmatprep.mubr.bf16.mxu0 0
        %542 = vmatmul.mubr.bf16.gmra.mxu0 %v450
        %v543 = vpop.f32.mrf.mxu0
        %v544 = vadd.f32 0.0, %v543
        %v545 = vpop.f32.mrf.mxu0
        %v546 = vpop.f32.mrf.mxu0
        %v547 = vadd.f32 0.0, %v546
        %v548 = vpop.f32.mrf.mxu0
        %549 = vdwg.mxu0
        %v550 = vadd.f32 %v417, %v536
        %v551 = vadd.f32 %v418, %v539
        %v552 = vadd.f32 %v419, %v544
        %v553 = vadd.f32 %v420, %v547
        %554 = vst [vmem:[#allocation2] sm:$0xff] %v550
        %555 = vst [vmem:[#allocation2 + $0x8] sm:$0xff] %v551
        %556 = vst [vmem:[#allocation2 + $0x10] sm:$0xff] %v552
        %557 = vst [vmem:[#allocation2 + $0x18] sm:$0xff] %v553
        %p558 = scmp.eq.s32.totalorder %s23, 2
        // Predicated region
        $region86: #{decoder_forward.66} parent=76 // pred_check
          %p559 = pneg %p558
        $region87: #{decoder_forward.66} parent=76 // pred_check_branch
          %561 = sbr.rel (%p559) target = $region89
        $region88: #{decoder_forward.66} parent=76 // pred_region
          %v562 = vld [vmem:[#allocation2] sm:$0xff]
          %v563 = vld [vmem:[#allocation2 + $0x8] sm:$0xff]
          %v564 = vld [vmem:[#allocation2 + $0x10] sm:$0xff]
          %v565 = vld [vmem:[#allocation2 + $0x18] sm:$0xff]
          %v566 = vld [vmem:[%s386] sm:$0x1]
          %v568 = vlaneseq
          %v569 = vshrl.u32 %v568, 7
          %v570 = vsub.s32 0, %v569
          %v571 = vrot.slane %v566, %v570
          %v573 = vmul.f32 %v562, %v571
          %v574 = vmul.f32 %v563, %v571
          %v575 = vmul.f32 %v564, %v571
          %v576 = vmul.f32 %v565, %v571
          %v577 = vld [vmem:[%s389] sm:$0x1]
          %v579 = vlaneseq
          %v580 = vshrl.u32 %v579, 7
          %v581 = vsub.s32 0, %v580
          %v582 = vrot.slane %v577, %v581
          %v584 = vadd.f32 %v573, %v582
          %v585 = vadd.f32 %v574, %v582
          %v586 = vadd.f32 %v575, %v582
          %v587 = vadd.f32 %v576, %v582
          %v588 = vld [vmem:[%s397] sm:$0xf]
          %v589 = vld [vmem:[%s397 + $0x4] sm:$0xf]
          %v590 = vld [vmem:[%s397 + $0x8] sm:$0xf]
          %v591 = vld [vmem:[%s397 + $0xc] sm:$0xf]
          %v592 = vunpack.c.l.bf16 %v588
          %v593 = vunpack.c.l.bf16 %v589
          %v594 = vunpack.c.l.bf16 %v590
          %v595 = vunpack.c.l.bf16 %v591
          %v596 = vadd.f32 %v584, %v592
          %v597 = vadd.f32 %v585, %v593
          %v598 = vadd.f32 %v586, %v594
          %v599 = vadd.f32 %v587, %v595
          %v600 = vmax.f32 %v596, 0.0
          %v601 = vmax.f32 %v597, 0.0
          %v602 = vmax.f32 %v598, 0.0
          %v603 = vmax.f32 %v599, 0.0
          %v604 = vpack.c.bf16 %v601, %v600
          %v605 = vpack.c.bf16 %v603, %v602
          %v608 = vunpack.c.l.b16 %v604
          %v609 = vunpack.c.h.b16 %v604
          %v610 = vunpack.c.l.b16 %v605
          %v611 = vunpack.c.h.b16 %v605
          %v612 = vpack.c.b16 %v608, %v608
          %v613 = vpack.c.b16 %v609, %v609
          %v614 = vpack.c.b16 %v610, %v610
          %v615 = vpack.c.b16 %v611, %v611
          %620 = vst [vmem:[%s406] sm:$0xf] %v612
          %621 = vst [vmem:[%s406 + $0x4] sm:$0xf] %v613
          %622 = vst [vmem:[%s406 + $0x8] sm:$0xf] %v614
          %623 = vst [vmem:[%s406 + $0xc] sm:$0xf] %v615
        $region89: #{decoder_forward.66} parent=76 // pred_fallthru
          _
        %s624 = smul.u32 4, %s21
        %p625 = scmp.lt.s32.totalorder %s624, 3
        %s626 = scalar_select %p625, %s624, 3
        %p627 = scmp.lt.s32.totalorder %s22, 0
        %s628 = scalar_select %p627, %s22, 0
        %s629 = sadd.s32 %s628, %s626
        %s630 = smul.addr %s629, 4
        %s631 = scalar_lea.vmem %s5, %s630
        // Predicated region
        $region90: #{decoder_forward.66} parent=76 // pred_check
          %p632 = pneg %p191
        $region91: #{decoder_forward.66} parent=76 // pred_check_branch
          %634 = sbr.rel (%p632) target = $region93
        $region92: #{decoder_forward.66} parent=76 // pred_region
          %s635 = smul.u32 4, %s21
        $region93: #{decoder_forward.66} parent=76 // pred_fallthru
          _
        // Predicated region
        $region94: #{decoder_forward.66} parent=76 // pred_check
          %p636 = pneg %p191
        $region95: #{decoder_forward.66} parent=76 // pred_check_branch
          %638 = sbr.rel (%p636) target = $region97
        $region96: #{decoder_forward.66} parent=76 // pred_region
          %s639 = smul.u32 4, %s21
          %p640 = scmp.lt.s32.totalorder %s639, 3
          %s641 = scalar_select %p640, %s639, 3
          %p642 = scmp.lt.s32.totalorder %s22, 0
          %s643 = scalar_select %p642, %s22, 0
          %s644 = sadd.s32 %s643, %s641
          %s645 = smul.addr %s644, 4
          %s646 = scalar_lea.vmem %s5, %s645
        $region97: #{decoder_forward.66} parent=76 // pred_fallthru
          _
      $region77: #{decoder_forward.66} parent=5 // pred_fallthru
        _
      %p647 = scmp.le.s32.totalorder 2, %s11
      // Predicated region
      $region98: #{decoder_forward.66} parent=5 // pred_check
        %p648 = pneg %p647
      $region99: #{decoder_forward.66} parent=5 // pred_check_branch
        %650 = sbr.rel (%p648) target = $region101
      $region100: #{decoder_forward.66} parent=5 // pred_region
        %s651 = ssub.s32 %s11, 2
      $region101: #{decoder_forward.66} parent=5 // pred_fallthru
        _
    $region6: #{decoder_forward.66} parent=1 // loop_footer
      %s15 = sadd.s32 1, %s11
    $region7: #{decoder_forward.66} parent=1 // loop_footer_branch
      %10 = sbr.rel target = $region3
    $region8: #{decoder_forward.66} parent=1 // loop_exit
      _

// kernel: decoder_forward.71
$region0: #{decoder_forward.71}
  #allocation0 [shape = 'u32[]', space=smem, size = 0x4, offset = 0x4, fixed_abs, tag = 'smem constant byte address 0x4 - core index']
  #allocation1 [shape = 'u32[144,128]{1,0:T(1,128)}', space=vmem, size = 0x12000, scoped, tag = 'internal scratch']
  #allocation2 [shape = 'f32[32,128]{1,0:T(8,128)}', space=vmem, size = 0x4000, scoped, tag = 'scratch operand']
  %s0 = inlined_call_operand.vmem [shape: bf16[32,128], index: 0, kind: input, shape index: {}]
  %s1 = inlined_call_operand.vmem [shape: bf16[128,128], index: 1, kind: input, shape index: {}]
  %s2 = inlined_call_operand.vmem [shape: f32[1,128], index: 2, kind: input, shape index: {}]
  %s3 = inlined_call_operand.vmem [shape: f32[1,128], index: 3, kind: input, shape index: {}]
  %s4 = inlined_call_operand.vmem [shape: bf16[32,128], index: 4, kind: output, shape index: {}]
  %s5 = sld [smem:[#allocation0]]
  $region34: #{decoder_forward.71} parent=0
    _
  %s7 = ssub.s32 1, %s5
  %s8 = scalar_select 0, %s7, %s5
  // Predicated region
  $region2: #{decoder_forward.71} parent=0 // pred_check
    _
  $region3: #{decoder_forward.71} parent=0 // pred_check_branch
    %10 = sbr.rel (0) target = $region5
  $region4: #{decoder_forward.71} parent=0 // pred_region
    _
  $region5: #{decoder_forward.71} parent=0 // pred_fallthru
    _
  // Predicated region
  $region6: #{decoder_forward.71} parent=0 // pred_check
    _
  $region7: #{decoder_forward.71} parent=0 // pred_check_branch
    %12 = sbr.rel (0) target = $region9
  $region8: #{decoder_forward.71} parent=0 // pred_region
    _
  $region9: #{decoder_forward.71} parent=0 // pred_fallthru
    _
  // Predicated region
  $region10: #{decoder_forward.71} parent=0 // pred_check
    _
  $region11: #{decoder_forward.71} parent=0 // pred_check_branch
    %14 = sbr.rel (0) target = $region13
  $region12: #{decoder_forward.71} parent=0 // pred_region
    _
  $region13: #{decoder_forward.71} parent=0 // pred_fallthru
    _
  // Predicated region
  $region14: #{decoder_forward.71} parent=0 // pred_check
    _
  $region15: #{decoder_forward.71} parent=0 // pred_check_branch
    %16 = sbr.rel (0) target = $region17
  $region16: #{decoder_forward.71} parent=0 // pred_region
    _
  $region17: #{decoder_forward.71} parent=0 // pred_fallthru
    _
  %p18 = scmp.eq.s32.totalorder 0, 0
  // Predicated region
  $region18: #{decoder_forward.71} parent=0 // pred_check
    %p19 = pneg %p18
  $region19: #{decoder_forward.71} parent=0 // pred_check_branch
    %21 = sbr.rel (%p19) target = $region21
  $region20: #{decoder_forward.71} parent=0 // pred_region
    %22 = vst [vmem:[#allocation2] sm:$0xff] 0.0
    %23 = vst [vmem:[#allocation2 + $0x8] sm:$0xff] 0.0
    %24 = vst [vmem:[#allocation2 + $0x10] sm:$0xff] 0.0
    %25 = vst [vmem:[#allocation2 + $0x18] sm:$0xff] 0.0
  $region21: #{decoder_forward.71} parent=0 // pred_fallthru
    _
  %v26 = vld [vmem:[#allocation2] sm:$0xff]
  %v27 = vld [vmem:[#allocation2 + $0x8] sm:$0xff]
  %v28 = vld [vmem:[#allocation2 + $0x10] sm:$0xff]
  %v29 = vld [vmem:[#allocation2 + $0x18] sm:$0xff]
  %v30 = vld [vmem:[%s0] sm:$0xf]
  %v31 = vld [vmem:[%s0 + $0x4] sm:$0xf]
  %v32 = vld [vmem:[%s0 + $0x8] sm:$0xf]
  %v33 = vld [vmem:[%s0 + $0xc] sm:$0xf]
  %v34 = vld [vmem:[%s1] sm:$0xf]
  %v35 = vld [vmem:[%s1 + $0x4] sm:$0xf]
  %v36 = vld [vmem:[%s1 + $0x8] sm:$0xf]
  %v37 = vld [vmem:[%s1 + $0xc] sm:$0xf]
  %v38 = vld [vmem:[%s1 + $0x10] sm:$0xf]
  %v39 = vld [vmem:[%s1 + $0x14] sm:$0xf]
  %v40 = vld [vmem:[%s1 + $0x18] sm:$0xf]
  %v41 = vld [vmem:[%s1 + $0x1c] sm:$0xf]
  %v42 = vld [vmem:[%s1 + $0x20] sm:$0xf]
  %v43 = vld [vmem:[%s1 + $0x24] sm:$0xf]
  %v44 = vld [vmem:[%s1 + $0x28] sm:$0xf]
  %v45 = vld [vmem:[%s1 + $0x2c] sm:$0xf]
  %v46 = vld [vmem:[%s1 + $0x30] sm:$0xf]
  %v47 = vld [vmem:[%s1 + $0x34] sm:$0xf]
  %v48 = vld [vmem:[%s1 + $0x38] sm:$0xf]
  %v49 = vld [vmem:[%s1 + $0x3c] sm:$0xf]
  %v54 = vunpack.c.l.b16 %v30
  %v55 = vunpack.c.l.b16 %v31
  %v56 = vunpack.c.l.b16 %v32
  %v57 = vunpack.c.l.b16 %v33
  %v58 = vpack.c.b16 %v55, %v54
  %v59 = vpack.c.b16 %v57, %v56
  %v78 = vunpack.c.l.b16 %v34
  %v79 = vunpack.c.l.b16 %v35
  %v80 = vunpack.c.l.b16 %v36
  %v81 = vunpack.c.l.b16 %v37
  %v82 = vunpack.c.l.b16 %v38
  %v83 = vunpack.c.l.b16 %v39
  %v84 = vunpack.c.l.b16 %v40
  %v85 = vunpack.c.l.b16 %v41
  %v86 = vunpack.c.l.b16 %v42
  %v87 = vunpack.c.l.b16 %v43
  %v88 = vunpack.c.l.b16 %v44
  %v89 = vunpack.c.l.b16 %v45
  %v90 = vunpack.c.l.b16 %v46
  %v91 = vunpack.c.l.b16 %v47
  %v92 = vunpack.c.l.b16 %v48
  %v93 = vunpack.c.l.b16 %v49
  %v94 = vpack.c.b16 %v79, %v78
  %v95 = vpack.c.b16 %v81, %v80
  %v96 = vpack.c.b16 %v83, %v82
  %v97 = vpack.c.b16 %v85, %v84
  %v98 = vpack.c.b16 %v87, %v86
  %v99 = vpack.c.b16 %v89, %v88
  %v100 = vpack.c.b16 %v91, %v90
  %v101 = vpack.c.b16 %v93, %v92
  %110 = vmatprep.subr.bf16.mxu0 0
  %111 = vmatpush1.bf16.msra.mxu0 %v101
  %112 = vmatprep.subr.bf16.mxu0 0
  %113 = vmatpush1.bf16.msra.mxu0 %v100
  %114 = vmatprep.subr.bf16.mxu0 0
  %115 = vmatpush1.bf16.msra.mxu0 %v99
  %116 = vmatprep.subr.bf16.mxu0 0
  %117 = vmatpush1.bf16.msra.mxu0 %v98
  %118 = vmatprep.subr.bf16.mxu0 0
  %119 = vmatpush1.bf16.msra.mxu0 %v97
  %120 = vmatprep.subr.bf16.mxu0 0
  %121 = vmatpush1.bf16.msra.mxu0 %v96
  %122 = vmatprep.subr.bf16.mxu0 0
  %123 = vmatpush1.bf16.msra.mxu0 %v95
  %124 = vmatprep.subr.bf16.mxu0 0
  %125 = vmatpush1.bf16.msra.mxu0 %v94
  %126 = vmatprep.subr.bf16.mxu0 0
  %127 = vmatpush2.bf16.msra.mxu0 0
  %128 = vmatprep.subr.bf16.mxu0 0
  %129 = vmatpush2.bf16.msra.mxu0 0
  %130 = vmatprep.subr.bf16.mxu0 0
  %131 = vmatpush2.bf16.msra.mxu0 0
  %132 = vmatprep.subr.bf16.mxu0 0
  %133 = vmatpush2.bf16.msra.mxu0 0
  %134 = vmatprep.subr.bf16.mxu0 0
  %135 = vmatpush2.bf16.msra.mxu0 0
  %136 = vmatprep.subr.bf16.mxu0 0
  %137 = vmatpush2.bf16.msra.mxu0 0
  %138 = vmatprep.subr.bf16.mxu0 0
  %139 = vmatpush2.bf16.msra.mxu0 0
  %140 = vmatprep.subr.bf16.mxu0 0
  %141 = vmatpush2.bf16.msra.mxu0 0
  %142 = vmatprep.mubr.bf16.mxu0 0
  %143 = vmatmul.mubr.bf16.gmra.mxu0 %v58
  %v144 = vpop.f32.mrf.mxu0
  %v145 = vadd.f32 0.0, %v144
  %v146 = vpop.f32.mrf.mxu0
  %v147 = vpop.f32.mrf.mxu0
  %v148 = vadd.f32 0.0, %v147
  %v149 = vpop.f32.mrf.mxu0
  %150 = vmatprep.mubr.bf16.mxu0 0
  %151 = vmatmul.mubr.bf16.gmra.mxu0 %v59
  %v152 = vpop.f32.mrf.mxu0
  %v153 = vadd.f32 0.0, %v152
  %v154 = vpop.f32.mrf.mxu0
  %v155 = vpop.f32.mrf.mxu0
  %v156 = vadd.f32 0.0, %v155
  %v157 = vpop.f32.mrf.mxu0
  %158 = vdwg.mxu0
  %v159 = vadd.f32 %v26, %v145
  %v160 = vadd.f32 %v27, %v148
  %v161 = vadd.f32 %v28, %v153
  %v162 = vadd.f32 %v29, %v156
  %163 = vst [vmem:[#allocation2] sm:$0xff] %v159
  %164 = vst [vmem:[#allocation2 + $0x8] sm:$0xff] %v160
  %165 = vst [vmem:[#allocation2 + $0x10] sm:$0xff] %v161
  %166 = vst [vmem:[#allocation2 + $0x18] sm:$0xff] %v162
  // Predicated region
  $region22: #{decoder_forward.71} parent=0 // pred_check
    %p167 = pneg %p18
  $region23: #{decoder_forward.71} parent=0 // pred_check_branch
    %169 = sbr.rel (%p167) target = $region25
  $region24: #{decoder_forward.71} parent=0 // pred_region
    %v170 = vld [vmem:[#allocation2] sm:$0xff]
    %v171 = vld [vmem:[#allocation2 + $0x8] sm:$0xff]
    %v172 = vld [vmem:[#allocation2 + $0x10] sm:$0xff]
    %v173 = vld [vmem:[#allocation2 + $0x18] sm:$0xff]
    %v174 = vld [vmem:[%s2] sm:$0x1]
    %v176 = vlaneseq
    %v177 = vshrl.u32 %v176, 7
    %v178 = vsub.s32 0, %v177
    %v179 = vrot.slane %v174, %v178
    %v181 = vmul.f32 %v170, %v179
    %v182 = vmul.f32 %v171, %v179
    %v183 = vmul.f32 %v172, %v179
    %v184 = vmul.f32 %v173, %v179
    %v185 = vld [vmem:[%s3] sm:$0x1]
    %v187 = vlaneseq
    %v188 = vshrl.u32 %v187, 7
    %v189 = vsub.s32 0, %v188
    %v190 = vrot.slane %v185, %v189
    %v192 = vadd.f32 %v181, %v190
    %v193 = vadd.f32 %v182, %v190
    %v194 = vadd.f32 %v183, %v190
    %v195 = vadd.f32 %v184, %v190
    %v196 = vpack.c.bf16 %v193, %v192
    %v197 = vpack.c.bf16 %v195, %v194
    %v200 = vunpack.c.l.b16 %v196
    %v201 = vunpack.c.h.b16 %v196
    %v202 = vunpack.c.l.b16 %v197
    %v203 = vunpack.c.h.b16 %v197
    %v204 = vpack.c.b16 %v200, %v200
    %v205 = vpack.c.b16 %v201, %v201
    %v206 = vpack.c.b16 %v202, %v202
    %v207 = vpack.c.b16 %v203, %v203
    %212 = vst [vmem:[%s4] sm:$0xf] %v204
    %213 = vst [vmem:[%s4 + $0x4] sm:$0xf] %v205
    %214 = vst [vmem:[%s4 + $0x8] sm:$0xf] %v206
    %215 = vst [vmem:[%s4 + $0xc] sm:$0xf] %v207
  $region25: #{decoder_forward.71} parent=0 // pred_fallthru
    _
  // Predicated region
  $region26: #{decoder_forward.71} parent=0 // pred_check
    _
  $region27: #{decoder_forward.71} parent=0 // pred_check_branch
    %217 = sbr.rel (0) target = $region29
  $region28: #{decoder_forward.71} parent=0 // pred_region
    _
  $region29: #{decoder_forward.71} parent=0 // pred_fallthru
    _
  // Predicated region
  $region30: #{decoder_forward.71} parent=0 // pred_check
    _
  $region31: #{decoder_forward.71} parent=0 // pred_check_branch
    %219 = sbr.rel (0) target = $region33
  $region32: #{decoder_forward.71} parent=0 // pred_region
    _
  $region33: #{decoder_forward.71} parent=0 // pred_fallthru
    _

// kernel: decoder_forward.73
$region0: #{decoder_forward.73}
  #allocation0 [shape = 'u32[]', space=smem, size = 0x4, offset = 0x4, fixed_abs, tag = 'smem constant byte address 0x4 - core index']
  #allocation1 [shape = 'u32[144,128]{1,0:T(1,128)}', space=vmem, size = 0x12000, scoped, tag = 'internal scratch']
  #allocation2 [shape = 'f32[32,128]{1,0:T(8,128)}', space=vmem, size = 0x4000, scoped, tag = 'scratch operand']
  %s0 = inlined_call_operand.vmem [shape: bf16[32,256], index: 0, kind: input, shape index: {}]
  %s1 = inlined_call_operand.vmem [shape: bf16[256,128], index: 1, kind: input, shape index: {}]
  %s2 = inlined_call_operand.vmem [shape: f32[1,128], index: 2, kind: input, shape index: {}]
  %s3 = inlined_call_operand.vmem [shape: f32[1,128], index: 3, kind: input, shape index: {}]
  %s4 = inlined_call_operand.vmem [shape: bf16[32,128], index: 4, kind: input, shape index: {}]
  %s5 = inlined_call_operand.vmem [shape: bf16[32,128], index: 5, kind: output, shape index: {}]
  %s6 = sld [smem:[#allocation0]]
  $region38: #{decoder_forward.73} parent=0
    _
  %s8 = ssub.s32 1, %s6
  %s9 = scalar_select 0, %s8, %s6
  // Predicated region
  $region2: #{decoder_forward.73} parent=0 // pred_check
    _
  $region3: #{decoder_forward.73} parent=0 // pred_check_branch
    %11 = sbr.rel (0) target = $region5
  $region4: #{decoder_forward.73} parent=0 // pred_region
    _
  $region5: #{decoder_forward.73} parent=0 // pred_fallthru
    _
  // Predicated region
  $region6: #{decoder_forward.73} parent=0 // pred_check
    _
  $region7: #{decoder_forward.73} parent=0 // pred_check_branch
    %13 = sbr.rel (0) target = $region9
  $region8: #{decoder_forward.73} parent=0 // pred_region
    _
  $region9: #{decoder_forward.73} parent=0 // pred_fallthru
    _
  // Predicated region
  $region10: #{decoder_forward.73} parent=0 // pred_check
    _
  $region11: #{decoder_forward.73} parent=0 // pred_check_branch
    %15 = sbr.rel (0) target = $region13
  $region12: #{decoder_forward.73} parent=0 // pred_region
    _
  $region13: #{decoder_forward.73} parent=0 // pred_fallthru
    _
  // Predicated region
  $region14: #{decoder_forward.73} parent=0 // pred_check
    _
  $region15: #{decoder_forward.73} parent=0 // pred_check_branch
    %17 = sbr.rel (0) target = $region17
  $region16: #{decoder_forward.73} parent=0 // pred_region
    _
  $region17: #{decoder_forward.73} parent=0 // pred_fallthru
    _
  // Predicated region
  $region18: #{decoder_forward.73} parent=0 // pred_check
    _
  $region19: #{decoder_forward.73} parent=0 // pred_check_branch
    %19 = sbr.rel (0) target = $region21
  $region20: #{decoder_forward.73} parent=0 // pred_region
    _
  $region21: #{decoder_forward.73} parent=0 // pred_fallthru
    _
  %p21 = scmp.eq.s32.totalorder 0, 0
  // Predicated region
  $region22: #{decoder_forward.73} parent=0 // pred_check
    %p22 = pneg %p21
  $region23: #{decoder_forward.73} parent=0 // pred_check_branch
    %24 = sbr.rel (%p22) target = $region25
  $region24: #{decoder_forward.73} parent=0 // pred_region
    %25 = vst [vmem:[#allocation2] sm:$0xff] 0.0
    %26 = vst [vmem:[#allocation2 + $0x8] sm:$0xff] 0.0
    %27 = vst [vmem:[#allocation2 + $0x10] sm:$0xff] 0.0
    %28 = vst [vmem:[#allocation2 + $0x18] sm:$0xff] 0.0
  $region25: #{decoder_forward.73} parent=0 // pred_fallthru
    _
  %v29 = vld [vmem:[#allocation2] sm:$0xff]
  %v30 = vld [vmem:[#allocation2 + $0x8] sm:$0xff]
  %v31 = vld [vmem:[#allocation2 + $0x10] sm:$0xff]
  %v32 = vld [vmem:[#allocation2 + $0x18] sm:$0xff]
  %v33 = vld [vmem:[%s0] sm:$0xff]
  %v34 = vld [vmem:[%s0 + $0x8] sm:$0xff]
  %v35 = vld [vmem:[%s0 + $0x10] sm:$0xff]
  %v36 = vld [vmem:[%s0 + $0x18] sm:$0xff]
  %v37 = vld [vmem:[%s1] sm:$0xf]
  %v38 = vld [vmem:[%s1 + $0x4] sm:$0xf]
  %v39 = vld [vmem:[%s1 + $0x8] sm:$0xf]
  %v40 = vld [vmem:[%s1 + $0xc] sm:$0xf]
  %v41 = vld [vmem:[%s1 + $0x10] sm:$0xf]
  %v42 = vld [vmem:[%s1 + $0x14] sm:$0xf]
  %v43 = vld [vmem:[%s1 + $0x18] sm:$0xf]
  %v44 = vld [vmem:[%s1 + $0x1c] sm:$0xf]
  %v45 = vld [vmem:[%s1 + $0x20] sm:$0xf]
  %v46 = vld [vmem:[%s1 + $0x24] sm:$0xf]
  %v47 = vld [vmem:[%s1 + $0x28] sm:$0xf]
  %v48 = vld [vmem:[%s1 + $0x2c] sm:$0xf]
  %v49 = vld [vmem:[%s1 + $0x30] sm:$0xf]
  %v50 = vld [vmem:[%s1 + $0x34] sm:$0xf]
  %v51 = vld [vmem:[%s1 + $0x38] sm:$0xf]
  %v52 = vld [vmem:[%s1 + $0x3c] sm:$0xf]
  %v53 = vld [vmem:[%s1 + $0x40] sm:$0xf]
  %v54 = vld [vmem:[%s1 + $0x44] sm:$0xf]
  %v55 = vld [vmem:[%s1 + $0x48] sm:$0xf]
  %v56 = vld [vmem:[%s1 + $0x4c] sm:$0xf]
  %v57 = vld [vmem:[%s1 + $0x50] sm:$0xf]
  %v58 = vld [vmem:[%s1 + $0x54] sm:$0xf]
  %v59 = vld [vmem:[%s1 + $0x58] sm:$0xf]
  %v60 = vld [vmem:[%s1 + $0x5c] sm:$0xf]
  %v61 = vld [vmem:[%s1 + $0x60] sm:$0xf]
  %v62 = vld [vmem:[%s1 + $0x64] sm:$0xf]
  %v63 = vld [vmem:[%s1 + $0x68] sm:$0xf]
  %v64 = vld [vmem:[%s1 + $0x6c] sm:$0xf]
  %v65 = vld [vmem:[%s1 + $0x70] sm:$0xf]
  %v66 = vld [vmem:[%s1 + $0x74] sm:$0xf]
  %v67 = vld [vmem:[%s1 + $0x78] sm:$0xf]
  %v68 = vld [vmem:[%s1 + $0x7c] sm:$0xf]
  %v73 = vunpack.c.l.b16 %v33
  %v74 = vunpack.c.h.b16 %v33
  %v75 = vunpack.c.l.b16 %v34
  %v76 = vunpack.c.h.b16 %v34
  %v77 = vunpack.c.l.b16 %v35
  %v78 = vunpack.c.h.b16 %v35
  %v79 = vunpack.c.l.b16 %v36
  %v80 = vunpack.c.h.b16 %v36
  %v81 = vpack.c.b16 %v75, %v73
  %v82 = vpack.c.b16 %v76, %v74
  %v83 = vpack.c.b16 %v79, %v77
  %v84 = vpack.c.b16 %v80, %v78
  %v121 = vunpack.c.l.b16 %v37
  %v122 = vunpack.c.l.b16 %v38
  %v123 = vunpack.c.l.b16 %v39
  %v124 = vunpack.c.l.b16 %v40
  %v125 = vunpack.c.l.b16 %v41
  %v126 = vunpack.c.l.b16 %v42
  %v127 = vunpack.c.l.b16 %v43
  %v128 = vunpack.c.l.b16 %v44
  %v129 = vunpack.c.l.b16 %v45
  %v130 = vunpack.c.l.b16 %v46
  %v131 = vunpack.c.l.b16 %v47
  %v132 = vunpack.c.l.b16 %v48
  %v133 = vunpack.c.l.b16 %v49
  %v134 = vunpack.c.l.b16 %v50
  %v135 = vunpack.c.l.b16 %v51
  %v136 = vunpack.c.l.b16 %v52
  %v137 = vunpack.c.l.b16 %v53
  %v138 = vunpack.c.l.b16 %v54
  %v139 = vunpack.c.l.b16 %v55
  %v140 = vunpack.c.l.b16 %v56
  %v141 = vunpack.c.l.b16 %v57
  %v142 = vunpack.c.l.b16 %v58
  %v143 = vunpack.c.l.b16 %v59
  %v144 = vunpack.c.l.b16 %v60
  %v145 = vunpack.c.l.b16 %v61
  %v146 = vunpack.c.l.b16 %v62
  %v147 = vunpack.c.l.b16 %v63
  %v148 = vunpack.c.l.b16 %v64
  %v149 = vunpack.c.l.b16 %v65
  %v150 = vunpack.c.l.b16 %v66
  %v151 = vunpack.c.l.b16 %v67
  %v152 = vunpack.c.l.b16 %v68
  %v153 = vpack.c.b16 %v122, %v121
  %v154 = vpack.c.b16 %v124, %v123
  %v155 = vpack.c.b16 %v126, %v125
  %v156 = vpack.c.b16 %v128, %v127
  %v157 = vpack.c.b16 %v130, %v129
  %v158 = vpack.c.b16 %v132, %v131
  %v159 = vpack.c.b16 %v134, %v133
  %v160 = vpack.c.b16 %v136, %v135
  %v161 = vpack.c.b16 %v138, %v137
  %v162 = vpack.c.b16 %v140, %v139
  %v163 = vpack.c.b16 %v142, %v141
  %v164 = vpack.c.b16 %v144, %v143
  %v165 = vpack.c.b16 %v146, %v145
  %v166 = vpack.c.b16 %v148, %v147
  %v167 = vpack.c.b16 %v150, %v149
  %v168 = vpack.c.b16 %v152, %v151
  %185 = vmatprep.subr.bf16.mxu0 0
  %186 = vmatpush1.bf16.msra.mxu0 %v160
  %187 = vmatprep.subr.bf16.mxu0 0
  %188 = vmatpush1.bf16.msra.mxu0 %v159
  %189 = vmatprep.subr.bf16.mxu0 0
  %190 = vmatpush1.bf16.msra.mxu0 %v158
  %191 = vmatprep.subr.bf16.mxu0 0
  %192 = vmatpush1.bf16.msra.mxu0 %v157
  %193 = vmatprep.subr.bf16.mxu0 0
  %194 = vmatpush1.bf16.msra.mxu0 %v156
  %195 = vmatprep.subr.bf16.mxu0 0
  %196 = vmatpush1.bf16.msra.mxu0 %v155
  %197 = vmatprep.subr.bf16.mxu0 0
  %198 = vmatpush1.bf16.msra.mxu0 %v154
  %199 = vmatprep.subr.bf16.mxu0 0
  %200 = vmatpush1.bf16.msra.mxu0 %v153
  %201 = vmatprep.subr.bf16.mxu0 0
  %202 = vmatpush2.bf16.msra.mxu0 %v168
  %203 = vmatprep.subr.bf16.mxu0 0
  %204 = vmatpush2.bf16.msra.mxu0 %v167
  %205 = vmatprep.subr.bf16.mxu0 0
  %206 = vmatpush2.bf16.msra.mxu0 %v166
  %207 = vmatprep.subr.bf16.mxu0 0
  %208 = vmatpush2.bf16.msra.mxu0 %v165
  %209 = vmatprep.subr.bf16.mxu0 0
  %210 = vmatpush2.bf16.msra.mxu0 %v164
  %211 = vmatprep.subr.bf16.mxu0 0
  %212 = vmatpush2.bf16.msra.mxu0 %v163
  %213 = vmatprep.subr.bf16.mxu0 0
  %214 = vmatpush2.bf16.msra.mxu0 %v162
  %215 = vmatprep.subr.bf16.mxu0 0
  %216 = vmatpush2.bf16.msra.mxu0 %v161
  %217 = vmatprep.mubr.bf16.mxu0 %v82
  %218 = vmatmul.mubr.bf16.gmra.mxu0 %v81
  %v219 = vpop.f32.mrf.mxu0
  %v220 = vadd.f32 0.0, %v219
  %v221 = vpop.f32.mrf.mxu0
  %v222 = vpop.f32.mrf.mxu0
  %v223 = vadd.f32 0.0, %v222
  %v224 = vpop.f32.mrf.mxu0
  %225 = vmatprep.mubr.bf16.mxu0 %v84
  %226 = vmatmul.mubr.bf16.gmra.mxu0 %v83
  %v227 = vpop.f32.mrf.mxu0
  %v228 = vadd.f32 0.0, %v227
  %v229 = vpop.f32.mrf.mxu0
  %v230 = vpop.f32.mrf.mxu0
  %v231 = vadd.f32 0.0, %v230
  %v232 = vpop.f32.mrf.mxu0
  %233 = vdwg.mxu0
  %v234 = vadd.f32 %v29, %v220
  %v235 = vadd.f32 %v30, %v223
  %v236 = vadd.f32 %v31, %v228
  %v237 = vadd.f32 %v32, %v231
  %238 = vst [vmem:[#allocation2] sm:$0xff] %v234
  %239 = vst [vmem:[#allocation2 + $0x8] sm:$0xff] %v235
  %240 = vst [vmem:[#allocation2 + $0x10] sm:$0xff] %v236
  %241 = vst [vmem:[#allocation2 + $0x18] sm:$0xff] %v237
  // Predicated region
  $region26: #{decoder_forward.73} parent=0 // pred_check
    %p242 = pneg %p21
  $region27: #{decoder_forward.73} parent=0 // pred_check_branch
    %244 = sbr.rel (%p242) target = $region29
  $region28: #{decoder_forward.73} parent=0 // pred_region
    %v245 = vld [vmem:[#allocation2] sm:$0xff]
    %v246 = vld [vmem:[#allocation2 + $0x8] sm:$0xff]
    %v247 = vld [vmem:[#allocation2 + $0x10] sm:$0xff]
    %v248 = vld [vmem:[#allocation2 + $0x18] sm:$0xff]
    %v249 = vld [vmem:[%s2] sm:$0x1]
    %v251 = vlaneseq
    %v252 = vshrl.u32 %v251, 7
    %v253 = vsub.s32 0, %v252
    %v254 = vrot.slane %v249, %v253
    %v256 = vmul.f32 %v245, %v254
    %v257 = vmul.f32 %v246, %v254
    %v258 = vmul.f32 %v247, %v254
    %v259 = vmul.f32 %v248, %v254
    %v260 = vld [vmem:[%s3] sm:$0x1]
    %v262 = vlaneseq
    %v263 = vshrl.u32 %v262, 7
    %v264 = vsub.s32 0, %v263
    %v265 = vrot.slane %v260, %v264
    %v267 = vadd.f32 %v256, %v265
    %v268 = vadd.f32 %v257, %v265
    %v269 = vadd.f32 %v258, %v265
    %v270 = vadd.f32 %v259, %v265
    %v271 = vld [vmem:[%s4] sm:$0xf]
    %v272 = vld [vmem:[%s4 + $0x4] sm:$0xf]
    %v273 = vld [vmem:[%s4 + $0x8] sm:$0xf]
    %v274 = vld [vmem:[%s4 + $0xc] sm:$0xf]
    %v275 = vunpack.c.l.bf16 %v271
    %v276 = vunpack.c.l.bf16 %v272
    %v277 = vunpack.c.l.bf16 %v273
    %v278 = vunpack.c.l.bf16 %v274
    %v279 = vadd.f32 %v267, %v275
    %v280 = vadd.f32 %v268, %v276
    %v281 = vadd.f32 %v269, %v277
    %v282 = vadd.f32 %v270, %v278
    %v283 = vmax.f32 %v279, 0.0
    %v284 = vmax.f32 %v280, 0.0
    %v285 = vmax.f32 %v281, 0.0
    %v286 = vmax.f32 %v282, 0.0
    %v287 = vpack.c.bf16 %v284, %v283
    %v288 = vpack.c.bf16 %v286, %v285
    %v291 = vunpack.c.l.b16 %v287
    %v292 = vunpack.c.h.b16 %v287
    %v293 = vunpack.c.l.b16 %v288
    %v294 = vunpack.c.h.b16 %v288
    %v295 = vpack.c.b16 %v291, %v291
    %v296 = vpack.c.b16 %v292, %v292
    %v297 = vpack.c.b16 %v293, %v293
    %v298 = vpack.c.b16 %v294, %v294
    %303 = vst [vmem:[%s5] sm:$0xf] %v295
    %304 = vst [vmem:[%s5 + $0x4] sm:$0xf] %v296
    %305 = vst [vmem:[%s5 + $0x8] sm:$0xf] %v297
    %306 = vst [vmem:[%s5 + $0xc] sm:$0xf] %v298
  $region29: #{decoder_forward.73} parent=0 // pred_fallthru
    _
  // Predicated region
  $region30: #{decoder_forward.73} parent=0 // pred_check
    _
  $region31: #{decoder_forward.73} parent=0 // pred_check_branch
    %308 = sbr.rel (0) target = $region33
  $region32: #{decoder_forward.73} parent=0 // pred_region
    _
  $region33: #{decoder_forward.73} parent=0 // pred_fallthru
    _
  // Predicated region
  $region34: #{decoder_forward.73} parent=0 // pred_check
    _
  $region35: #{decoder_forward.73} parent=0 // pred_check_branch
    %310 = sbr.rel (0) target = $region37
  $region36: #{decoder_forward.73} parent=0 // pred_region
    _
  $region37: #{decoder_forward.73} parent=0 // pred_fallthru
    _

// kernel: decoder_forward.74
$region0: #{decoder_forward.74}
  #allocation0 [shape = 'u32[]', space=smem, size = 0x4, offset = 0x4, fixed_abs, tag = 'smem constant byte address 0x4 - core index']
  #allocation1 [shape = 'u32[144,128]{1,0:T(1,128)}', space=vmem, size = 0x12000, scoped, tag = 'internal scratch']
  #allocation2 [shape = 'f32[32,128]{1,0:T(8,128)}', space=vmem, size = 0x4000, scoped, tag = 'scratch operand']
  %s0 = inlined_call_operand.vmem [shape: bf16[32,256], index: 0, kind: input, shape index: {}]
  %s1 = inlined_call_operand.vmem [shape: bf16[256,128], index: 1, kind: input, shape index: {}]
  %s2 = inlined_call_operand.vmem [shape: f32[1,128], index: 2, kind: input, shape index: {}]
  %s3 = inlined_call_operand.vmem [shape: f32[1,128], index: 3, kind: input, shape index: {}]
  %s4 = inlined_call_operand.vmem [shape: bf16[32,128], index: 4, kind: output, shape index: {}]
  %s5 = sld [smem:[#allocation0]]
  $region34: #{decoder_forward.74} parent=0
    _
  %s7 = ssub.s32 1, %s5
  %s8 = scalar_select 0, %s7, %s5
  // Predicated region
  $region2: #{decoder_forward.74} parent=0 // pred_check
    _
  $region3: #{decoder_forward.74} parent=0 // pred_check_branch
    %10 = sbr.rel (0) target = $region5
  $region4: #{decoder_forward.74} parent=0 // pred_region
    _
  $region5: #{decoder_forward.74} parent=0 // pred_fallthru
    _
  // Predicated region
  $region6: #{decoder_forward.74} parent=0 // pred_check
    _
  $region7: #{decoder_forward.74} parent=0 // pred_check_branch
    %12 = sbr.rel (0) target = $region9
  $region8: #{decoder_forward.74} parent=0 // pred_region
    _
  $region9: #{decoder_forward.74} parent=0 // pred_fallthru
    _
  // Predicated region
  $region10: #{decoder_forward.74} parent=0 // pred_check
    _
  $region11: #{decoder_forward.74} parent=0 // pred_check_branch
    %14 = sbr.rel (0) target = $region13
  $region12: #{decoder_forward.74} parent=0 // pred_region
    _
  $region13: #{decoder_forward.74} parent=0 // pred_fallthru
    _
  // Predicated region
  $region14: #{decoder_forward.74} parent=0 // pred_check
    _
  $region15: #{decoder_forward.74} parent=0 // pred_check_branch
    %16 = sbr.rel (0) target = $region17
  $region16: #{decoder_forward.74} parent=0 // pred_region
    _
  $region17: #{decoder_forward.74} parent=0 // pred_fallthru
    _
  %p18 = scmp.eq.s32.totalorder 0, 0
  // Predicated region
  $region18: #{decoder_forward.74} parent=0 // pred_check
    %p19 = pneg %p18
  $region19: #{decoder_forward.74} parent=0 // pred_check_branch
    %21 = sbr.rel (%p19) target = $region21
  $region20: #{decoder_forward.74} parent=0 // pred_region
    %22 = vst [vmem:[#allocation2] sm:$0xff] 0.0
    %23 = vst [vmem:[#allocation2 + $0x8] sm:$0xff] 0.0
    %24 = vst [vmem:[#allocation2 + $0x10] sm:$0xff] 0.0
    %25 = vst [vmem:[#allocation2 + $0x18] sm:$0xff] 0.0
  $region21: #{decoder_forward.74} parent=0 // pred_fallthru
    _
  %v26 = vld [vmem:[#allocation2] sm:$0xff]
  %v27 = vld [vmem:[#allocation2 + $0x8] sm:$0xff]
  %v28 = vld [vmem:[#allocation2 + $0x10] sm:$0xff]
  %v29 = vld [vmem:[#allocation2 + $0x18] sm:$0xff]
  %v30 = vld [vmem:[%s0] sm:$0xff]
  %v31 = vld [vmem:[%s0 + $0x8] sm:$0xff]
  %v32 = vld [vmem:[%s0 + $0x10] sm:$0xff]
  %v33 = vld [vmem:[%s0 + $0x18] sm:$0xff]
  %v34 = vld [vmem:[%s1] sm:$0xf]
  %v35 = vld [vmem:[%s1 + $0x4] sm:$0xf]
  %v36 = vld [vmem:[%s1 + $0x8] sm:$0xf]
  %v37 = vld [vmem:[%s1 + $0xc] sm:$0xf]
  %v38 = vld [vmem:[%s1 + $0x10] sm:$0xf]
  %v39 = vld [vmem:[%s1 + $0x14] sm:$0xf]
  %v40 = vld [vmem:[%s1 + $0x18] sm:$0xf]
  %v41 = vld [vmem:[%s1 + $0x1c] sm:$0xf]
  %v42 = vld [vmem:[%s1 + $0x20] sm:$0xf]
  %v43 = vld [vmem:[%s1 + $0x24] sm:$0xf]
  %v44 = vld [vmem:[%s1 + $0x28] sm:$0xf]
  %v45 = vld [vmem:[%s1 + $0x2c] sm:$0xf]
  %v46 = vld [vmem:[%s1 + $0x30] sm:$0xf]
  %v47 = vld [vmem:[%s1 + $0x34] sm:$0xf]
  %v48 = vld [vmem:[%s1 + $0x38] sm:$0xf]
  %v49 = vld [vmem:[%s1 + $0x3c] sm:$0xf]
  %v50 = vld [vmem:[%s1 + $0x40] sm:$0xf]
  %v51 = vld [vmem:[%s1 + $0x44] sm:$0xf]
  %v52 = vld [vmem:[%s1 + $0x48] sm:$0xf]
  %v53 = vld [vmem:[%s1 + $0x4c] sm:$0xf]
  %v54 = vld [vmem:[%s1 + $0x50] sm:$0xf]
  %v55 = vld [vmem:[%s1 + $0x54] sm:$0xf]
  %v56 = vld [vmem:[%s1 + $0x58] sm:$0xf]
  %v57 = vld [vmem:[%s1 + $0x5c] sm:$0xf]
  %v58 = vld [vmem:[%s1 + $0x60] sm:$0xf]
  %v59 = vld [vmem:[%s1 + $0x64] sm:$0xf]
  %v60 = vld [vmem:[%s1 + $0x68] sm:$0xf]
  %v61 = vld [vmem:[%s1 + $0x6c] sm:$0xf]
  %v62 = vld [vmem:[%s1 + $0x70] sm:$0xf]
  %v63 = vld [vmem:[%s1 + $0x74] sm:$0xf]
  %v64 = vld [vmem:[%s1 + $0x78] sm:$0xf]
  %v65 = vld [vmem:[%s1 + $0x7c] sm:$0xf]
  %v70 = vunpack.c.l.b16 %v30
  %v71 = vunpack.c.h.b16 %v30
  %v72 = vunpack.c.l.b16 %v31
  %v73 = vunpack.c.h.b16 %v31
  %v74 = vunpack.c.l.b16 %v32
  %v75 = vunpack.c.h.b16 %v32
  %v76 = vunpack.c.l.b16 %v33
  %v77 = vunpack.c.h.b16 %v33
  %v78 = vpack.c.b16 %v72, %v70
  %v79 = vpack.c.b16 %v73, %v71
  %v80 = vpack.c.b16 %v76, %v74
  %v81 = vpack.c.b16 %v77, %v75
  %v118 = vunpack.c.l.b16 %v34
  %v119 = vunpack.c.l.b16 %v35
  %v120 = vunpack.c.l.b16 %v36
  %v121 = vunpack.c.l.b16 %v37
  %v122 = vunpack.c.l.b16 %v38
  %v123 = vunpack.c.l.b16 %v39
  %v124 = vunpack.c.l.b16 %v40
  %v125 = vunpack.c.l.b16 %v41
  %v126 = vunpack.c.l.b16 %v42
  %v127 = vunpack.c.l.b16 %v43
  %v128 = vunpack.c.l.b16 %v44
  %v129 = vunpack.c.l.b16 %v45
  %v130 = vunpack.c.l.b16 %v46
  %v131 = vunpack.c.l.b16 %v47
  %v132 = vunpack.c.l.b16 %v48
  %v133 = vunpack.c.l.b16 %v49
  %v134 = vunpack.c.l.b16 %v50
  %v135 = vunpack.c.l.b16 %v51
  %v136 = vunpack.c.l.b16 %v52
  %v137 = vunpack.c.l.b16 %v53
  %v138 = vunpack.c.l.b16 %v54
  %v139 = vunpack.c.l.b16 %v55
  %v140 = vunpack.c.l.b16 %v56
  %v141 = vunpack.c.l.b16 %v57
  %v142 = vunpack.c.l.b16 %v58
  %v143 = vunpack.c.l.b16 %v59
  %v144 = vunpack.c.l.b16 %v60
  %v145 = vunpack.c.l.b16 %v61
  %v146 = vunpack.c.l.b16 %v62
  %v147 = vunpack.c.l.b16 %v63
  %v148 = vunpack.c.l.b16 %v64
  %v149 = vunpack.c.l.b16 %v65
  %v150 = vpack.c.b16 %v119, %v118
  %v151 = vpack.c.b16 %v121, %v120
  %v152 = vpack.c.b16 %v123, %v122
  %v153 = vpack.c.b16 %v125, %v124
  %v154 = vpack.c.b16 %v127, %v126
  %v155 = vpack.c.b16 %v129, %v128
  %v156 = vpack.c.b16 %v131, %v130
  %v157 = vpack.c.b16 %v133, %v132
  %v158 = vpack.c.b16 %v135, %v134
  %v159 = vpack.c.b16 %v137, %v136
  %v160 = vpack.c.b16 %v139, %v138
  %v161 = vpack.c.b16 %v141, %v140
  %v162 = vpack.c.b16 %v143, %v142
  %v163 = vpack.c.b16 %v145, %v144
  %v164 = vpack.c.b16 %v147, %v146
  %v165 = vpack.c.b16 %v149, %v148
  %182 = vmatprep.subr.bf16.mxu0 0
  %183 = vmatpush1.bf16.msra.mxu0 %v157
  %184 = vmatprep.subr.bf16.mxu0 0
  %185 = vmatpush1.bf16.msra.mxu0 %v156
  %186 = vmatprep.subr.bf16.mxu0 0
  %187 = vmatpush1.bf16.msra.mxu0 %v155
  %188 = vmatprep.subr.bf16.mxu0 0
  %189 = vmatpush1.bf16.msra.mxu0 %v154
  %190 = vmatprep.subr.bf16.mxu0 0
  %191 = vmatpush1.bf16.msra.mxu0 %v153
  %192 = vmatprep.subr.bf16.mxu0 0
  %193 = vmatpush1.bf16.msra.mxu0 %v152
  %194 = vmatprep.subr.bf16.mxu0 0
  %195 = vmatpush1.bf16.msra.mxu0 %v151
  %196 = vmatprep.subr.bf16.mxu0 0
  %197 = vmatpush1.bf16.msra.mxu0 %v150
  %198 = vmatprep.subr.bf16.mxu0 0
  %199 = vmatpush2.bf16.msra.mxu0 %v165
  %200 = vmatprep.subr.bf16.mxu0 0
  %201 = vmatpush2.bf16.msra.mxu0 %v164
  %202 = vmatprep.subr.bf16.mxu0 0
  %203 = vmatpush2.bf16.msra.mxu0 %v163
  %204 = vmatprep.subr.bf16.mxu0 0
  %205 = vmatpush2.bf16.msra.mxu0 %v162
  %206 = vmatprep.subr.bf16.mxu0 0
  %207 = vmatpush2.bf16.msra.mxu0 %v161
  %208 = vmatprep.subr.bf16.mxu0 0
  %209 = vmatpush2.bf16.msra.mxu0 %v160
  %210 = vmatprep.subr.bf16.mxu0 0
  %211 = vmatpush2.bf16.msra.mxu0 %v159
  %212 = vmatprep.subr.bf16.mxu0 0
  %213 = vmatpush2.bf16.msra.mxu0 %v158
  %214 = vmatprep.mubr.bf16.mxu0 %v79
  %215 = vmatmul.mubr.bf16.gmra.mxu0 %v78
  %v216 = vpop.f32.mrf.mxu0
  %v217 = vadd.f32 0.0, %v216
  %v218 = vpop.f32.mrf.mxu0
  %v219 = vpop.f32.mrf.mxu0
  %v220 = vadd.f32 0.0, %v219
  %v221 = vpop.f32.mrf.mxu0
  %222 = vmatprep.mubr.bf16.mxu0 %v81
  %223 = vmatmul.mubr.bf16.gmra.mxu0 %v80
  %v224 = vpop.f32.mrf.mxu0
  %v225 = vadd.f32 0.0, %v224
  %v226 = vpop.f32.mrf.mxu0
  %v227 = vpop.f32.mrf.mxu0
  %v228 = vadd.f32 0.0, %v227
  %v229 = vpop.f32.mrf.mxu0
  %230 = vdwg.mxu0
  %v231 = vadd.f32 %v26, %v217
  %v232 = vadd.f32 %v27, %v220
  %v233 = vadd.f32 %v28, %v225
  %v234 = vadd.f32 %v29, %v228
  %235 = vst [vmem:[#allocation2] sm:$0xff] %v231
  %236 = vst [vmem:[#allocation2 + $0x8] sm:$0xff] %v232
  %237 = vst [vmem:[#allocation2 + $0x10] sm:$0xff] %v233
  %238 = vst [vmem:[#allocation2 + $0x18] sm:$0xff] %v234
  // Predicated region
  $region22: #{decoder_forward.74} parent=0 // pred_check
    %p239 = pneg %p18
  $region23: #{decoder_forward.74} parent=0 // pred_check_branch
    %241 = sbr.rel (%p239) target = $region25
  $region24: #{decoder_forward.74} parent=0 // pred_region
    %v242 = vld [vmem:[#allocation2] sm:$0xff]
    %v243 = vld [vmem:[#allocation2 + $0x8] sm:$0xff]
    %v244 = vld [vmem:[#allocation2 + $0x10] sm:$0xff]
    %v245 = vld [vmem:[#allocation2 + $0x18] sm:$0xff]
    %v246 = vld [vmem:[%s2] sm:$0x1]
    %v248 = vlaneseq
    %v249 = vshrl.u32 %v248, 7
    %v250 = vsub.s32 0, %v249
    %v251 = vrot.slane %v246, %v250
    %v253 = vmul.f32 %v242, %v251
    %v254 = vmul.f32 %v243, %v251
    %v255 = vmul.f32 %v244, %v251
    %v256 = vmul.f32 %v245, %v251
    %v257 = vld [vmem:[%s3] sm:$0x1]
    %v259 = vlaneseq
    %v260 = vshrl.u32 %v259, 7
    %v261 = vsub.s32 0, %v260
    %v262 = vrot.slane %v257, %v261
    %v264 = vadd.f32 %v253, %v262
    %v265 = vadd.f32 %v254, %v262
    %v266 = vadd.f32 %v255, %v262
    %v267 = vadd.f32 %v256, %v262
    %v268 = vmax.f32 %v264, 0.0
    %v269 = vmax.f32 %v265, 0.0
    %v270 = vmax.f32 %v266, 0.0
    %v271 = vmax.f32 %v267, 0.0
    %v272 = vpack.c.bf16 %v269, %v268
    %v273 = vpack.c.bf16 %v271, %v270
    %v276 = vunpack.c.l.b16 %v272
    %v277 = vunpack.c.h.b16 %v272
    %v278 = vunpack.c.l.b16 %v273
    %v279 = vunpack.c.h.b16 %v273
    %v280 = vpack.c.b16 %v276, %v276
    %v281 = vpack.c.b16 %v277, %v277
    %v282 = vpack.c.b16 %v278, %v278
    %v283 = vpack.c.b16 %v279, %v279
    %288 = vst [vmem:[%s4] sm:$0xf] %v280
    %289 = vst [vmem:[%s4 + $0x4] sm:$0xf] %v281
    %290 = vst [vmem:[%s4 + $0x8] sm:$0xf] %v282
    %291 = vst [vmem:[%s4 + $0xc] sm:$0xf] %v283
  $region25: #{decoder_forward.74} parent=0 // pred_fallthru
    _
  // Predicated region
  $region26: #{decoder_forward.74} parent=0 // pred_check
    _
  $region27: #{decoder_forward.74} parent=0 // pred_check_branch
    %293 = sbr.rel (0) target = $region29
  $region28: #{decoder_forward.74} parent=0 // pred_region
    _
  $region29: #{decoder_forward.74} parent=0 // pred_fallthru
    _
  // Predicated region
  $region30: #{decoder_forward.74} parent=0 // pred_check
    _
  $region31: #{decoder_forward.74} parent=0 // pred_check_branch
    %295 = sbr.rel (0) target = $region33
  $region32: #{decoder_forward.74} parent=0 // pred_region
    _
  $region33: #{decoder_forward.74} parent=0 // pred_fallthru
    _

// kernel: decoder_forward.94
$region0: #{decoder_forward.94}
  #allocation0 [shape = 'u32[]', space=smem, size = 0x4, offset = 0x4, fixed_abs, tag = 'smem constant byte address 0x4 - core index']
  #allocation1 [shape = 'u32[144,128]{1,0:T(1,128)}', space=vmem, size = 0x12000, scoped, tag = 'internal scratch']
  #allocation2 [shape = 'f32[32,128]{1,0:T(8,128)}', space=vmem, size = 0x4000, scoped, tag = 'scratch operand']
  %s0 = inlined_call_operand.vmem [shape: bf16[32,128], index: 0, kind: input, shape index: {}]
  %s1 = inlined_call_operand.vmem [shape: bf16[128,128], index: 1, kind: input, shape index: {}]
  %s2 = inlined_call_operand.vmem [shape: f32[1,128], index: 2, kind: input, shape index: {}]
  %s3 = inlined_call_operand.vmem [shape: f32[1,128], index: 3, kind: input, shape index: {}]
  %s4 = inlined_call_operand.vmem [shape: bf16[32,128], index: 4, kind: input, shape index: {}]
  %s5 = inlined_call_operand.vmem [shape: bf16[32,128], index: 5, kind: output, shape index: {}]
  %s6 = sld [smem:[#allocation0]]
  $region38: #{decoder_forward.94} parent=0
    _
  %s8 = ssub.s32 1, %s6
  %s9 = scalar_select 0, %s8, %s6
  // Predicated region
  $region2: #{decoder_forward.94} parent=0 // pred_check
    _
  $region3: #{decoder_forward.94} parent=0 // pred_check_branch
    %11 = sbr.rel (0) target = $region5
  $region4: #{decoder_forward.94} parent=0 // pred_region
    _
  $region5: #{decoder_forward.94} parent=0 // pred_fallthru
    _
  // Predicated region
  $region6: #{decoder_forward.94} parent=0 // pred_check
    _
  $region7: #{decoder_forward.94} parent=0 // pred_check_branch
    %13 = sbr.rel (0) target = $region9
  $region8: #{decoder_forward.94} parent=0 // pred_region
    _
  $region9: #{decoder_forward.94} parent=0 // pred_fallthru
    _
  // Predicated region
  $region10: #{decoder_forward.94} parent=0 // pred_check
    _
  $region11: #{decoder_forward.94} parent=0 // pred_check_branch
    %15 = sbr.rel (0) target = $region13
  $region12: #{decoder_forward.94} parent=0 // pred_region
    _
  $region13: #{decoder_forward.94} parent=0 // pred_fallthru
    _
  // Predicated region
  $region14: #{decoder_forward.94} parent=0 // pred_check
    _
  $region15: #{decoder_forward.94} parent=0 // pred_check_branch
    %17 = sbr.rel (0) target = $region17
  $region16: #{decoder_forward.94} parent=0 // pred_region
    _
  $region17: #{decoder_forward.94} parent=0 // pred_fallthru
    _
  // Predicated region
  $region18: #{decoder_forward.94} parent=0 // pred_check
    _
  $region19: #{decoder_forward.94} parent=0 // pred_check_branch
    %19 = sbr.rel (0) target = $region21
  $region20: #{decoder_forward.94} parent=0 // pred_region
    _
  $region21: #{decoder_forward.94} parent=0 // pred_fallthru
    _
  %p21 = scmp.eq.s32.totalorder 0, 0
  // Predicated region
  $region22: #{decoder_forward.94} parent=0 // pred_check
    %p22 = pneg %p21
  $region23: #{decoder_forward.94} parent=0 // pred_check_branch
    %24 = sbr.rel (%p22) target = $region25
  $region24: #{decoder_forward.94} parent=0 // pred_region
    %25 = vst [vmem:[#allocation2] sm:$0xff] 0.0
    %26 = vst [vmem:[#allocation2 + $0x8] sm:$0xff] 0.0
    %27 = vst [vmem:[#allocation2 + $0x10] sm:$0xff] 0.0
    %28 = vst [vmem:[#allocation2 + $0x18] sm:$0xff] 0.0
  $region25: #{decoder_forward.94} parent=0 // pred_fallthru
    _
  %v29 = vld [vmem:[#allocation2] sm:$0xff]
  %v30 = vld [vmem:[#allocation2 + $0x8] sm:$0xff]
  %v31 = vld [vmem:[#allocation2 + $0x10] sm:$0xff]
  %v32 = vld [vmem:[#allocation2 + $0x18] sm:$0xff]
  %v33 = vld [vmem:[%s0] sm:$0xf]
  %v34 = vld [vmem:[%s0 + $0x4] sm:$0xf]
  %v35 = vld [vmem:[%s0 + $0x8] sm:$0xf]
  %v36 = vld [vmem:[%s0 + $0xc] sm:$0xf]
  %v37 = vld [vmem:[%s1] sm:$0xf]
  %v38 = vld [vmem:[%s1 + $0x4] sm:$0xf]
  %v39 = vld [vmem:[%s1 + $0x8] sm:$0xf]
  %v40 = vld [vmem:[%s1 + $0xc] sm:$0xf]
  %v41 = vld [vmem:[%s1 + $0x10] sm:$0xf]
  %v42 = vld [vmem:[%s1 + $0x14] sm:$0xf]
  %v43 = vld [vmem:[%s1 + $0x18] sm:$0xf]
  %v44 = vld [vmem:[%s1 + $0x1c] sm:$0xf]
  %v45 = vld [vmem:[%s1 + $0x20] sm:$0xf]
  %v46 = vld [vmem:[%s1 + $0x24] sm:$0xf]
  %v47 = vld [vmem:[%s1 + $0x28] sm:$0xf]
  %v48 = vld [vmem:[%s1 + $0x2c] sm:$0xf]
  %v49 = vld [vmem:[%s1 + $0x30] sm:$0xf]
  %v50 = vld [vmem:[%s1 + $0x34] sm:$0xf]
  %v51 = vld [vmem:[%s1 + $0x38] sm:$0xf]
  %v52 = vld [vmem:[%s1 + $0x3c] sm:$0xf]
  %v57 = vunpack.c.l.b16 %v33
  %v58 = vunpack.c.l.b16 %v34
  %v59 = vunpack.c.l.b16 %v35
  %v60 = vunpack.c.l.b16 %v36
  %v61 = vpack.c.b16 %v58, %v57
  %v62 = vpack.c.b16 %v60, %v59
  %v81 = vunpack.c.l.b16 %v37
  %v82 = vunpack.c.l.b16 %v38
  %v83 = vunpack.c.l.b16 %v39
  %v84 = vunpack.c.l.b16 %v40
  %v85 = vunpack.c.l.b16 %v41
  %v86 = vunpack.c.l.b16 %v42
  %v87 = vunpack.c.l.b16 %v43
  %v88 = vunpack.c.l.b16 %v44
  %v89 = vunpack.c.l.b16 %v45
  %v90 = vunpack.c.l.b16 %v46
  %v91 = vunpack.c.l.b16 %v47
  %v92 = vunpack.c.l.b16 %v48
  %v93 = vunpack.c.l.b16 %v49
  %v94 = vunpack.c.l.b16 %v50
  %v95 = vunpack.c.l.b16 %v51
  %v96 = vunpack.c.l.b16 %v52
  %v97 = vpack.c.b16 %v82, %v81
  %v98 = vpack.c.b16 %v84, %v83
  %v99 = vpack.c.b16 %v86, %v85
  %v100 = vpack.c.b16 %v88, %v87
  %v101 = vpack.c.b16 %v90, %v89
  %v102 = vpack.c.b16 %v92, %v91
  %v103 = vpack.c.b16 %v94, %v93
  %v104 = vpack.c.b16 %v96, %v95
  %113 = vmatprep.subr.bf16.mxu0 0
  %114 = vmatpush1.bf16.msra.mxu0 %v104
  %115 = vmatprep.subr.bf16.mxu0 0
  %116 = vmatpush1.bf16.msra.mxu0 %v103
  %117 = vmatprep.subr.bf16.mxu0 0
  %118 = vmatpush1.bf16.msra.mxu0 %v102
  %119 = vmatprep.subr.bf16.mxu0 0
  %120 = vmatpush1.bf16.msra.mxu0 %v101
  %121 = vmatprep.subr.bf16.mxu0 0
  %122 = vmatpush1.bf16.msra.mxu0 %v100
  %123 = vmatprep.subr.bf16.mxu0 0
  %124 = vmatpush1.bf16.msra.mxu0 %v99
  %125 = vmatprep.subr.bf16.mxu0 0
  %126 = vmatpush1.bf16.msra.mxu0 %v98
  %127 = vmatprep.subr.bf16.mxu0 0
  %128 = vmatpush1.bf16.msra.mxu0 %v97
  %129 = vmatprep.subr.bf16.mxu0 0
  %130 = vmatpush2.bf16.msra.mxu0 0
  %131 = vmatprep.subr.bf16.mxu0 0
  %132 = vmatpush2.bf16.msra.mxu0 0
  %133 = vmatprep.subr.bf16.mxu0 0
  %134 = vmatpush2.bf16.msra.mxu0 0
  %135 = vmatprep.subr.bf16.mxu0 0
  %136 = vmatpush2.bf16.msra.mxu0 0
  %137 = vmatprep.subr.bf16.mxu0 0
  %138 = vmatpush2.bf16.msra.mxu0 0
  %139 = vmatprep.subr.bf16.mxu0 0
  %140 = vmatpush2.bf16.msra.mxu0 0
  %141 = vmatprep.subr.bf16.mxu0 0
  %142 = vmatpush2.bf16.msra.mxu0 0
  %143 = vmatprep.subr.bf16.mxu0 0
  %144 = vmatpush2.bf16.msra.mxu0 0
  %145 = vmatprep.mubr.bf16.mxu0 0
  %146 = vmatmul.mubr.bf16.gmra.mxu0 %v61
  %v147 = vpop.f32.mrf.mxu0
  %v148 = vadd.f32 0.0, %v147
  %v149 = vpop.f32.mrf.mxu0
  %v150 = vpop.f32.mrf.mxu0
  %v151 = vadd.f32 0.0, %v150
  %v152 = vpop.f32.mrf.mxu0
  %153 = vmatprep.mubr.bf16.mxu0 0
  %154 = vmatmul.mubr.bf16.gmra.mxu0 %v62
  %v155 = vpop.f32.mrf.mxu0
  %v156 = vadd.f32 0.0, %v155
  %v157 = vpop.f32.mrf.mxu0
  %v158 = vpop.f32.mrf.mxu0
  %v159 = vadd.f32 0.0, %v158
  %v160 = vpop.f32.mrf.mxu0
  %161 = vdwg.mxu0
  %v162 = vadd.f32 %v29, %v148
  %v163 = vadd.f32 %v30, %v151
  %v164 = vadd.f32 %v31, %v156
  %v165 = vadd.f32 %v32, %v159
  %166 = vst [vmem:[#allocation2] sm:$0xff] %v162
  %167 = vst [vmem:[#allocation2 + $0x8] sm:$0xff] %v163
  %168 = vst [vmem:[#allocation2 + $0x10] sm:$0xff] %v164
  %169 = vst [vmem:[#allocation2 + $0x18] sm:$0xff] %v165
  // Predicated region
  $region26: #{decoder_forward.94} parent=0 // pred_check
    %p170 = pneg %p21
  $region27: #{decoder_forward.94} parent=0 // pred_check_branch
    %172 = sbr.rel (%p170) target = $region29
  $region28: #{decoder_forward.94} parent=0 // pred_region
    %v173 = vld [vmem:[#allocation2] sm:$0xff]
    %v174 = vld [vmem:[#allocation2 + $0x8] sm:$0xff]
    %v175 = vld [vmem:[#allocation2 + $0x10] sm:$0xff]
    %v176 = vld [vmem:[#allocation2 + $0x18] sm:$0xff]
    %v177 = vld [vmem:[%s2] sm:$0x1]
    %v179 = vlaneseq
    %v180 = vshrl.u32 %v179, 7
    %v181 = vsub.s32 0, %v180
    %v182 = vrot.slane %v177, %v181
    %v184 = vmul.f32 %v173, %v182
    %v185 = vmul.f32 %v174, %v182
    %v186 = vmul.f32 %v175, %v182
    %v187 = vmul.f32 %v176, %v182
    %v188 = vld [vmem:[%s3] sm:$0x1]
    %v190 = vlaneseq
    %v191 = vshrl.u32 %v190, 7
    %v192 = vsub.s32 0, %v191
    %v193 = vrot.slane %v188, %v192
    %v195 = vadd.f32 %v184, %v193
    %v196 = vadd.f32 %v185, %v193
    %v197 = vadd.f32 %v186, %v193
    %v198 = vadd.f32 %v187, %v193
    %v199 = vld [vmem:[%s4] sm:$0xf]
    %v200 = vld [vmem:[%s4 + $0x4] sm:$0xf]
    %v201 = vld [vmem:[%s4 + $0x8] sm:$0xf]
    %v202 = vld [vmem:[%s4 + $0xc] sm:$0xf]
    %v203 = vunpack.c.l.bf16 %v199
    %v204 = vunpack.c.l.bf16 %v200
    %v205 = vunpack.c.l.bf16 %v201
    %v206 = vunpack.c.l.bf16 %v202
    %v207 = vadd.f32 %v195, %v203
    %v208 = vadd.f32 %v196, %v204
    %v209 = vadd.f32 %v197, %v205
    %v210 = vadd.f32 %v198, %v206
    %v211 = vmax.f32 %v207, 0.0
    %v212 = vmax.f32 %v208, 0.0
    %v213 = vmax.f32 %v209, 0.0
    %v214 = vmax.f32 %v210, 0.0
    %v215 = vpack.c.bf16 %v212, %v211
    %v216 = vpack.c.bf16 %v214, %v213
    %v219 = vunpack.c.l.b16 %v215
    %v220 = vunpack.c.h.b16 %v215
    %v221 = vunpack.c.l.b16 %v216
    %v222 = vunpack.c.h.b16 %v216
    %v223 = vpack.c.b16 %v219, %v219
    %v224 = vpack.c.b16 %v220, %v220
    %v225 = vpack.c.b16 %v221, %v221
    %v226 = vpack.c.b16 %v222, %v222
    %231 = vst [vmem:[%s5] sm:$0xf] %v223
    %232 = vst [vmem:[%s5 + $0x4] sm:$0xf] %v224
    %233 = vst [vmem:[%s5 + $0x8] sm:$0xf] %v225
    %234 = vst [vmem:[%s5 + $0xc] sm:$0xf] %v226
  $region29: #{decoder_forward.94} parent=0 // pred_fallthru
    _
  // Predicated region
  $region30: #{decoder_forward.94} parent=0 // pred_check
    _
  $region31: #{decoder_forward.94} parent=0 // pred_check_branch
    %236 = sbr.rel (0) target = $region33
  $region32: #{decoder_forward.94} parent=0 // pred_region
    _
  $region33: #{decoder_forward.94} parent=0 // pred_fallthru
    _
  // Predicated region
  $region34: #{decoder_forward.94} parent=0 // pred_check
    _
  $region35: #{decoder_forward.94} parent=0 // pred_check_branch
    %238 = sbr.rel (0) target = $region37
  $region36: #{decoder_forward.94} parent=0 // pred_region
    _
  $region37: #{decoder_forward.94} parent=0 // pred_fallthru
    _

// kernel: decoder_forward.95
$region0: #{decoder_forward.95}
  #allocation0 [shape = 'u32[]', space=smem, size = 0x4, offset = 0x4, fixed_abs, tag = 'smem constant byte address 0x4 - core index']
  #allocation1 [shape = 'u32[144,128]{1,0:T(1,128)}', space=vmem, size = 0x12000, scoped, tag = 'internal scratch']
  #allocation2 [shape = 'f32[32,128]{1,0:T(8,128)}', space=vmem, size = 0x4000, scoped, tag = 'scratch operand']
  %s0 = inlined_call_operand.vmem [shape: bf16[32,128], index: 0, kind: input, shape index: {}]
  %s1 = inlined_call_operand.vmem [shape: bf16[128,128], index: 1, kind: input, shape index: {}]
  %s2 = inlined_call_operand.vmem [shape: f32[1,128], index: 2, kind: input, shape index: {}]
  %s3 = inlined_call_operand.vmem [shape: f32[1,128], index: 3, kind: input, shape index: {}]
  %s4 = inlined_call_operand.vmem [shape: bf16[32,128], index: 4, kind: output, shape index: {}]
  %s5 = sld [smem:[#allocation0]]
  $region34: #{decoder_forward.95} parent=0
    _
  %s7 = ssub.s32 1, %s5
  %s8 = scalar_select 0, %s7, %s5
  // Predicated region
  $region2: #{decoder_forward.95} parent=0 // pred_check
    _
  $region3: #{decoder_forward.95} parent=0 // pred_check_branch
    %10 = sbr.rel (0) target = $region5
  $region4: #{decoder_forward.95} parent=0 // pred_region
    _
  $region5: #{decoder_forward.95} parent=0 // pred_fallthru
    _
  // Predicated region
  $region6: #{decoder_forward.95} parent=0 // pred_check
    _
  $region7: #{decoder_forward.95} parent=0 // pred_check_branch
    %12 = sbr.rel (0) target = $region9
  $region8: #{decoder_forward.95} parent=0 // pred_region
    _
  $region9: #{decoder_forward.95} parent=0 // pred_fallthru
    _
  // Predicated region
  $region10: #{decoder_forward.95} parent=0 // pred_check
    _
  $region11: #{decoder_forward.95} parent=0 // pred_check_branch
    %14 = sbr.rel (0) target = $region13
  $region12: #{decoder_forward.95} parent=0 // pred_region
    _
  $region13: #{decoder_forward.95} parent=0 // pred_fallthru
    _
  // Predicated region
  $region14: #{decoder_forward.95} parent=0 // pred_check
    _
  $region15: #{decoder_forward.95} parent=0 // pred_check_branch
    %16 = sbr.rel (0) target = $region17
  $region16: #{decoder_forward.95} parent=0 // pred_region
    _
  $region17: #{decoder_forward.95} parent=0 // pred_fallthru
    _
  %p18 = scmp.eq.s32.totalorder 0, 0
  // Predicated region
  $region18: #{decoder_forward.95} parent=0 // pred_check
    %p19 = pneg %p18
  $region19: #{decoder_forward.95} parent=0 // pred_check_branch
    %21 = sbr.rel (%p19) target = $region21
  $region20: #{decoder_forward.95} parent=0 // pred_region
    %22 = vst [vmem:[#allocation2] sm:$0xff] 0.0
    %23 = vst [vmem:[#allocation2 + $0x8] sm:$0xff] 0.0
    %24 = vst [vmem:[#allocation2 + $0x10] sm:$0xff] 0.0
    %25 = vst [vmem:[#allocation2 + $0x18] sm:$0xff] 0.0
  $region21: #{decoder_forward.95} parent=0 // pred_fallthru
    _
  %v26 = vld [vmem:[#allocation2] sm:$0xff]
  %v27 = vld [vmem:[#allocation2 + $0x8] sm:$0xff]
  %v28 = vld [vmem:[#allocation2 + $0x10] sm:$0xff]
  %v29 = vld [vmem:[#allocation2 + $0x18] sm:$0xff]
  %v30 = vld [vmem:[%s0] sm:$0xf]
  %v31 = vld [vmem:[%s0 + $0x4] sm:$0xf]
  %v32 = vld [vmem:[%s0 + $0x8] sm:$0xf]
  %v33 = vld [vmem:[%s0 + $0xc] sm:$0xf]
  %v34 = vld [vmem:[%s1] sm:$0xf]
  %v35 = vld [vmem:[%s1 + $0x4] sm:$0xf]
  %v36 = vld [vmem:[%s1 + $0x8] sm:$0xf]
  %v37 = vld [vmem:[%s1 + $0xc] sm:$0xf]
  %v38 = vld [vmem:[%s1 + $0x10] sm:$0xf]
  %v39 = vld [vmem:[%s1 + $0x14] sm:$0xf]
  %v40 = vld [vmem:[%s1 + $0x18] sm:$0xf]
  %v41 = vld [vmem:[%s1 + $0x1c] sm:$0xf]
  %v42 = vld [vmem:[%s1 + $0x20] sm:$0xf]
  %v43 = vld [vmem:[%s1 + $0x24] sm:$0xf]
  %v44 = vld [vmem:[%s1 + $0x28] sm:$0xf]
  %v45 = vld [vmem:[%s1 + $0x2c] sm:$0xf]
  %v46 = vld [vmem:[%s1 + $0x30] sm:$0xf]
  %v47 = vld [vmem:[%s1 + $0x34] sm:$0xf]
  %v48 = vld [vmem:[%s1 + $0x38] sm:$0xf]
  %v49 = vld [vmem:[%s1 + $0x3c] sm:$0xf]
  %v54 = vunpack.c.l.b16 %v30
  %v55 = vunpack.c.l.b16 %v31
  %v56 = vunpack.c.l.b16 %v32
  %v57 = vunpack.c.l.b16 %v33
  %v58 = vpack.c.b16 %v55, %v54
  %v59 = vpack.c.b16 %v57, %v56
  %v78 = vunpack.c.l.b16 %v34
  %v79 = vunpack.c.l.b16 %v35
  %v80 = vunpack.c.l.b16 %v36
  %v81 = vunpack.c.l.b16 %v37
  %v82 = vunpack.c.l.b16 %v38
  %v83 = vunpack.c.l.b16 %v39
  %v84 = vunpack.c.l.b16 %v40
  %v85 = vunpack.c.l.b16 %v41
  %v86 = vunpack.c.l.b16 %v42
  %v87 = vunpack.c.l.b16 %v43
  %v88 = vunpack.c.l.b16 %v44
  %v89 = vunpack.c.l.b16 %v45
  %v90 = vunpack.c.l.b16 %v46
  %v91 = vunpack.c.l.b16 %v47
  %v92 = vunpack.c.l.b16 %v48
  %v93 = vunpack.c.l.b16 %v49
  %v94 = vpack.c.b16 %v79, %v78
  %v95 = vpack.c.b16 %v81, %v80
  %v96 = vpack.c.b16 %v83, %v82
  %v97 = vpack.c.b16 %v85, %v84
  %v98 = vpack.c.b16 %v87, %v86
  %v99 = vpack.c.b16 %v89, %v88
  %v100 = vpack.c.b16 %v91, %v90
  %v101 = vpack.c.b16 %v93, %v92
  %110 = vmatprep.subr.bf16.mxu0 0
  %111 = vmatpush1.bf16.msra.mxu0 %v101
  %112 = vmatprep.subr.bf16.mxu0 0
  %113 = vmatpush1.bf16.msra.mxu0 %v100
  %114 = vmatprep.subr.bf16.mxu0 0
  %115 = vmatpush1.bf16.msra.mxu0 %v99
  %116 = vmatprep.subr.bf16.mxu0 0
  %117 = vmatpush1.bf16.msra.mxu0 %v98
  %118 = vmatprep.subr.bf16.mxu0 0
  %119 = vmatpush1.bf16.msra.mxu0 %v97
  %120 = vmatprep.subr.bf16.mxu0 0
  %121 = vmatpush1.bf16.msra.mxu0 %v96
  %122 = vmatprep.subr.bf16.mxu0 0
  %123 = vmatpush1.bf16.msra.mxu0 %v95
  %124 = vmatprep.subr.bf16.mxu0 0
  %125 = vmatpush1.bf16.msra.mxu0 %v94
  %126 = vmatprep.subr.bf16.mxu0 0
  %127 = vmatpush2.bf16.msra.mxu0 0
  %128 = vmatprep.subr.bf16.mxu0 0
  %129 = vmatpush2.bf16.msra.mxu0 0
  %130 = vmatprep.subr.bf16.mxu0 0
  %131 = vmatpush2.bf16.msra.mxu0 0
  %132 = vmatprep.subr.bf16.mxu0 0
  %133 = vmatpush2.bf16.msra.mxu0 0
  %134 = vmatprep.subr.bf16.mxu0 0
  %135 = vmatpush2.bf16.msra.mxu0 0
  %136 = vmatprep.subr.bf16.mxu0 0
  %137 = vmatpush2.bf16.msra.mxu0 0
  %138 = vmatprep.subr.bf16.mxu0 0
  %139 = vmatpush2.bf16.msra.mxu0 0
  %140 = vmatprep.subr.bf16.mxu0 0
  %141 = vmatpush2.bf16.msra.mxu0 0
  %142 = vmatprep.mubr.bf16.mxu0 0
  %143 = vmatmul.mubr.bf16.gmra.mxu0 %v58
  %v144 = vpop.f32.mrf.mxu0
  %v145 = vadd.f32 0.0, %v144
  %v146 = vpop.f32.mrf.mxu0
  %v147 = vpop.f32.mrf.mxu0
  %v148 = vadd.f32 0.0, %v147
  %v149 = vpop.f32.mrf.mxu0
  %150 = vmatprep.mubr.bf16.mxu0 0
  %151 = vmatmul.mubr.bf16.gmra.mxu0 %v59
  %v152 = vpop.f32.mrf.mxu0
  %v153 = vadd.f32 0.0, %v152
  %v154 = vpop.f32.mrf.mxu0
  %v155 = vpop.f32.mrf.mxu0
  %v156 = vadd.f32 0.0, %v155
  %v157 = vpop.f32.mrf.mxu0
  %158 = vdwg.mxu0
  %v159 = vadd.f32 %v26, %v145
  %v160 = vadd.f32 %v27, %v148
  %v161 = vadd.f32 %v28, %v153
  %v162 = vadd.f32 %v29, %v156
  %163 = vst [vmem:[#allocation2] sm:$0xff] %v159
  %164 = vst [vmem:[#allocation2 + $0x8] sm:$0xff] %v160
  %165 = vst [vmem:[#allocation2 + $0x10] sm:$0xff] %v161
  %166 = vst [vmem:[#allocation2 + $0x18] sm:$0xff] %v162
  // Predicated region
  $region22: #{decoder_forward.95} parent=0 // pred_check
    %p167 = pneg %p18
  $region23: #{decoder_forward.95} parent=0 // pred_check_branch
    %169 = sbr.rel (%p167) target = $region25
  $region24: #{decoder_forward.95} parent=0 // pred_region
    %v170 = vld [vmem:[#allocation2] sm:$0xff]
    %v171 = vld [vmem:[#allocation2 + $0x8] sm:$0xff]
    %v172 = vld [vmem:[#allocation2 + $0x10] sm:$0xff]
    %v173 = vld [vmem:[#allocation2 + $0x18] sm:$0xff]
    %v174 = vld [vmem:[%s2] sm:$0x1]
    %v176 = vlaneseq
    %v177 = vshrl.u32 %v176, 7
    %v178 = vsub.s32 0, %v177
    %v179 = vrot.slane %v174, %v178
    %v181 = vmul.f32 %v170, %v179
    %v182 = vmul.f32 %v171, %v179
    %v183 = vmul.f32 %v172, %v179
    %v184 = vmul.f32 %v173, %v179
    %v185 = vld [vmem:[%s3] sm:$0x1]
    %v187 = vlaneseq
    %v188 = vshrl.u32 %v187, 7
    %v189 = vsub.s32 0, %v188
    %v190 = vrot.slane %v185, %v189
    %v192 = vadd.f32 %v181, %v190
    %v193 = vadd.f32 %v182, %v190
    %v194 = vadd.f32 %v183, %v190
    %v195 = vadd.f32 %v184, %v190
    %v196 = vmax.f32 %v192, 0.0
    %v197 = vmax.f32 %v193, 0.0
    %v198 = vmax.f32 %v194, 0.0
    %v199 = vmax.f32 %v195, 0.0
    %v200 = vpack.c.bf16 %v197, %v196
    %v201 = vpack.c.bf16 %v199, %v198
    %v204 = vunpack.c.l.b16 %v200
    %v205 = vunpack.c.h.b16 %v200
    %v206 = vunpack.c.l.b16 %v201
    %v207 = vunpack.c.h.b16 %v201
    %v208 = vpack.c.b16 %v204, %v204
    %v209 = vpack.c.b16 %v205, %v205
    %v210 = vpack.c.b16 %v206, %v206
    %v211 = vpack.c.b16 %v207, %v207
    %216 = vst [vmem:[%s4] sm:$0xf] %v208
    %217 = vst [vmem:[%s4 + $0x4] sm:$0xf] %v209
    %218 = vst [vmem:[%s4 + $0x8] sm:$0xf] %v210
    %219 = vst [vmem:[%s4 + $0xc] sm:$0xf] %v211
  $region25: #{decoder_forward.95} parent=0 // pred_fallthru
    _
  // Predicated region
  $region26: #{decoder_forward.95} parent=0 // pred_check
    _
  $region27: #{decoder_forward.95} parent=0 // pred_check_branch
    %221 = sbr.rel (0) target = $region29
  $region28: #{decoder_forward.95} parent=0 // pred_region
    _
  $region29: #{decoder_forward.95} parent=0 // pred_fallthru
    _
  // Predicated region
  $region30: #{decoder_forward.95} parent=0 // pred_check
    _
  $region31: #{decoder_forward.95} parent=0 // pred_check_branch
    %223 = sbr.rel (0) target = $region33
  $region32: #{decoder_forward.95} parent=0 // pred_region
    _
  $region33: #{decoder_forward.95} parent=0 // pred_fallthru
    _

// kernel: decoder_forward.109
$region0: #{decoder_forward.109}
  #allocation0 [shape = 'u32[]', space=smem, size = 0x4, offset = 0x4, fixed_abs, tag = 'smem constant byte address 0x4 - core index']
  #allocation1 [shape = 'u32[144,128]{1,0:T(1,128)}', space=vmem, size = 0x12000, scoped, tag = 'internal scratch']
  #allocation2 [shape = 'f32[128,128]{1,0:T(8,128)}', space=vmem, size = 0x10000, scoped, tag = 'scratch operand']
  %s0 = inlined_call_operand.vmem [shape: bf16[128,128], index: 0, kind: input, shape index: {}]
  %s1 = inlined_call_operand.vmem [shape: bf16[128,128], index: 1, kind: input, shape index: {}]
  %s2 = inlined_call_operand.vmem [shape: f32[1,128], index: 2, kind: input, shape index: {}]
  %s3 = inlined_call_operand.vmem [shape: f32[1,128], index: 3, kind: input, shape index: {}]
  %s4 = inlined_call_operand.vmem [shape: bf16[128,128], index: 4, kind: output, shape index: {}]
  %s5 = sld [smem:[#allocation0]]
  $region34: #{decoder_forward.109} parent=0
    _
  %s7 = ssub.s32 1, %s5
  %s8 = scalar_select 0, %s7, %s5
  // Predicated region
  $region2: #{decoder_forward.109} parent=0 // pred_check
    _
  $region3: #{decoder_forward.109} parent=0 // pred_check_branch
    %10 = sbr.rel (0) target = $region5
  $region4: #{decoder_forward.109} parent=0 // pred_region
    _
  $region5: #{decoder_forward.109} parent=0 // pred_fallthru
    _
  // Predicated region
  $region6: #{decoder_forward.109} parent=0 // pred_check
    _
  $region7: #{decoder_forward.109} parent=0 // pred_check_branch
    %12 = sbr.rel (0) target = $region9
  $region8: #{decoder_forward.109} parent=0 // pred_region
    _
  $region9: #{decoder_forward.109} parent=0 // pred_fallthru
    _
  // Predicated region
  $region10: #{decoder_forward.109} parent=0 // pred_check
    _
  $region11: #{decoder_forward.109} parent=0 // pred_check_branch
    %14 = sbr.rel (0) target = $region13
  $region12: #{decoder_forward.109} parent=0 // pred_region
    _
  $region13: #{decoder_forward.109} parent=0 // pred_fallthru
    _
  // Predicated region
  $region14: #{decoder_forward.109} parent=0 // pred_check
    _
  $region15: #{decoder_forward.109} parent=0 // pred_check_branch
    %16 = sbr.rel (0) target = $region17
  $region16: #{decoder_forward.109} parent=0 // pred_region
    _
  $region17: #{decoder_forward.109} parent=0 // pred_fallthru
    _
  %p18 = scmp.eq.s32.totalorder 0, 0
  // Predicated region
  $region18: #{decoder_forward.109} parent=0 // pred_check
    %p19 = pneg %p18
  $region19: #{decoder_forward.109} parent=0 // pred_check_branch
    %21 = sbr.rel (%p19) target = $region21
  $region20: #{decoder_forward.109} parent=0 // pred_region
    %22 = vst [vmem:[#allocation2] sm:$0xff] 0.0
    %23 = vst [vmem:[#allocation2 + $0x8] sm:$0xff] 0.0
    %24 = vst [vmem:[#allocation2 + $0x10] sm:$0xff] 0.0
    %25 = vst [vmem:[#allocation2 + $0x18] sm:$0xff] 0.0
    %26 = vst [vmem:[#allocation2 + $0x20] sm:$0xff] 0.0
    %27 = vst [vmem:[#allocation2 + $0x28] sm:$0xff] 0.0
    %28 = vst [vmem:[#allocation2 + $0x30] sm:$0xff] 0.0
    %29 = vst [vmem:[#allocation2 + $0x38] sm:$0xff] 0.0
    %30 = vst [vmem:[#allocation2 + $0x40] sm:$0xff] 0.0
    %31 = vst [vmem:[#allocation2 + $0x48] sm:$0xff] 0.0
    %32 = vst [vmem:[#allocation2 + $0x50] sm:$0xff] 0.0
    %33 = vst [vmem:[#allocation2 + $0x58] sm:$0xff] 0.0
    %34 = vst [vmem:[#allocation2 + $0x60] sm:$0xff] 0.0
    %35 = vst [vmem:[#allocation2 + $0x68] sm:$0xff] 0.0
    %36 = vst [vmem:[#allocation2 + $0x70] sm:$0xff] 0.0
    %37 = vst [vmem:[#allocation2 + $0x78] sm:$0xff] 0.0
  $region21: #{decoder_forward.109} parent=0 // pred_fallthru
    _
  %v38 = vld [vmem:[#allocation2] sm:$0xff]
  %v39 = vld [vmem:[#allocation2 + $0x8] sm:$0xff]
  %v40 = vld [vmem:[#allocation2 + $0x10] sm:$0xff]
  %v41 = vld [vmem:[#allocation2 + $0x18] sm:$0xff]
  %v42 = vld [vmem:[#allocation2 + $0x20] sm:$0xff]
  %v43 = vld [vmem:[#allocation2 + $0x28] sm:$0xff]
  %v44 = vld [vmem:[#allocation2 + $0x30] sm:$0xff]
  %v45 = vld [vmem:[#allocation2 + $0x38] sm:$0xff]
  %v46 = vld [vmem:[#allocation2 + $0x40] sm:$0xff]
  %v47 = vld [vmem:[#allocation2 + $0x48] sm:$0xff]
  %v48 = vld [vmem:[#allocation2 + $0x50] sm:$0xff]
  %v49 = vld [vmem:[#allocation2 + $0x58] sm:$0xff]
  %v50 = vld [vmem:[#allocation2 + $0x60] sm:$0xff]
  %v51 = vld [vmem:[#allocation2 + $0x68] sm:$0xff]
  %v52 = vld [vmem:[#allocation2 + $0x70] sm:$0xff]
  %v53 = vld [vmem:[#allocation2 + $0x78] sm:$0xff]
  %v54 = vld [vmem:[%s0] sm:$0xf]
  %v55 = vld [vmem:[%s0 + $0x4] sm:$0xf]
  %v56 = vld [vmem:[%s0 + $0x8] sm:$0xf]
  %v57 = vld [vmem:[%s0 + $0xc] sm:$0xf]
  %v58 = vld [vmem:[%s0 + $0x10] sm:$0xf]
  %v59 = vld [vmem:[%s0 + $0x14] sm:$0xf]
  %v60 = vld [vmem:[%s0 + $0x18] sm:$0xf]
  %v61 = vld [vmem:[%s0 + $0x1c] sm:$0xf]
  %v62 = vld [vmem:[%s0 + $0x20] sm:$0xf]
  %v63 = vld [vmem:[%s0 + $0x24] sm:$0xf]
  %v64 = vld [vmem:[%s0 + $0x28] sm:$0xf]
  %v65 = vld [vmem:[%s0 + $0x2c] sm:$0xf]
  %v66 = vld [vmem:[%s0 + $0x30] sm:$0xf]
  %v67 = vld [vmem:[%s0 + $0x34] sm:$0xf]
  %v68 = vld [vmem:[%s0 + $0x38] sm:$0xf]
  %v69 = vld [vmem:[%s0 + $0x3c] sm:$0xf]
  %v70 = vld [vmem:[%s1] sm:$0xf]
  %v71 = vld [vmem:[%s1 + $0x4] sm:$0xf]
  %v72 = vld [vmem:[%s1 + $0x8] sm:$0xf]
  %v73 = vld [vmem:[%s1 + $0xc] sm:$0xf]
  %v74 = vld [vmem:[%s1 + $0x10] sm:$0xf]
  %v75 = vld [vmem:[%s1 + $0x14] sm:$0xf]
  %v76 = vld [vmem:[%s1 + $0x18] sm:$0xf]
  %v77 = vld [vmem:[%s1 + $0x1c] sm:$0xf]
  %v78 = vld [vmem:[%s1 + $0x20] sm:$0xf]
  %v79 = vld [vmem:[%s1 + $0x24] sm:$0xf]
  %v80 = vld [vmem:[%s1 + $0x28] sm:$0xf]
  %v81 = vld [vmem:[%s1 + $0x2c] sm:$0xf]
  %v82 = vld [vmem:[%s1 + $0x30] sm:$0xf]
  %v83 = vld [vmem:[%s1 + $0x34] sm:$0xf]
  %v84 = vld [vmem:[%s1 + $0x38] sm:$0xf]
  %v85 = vld [vmem:[%s1 + $0x3c] sm:$0xf]
  %v102 = vunpack.c.l.b16 %v54
  %v103 = vunpack.c.l.b16 %v55
  %v104 = vunpack.c.l.b16 %v56
  %v105 = vunpack.c.l.b16 %v57
  %v106 = vunpack.c.l.b16 %v58
  %v107 = vunpack.c.l.b16 %v59
  %v108 = vunpack.c.l.b16 %v60
  %v109 = vunpack.c.l.b16 %v61
  %v110 = vunpack.c.l.b16 %v62
  %v111 = vunpack.c.l.b16 %v63
  %v112 = vunpack.c.l.b16 %v64
  %v113 = vunpack.c.l.b16 %v65
  %v114 = vunpack.c.l.b16 %v66
  %v115 = vunpack.c.l.b16 %v67
  %v116 = vunpack.c.l.b16 %v68
  %v117 = vunpack.c.l.b16 %v69
  %v118 = vpack.c.b16 %v103, %v102
  %v119 = vpack.c.b16 %v105, %v104
  %v120 = vpack.c.b16 %v107, %v106
  %v121 = vpack.c.b16 %v109, %v108
  %v122 = vpack.c.b16 %v111, %v110
  %v123 = vpack.c.b16 %v113, %v112
  %v124 = vpack.c.b16 %v115, %v114
  %v125 = vpack.c.b16 %v117, %v116
  %v150 = vunpack.c.l.b16 %v70
  %v151 = vunpack.c.l.b16 %v71
  %v152 = vunpack.c.l.b16 %v72
  %v153 = vunpack.c.l.b16 %v73
  %v154 = vunpack.c.l.b16 %v74
  %v155 = vunpack.c.l.b16 %v75
  %v156 = vunpack.c.l.b16 %v76
  %v157 = vunpack.c.l.b16 %v77
  %v158 = vunpack.c.l.b16 %v78
  %v159 = vunpack.c.l.b16 %v79
  %v160 = vunpack.c.l.b16 %v80
  %v161 = vunpack.c.l.b16 %v81
  %v162 = vunpack.c.l.b16 %v82
  %v163 = vunpack.c.l.b16 %v83
  %v164 = vunpack.c.l.b16 %v84
  %v165 = vunpack.c.l.b16 %v85
  %v166 = vpack.c.b16 %v151, %v150
  %v167 = vpack.c.b16 %v153, %v152
  %v168 = vpack.c.b16 %v155, %v154
  %v169 = vpack.c.b16 %v157, %v156
  %v170 = vpack.c.b16 %v159, %v158
  %v171 = vpack.c.b16 %v161, %v160
  %v172 = vpack.c.b16 %v163, %v162
  %v173 = vpack.c.b16 %v165, %v164
  %182 = vmatprep.subr.bf16.mxu0 0
  %183 = vmatpush1.bf16.msra.mxu0 %v173
  %184 = vmatprep.subr.bf16.mxu0 0
  %185 = vmatpush1.bf16.msra.mxu0 %v172
  %186 = vmatprep.subr.bf16.mxu0 0
  %187 = vmatpush1.bf16.msra.mxu0 %v171
  %188 = vmatprep.subr.bf16.mxu0 0
  %189 = vmatpush1.bf16.msra.mxu0 %v170
  %190 = vmatprep.subr.bf16.mxu0 0
  %191 = vmatpush1.bf16.msra.mxu0 %v169
  %192 = vmatprep.subr.bf16.mxu0 0
  %193 = vmatpush1.bf16.msra.mxu0 %v168
  %194 = vmatprep.subr.bf16.mxu0 0
  %195 = vmatpush1.bf16.msra.mxu0 %v167
  %196 = vmatprep.subr.bf16.mxu0 0
  %197 = vmatpush1.bf16.msra.mxu0 %v166
  %198 = vmatprep.subr.bf16.mxu0 0
  %199 = vmatpush2.bf16.msra.mxu0 0
  %200 = vmatprep.subr.bf16.mxu0 0
  %201 = vmatpush2.bf16.msra.mxu0 0
  %202 = vmatprep.subr.bf16.mxu0 0
  %203 = vmatpush2.bf16.msra.mxu0 0
  %204 = vmatprep.subr.bf16.mxu0 0
  %205 = vmatpush2.bf16.msra.mxu0 0
  %206 = vmatprep.subr.bf16.mxu0 0
  %207 = vmatpush2.bf16.msra.mxu0 0
  %208 = vmatprep.subr.bf16.mxu0 0
  %209 = vmatpush2.bf16.msra.mxu0 0
  %210 = vmatprep.subr.bf16.mxu0 0
  %211 = vmatpush2.bf16.msra.mxu0 0
  %212 = vmatprep.subr.bf16.mxu0 0
  %213 = vmatpush2.bf16.msra.mxu0 0
  %214 = vmatprep.mubr.bf16.mxu0 0
  %215 = vmatmul.mubr.bf16.gmra.mxu0 %v118
  %v216 = vpop.f32.mrf.mxu0
  %v217 = vadd.f32 0.0, %v216
  %v218 = vpop.f32.mrf.mxu0
  %v219 = vpop.f32.mrf.mxu0
  %v220 = vadd.f32 0.0, %v219
  %v221 = vpop.f32.mrf.mxu0
  %222 = vmatprep.mubr.bf16.mxu0 0
  %223 = vmatmul.mubr.bf16.gmra.mxu0 %v119
  %v224 = vpop.f32.mrf.mxu0
  %v225 = vadd.f32 0.0, %v224
  %v226 = vpop.f32.mrf.mxu0
  %v227 = vpop.f32.mrf.mxu0
  %v228 = vadd.f32 0.0, %v227
  %v229 = vpop.f32.mrf.mxu0
  %230 = vmatprep.mubr.bf16.mxu0 0
  %231 = vmatmul.mubr.bf16.gmra.mxu0 %v120
  %v232 = vpop.f32.mrf.mxu0
  %v233 = vadd.f32 0.0, %v232
  %v234 = vpop.f32.mrf.mxu0
  %v235 = vpop.f32.mrf.mxu0
  %v236 = vadd.f32 0.0, %v235
  %v237 = vpop.f32.mrf.mxu0
  %238 = vmatprep.mubr.bf16.mxu0 0
  %239 = vmatmul.mubr.bf16.gmra.mxu0 %v121
  %v240 = vpop.f32.mrf.mxu0
  %v241 = vadd.f32 0.0, %v240
  %v242 = vpop.f32.mrf.mxu0
  %v243 = vpop.f32.mrf.mxu0
  %v244 = vadd.f32 0.0, %v243
  %v245 = vpop.f32.mrf.mxu0
  %246 = vmatprep.mubr.bf16.mxu0 0
  %247 = vmatmul.mubr.bf16.gmra.mxu0 %v122
  %v248 = vpop.f32.mrf.mxu0
  %v249 = vadd.f32 0.0, %v248
  %v250 = vpop.f32.mrf.mxu0
  %v251 = vpop.f32.mrf.mxu0
  %v252 = vadd.f32 0.0, %v251
  %v253 = vpop.f32.mrf.mxu0
  %254 = vmatprep.mubr.bf16.mxu0 0
  %255 = vmatmul.mubr.bf16.gmra.mxu0 %v123
  %v256 = vpop.f32.mrf.mxu0
  %v257 = vadd.f32 0.0, %v256
  %v258 = vpop.f32.mrf.mxu0
  %v259 = vpop.f32.mrf.mxu0
  %v260 = vadd.f32 0.0, %v259
  %v261 = vpop.f32.mrf.mxu0
  %262 = vmatprep.mubr.bf16.mxu0 0
  %263 = vmatmul.mubr.bf16.gmra.mxu0 %v124
  %v264 = vpop.f32.mrf.mxu0
  %v265 = vadd.f32 0.0, %v264
  %v266 = vpop.f32.mrf.mxu0
  %v267 = vpop.f32.mrf.mxu0
  %v268 = vadd.f32 0.0, %v267
  %v269 = vpop.f32.mrf.mxu0
  %270 = vmatprep.mubr.bf16.mxu0 0
  %271 = vmatmul.mubr.bf16.gmra.mxu0 %v125
  %v272 = vpop.f32.mrf.mxu0
  %v273 = vadd.f32 0.0, %v272
  %v274 = vpop.f32.mrf.mxu0
  %v275 = vpop.f32.mrf.mxu0
  %v276 = vadd.f32 0.0, %v275
  %v277 = vpop.f32.mrf.mxu0
  %278 = vdwg.mxu0
  %v279 = vadd.f32 %v38, %v217
  %v280 = vadd.f32 %v39, %v220
  %v281 = vadd.f32 %v40, %v225
  %v282 = vadd.f32 %v41, %v228
  %v283 = vadd.f32 %v42, %v233
  %v284 = vadd.f32 %v43, %v236
  %v285 = vadd.f32 %v44, %v241
  %v286 = vadd.f32 %v45, %v244
  %v287 = vadd.f32 %v46, %v249
  %v288 = vadd.f32 %v47, %v252
  %v289 = vadd.f32 %v48, %v257
  %v290 = vadd.f32 %v49, %v260
  %v291 = vadd.f32 %v50, %v265
  %v292 = vadd.f32 %v51, %v268
  %v293 = vadd.f32 %v52, %v273
  %v294 = vadd.f32 %v53, %v276
  %295 = vst [vmem:[#allocation2] sm:$0xff] %v279
  %296 = vst [vmem:[#allocation2 + $0x8] sm:$0xff] %v280
  %297 = vst [vmem:[#allocation2 + $0x10] sm:$0xff] %v281
  %298 = vst [vmem:[#allocation2 + $0x18] sm:$0xff] %v282
  %299 = vst [vmem:[#allocation2 + $0x20] sm:$0xff] %v283
  %300 = vst [vmem:[#allocation2 + $0x28] sm:$0xff] %v284
  %301 = vst [vmem:[#allocation2 + $0x30] sm:$0xff] %v285
  %302 = vst [vmem:[#allocation2 + $0x38] sm:$0xff] %v286
  %303 = vst [vmem:[#allocation2 + $0x40] sm:$0xff] %v287
  %304 = vst [vmem:[#allocation2 + $0x48] sm:$0xff] %v288
  %305 = vst [vmem:[#allocation2 + $0x50] sm:$0xff] %v289
  %306 = vst [vmem:[#allocation2 + $0x58] sm:$0xff] %v290
  %307 = vst [vmem:[#allocation2 + $0x60] sm:$0xff] %v291
  %308 = vst [vmem:[#allocation2 + $0x68] sm:$0xff] %v292
  %309 = vst [vmem:[#allocation2 + $0x70] sm:$0xff] %v293
  %310 = vst [vmem:[#allocation2 + $0x78] sm:$0xff] %v294
  // Predicated region
  $region22: #{decoder_forward.109} parent=0 // pred_check
    %p311 = pneg %p18
  $region23: #{decoder_forward.109} parent=0 // pred_check_branch
    %313 = sbr.rel (%p311) target = $region25
  $region24: #{decoder_forward.109} parent=0 // pred_region
    %v314 = vld [vmem:[#allocation2] sm:$0xff]
    %v315 = vld [vmem:[#allocation2 + $0x8] sm:$0xff]
    %v316 = vld [vmem:[#allocation2 + $0x10] sm:$0xff]
    %v317 = vld [vmem:[#allocation2 + $0x18] sm:$0xff]
    %v318 = vld [vmem:[#allocation2 + $0x20] sm:$0xff]
    %v319 = vld [vmem:[#allocation2 + $0x28] sm:$0xff]
    %v320 = vld [vmem:[#allocation2 + $0x30] sm:$0xff]
    %v321 = vld [vmem:[#allocation2 + $0x38] sm:$0xff]
    %v322 = vld [vmem:[#allocation2 + $0x40] sm:$0xff]
    %v323 = vld [vmem:[#allocation2 + $0x48] sm:$0xff]
    %v324 = vld [vmem:[#allocation2 + $0x50] sm:$0xff]
    %v325 = vld [vmem:[#allocation2 + $0x58] sm:$0xff]
    %v326 = vld [vmem:[#allocation2 + $0x60] sm:$0xff]
    %v327 = vld [vmem:[#allocation2 + $0x68] sm:$0xff]
    %v328 = vld [vmem:[#allocation2 + $0x70] sm:$0xff]
    %v329 = vld [vmem:[#allocation2 + $0x78] sm:$0xff]
    %v330 = vld [vmem:[%s2] sm:$0x1]
    %v332 = vlaneseq
    %v333 = vshrl.u32 %v332, 7
    %v334 = vsub.s32 0, %v333
    %v335 = vrot.slane %v330, %v334
    %v337 = vmul.f32 %v314, %v335
    %v338 = vmul.f32 %v315, %v335
    %v339 = vmul.f32 %v316, %v335
    %v340 = vmul.f32 %v317, %v335
    %v341 = vmul.f32 %v318, %v335
    %v342 = vmul.f32 %v319, %v335
    %v343 = vmul.f32 %v320, %v335
    %v344 = vmul.f32 %v321, %v335
    %v345 = vmul.f32 %v322, %v335
    %v346 = vmul.f32 %v323, %v335
    %v347 = vmul.f32 %v324, %v335
    %v348 = vmul.f32 %v325, %v335
    %v349 = vmul.f32 %v326, %v335
    %v350 = vmul.f32 %v327, %v335
    %v351 = vmul.f32 %v328, %v335
    %v352 = vmul.f32 %v329, %v335
    %v353 = vld [vmem:[%s3] sm:$0x1]
    %v355 = vlaneseq
    %v356 = vshrl.u32 %v355, 7
    %v357 = vsub.s32 0, %v356
    %v358 = vrot.slane %v353, %v357
    %v360 = vadd.f32 %v337, %v358
    %v361 = vadd.f32 %v338, %v358
    %v362 = vadd.f32 %v339, %v358
    %v363 = vadd.f32 %v340, %v358
    %v364 = vadd.f32 %v341, %v358
    %v365 = vadd.f32 %v342, %v358
    %v366 = vadd.f32 %v343, %v358
    %v367 = vadd.f32 %v344, %v358
    %v368 = vadd.f32 %v345, %v358
    %v369 = vadd.f32 %v346, %v358
    %v370 = vadd.f32 %v347, %v358
    %v371 = vadd.f32 %v348, %v358
    %v372 = vadd.f32 %v349, %v358
    %v373 = vadd.f32 %v350, %v358
    %v374 = vadd.f32 %v351, %v358
    %v375 = vadd.f32 %v352, %v358
    %v376 = vmax.f32 %v360, 0.0
    %v377 = vmax.f32 %v361, 0.0
    %v378 = vmax.f32 %v362, 0.0
    %v379 = vmax.f32 %v363, 0.0
    %v380 = vmax.f32 %v364, 0.0
    %v381 = vmax.f32 %v365, 0.0
    %v382 = vmax.f32 %v366, 0.0
    %v383 = vmax.f32 %v367, 0.0
    %v384 = vmax.f32 %v368, 0.0
    %v385 = vmax.f32 %v369, 0.0
    %v386 = vmax.f32 %v370, 0.0
    %v387 = vmax.f32 %v371, 0.0
    %v388 = vmax.f32 %v372, 0.0
    %v389 = vmax.f32 %v373, 0.0
    %v390 = vmax.f32 %v374, 0.0
    %v391 = vmax.f32 %v375, 0.0
    %v392 = vpack.c.bf16 %v377, %v376
    %v393 = vpack.c.bf16 %v379, %v378
    %v394 = vpack.c.bf16 %v381, %v380
    %v395 = vpack.c.bf16 %v383, %v382
    %v396 = vpack.c.bf16 %v385, %v384
    %v397 = vpack.c.bf16 %v387, %v386
    %v398 = vpack.c.bf16 %v389, %v388
    %v399 = vpack.c.bf16 %v391, %v390
    %v408 = vunpack.c.l.b16 %v392
    %v409 = vunpack.c.h.b16 %v392
    %v410 = vunpack.c.l.b16 %v393
    %v411 = vunpack.c.h.b16 %v393
    %v412 = vunpack.c.l.b16 %v394
    %v413 = vunpack.c.h.b16 %v394
    %v414 = vunpack.c.l.b16 %v395
    %v415 = vunpack.c.h.b16 %v395
    %v416 = vunpack.c.l.b16 %v396
    %v417 = vunpack.c.h.b16 %v396
    %v418 = vunpack.c.l.b16 %v397
    %v419 = vunpack.c.h.b16 %v397
    %v420 = vunpack.c.l.b16 %v398
    %v421 = vunpack.c.h.b16 %v398
    %v422 = vunpack.c.l.b16 %v399
    %v423 = vunpack.c.h.b16 %v399
    %v424 = vpack.c.b16 %v408, %v408
    %v425 = vpack.c.b16 %v409, %v409
    %v426 = vpack.c.b16 %v410, %v410
    %v427 = vpack.c.b16 %v411, %v411
    %v428 = vpack.c.b16 %v412, %v412
    %v429 = vpack.c.b16 %v413, %v413
    %v430 = vpack.c.b16 %v414, %v414
    %v431 = vpack.c.b16 %v415, %v415
    %v432 = vpack.c.b16 %v416, %v416
    %v433 = vpack.c.b16 %v417, %v417
    %v434 = vpack.c.b16 %v418, %v418
    %v435 = vpack.c.b16 %v419, %v419
    %v436 = vpack.c.b16 %v420, %v420
    %v437 = vpack.c.b16 %v421, %v421
    %v438 = vpack.c.b16 %v422, %v422
    %v439 = vpack.c.b16 %v423, %v423
    %456 = vst [vmem:[%s4] sm:$0xf] %v424
    %457 = vst [vmem:[%s4 + $0x4] sm:$0xf] %v425
    %458 = vst [vmem:[%s4 + $0x8] sm:$0xf] %v426
    %459 = vst [vmem:[%s4 + $0xc] sm:$0xf] %v427
    %460 = vst [vmem:[%s4 + $0x10] sm:$0xf] %v428
    %461 = vst [vmem:[%s4 + $0x14] sm:$0xf] %v429
    %462 = vst [vmem:[%s4 + $0x18] sm:$0xf] %v430
    %463 = vst [vmem:[%s4 + $0x1c] sm:$0xf] %v431
    %464 = vst [vmem:[%s4 + $0x20] sm:$0xf] %v432
    %465 = vst [vmem:[%s4 + $0x24] sm:$0xf] %v433
    %466 = vst [vmem:[%s4 + $0x28] sm:$0xf] %v434
    %467 = vst [vmem:[%s4 + $0x2c] sm:$0xf] %v435
    %468 = vst [vmem:[%s4 + $0x30] sm:$0xf] %v436
    %469 = vst [vmem:[%s4 + $0x34] sm:$0xf] %v437
    %470 = vst [vmem:[%s4 + $0x38] sm:$0xf] %v438
    %471 = vst [vmem:[%s4 + $0x3c] sm:$0xf] %v439
  $region25: #{decoder_forward.109} parent=0 // pred_fallthru
    _
  // Predicated region
  $region26: #{decoder_forward.109} parent=0 // pred_check
    _
  $region27: #{decoder_forward.109} parent=0 // pred_check_branch
    %473 = sbr.rel (0) target = $region29
  $region28: #{decoder_forward.109} parent=0 // pred_region
    _
  $region29: #{decoder_forward.109} parent=0 // pred_fallthru
    _
  // Predicated region
  $region30: #{decoder_forward.109} parent=0 // pred_check
    _
  $region31: #{decoder_forward.109} parent=0 // pred_check_branch
    %475 = sbr.rel (0) target = $region33
  $region32: #{decoder_forward.109} parent=0 // pred_region
    _
  $region33: #{decoder_forward.109} parent=0 // pred_fallthru
    _

// kernel: decoder_forward.113
$region0: #{decoder_forward.113}
  #allocation0 [shape = 'u32[]', space=smem, size = 0x4, offset = 0x4, fixed_abs, tag = 'smem constant byte address 0x4 - core index']
  #allocation1 [shape = 'u32[144,128]{1,0:T(1,128)}', space=vmem, size = 0x12000, scoped, tag = 'internal scratch']
  #allocation2 [shape = 'f32[512,128]{1,0:T(8,128)}', space=vmem, size = 0x40000, scoped, tag = 'scratch operand']
  %s0 = inlined_call_operand.vmem [shape: bf16[512,128], index: 0, kind: input, shape index: {}]
  %s1 = inlined_call_operand.vmem [shape: bf16[128,128], index: 1, kind: input, shape index: {}]
  %s2 = inlined_call_operand.vmem [shape: f32[1,128], index: 2, kind: input, shape index: {}]
  %s3 = inlined_call_operand.vmem [shape: f32[1,128], index: 3, kind: input, shape index: {}]
  %s4 = inlined_call_operand.vmem [shape: bf16[512,128], index: 4, kind: output, shape index: {}]
  %s5 = sld [smem:[#allocation0]]
  $region34: #{decoder_forward.113} parent=0
    _
  %s7 = ssub.s32 1, %s5
  %s8 = scalar_select 0, %s7, %s5
  // Predicated region
  $region2: #{decoder_forward.113} parent=0 // pred_check
    _
  $region3: #{decoder_forward.113} parent=0 // pred_check_branch
    %10 = sbr.rel (0) target = $region5
  $region4: #{decoder_forward.113} parent=0 // pred_region
    _
  $region5: #{decoder_forward.113} parent=0 // pred_fallthru
    _
  // Predicated region
  $region6: #{decoder_forward.113} parent=0 // pred_check
    _
  $region7: #{decoder_forward.113} parent=0 // pred_check_branch
    %12 = sbr.rel (0) target = $region9
  $region8: #{decoder_forward.113} parent=0 // pred_region
    _
  $region9: #{decoder_forward.113} parent=0 // pred_fallthru
    _
  // Predicated region
  $region10: #{decoder_forward.113} parent=0 // pred_check
    _
  $region11: #{decoder_forward.113} parent=0 // pred_check_branch
    %14 = sbr.rel (0) target = $region13
  $region12: #{decoder_forward.113} parent=0 // pred_region
    _
  $region13: #{decoder_forward.113} parent=0 // pred_fallthru
    _
  // Predicated region
  $region14: #{decoder_forward.113} parent=0 // pred_check
    _
  $region15: #{decoder_forward.113} parent=0 // pred_check_branch
    %16 = sbr.rel (0) target = $region17
  $region16: #{decoder_forward.113} parent=0 // pred_region
    _
  $region17: #{decoder_forward.113} parent=0 // pred_fallthru
    _
  %p18 = scmp.eq.s32.totalorder 0, 0
  // Predicated region
  $region18: #{decoder_forward.113} parent=0 // pred_check
    %p19 = pneg %p18
  $region19: #{decoder_forward.113} parent=0 // pred_check_branch
    %21 = sbr.rel (%p19) target = $region21
  $region20: #{decoder_forward.113} parent=0 // pred_region
    %22 = vst [vmem:[#allocation2] sm:$0xff] 0.0
    %23 = vst [vmem:[#allocation2 + $0x8] sm:$0xff] 0.0
    %24 = vst [vmem:[#allocation2 + $0x10] sm:$0xff] 0.0
    %25 = vst [vmem:[#allocation2 + $0x18] sm:$0xff] 0.0
    %26 = vst [vmem:[#allocation2 + $0x20] sm:$0xff] 0.0
    %27 = vst [vmem:[#allocation2 + $0x28] sm:$0xff] 0.0
    %28 = vst [vmem:[#allocation2 + $0x30] sm:$0xff] 0.0
    %29 = vst [vmem:[#allocation2 + $0x38] sm:$0xff] 0.0
    %30 = vst [vmem:[#allocation2 + $0x40] sm:$0xff] 0.0
    %31 = vst [vmem:[#allocation2 + $0x48] sm:$0xff] 0.0
    %32 = vst [vmem:[#allocation2 + $0x50] sm:$0xff] 0.0
    %33 = vst [vmem:[#allocation2 + $0x58] sm:$0xff] 0.0
    %34 = vst [vmem:[#allocation2 + $0x60] sm:$0xff] 0.0
    %35 = vst [vmem:[#allocation2 + $0x68] sm:$0xff] 0.0
    %36 = vst [vmem:[#allocation2 + $0x70] sm:$0xff] 0.0
    %37 = vst [vmem:[#allocation2 + $0x78] sm:$0xff] 0.0
    %38 = vst [vmem:[#allocation2 + $0x80] sm:$0xff] 0.0
    %39 = vst [vmem:[#allocation2 + $0x88] sm:$0xff] 0.0
    %40 = vst [vmem:[#allocation2 + $0x90] sm:$0xff] 0.0
    %41 = vst [vmem:[#allocation2 + $0x98] sm:$0xff] 0.0
    %42 = vst [vmem:[#allocation2 + $0xa0] sm:$0xff] 0.0
    %43 = vst [vmem:[#allocation2 + $0xa8] sm:$0xff] 0.0
    %44 = vst [vmem:[#allocation2 + $0xb0] sm:$0xff] 0.0
    %45 = vst [vmem:[#allocation2 + $0xb8] sm:$0xff] 0.0
    %46 = vst [vmem:[#allocation2 + $0xc0] sm:$0xff] 0.0
    %47 = vst [vmem:[#allocation2 + $0xc8] sm:$0xff] 0.0
    %48 = vst [vmem:[#allocation2 + $0xd0] sm:$0xff] 0.0
    %49 = vst [vmem:[#allocation2 + $0xd8] sm:$0xff] 0.0
    %50 = vst [vmem:[#allocation2 + $0xe0] sm:$0xff] 0.0
    %51 = vst [vmem:[#allocation2 + $0xe8] sm:$0xff] 0.0
    %52 = vst [vmem:[#allocation2 + $0xf0] sm:$0xff] 0.0
    %53 = vst [vmem:[#allocation2 + $0xf8] sm:$0xff] 0.0
    %54 = vst [vmem:[#allocation2 + $0x100] sm:$0xff] 0.0
    %55 = vst [vmem:[#allocation2 + $0x108] sm:$0xff] 0.0
    %56 = vst [vmem:[#allocation2 + $0x110] sm:$0xff] 0.0
    %57 = vst [vmem:[#allocation2 + $0x118] sm:$0xff] 0.0
    %58 = vst [vmem:[#allocation2 + $0x120] sm:$0xff] 0.0
    %59 = vst [vmem:[#allocation2 + $0x128] sm:$0xff] 0.0
    %60 = vst [vmem:[#allocation2 + $0x130] sm:$0xff] 0.0
    %61 = vst [vmem:[#allocation2 + $0x138] sm:$0xff] 0.0
    %62 = vst [vmem:[#allocation2 + $0x140] sm:$0xff] 0.0
    %63 = vst [vmem:[#allocation2 + $0x148] sm:$0xff] 0.0
    %64 = vst [vmem:[#allocation2 + $0x150] sm:$0xff] 0.0
    %65 = vst [vmem:[#allocation2 + $0x158] sm:$0xff] 0.0
    %66 = vst [vmem:[#allocation2 + $0x160] sm:$0xff] 0.0
    %67 = vst [vmem:[#allocation2 + $0x168] sm:$0xff] 0.0
    %68 = vst [vmem:[#allocation2 + $0x170] sm:$0xff] 0.0
    %69 = vst [vmem:[#allocation2 + $0x178] sm:$0xff] 0.0
    %70 = vst [vmem:[#allocation2 + $0x180] sm:$0xff] 0.0
    %71 = vst [vmem:[#allocation2 + $0x188] sm:$0xff] 0.0
    %72 = vst [vmem:[#allocation2 + $0x190] sm:$0xff] 0.0
    %73 = vst [vmem:[#allocation2 + $0x198] sm:$0xff] 0.0
    %74 = vst [vmem:[#allocation2 + $0x1a0] sm:$0xff] 0.0
    %75 = vst [vmem:[#allocation2 + $0x1a8] sm:$0xff] 0.0
    %76 = vst [vmem:[#allocation2 + $0x1b0] sm:$0xff] 0.0
    %77 = vst [vmem:[#allocation2 + $0x1b8] sm:$0xff] 0.0
    %78 = vst [vmem:[#allocation2 + $0x1c0] sm:$0xff] 0.0
    %79 = vst [vmem:[#allocation2 + $0x1c8] sm:$0xff] 0.0
    %80 = vst [vmem:[#allocation2 + $0x1d0] sm:$0xff] 0.0
    %81 = vst [vmem:[#allocation2 + $0x1d8] sm:$0xff] 0.0
    %82 = vst [vmem:[#allocation2 + $0x1e0] sm:$0xff] 0.0
    %83 = vst [vmem:[#allocation2 + $0x1e8] sm:$0xff] 0.0
    %84 = vst [vmem:[#allocation2 + $0x1f0] sm:$0xff] 0.0
    %85 = vst [vmem:[#allocation2 + $0x1f8] sm:$0xff] 0.0
  $region21: #{decoder_forward.113} parent=0 // pred_fallthru
    _
  %v86 = vld [vmem:[#allocation2] sm:$0xff]
  %v87 = vld [vmem:[#allocation2 + $0x8] sm:$0xff]
  %v88 = vld [vmem:[#allocation2 + $0x10] sm:$0xff]
  %v89 = vld [vmem:[#allocation2 + $0x18] sm:$0xff]
  %v90 = vld [vmem:[#allocation2 + $0x20] sm:$0xff]
  %v91 = vld [vmem:[#allocation2 + $0x28] sm:$0xff]
  %v92 = vld [vmem:[#allocation2 + $0x30] sm:$0xff]
  %v93 = vld [vmem:[#allocation2 + $0x38] sm:$0xff]
  %v94 = vld [vmem:[#allocation2 + $0x40] sm:$0xff]
  %v95 = vld [vmem:[#allocation2 + $0x48] sm:$0xff]
  %v96 = vld [vmem:[#allocation2 + $0x50] sm:$0xff]
  %v97 = vld [vmem:[#allocation2 + $0x58] sm:$0xff]
  %v98 = vld [vmem:[#allocation2 + $0x60] sm:$0xff]
  %v99 = vld [vmem:[#allocation2 + $0x68] sm:$0xff]
  %v100 = vld [vmem:[#allocation2 + $0x70] sm:$0xff]
  %v101 = vld [vmem:[#allocation2 + $0x78] sm:$0xff]
  %v102 = vld [vmem:[#allocation2 + $0x80] sm:$0xff]
  %v103 = vld [vmem:[#allocation2 + $0x88] sm:$0xff]
  %v104 = vld [vmem:[#allocation2 + $0x90] sm:$0xff]
  %v105 = vld [vmem:[#allocation2 + $0x98] sm:$0xff]
  %v106 = vld [vmem:[#allocation2 + $0xa0] sm:$0xff]
  %v107 = vld [vmem:[#allocation2 + $0xa8] sm:$0xff]
  %v108 = vld [vmem:[#allocation2 + $0xb0] sm:$0xff]
  %v109 = vld [vmem:[#allocation2 + $0xb8] sm:$0xff]
  %v110 = vld [vmem:[#allocation2 + $0xc0] sm:$0xff]
  %v111 = vld [vmem:[#allocation2 + $0xc8] sm:$0xff]
  %v112 = vld [vmem:[#allocation2 + $0xd0] sm:$0xff]
  %v113 = vld [vmem:[#allocation2 + $0xd8] sm:$0xff]
  %v114 = vld [vmem:[#allocation2 + $0xe0] sm:$0xff]
  %v115 = vld [vmem:[#allocation2 + $0xe8] sm:$0xff]
  %v116 = vld [vmem:[#allocation2 + $0xf0] sm:$0xff]
  %v117 = vld [vmem:[#allocation2 + $0xf8] sm:$0xff]
  %v118 = vld [vmem:[#allocation2 + $0x100] sm:$0xff]
  %v119 = vld [vmem:[#allocation2 + $0x108] sm:$0xff]
  %v120 = vld [vmem:[#allocation2 + $0x110] sm:$0xff]
  %v121 = vld [vmem:[#allocation2 + $0x118] sm:$0xff]
  %v122 = vld [vmem:[#allocation2 + $0x120] sm:$0xff]
  %v123 = vld [vmem:[#allocation2 + $0x128] sm:$0xff]
  %v124 = vld [vmem:[#allocation2 + $0x130] sm:$0xff]
  %v125 = vld [vmem:[#allocation2 + $0x138] sm:$0xff]
  %v126 = vld [vmem:[#allocation2 + $0x140] sm:$0xff]
  %v127 = vld [vmem:[#allocation2 + $0x148] sm:$0xff]
  %v128 = vld [vmem:[#allocation2 + $0x150] sm:$0xff]
  %v129 = vld [vmem:[#allocation2 + $0x158] sm:$0xff]
  %v130 = vld [vmem:[#allocation2 + $0x160] sm:$0xff]
  %v131 = vld [vmem:[#allocation2 + $0x168] sm:$0xff]
  %v132 = vld [vmem:[#allocation2 + $0x170] sm:$0xff]
  %v133 = vld [vmem:[#allocation2 + $0x178] sm:$0xff]
  %v134 = vld [vmem:[#allocation2 + $0x180] sm:$0xff]
  %v135 = vld [vmem:[#allocation2 + $0x188] sm:$0xff]
  %v136 = vld [vmem:[#allocation2 + $0x190] sm:$0xff]
  %v137 = vld [vmem:[#allocation2 + $0x198] sm:$0xff]
  %v138 = vld [vmem:[#allocation2 + $0x1a0] sm:$0xff]
  %v139 = vld [vmem:[#allocation2 + $0x1a8] sm:$0xff]
  %v140 = vld [vmem:[#allocation2 + $0x1b0] sm:$0xff]
  %v141 = vld [vmem:[#allocation2 + $0x1b8] sm:$0xff]
  %v142 = vld [vmem:[#allocation2 + $0x1c0] sm:$0xff]
  %v143 = vld [vmem:[#allocation2 + $0x1c8] sm:$0xff]
  %v144 = vld [vmem:[#allocation2 + $0x1d0] sm:$0xff]
  %v145 = vld [vmem:[#allocation2 + $0x1d8] sm:$0xff]
  %v146 = vld [vmem:[#allocation2 + $0x1e0] sm:$0xff]
  %v147 = vld [vmem:[#allocation2 + $0x1e8] sm:$0xff]
  %v148 = vld [vmem:[#allocation2 + $0x1f0] sm:$0xff]
  %v149 = vld [vmem:[#allocation2 + $0x1f8] sm:$0xff]
  %v150 = vld [vmem:[%s0] sm:$0xf]
  %v151 = vld [vmem:[%s0 + $0x4] sm:$0xf]
  %v152 = vld [vmem:[%s0 + $0x8] sm:$0xf]
  %v153 = vld [vmem:[%s0 + $0xc] sm:$0xf]
  %v154 = vld [vmem:[%s0 + $0x10] sm:$0xf]
  %v155 = vld [vmem:[%s0 + $0x14] sm:$0xf]
  %v156 = vld [vmem:[%s0 + $0x18] sm:$0xf]
  %v157 = vld [vmem:[%s0 + $0x1c] sm:$0xf]
  %v158 = vld [vmem:[%s0 + $0x20] sm:$0xf]
  %v159 = vld [vmem:[%s0 + $0x24] sm:$0xf]
  %v160 = vld [vmem:[%s0 + $0x28] sm:$0xf]
  %v161 = vld [vmem:[%s0 + $0x2c] sm:$0xf]
  %v162 = vld [vmem:[%s0 + $0x30] sm:$0xf]
  %v163 = vld [vmem:[%s0 + $0x34] sm:$0xf]
  %v164 = vld [vmem:[%s0 + $0x38] sm:$0xf]
  %v165 = vld [vmem:[%s0 + $0x3c] sm:$0xf]
  %v166 = vld [vmem:[%s0 + $0x40] sm:$0xf]
  %v167 = vld [vmem:[%s0 + $0x44] sm:$0xf]
  %v168 = vld [vmem:[%s0 + $0x48] sm:$0xf]
  %v169 = vld [vmem:[%s0 + $0x4c] sm:$0xf]
  %v170 = vld [vmem:[%s0 + $0x50] sm:$0xf]
  %v171 = vld [vmem:[%s0 + $0x54] sm:$0xf]
  %v172 = vld [vmem:[%s0 + $0x58] sm:$0xf]
  %v173 = vld [vmem:[%s0 + $0x5c] sm:$0xf]
  %v174 = vld [vmem:[%s0 + $0x60] sm:$0xf]
  %v175 = vld [vmem:[%s0 + $0x64] sm:$0xf]
  %v176 = vld [vmem:[%s0 + $0x68] sm:$0xf]
  %v177 = vld [vmem:[%s0 + $0x6c] sm:$0xf]
  %v178 = vld [vmem:[%s0 + $0x70] sm:$0xf]
  %v179 = vld [vmem:[%s0 + $0x74] sm:$0xf]
  %v180 = vld [vmem:[%s0 + $0x78] sm:$0xf]
  %v181 = vld [vmem:[%s0 + $0x7c] sm:$0xf]
  %v182 = vld [vmem:[%s0 + $0x80] sm:$0xf]
  %v183 = vld [vmem:[%s0 + $0x84] sm:$0xf]
  %v184 = vld [vmem:[%s0 + $0x88] sm:$0xf]
  %v185 = vld [vmem:[%s0 + $0x8c] sm:$0xf]
  %v186 = vld [vmem:[%s0 + $0x90] sm:$0xf]
  %v187 = vld [vmem:[%s0 + $0x94] sm:$0xf]
  %v188 = vld [vmem:[%s0 + $0x98] sm:$0xf]
  %v189 = vld [vmem:[%s0 + $0x9c] sm:$0xf]
  %v190 = vld [vmem:[%s0 + $0xa0] sm:$0xf]
  %v191 = vld [vmem:[%s0 + $0xa4] sm:$0xf]
  %v192 = vld [vmem:[%s0 + $0xa8] sm:$0xf]
  %v193 = vld [vmem:[%s0 + $0xac] sm:$0xf]
  %v194 = vld [vmem:[%s0 + $0xb0] sm:$0xf]
  %v195 = vld [vmem:[%s0 + $0xb4] sm:$0xf]
  %v196 = vld [vmem:[%s0 + $0xb8] sm:$0xf]
  %v197 = vld [vmem:[%s0 + $0xbc] sm:$0xf]
  %v198 = vld [vmem:[%s0 + $0xc0] sm:$0xf]
  %v199 = vld [vmem:[%s0 + $0xc4] sm:$0xf]
  %v200 = vld [vmem:[%s0 + $0xc8] sm:$0xf]
  %v201 = vld [vmem:[%s0 + $0xcc] sm:$0xf]
  %v202 = vld [vmem:[%s0 + $0xd0] sm:$0xf]
  %v203 = vld [vmem:[%s0 + $0xd4] sm:$0xf]
  %v204 = vld [vmem:[%s0 + $0xd8] sm:$0xf]
  %v205 = vld [vmem:[%s0 + $0xdc] sm:$0xf]
  %v206 = vld [vmem:[%s0 + $0xe0] sm:$0xf]
  %v207 = vld [vmem:[%s0 + $0xe4] sm:$0xf]
  %v208 = vld [vmem:[%s0 + $0xe8] sm:$0xf]
  %v209 = vld [vmem:[%s0 + $0xec] sm:$0xf]
  %v210 = vld [vmem:[%s0 + $0xf0] sm:$0xf]
  %v211 = vld [vmem:[%s0 + $0xf4] sm:$0xf]
  %v212 = vld [vmem:[%s0 + $0xf8] sm:$0xf]
  %v213 = vld [vmem:[%s0 + $0xfc] sm:$0xf]
  %v214 = vld [vmem:[%s1] sm:$0xf]
  %v215 = vld [vmem:[%s1 + $0x4] sm:$0xf]
  %v216 = vld [vmem:[%s1 + $0x8] sm:$0xf]
  %v217 = vld [vmem:[%s1 + $0xc] sm:$0xf]
  %v218 = vld [vmem:[%s1 + $0x10] sm:$0xf]
  %v219 = vld [vmem:[%s1 + $0x14] sm:$0xf]
  %v220 = vld [vmem:[%s1 + $0x18] sm:$0xf]
  %v221 = vld [vmem:[%s1 + $0x1c] sm:$0xf]
  %v222 = vld [vmem:[%s1 + $0x20] sm:$0xf]
  %v223 = vld [vmem:[%s1 + $0x24] sm:$0xf]
  %v224 = vld [vmem:[%s1 + $0x28] sm:$0xf]
  %v225 = vld [vmem:[%s1 + $0x2c] sm:$0xf]
  %v226 = vld [vmem:[%s1 + $0x30] sm:$0xf]
  %v227 = vld [vmem:[%s1 + $0x34] sm:$0xf]
  %v228 = vld [vmem:[%s1 + $0x38] sm:$0xf]
  %v229 = vld [vmem:[%s1 + $0x3c] sm:$0xf]
  %v294 = vunpack.c.l.b16 %v150
  %v295 = vunpack.c.l.b16 %v151
  %v296 = vunpack.c.l.b16 %v152
  %v297 = vunpack.c.l.b16 %v153
  %v298 = vunpack.c.l.b16 %v154
  %v299 = vunpack.c.l.b16 %v155
  %v300 = vunpack.c.l.b16 %v156
  %v301 = vunpack.c.l.b16 %v157
  %v302 = vunpack.c.l.b16 %v158
  %v303 = vunpack.c.l.b16 %v159
  %v304 = vunpack.c.l.b16 %v160
  %v305 = vunpack.c.l.b16 %v161
  %v306 = vunpack.c.l.b16 %v162
  %v307 = vunpack.c.l.b16 %v163
  %v308 = vunpack.c.l.b16 %v164
  %v309 = vunpack.c.l.b16 %v165
  %v310 = vunpack.c.l.b16 %v166
  %v311 = vunpack.c.l.b16 %v167
  %v312 = vunpack.c.l.b16 %v168
  %v313 = vunpack.c.l.b16 %v169
  %v314 = vunpack.c.l.b16 %v170
  %v315 = vunpack.c.l.b16 %v171
  %v316 = vunpack.c.l.b16 %v172
  %v317 = vunpack.c.l.b16 %v173
  %v318 = vunpack.c.l.b16 %v174
  %v319 = vunpack.c.l.b16 %v175
  %v320 = vunpack.c.l.b16 %v176
  %v321 = vunpack.c.l.b16 %v177
  %v322 = vunpack.c.l.b16 %v178
  %v323 = vunpack.c.l.b16 %v179
  %v324 = vunpack.c.l.b16 %v180
  %v325 = vunpack.c.l.b16 %v181
  %v326 = vunpack.c.l.b16 %v182
  %v327 = vunpack.c.l.b16 %v183
  %v328 = vunpack.c.l.b16 %v184
  %v329 = vunpack.c.l.b16 %v185
  %v330 = vunpack.c.l.b16 %v186
  %v331 = vunpack.c.l.b16 %v187
  %v332 = vunpack.c.l.b16 %v188
  %v333 = vunpack.c.l.b16 %v189
  %v334 = vunpack.c.l.b16 %v190
  %v335 = vunpack.c.l.b16 %v191
  %v336 = vunpack.c.l.b16 %v192
  %v337 = vunpack.c.l.b16 %v193
  %v338 = vunpack.c.l.b16 %v194
  %v339 = vunpack.c.l.b16 %v195
  %v340 = vunpack.c.l.b16 %v196
  %v341 = vunpack.c.l.b16 %v197
  %v342 = vunpack.c.l.b16 %v198
  %v343 = vunpack.c.l.b16 %v199
  %v344 = vunpack.c.l.b16 %v200
  %v345 = vunpack.c.l.b16 %v201
  %v346 = vunpack.c.l.b16 %v202
  %v347 = vunpack.c.l.b16 %v203
  %v348 = vunpack.c.l.b16 %v204
  %v349 = vunpack.c.l.b16 %v205
  %v350 = vunpack.c.l.b16 %v206
  %v351 = vunpack.c.l.b16 %v207
  %v352 = vunpack.c.l.b16 %v208
  %v353 = vunpack.c.l.b16 %v209
  %v354 = vunpack.c.l.b16 %v210
  %v355 = vunpack.c.l.b16 %v211
  %v356 = vunpack.c.l.b16 %v212
  %v357 = vunpack.c.l.b16 %v213
  %v358 = vpack.c.b16 %v295, %v294
  %v359 = vpack.c.b16 %v297, %v296
  %v360 = vpack.c.b16 %v299, %v298
  %v361 = vpack.c.b16 %v301, %v300
  %v362 = vpack.c.b16 %v303, %v302
  %v363 = vpack.c.b16 %v305, %v304
  %v364 = vpack.c.b16 %v307, %v306
  %v365 = vpack.c.b16 %v309, %v308
  %v366 = vpack.c.b16 %v311, %v310
  %v367 = vpack.c.b16 %v313, %v312
  %v368 = vpack.c.b16 %v315, %v314
  %v369 = vpack.c.b16 %v317, %v316
  %v370 = vpack.c.b16 %v319, %v318
  %v371 = vpack.c.b16 %v321, %v320
  %v372 = vpack.c.b16 %v323, %v322
  %v373 = vpack.c.b16 %v325, %v324
  %v374 = vpack.c.b16 %v327, %v326
  %v375 = vpack.c.b16 %v329, %v328
  %v376 = vpack.c.b16 %v331, %v330
  %v377 = vpack.c.b16 %v333, %v332
  %v378 = vpack.c.b16 %v335, %v334
  %v379 = vpack.c.b16 %v337, %v336
  %v380 = vpack.c.b16 %v339, %v338
  %v381 = vpack.c.b16 %v341, %v340
  %v382 = vpack.c.b16 %v343, %v342
  %v383 = vpack.c.b16 %v345, %v344
  %v384 = vpack.c.b16 %v347, %v346
  %v385 = vpack.c.b16 %v349, %v348
  %v386 = vpack.c.b16 %v351, %v350
  %v387 = vpack.c.b16 %v353, %v352
  %v388 = vpack.c.b16 %v355, %v354
  %v389 = vpack.c.b16 %v357, %v356
  %v438 = vunpack.c.l.b16 %v214
  %v439 = vunpack.c.l.b16 %v215
  %v440 = vunpack.c.l.b16 %v216
  %v441 = vunpack.c.l.b16 %v217
  %v442 = vunpack.c.l.b16 %v218
  %v443 = vunpack.c.l.b16 %v219
  %v444 = vunpack.c.l.b16 %v220
  %v445 = vunpack.c.l.b16 %v221
  %v446 = vunpack.c.l.b16 %v222
  %v447 = vunpack.c.l.b16 %v223
  %v448 = vunpack.c.l.b16 %v224
  %v449 = vunpack.c.l.b16 %v225
  %v450 = vunpack.c.l.b16 %v226
  %v451 = vunpack.c.l.b16 %v227
  %v452 = vunpack.c.l.b16 %v228
  %v453 = vunpack.c.l.b16 %v229
  %v454 = vpack.c.b16 %v439, %v438
  %v455 = vpack.c.b16 %v441, %v440
  %v456 = vpack.c.b16 %v443, %v442
  %v457 = vpack.c.b16 %v445, %v444
  %v458 = vpack.c.b16 %v447, %v446
  %v459 = vpack.c.b16 %v449, %v448
  %v460 = vpack.c.b16 %v451, %v450
  %v461 = vpack.c.b16 %v453, %v452
  %470 = vmatprep.subr.bf16.mxu0 0
  %471 = vmatpush1.bf16.msra.mxu0 %v461
  %472 = vmatprep.subr.bf16.mxu0 0
  %473 = vmatpush1.bf16.msra.mxu0 %v460
  %474 = vmatprep.subr.bf16.mxu0 0
  %475 = vmatpush1.bf16.msra.mxu0 %v459
  %476 = vmatprep.subr.bf16.mxu0 0
  %477 = vmatpush1.bf16.msra.mxu0 %v458
  %478 = vmatprep.subr.bf16.mxu0 0
  %479 = vmatpush1.bf16.msra.mxu0 %v457
  %480 = vmatprep.subr.bf16.mxu0 0
  %481 = vmatpush1.bf16.msra.mxu0 %v456
  %482 = vmatprep.subr.bf16.mxu0 0
  %483 = vmatpush1.bf16.msra.mxu0 %v455
  %484 = vmatprep.subr.bf16.mxu0 0
  %485 = vmatpush1.bf16.msra.mxu0 %v454
  %486 = vmatprep.subr.bf16.mxu0 0
  %487 = vmatpush2.bf16.msra.mxu0 0
  %488 = vmatprep.subr.bf16.mxu0 0
  %489 = vmatpush2.bf16.msra.mxu0 0
  %490 = vmatprep.subr.bf16.mxu0 0
  %491 = vmatpush2.bf16.msra.mxu0 0
  %492 = vmatprep.subr.bf16.mxu0 0
  %493 = vmatpush2.bf16.msra.mxu0 0
  %494 = vmatprep.subr.bf16.mxu0 0
  %495 = vmatpush2.bf16.msra.mxu0 0
  %496 = vmatprep.subr.bf16.mxu0 0
  %497 = vmatpush2.bf16.msra.mxu0 0
  %498 = vmatprep.subr.bf16.mxu0 0
  %499 = vmatpush2.bf16.msra.mxu0 0
  %500 = vmatprep.subr.bf16.mxu0 0
  %501 = vmatpush2.bf16.msra.mxu0 0
  %502 = vmatprep.mubr.bf16.mxu0 0
  %503 = vmatmul.mubr.bf16.gmra.mxu0 %v358
  %v504 = vpop.f32.mrf.mxu0
  %v505 = vadd.f32 0.0, %v504
  %v506 = vpop.f32.mrf.mxu0
  %v507 = vpop.f32.mrf.mxu0
  %v508 = vadd.f32 0.0, %v507
  %v509 = vpop.f32.mrf.mxu0
  %510 = vmatprep.mubr.bf16.mxu0 0
  %511 = vmatmul.mubr.bf16.gmra.mxu0 %v359
  %v512 = vpop.f32.mrf.mxu0
  %v513 = vadd.f32 0.0, %v512
  %v514 = vpop.f32.mrf.mxu0
  %v515 = vpop.f32.mrf.mxu0
  %v516 = vadd.f32 0.0, %v515
  %v517 = vpop.f32.mrf.mxu0
  %518 = vmatprep.mubr.bf16.mxu0 0
  %519 = vmatmul.mubr.bf16.gmra.mxu0 %v360
  %v520 = vpop.f32.mrf.mxu0
  %v521 = vadd.f32 0.0, %v520
  %v522 = vpop.f32.mrf.mxu0
  %v523 = vpop.f32.mrf.mxu0
  %v524 = vadd.f32 0.0, %v523
  %v525 = vpop.f32.mrf.mxu0
  %526 = vmatprep.mubr.bf16.mxu0 0
  %527 = vmatmul.mubr.bf16.gmra.mxu0 %v361
  %v528 = vpop.f32.mrf.mxu0
  %v529 = vadd.f32 0.0, %v528
  %v530 = vpop.f32.mrf.mxu0
  %v531 = vpop.f32.mrf.mxu0
  %v532 = vadd.f32 0.0, %v531
  %v533 = vpop.f32.mrf.mxu0
  %534 = vmatprep.mubr.bf16.mxu0 0
  %535 = vmatmul.mubr.bf16.gmra.mxu0 %v362
  %v536 = vpop.f32.mrf.mxu0
  %v537 = vadd.f32 0.0, %v536
  %v538 = vpop.f32.mrf.mxu0
  %v539 = vpop.f32.mrf.mxu0
  %v540 = vadd.f32 0.0, %v539
  %v541 = vpop.f32.mrf.mxu0
  %542 = vmatprep.mubr.bf16.mxu0 0
  %543 = vmatmul.mubr.bf16.gmra.mxu0 %v363
  %v544 = vpop.f32.mrf.mxu0
  %v545 = vadd.f32 0.0, %v544
  %v546 = vpop.f32.mrf.mxu0
  %v547 = vpop.f32.mrf.mxu0
  %v548 = vadd.f32 0.0, %v547
  %v549 = vpop.f32.mrf.mxu0
  %550 = vmatprep.mubr.bf16.mxu0 0
  %551 = vmatmul.mubr.bf16.gmra.mxu0 %v364
  %v552 = vpop.f32.mrf.mxu0
  %v553 = vadd.f32 0.0, %v552
  %v554 = vpop.f32.mrf.mxu0
  %v555 = vpop.f32.mrf.mxu0
  %v556 = vadd.f32 0.0, %v555
  %v557 = vpop.f32.mrf.mxu0
  %558 = vmatprep.mubr.bf16.mxu0 0
  %559 = vmatmul.mubr.bf16.gmra.mxu0 %v365
  %v560 = vpop.f32.mrf.mxu0
  %v561 = vadd.f32 0.0, %v560
  %v562 = vpop.f32.mrf.mxu0
  %v563 = vpop.f32.mrf.mxu0
  %v564 = vadd.f32 0.0, %v563
  %v565 = vpop.f32.mrf.mxu0
  %566 = vmatprep.mubr.bf16.mxu0 0
  %567 = vmatmul.mubr.bf16.gmra.mxu0 %v366
  %v568 = vpop.f32.mrf.mxu0
  %v569 = vadd.f32 0.0, %v568
  %v570 = vpop.f32.mrf.mxu0
  %v571 = vpop.f32.mrf.mxu0
  %v572 = vadd.f32 0.0, %v571
  %v573 = vpop.f32.mrf.mxu0
  %574 = vmatprep.mubr.bf16.mxu0 0
  %575 = vmatmul.mubr.bf16.gmra.mxu0 %v367
  %v576 = vpop.f32.mrf.mxu0
  %v577 = vadd.f32 0.0, %v576
  %v578 = vpop.f32.mrf.mxu0
  %v579 = vpop.f32.mrf.mxu0
  %v580 = vadd.f32 0.0, %v579
  %v581 = vpop.f32.mrf.mxu0
  %582 = vmatprep.mubr.bf16.mxu0 0
  %583 = vmatmul.mubr.bf16.gmra.mxu0 %v368
  %v584 = vpop.f32.mrf.mxu0
  %v585 = vadd.f32 0.0, %v584
  %v586 = vpop.f32.mrf.mxu0
  %v587 = vpop.f32.mrf.mxu0
  %v588 = vadd.f32 0.0, %v587
  %v589 = vpop.f32.mrf.mxu0
  %590 = vmatprep.mubr.bf16.mxu0 0
  %591 = vmatmul.mubr.bf16.gmra.mxu0 %v369
  %v592 = vpop.f32.mrf.mxu0
  %v593 = vadd.f32 0.0, %v592
  %v594 = vpop.f32.mrf.mxu0
  %v595 = vpop.f32.mrf.mxu0
  %v596 = vadd.f32 0.0, %v595
  %v597 = vpop.f32.mrf.mxu0
  %598 = vmatprep.mubr.bf16.mxu0 0
  %599 = vmatmul.mubr.bf16.gmra.mxu0 %v370
  %v600 = vpop.f32.mrf.mxu0
  %v601 = vadd.f32 0.0, %v600
  %v602 = vpop.f32.mrf.mxu0
  %v603 = vpop.f32.mrf.mxu0
  %v604 = vadd.f32 0.0, %v603
  %v605 = vpop.f32.mrf.mxu0
  %606 = vmatprep.mubr.bf16.mxu0 0
  %607 = vmatmul.mubr.bf16.gmra.mxu0 %v371
  %v608 = vpop.f32.mrf.mxu0
  %v609 = vadd.f32 0.0, %v608
  %v610 = vpop.f32.mrf.mxu0
  %v611 = vpop.f32.mrf.mxu0
  %v612 = vadd.f32 0.0, %v611
  %v613 = vpop.f32.mrf.mxu0
  %614 = vmatprep.mubr.bf16.mxu0 0
  %615 = vmatmul.mubr.bf16.gmra.mxu0 %v372
  %v616 = vpop.f32.mrf.mxu0
  %v617 = vadd.f32 0.0, %v616
  %v618 = vpop.f32.mrf.mxu0
  %v619 = vpop.f32.mrf.mxu0
  %v620 = vadd.f32 0.0, %v619
  %v621 = vpop.f32.mrf.mxu0
  %622 = vmatprep.mubr.bf16.mxu0 0
  %623 = vmatmul.mubr.bf16.gmra.mxu0 %v373
  %v624 = vpop.f32.mrf.mxu0
  %v625 = vadd.f32 0.0, %v624
  %v626 = vpop.f32.mrf.mxu0
  %v627 = vpop.f32.mrf.mxu0
  %v628 = vadd.f32 0.0, %v627
  %v629 = vpop.f32.mrf.mxu0
  %630 = vmatprep.mubr.bf16.mxu0 0
  %631 = vmatmul.mubr.bf16.gmra.mxu0 %v374
  %v632 = vpop.f32.mrf.mxu0
  %v633 = vadd.f32 0.0, %v632
  %v634 = vpop.f32.mrf.mxu0
  %v635 = vpop.f32.mrf.mxu0
  %v636 = vadd.f32 0.0, %v635
  %v637 = vpop.f32.mrf.mxu0
  %638 = vmatprep.mubr.bf16.mxu0 0
  %639 = vmatmul.mubr.bf16.gmra.mxu0 %v375
  %v640 = vpop.f32.mrf.mxu0
  %v641 = vadd.f32 0.0, %v640
  %v642 = vpop.f32.mrf.mxu0
  %v643 = vpop.f32.mrf.mxu0
  %v644 = vadd.f32 0.0, %v643
  %v645 = vpop.f32.mrf.mxu0
  %646 = vmatprep.mubr.bf16.mxu0 0
  %647 = vmatmul.mubr.bf16.gmra.mxu0 %v376
  %v648 = vpop.f32.mrf.mxu0
  %v649 = vadd.f32 0.0, %v648
  %v650 = vpop.f32.mrf.mxu0
  %v651 = vpop.f32.mrf.mxu0
  %v652 = vadd.f32 0.0, %v651
  %v653 = vpop.f32.mrf.mxu0
  %654 = vmatprep.mubr.bf16.mxu0 0
  %655 = vmatmul.mubr.bf16.gmra.mxu0 %v377
  %v656 = vpop.f32.mrf.mxu0
  %v657 = vadd.f32 0.0, %v656
  %v658 = vpop.f32.mrf.mxu0
  %v659 = vpop.f32.mrf.mxu0
  %v660 = vadd.f32 0.0, %v659
  %v661 = vpop.f32.mrf.mxu0
  %662 = vmatprep.mubr.bf16.mxu0 0
  %663 = vmatmul.mubr.bf16.gmra.mxu0 %v378
  %v664 = vpop.f32.mrf.mxu0
  %v665 = vadd.f32 0.0, %v664
  %v666 = vpop.f32.mrf.mxu0
  %v667 = vpop.f32.mrf.mxu0
  %v668 = vadd.f32 0.0, %v667
  %v669 = vpop.f32.mrf.mxu0
  %670 = vmatprep.mubr.bf16.mxu0 0
  %671 = vmatmul.mubr.bf16.gmra.mxu0 %v379
  %v672 = vpop.f32.mrf.mxu0
  %v673 = vadd.f32 0.0, %v672
  %v674 = vpop.f32.mrf.mxu0
  %v675 = vpop.f32.mrf.mxu0
  %v676 = vadd.f32 0.0, %v675
  %v677 = vpop.f32.mrf.mxu0
  %678 = vmatprep.mubr.bf16.mxu0 0
  %679 = vmatmul.mubr.bf16.gmra.mxu0 %v380
  %v680 = vpop.f32.mrf.mxu0
  %v681 = vadd.f32 0.0, %v680
  %v682 = vpop.f32.mrf.mxu0
  %v683 = vpop.f32.mrf.mxu0
  %v684 = vadd.f32 0.0, %v683
  %v685 = vpop.f32.mrf.mxu0
  %686 = vmatprep.mubr.bf16.mxu0 0
  %687 = vmatmul.mubr.bf16.gmra.mxu0 %v381
  %v688 = vpop.f32.mrf.mxu0
  %v689 = vadd.f32 0.0, %v688
  %v690 = vpop.f32.mrf.mxu0
  %v691 = vpop.f32.mrf.mxu0
  %v692 = vadd.f32 0.0, %v691
  %v693 = vpop.f32.mrf.mxu0
  %694 = vmatprep.mubr.bf16.mxu0 0
  %695 = vmatmul.mubr.bf16.gmra.mxu0 %v382
  %v696 = vpop.f32.mrf.mxu0
  %v697 = vadd.f32 0.0, %v696
  %v698 = vpop.f32.mrf.mxu0
  %v699 = vpop.f32.mrf.mxu0
  %v700 = vadd.f32 0.0, %v699
  %v701 = vpop.f32.mrf.mxu0
  %702 = vmatprep.mubr.bf16.mxu0 0
  %703 = vmatmul.mubr.bf16.gmra.mxu0 %v383
  %v704 = vpop.f32.mrf.mxu0
  %v705 = vadd.f32 0.0, %v704
  %v706 = vpop.f32.mrf.mxu0
  %v707 = vpop.f32.mrf.mxu0
  %v708 = vadd.f32 0.0, %v707
  %v709 = vpop.f32.mrf.mxu0
  %710 = vmatprep.mubr.bf16.mxu0 0
  %711 = vmatmul.mubr.bf16.gmra.mxu0 %v384
  %v712 = vpop.f32.mrf.mxu0
  %v713 = vadd.f32 0.0, %v712
  %v714 = vpop.f32.mrf.mxu0
  %v715 = vpop.f32.mrf.mxu0
  %v716 = vadd.f32 0.0, %v715
  %v717 = vpop.f32.mrf.mxu0
  %718 = vmatprep.mubr.bf16.mxu0 0
  %719 = vmatmul.mubr.bf16.gmra.mxu0 %v385
  %v720 = vpop.f32.mrf.mxu0
  %v721 = vadd.f32 0.0, %v720
  %v722 = vpop.f32.mrf.mxu0
  %v723 = vpop.f32.mrf.mxu0
  %v724 = vadd.f32 0.0, %v723
  %v725 = vpop.f32.mrf.mxu0
  %726 = vmatprep.mubr.bf16.mxu0 0
  %727 = vmatmul.mubr.bf16.gmra.mxu0 %v386
  %v728 = vpop.f32.mrf.mxu0
  %v729 = vadd.f32 0.0, %v728
  %v730 = vpop.f32.mrf.mxu0
  %v731 = vpop.f32.mrf.mxu0
  %v732 = vadd.f32 0.0, %v731
  %v733 = vpop.f32.mrf.mxu0
  %734 = vmatprep.mubr.bf16.mxu0 0
  %735 = vmatmul.mubr.bf16.gmra.mxu0 %v387
  %v736 = vpop.f32.mrf.mxu0
  %v737 = vadd.f32 0.0, %v736
  %v738 = vpop.f32.mrf.mxu0
  %v739 = vpop.f32.mrf.mxu0
  %v740 = vadd.f32 0.0, %v739
  %v741 = vpop.f32.mrf.mxu0
  %742 = vmatprep.mubr.bf16.mxu0 0
  %743 = vmatmul.mubr.bf16.gmra.mxu0 %v388
  %v744 = vpop.f32.mrf.mxu0
  %v745 = vadd.f32 0.0, %v744
  %v746 = vpop.f32.mrf.mxu0
  %v747 = vpop.f32.mrf.mxu0
  %v748 = vadd.f32 0.0, %v747
  %v749 = vpop.f32.mrf.mxu0
  %750 = vmatprep.mubr.bf16.mxu0 0
  %751 = vmatmul.mubr.bf16.gmra.mxu0 %v389
  %v752 = vpop.f32.mrf.mxu0
  %v753 = vadd.f32 0.0, %v752
  %v754 = vpop.f32.mrf.mxu0
  %v755 = vpop.f32.mrf.mxu0
  %v756 = vadd.f32 0.0, %v755
  %v757 = vpop.f32.mrf.mxu0
  %758 = vdwg.mxu0
  %v759 = vadd.f32 %v86, %v505
  %v760 = vadd.f32 %v87, %v508
  %v761 = vadd.f32 %v88, %v513
  %v762 = vadd.f32 %v89, %v516
  %v763 = vadd.f32 %v90, %v521
  %v764 = vadd.f32 %v91, %v524
  %v765 = vadd.f32 %v92, %v529
  %v766 = vadd.f32 %v93, %v532
  %v767 = vadd.f32 %v94, %v537
  %v768 = vadd.f32 %v95, %v540
  %v769 = vadd.f32 %v96, %v545
  %v770 = vadd.f32 %v97, %v548
  %v771 = vadd.f32 %v98, %v553
  %v772 = vadd.f32 %v99, %v556
  %v773 = vadd.f32 %v100, %v561
  %v774 = vadd.f32 %v101, %v564
  %v775 = vadd.f32 %v102, %v569
  %v776 = vadd.f32 %v103, %v572
  %v777 = vadd.f32 %v104, %v577
  %v778 = vadd.f32 %v105, %v580
  %v779 = vadd.f32 %v106, %v585
  %v780 = vadd.f32 %v107, %v588
  %v781 = vadd.f32 %v108, %v593
  %v782 = vadd.f32 %v109, %v596
  %v783 = vadd.f32 %v110, %v601
  %v784 = vadd.f32 %v111, %v604
  %v785 = vadd.f32 %v112, %v609
  %v786 = vadd.f32 %v113, %v612
  %v787 = vadd.f32 %v114, %v617
  %v788 = vadd.f32 %v115, %v620
  %v789 = vadd.f32 %v116, %v625
  %v790 = vadd.f32 %v117, %v628
  %v791 = vadd.f32 %v118, %v633
  %v792 = vadd.f32 %v119, %v636
  %v793 = vadd.f32 %v120, %v641
  %v794 = vadd.f32 %v121, %v644
  %v795 = vadd.f32 %v122, %v649
  %v796 = vadd.f32 %v123, %v652
  %v797 = vadd.f32 %v124, %v657
  %v798 = vadd.f32 %v125, %v660
  %v799 = vadd.f32 %v126, %v665
  %v800 = vadd.f32 %v127, %v668
  %v801 = vadd.f32 %v128, %v673
  %v802 = vadd.f32 %v129, %v676
  %v803 = vadd.f32 %v130, %v681
  %v804 = vadd.f32 %v131, %v684
  %v805 = vadd.f32 %v132, %v689
  %v806 = vadd.f32 %v133, %v692
  %v807 = vadd.f32 %v134, %v697
  %v808 = vadd.f32 %v135, %v700
  %v809 = vadd.f32 %v136, %v705
  %v810 = vadd.f32 %v137, %v708
  %v811 = vadd.f32 %v138, %v713
  %v812 = vadd.f32 %v139, %v716
  %v813 = vadd.f32 %v140, %v721
  %v814 = vadd.f32 %v141, %v724
  %v815 = vadd.f32 %v142, %v729
  %v816 = vadd.f32 %v143, %v732
  %v817 = vadd.f32 %v144, %v737
  %v818 = vadd.f32 %v145, %v740
  %v819 = vadd.f32 %v146, %v745
  %v820 = vadd.f32 %v147, %v748
  %v821 = vadd.f32 %v148, %v753
  %v822 = vadd.f32 %v149, %v756
  %823 = vst [vmem:[#allocation2] sm:$0xff] %v759
  %824 = vst [vmem:[#allocation2 + $0x8] sm:$0xff] %v760
  %825 = vst [vmem:[#allocation2 + $0x10] sm:$0xff] %v761
  %826 = vst [vmem:[#allocation2 + $0x18] sm:$0xff] %v762
  %827 = vst [vmem:[#allocation2 + $0x20] sm:$0xff] %v763
  %828 = vst [vmem:[#allocation2 + $0x28] sm:$0xff] %v764
  %829 = vst [vmem:[#allocation2 + $0x30] sm:$0xff] %v765
  %830 = vst [vmem:[#allocation2 + $0x38] sm:$0xff] %v766
  %831 = vst [vmem:[#allocation2 + $0x40] sm:$0xff] %v767
  %832 = vst [vmem:[#allocation2 + $0x48] sm:$0xff] %v768
  %833 = vst [vmem:[#allocation2 + $0x50] sm:$0xff] %v769
  %834 = vst [vmem:[#allocation2 + $0x58] sm:$0xff] %v770
  %835 = vst [vmem:[#allocation2 + $0x60] sm:$0xff] %v771
  %836 = vst [vmem:[#allocation2 + $0x68] sm:$0xff] %v772
  %837 = vst [vmem:[#allocation2 + $0x70] sm:$0xff] %v773
  %838 = vst [vmem:[#allocation2 + $0x78] sm:$0xff] %v774
  %839 = vst [vmem:[#allocation2 + $0x80] sm:$0xff] %v775
  %840 = vst [vmem:[#allocation2 + $0x88] sm:$0xff] %v776
  %841 = vst [vmem:[#allocation2 + $0x90] sm:$0xff] %v777
  %842 = vst [vmem:[#allocation2 + $0x98] sm:$0xff] %v778
  %843 = vst [vmem:[#allocation2 + $0xa0] sm:$0xff] %v779
  %844 = vst [vmem:[#allocation2 + $0xa8] sm:$0xff] %v780
  %845 = vst [vmem:[#allocation2 + $0xb0] sm:$0xff] %v781
  %846 = vst [vmem:[#allocation2 + $0xb8] sm:$0xff] %v782
  %847 = vst [vmem:[#allocation2 + $0xc0] sm:$0xff] %v783
  %848 = vst [vmem:[#allocation2 + $0xc8] sm:$0xff] %v784
  %849 = vst [vmem:[#allocation2 + $0xd0] sm:$0xff] %v785
  %850 = vst [vmem:[#allocation2 + $0xd8] sm:$0xff] %v786
  %851 = vst [vmem:[#allocation2 + $0xe0] sm:$0xff] %v787
  %852 = vst [vmem:[#allocation2 + $0xe8] sm:$0xff] %v788
  %853 = vst [vmem:[#allocation2 + $0xf0] sm:$0xff] %v789
  %854 = vst [vmem:[#allocation2 + $0xf8] sm:$0xff] %v790
  %855 = vst [vmem:[#allocation2 + $0x100] sm:$0xff] %v791
  %856 = vst [vmem:[#allocation2 + $0x108] sm:$0xff] %v792
  %857 = vst [vmem:[#allocation2 + $0x110] sm:$0xff] %v793
  %858 = vst [vmem:[#allocation2 + $0x118] sm:$0xff] %v794
  %859 = vst [vmem:[#allocation2 + $0x120] sm:$0xff] %v795
  %860 = vst [vmem:[#allocation2 + $0x128] sm:$0xff] %v796
  %861 = vst [vmem:[#allocation2 + $0x130] sm:$0xff] %v797
  %862 = vst [vmem:[#allocation2 + $0x138] sm:$0xff] %v798
  %863 = vst [vmem:[#allocation2 + $0x140] sm:$0xff] %v799
  %864 = vst [vmem:[#allocation2 + $0x148] sm:$0xff] %v800
  %865 = vst [vmem:[#allocation2 + $0x150] sm:$0xff] %v801
  %866 = vst [vmem:[#allocation2 + $0x158] sm:$0xff] %v802
  %867 = vst [vmem:[#allocation2 + $0x160] sm:$0xff] %v803
  %868 = vst [vmem:[#allocation2 + $0x168] sm:$0xff] %v804
  %869 = vst [vmem:[#allocation2 + $0x170] sm:$0xff] %v805
  %870 = vst [vmem:[#allocation2 + $0x178] sm:$0xff] %v806
  %871 = vst [vmem:[#allocation2 + $0x180] sm:$0xff] %v807
  %872 = vst [vmem:[#allocation2 + $0x188] sm:$0xff] %v808
  %873 = vst [vmem:[#allocation2 + $0x190] sm:$0xff] %v809
  %874 = vst [vmem:[#allocation2 + $0x198] sm:$0xff] %v810
  %875 = vst [vmem:[#allocation2 + $0x1a0] sm:$0xff] %v811
  %876 = vst [vmem:[#allocation2 + $0x1a8] sm:$0xff] %v812
  %877 = vst [vmem:[#allocation2 + $0x1b0] sm:$0xff] %v813
  %878 = vst [vmem:[#allocation2 + $0x1b8] sm:$0xff] %v814
  %879 = vst [vmem:[#allocation2 + $0x1c0] sm:$0xff] %v815
  %880 = vst [vmem:[#allocation2 + $0x1c8] sm:$0xff] %v816
  %881 = vst [vmem:[#allocation2 + $0x1d0] sm:$0xff] %v817
  %882 = vst [vmem:[#allocation2 + $0x1d8] sm:$0xff] %v818
  %883 = vst [vmem:[#allocation2 + $0x1e0] sm:$0xff] %v819
  %884 = vst [vmem:[#allocation2 + $0x1e8] sm:$0xff] %v820
  %885 = vst [vmem:[#allocation2 + $0x1f0] sm:$0xff] %v821
  %886 = vst [vmem:[#allocation2 + $0x1f8] sm:$0xff] %v822
  // Predicated region
  $region22: #{decoder_forward.113} parent=0 // pred_check
    %p887 = pneg %p18
  $region23: #{decoder_forward.113} parent=0 // pred_check_branch
    %889 = sbr.rel (%p887) target = $region25
  $region24: #{decoder_forward.113} parent=0 // pred_region
    %v890 = vld [vmem:[#allocation2] sm:$0xff]
    %v891 = vld [vmem:[#allocation2 + $0x8] sm:$0xff]
    %v892 = vld [vmem:[#allocation2 + $0x10] sm:$0xff]
    %v893 = vld [vmem:[#allocation2 + $0x18] sm:$0xff]
    %v894 = vld [vmem:[#allocation2 + $0x20] sm:$0xff]
    %v895 = vld [vmem:[#allocation2 + $0x28] sm:$0xff]
    %v896 = vld [vmem:[#allocation2 + $0x30] sm:$0xff]
    %v897 = vld [vmem:[#allocation2 + $0x38] sm:$0xff]
    %v898 = vld [vmem:[#allocation2 + $0x40] sm:$0xff]
    %v899 = vld [vmem:[#allocation2 + $0x48] sm:$0xff]
    %v900 = vld [vmem:[#allocation2 + $0x50] sm:$0xff]
    %v901 = vld [vmem:[#allocation2 + $0x58] sm:$0xff]
    %v902 = vld [vmem:[#allocation2 + $0x60] sm:$0xff]
    %v903 = vld [vmem:[#allocation2 + $0x68] sm:$0xff]
    %v904 = vld [vmem:[#allocation2 + $0x70] sm:$0xff]
    %v905 = vld [vmem:[#allocation2 + $0x78] sm:$0xff]
    %v906 = vld [vmem:[#allocation2 + $0x80] sm:$0xff]
    %v907 = vld [vmem:[#allocation2 + $0x88] sm:$0xff]
    %v908 = vld [vmem:[#allocation2 + $0x90] sm:$0xff]
    %v909 = vld [vmem:[#allocation2 + $0x98] sm:$0xff]
    %v910 = vld [vmem:[#allocation2 + $0xa0] sm:$0xff]
    %v911 = vld [vmem:[#allocation2 + $0xa8] sm:$0xff]
    %v912 = vld [vmem:[#allocation2 + $0xb0] sm:$0xff]
    %v913 = vld [vmem:[#allocation2 + $0xb8] sm:$0xff]
    %v914 = vld [vmem:[#allocation2 + $0xc0] sm:$0xff]
    %v915 = vld [vmem:[#allocation2 + $0xc8] sm:$0xff]
    %v916 = vld [vmem:[#allocation2 + $0xd0] sm:$0xff]
    %v917 = vld [vmem:[#allocation2 + $0xd8] sm:$0xff]
    %v918 = vld [vmem:[#allocation2 + $0xe0] sm:$0xff]
    %v919 = vld [vmem:[#allocation2 + $0xe8] sm:$0xff]
    %v920 = vld [vmem:[#allocation2 + $0xf0] sm:$0xff]
    %v921 = vld [vmem:[#allocation2 + $0xf8] sm:$0xff]
    %v922 = vld [vmem:[#allocation2 + $0x100] sm:$0xff]
    %v923 = vld [vmem:[#allocation2 + $0x108] sm:$0xff]
    %v924 = vld [vmem:[#allocation2 + $0x110] sm:$0xff]
    %v925 = vld [vmem:[#allocation2 + $0x118] sm:$0xff]
    %v926 = vld [vmem:[#allocation2 + $0x120] sm:$0xff]
    %v927 = vld [vmem:[#allocation2 + $0x128] sm:$0xff]
    %v928 = vld [vmem:[#allocation2 + $0x130] sm:$0xff]
    %v929 = vld [vmem:[#allocation2 + $0x138] sm:$0xff]
    %v930 = vld [vmem:[#allocation2 + $0x140] sm:$0xff]
    %v931 = vld [vmem:[#allocation2 + $0x148] sm:$0xff]
    %v932 = vld [vmem:[#allocation2 + $0x150] sm:$0xff]
    %v933 = vld [vmem:[#allocation2 + $0x158] sm:$0xff]
    %v934 = vld [vmem:[#allocation2 + $0x160] sm:$0xff]
    %v935 = vld [vmem:[#allocation2 + $0x168] sm:$0xff]
    %v936 = vld [vmem:[#allocation2 + $0x170] sm:$0xff]
    %v937 = vld [vmem:[#allocation2 + $0x178] sm:$0xff]
    %v938 = vld [vmem:[#allocation2 + $0x180] sm:$0xff]
    %v939 = vld [vmem:[#allocation2 + $0x188] sm:$0xff]
    %v940 = vld [vmem:[#allocation2 + $0x190] sm:$0xff]
    %v941 = vld [vmem:[#allocation2 + $0x198] sm:$0xff]
    %v942 = vld [vmem:[#allocation2 + $0x1a0] sm:$0xff]
    %v943 = vld [vmem:[#allocation2 + $0x1a8] sm:$0xff]
    %v944 = vld [vmem:[#allocation2 + $0x1b0] sm:$0xff]
    %v945 = vld [vmem:[#allocation2 + $0x1b8] sm:$0xff]
    %v946 = vld [vmem:[#allocation2 + $0x1c0] sm:$0xff]
    %v947 = vld [vmem:[#allocation2 + $0x1c8] sm:$0xff]
    %v948 = vld [vmem:[#allocation2 + $0x1d0] sm:$0xff]
    %v949 = vld [vmem:[#allocation2 + $0x1d8] sm:$0xff]
    %v950 = vld [vmem:[#allocation2 + $0x1e0] sm:$0xff]
    %v951 = vld [vmem:[#allocation2 + $0x1e8] sm:$0xff]
    %v952 = vld [vmem:[#allocation2 + $0x1f0] sm:$0xff]
    %v953 = vld [vmem:[#allocation2 + $0x1f8] sm:$0xff]
    %v954 = vld [vmem:[%s2] sm:$0x1]
    %v956 = vlaneseq
    %v957 = vshrl.u32 %v956, 7
    %v958 = vsub.s32 0, %v957
    %v959 = vrot.slane %v954, %v958
    %v961 = vmul.f32 %v890, %v959
    %v962 = vmul.f32 %v891, %v959
    %v963 = vmul.f32 %v892, %v959
    %v964 = vmul.f32 %v893, %v959
    %v965 = vmul.f32 %v894, %v959
    %v966 = vmul.f32 %v895, %v959
    %v967 = vmul.f32 %v896, %v959
    %v968 = vmul.f32 %v897, %v959
    %v969 = vmul.f32 %v898, %v959
    %v970 = vmul.f32 %v899, %v959
    %v971 = vmul.f32 %v900, %v959
    %v972 = vmul.f32 %v901, %v959
    %v973 = vmul.f32 %v902, %v959
    %v974 = vmul.f32 %v903, %v959
    %v975 = vmul.f32 %v904, %v959
    %v976 = vmul.f32 %v905, %v959
    %v977 = vmul.f32 %v906, %v959
    %v978 = vmul.f32 %v907, %v959
    %v979 = vmul.f32 %v908, %v959
    %v980 = vmul.f32 %v909, %v959
    %v981 = vmul.f32 %v910, %v959
    %v982 = vmul.f32 %v911, %v959
    %v983 = vmul.f32 %v912, %v959
    %v984 = vmul.f32 %v913, %v959
    %v985 = vmul.f32 %v914, %v959
    %v986 = vmul.f32 %v915, %v959
    %v987 = vmul.f32 %v916, %v959
    %v988 = vmul.f32 %v917, %v959
    %v989 = vmul.f32 %v918, %v959
    %v990 = vmul.f32 %v919, %v959
    %v991 = vmul.f32 %v920, %v959
    %v992 = vmul.f32 %v921, %v959
    %v993 = vmul.f32 %v922, %v959
    %v994 = vmul.f32 %v923, %v959
    %v995 = vmul.f32 %v924, %v959
    %v996 = vmul.f32 %v925, %v959
    %v997 = vmul.f32 %v926, %v959
    %v998 = vmul.f32 %v927, %v959
    %v999 = vmul.f32 %v928, %v959
    %v1000 = vmul.f32 %v929, %v959
    %v1001 = vmul.f32 %v930, %v959
    %v1002 = vmul.f32 %v931, %v959
    %v1003 = vmul.f32 %v932, %v959
    %v1004 = vmul.f32 %v933, %v959
    %v1005 = vmul.f32 %v934, %v959
    %v1006 = vmul.f32 %v935, %v959
    %v1007 = vmul.f32 %v936, %v959
    %v1008 = vmul.f32 %v937, %v959
    %v1009 = vmul.f32 %v938, %v959
    %v1010 = vmul.f32 %v939, %v959
    %v1011 = vmul.f32 %v940, %v959
    %v1012 = vmul.f32 %v941, %v959
    %v1013 = vmul.f32 %v942, %v959
    %v1014 = vmul.f32 %v943, %v959
    %v1015 = vmul.f32 %v944, %v959
    %v1016 = vmul.f32 %v945, %v959
    %v1017 = vmul.f32 %v946, %v959
    %v1018 = vmul.f32 %v947, %v959
    %v1019 = vmul.f32 %v948, %v959
    %v1020 = vmul.f32 %v949, %v959
    %v1021 = vmul.f32 %v950, %v959
    %v1022 = vmul.f32 %v951, %v959
    %v1023 = vmul.f32 %v952, %v959
    %v1024 = vmul.f32 %v953, %v959
    %v1025 = vld [vmem:[%s3] sm:$0x1]
    %v1027 = vlaneseq
    %v1028 = vshrl.u32 %v1027, 7
    %v1029 = vsub.s32 0, %v1028
    %v1030 = vrot.slane %v1025, %v1029
    %v1032 = vadd.f32 %v961, %v1030
    %v1033 = vadd.f32 %v962, %v1030
    %v1034 = vadd.f32 %v963, %v1030
    %v1035 = vadd.f32 %v964, %v1030
    %v1036 = vadd.f32 %v965, %v1030
    %v1037 = vadd.f32 %v966, %v1030
    %v1038 = vadd.f32 %v967, %v1030
    %v1039 = vadd.f32 %v968, %v1030
    %v1040 = vadd.f32 %v969, %v1030
    %v1041 = vadd.f32 %v970, %v1030
    %v1042 = vadd.f32 %v971, %v1030
    %v1043 = vadd.f32 %v972, %v1030
    %v1044 = vadd.f32 %v973, %v1030
    %v1045 = vadd.f32 %v974, %v1030
    %v1046 = vadd.f32 %v975, %v1030
    %v1047 = vadd.f32 %v976, %v1030
    %v1048 = vadd.f32 %v977, %v1030
    %v1049 = vadd.f32 %v978, %v1030
    %v1050 = vadd.f32 %v979, %v1030
    %v1051 = vadd.f32 %v980, %v1030
    %v1052 = vadd.f32 %v981, %v1030
    %v1053 = vadd.f32 %v982, %v1030
    %v1054 = vadd.f32 %v983, %v1030
    %v1055 = vadd.f32 %v984, %v1030
    %v1056 = vadd.f32 %v985, %v1030
    %v1057 = vadd.f32 %v986, %v1030
    %v1058 = vadd.f32 %v987, %v1030
    %v1059 = vadd.f32 %v988, %v1030
    %v1060 = vadd.f32 %v989, %v1030
    %v1061 = vadd.f32 %v990, %v1030
    %v1062 = vadd.f32 %v991, %v1030
    %v1063 = vadd.f32 %v992, %v1030
    %v1064 = vadd.f32 %v993, %v1030
    %v1065 = vadd.f32 %v994, %v1030
    %v1066 = vadd.f32 %v995, %v1030
    %v1067 = vadd.f32 %v996, %v1030
    %v1068 = vadd.f32 %v997, %v1030
    %v1069 = vadd.f32 %v998, %v1030
    %v1070 = vadd.f32 %v999, %v1030
    %v1071 = vadd.f32 %v1000, %v1030
    %v1072 = vadd.f32 %v1001, %v1030
    %v1073 = vadd.f32 %v1002, %v1030
    %v1074 = vadd.f32 %v1003, %v1030
    %v1075 = vadd.f32 %v1004, %v1030
    %v1076 = vadd.f32 %v1005, %v1030
    %v1077 = vadd.f32 %v1006, %v1030
    %v1078 = vadd.f32 %v1007, %v1030
    %v1079 = vadd.f32 %v1008, %v1030
    %v1080 = vadd.f32 %v1009, %v1030
    %v1081 = vadd.f32 %v1010, %v1030
    %v1082 = vadd.f32 %v1011, %v1030
    %v1083 = vadd.f32 %v1012, %v1030
    %v1084 = vadd.f32 %v1013, %v1030
    %v1085 = vadd.f32 %v1014, %v1030
    %v1086 = vadd.f32 %v1015, %v1030
    %v1087 = vadd.f32 %v1016, %v1030
    %v1088 = vadd.f32 %v1017, %v1030
    %v1089 = vadd.f32 %v1018, %v1030
    %v1090 = vadd.f32 %v1019, %v1030
    %v1091 = vadd.f32 %v1020, %v1030
    %v1092 = vadd.f32 %v1021, %v1030
    %v1093 = vadd.f32 %v1022, %v1030
    %v1094 = vadd.f32 %v1023, %v1030
    %v1095 = vadd.f32 %v1024, %v1030
    %v1096 = vmax.f32 %v1032, 0.0
    %v1097 = vmax.f32 %v1033, 0.0
    %v1098 = vmax.f32 %v1034, 0.0
    %v1099 = vmax.f32 %v1035, 0.0
    %v1100 = vmax.f32 %v1036, 0.0
    %v1101 = vmax.f32 %v1037, 0.0
    %v1102 = vmax.f32 %v1038, 0.0
    %v1103 = vmax.f32 %v1039, 0.0
    %v1104 = vmax.f32 %v1040, 0.0
    %v1105 = vmax.f32 %v1041, 0.0
    %v1106 = vmax.f32 %v1042, 0.0
    %v1107 = vmax.f32 %v1043, 0.0
    %v1108 = vmax.f32 %v1044, 0.0
    %v1109 = vmax.f32 %v1045, 0.0
    %v1110 = vmax.f32 %v1046, 0.0
    %v1111 = vmax.f32 %v1047, 0.0
    %v1112 = vmax.f32 %v1048, 0.0
    %v1113 = vmax.f32 %v1049, 0.0
    %v1114 = vmax.f32 %v1050, 0.0
    %v1115 = vmax.f32 %v1051, 0.0
    %v1116 = vmax.f32 %v1052, 0.0
    %v1117 = vmax.f32 %v1053, 0.0
    %v1118 = vmax.f32 %v1054, 0.0
    %v1119 = vmax.f32 %v1055, 0.0
    %v1120 = vmax.f32 %v1056, 0.0
    %v1121 = vmax.f32 %v1057, 0.0
    %v1122 = vmax.f32 %v1058, 0.0
    %v1123 = vmax.f32 %v1059, 0.0
    %v1124 = vmax.f32 %v1060, 0.0
    %v1125 = vmax.f32 %v1061, 0.0
    %v1126 = vmax.f32 %v1062, 0.0
    %v1127 = vmax.f32 %v1063, 0.0
    %v1128 = vmax.f32 %v1064, 0.0
    %v1129 = vmax.f32 %v1065, 0.0
    %v1130 = vmax.f32 %v1066, 0.0
    %v1131 = vmax.f32 %v1067, 0.0
    %v1132 = vmax.f32 %v1068, 0.0
    %v1133 = vmax.f32 %v1069, 0.0
    %v1134 = vmax.f32 %v1070, 0.0
    %v1135 = vmax.f32 %v1071, 0.0
    %v1136 = vmax.f32 %v1072, 0.0
    %v1137 = vmax.f32 %v1073, 0.0
    %v1138 = vmax.f32 %v1074, 0.0
    %v1139 = vmax.f32 %v1075, 0.0
    %v1140 = vmax.f32 %v1076, 0.0
    %v1141 = vmax.f32 %v1077, 0.0
    %v1142 = vmax.f32 %v1078, 0.0
    %v1143 = vmax.f32 %v1079, 0.0
    %v1144 = vmax.f32 %v1080, 0.0
    %v1145 = vmax.f32 %v1081, 0.0
    %v1146 = vmax.f32 %v1082, 0.0
    %v1147 = vmax.f32 %v1083, 0.0
    %v1148 = vmax.f32 %v1084, 0.0
    %v1149 = vmax.f32 %v1085, 0.0
    %v1150 = vmax.f32 %v1086, 0.0
    %v1151 = vmax.f32 %v1087, 0.0
    %v1152 = vmax.f32 %v1088, 0.0
    %v1153 = vmax.f32 %v1089, 0.0
    %v1154 = vmax.f32 %v1090, 0.0
    %v1155 = vmax.f32 %v1091, 0.0
    %v1156 = vmax.f32 %v1092, 0.0
    %v1157 = vmax.f32 %v1093, 0.0
    %v1158 = vmax.f32 %v1094, 0.0
    %v1159 = vmax.f32 %v1095, 0.0
    %v1160 = vpack.c.bf16 %v1097, %v1096
    %v1161 = vpack.c.bf16 %v1099, %v1098
    %v1162 = vpack.c.bf16 %v1101, %v1100
    %v1163 = vpack.c.bf16 %v1103, %v1102
    %v1164 = vpack.c.bf16 %v1105, %v1104
    %v1165 = vpack.c.bf16 %v1107, %v1106
    %v1166 = vpack.c.bf16 %v1109, %v1108
    %v1167 = vpack.c.bf16 %v1111, %v1110
    %v1168 = vpack.c.bf16 %v1113, %v1112
    %v1169 = vpack.c.bf16 %v1115, %v1114
    %v1170 = vpack.c.bf16 %v1117, %v1116
    %v1171 = vpack.c.bf16 %v1119, %v1118
    %v1172 = vpack.c.bf16 %v1121, %v1120
    %v1173 = vpack.c.bf16 %v1123, %v1122
    %v1174 = vpack.c.bf16 %v1125, %v1124
    %v1175 = vpack.c.bf16 %v1127, %v1126
    %v1176 = vpack.c.bf16 %v1129, %v1128
    %v1177 = vpack.c.bf16 %v1131, %v1130
    %v1178 = vpack.c.bf16 %v1133, %v1132
    %v1179 = vpack.c.bf16 %v1135, %v1134
    %v1180 = vpack.c.bf16 %v1137, %v1136
    %v1181 = vpack.c.bf16 %v1139, %v1138
    %v1182 = vpack.c.bf16 %v1141, %v1140
    %v1183 = vpack.c.bf16 %v1143, %v1142
    %v1184 = vpack.c.bf16 %v1145, %v1144
    %v1185 = vpack.c.bf16 %v1147, %v1146
    %v1186 = vpack.c.bf16 %v1149, %v1148
    %v1187 = vpack.c.bf16 %v1151, %v1150
    %v1188 = vpack.c.bf16 %v1153, %v1152
    %v1189 = vpack.c.bf16 %v1155, %v1154
    %v1190 = vpack.c.bf16 %v1157, %v1156
    %v1191 = vpack.c.bf16 %v1159, %v1158
    %v1224 = vunpack.c.l.b16 %v1160
    %v1225 = vunpack.c.h.b16 %v1160
    %v1226 = vunpack.c.l.b16 %v1161
    %v1227 = vunpack.c.h.b16 %v1161
    %v1228 = vunpack.c.l.b16 %v1162
    %v1229 = vunpack.c.h.b16 %v1162
    %v1230 = vunpack.c.l.b16 %v1163
    %v1231 = vunpack.c.h.b16 %v1163
    %v1232 = vunpack.c.l.b16 %v1164
    %v1233 = vunpack.c.h.b16 %v1164
    %v1234 = vunpack.c.l.b16 %v1165
    %v1235 = vunpack.c.h.b16 %v1165
    %v1236 = vunpack.c.l.b16 %v1166
    %v1237 = vunpack.c.h.b16 %v1166
    %v1238 = vunpack.c.l.b16 %v1167
    %v1239 = vunpack.c.h.b16 %v1167
    %v1240 = vunpack.c.l.b16 %v1168
    %v1241 = vunpack.c.h.b16 %v1168
    %v1242 = vunpack.c.l.b16 %v1169
    %v1243 = vunpack.c.h.b16 %v1169
    %v1244 = vunpack.c.l.b16 %v1170
    %v1245 = vunpack.c.h.b16 %v1170
    %v1246 = vunpack.c.l.b16 %v1171
    %v1247 = vunpack.c.h.b16 %v1171
    %v1248 = vunpack.c.l.b16 %v1172
    %v1249 = vunpack.c.h.b16 %v1172
    %v1250 = vunpack.c.l.b16 %v1173
    %v1251 = vunpack.c.h.b16 %v1173
    %v1252 = vunpack.c.l.b16 %v1174
    %v1253 = vunpack.c.h.b16 %v1174
    %v1254 = vunpack.c.l.b16 %v1175
    %v1255 = vunpack.c.h.b16 %v1175
    %v1256 = vunpack.c.l.b16 %v1176
    %v1257 = vunpack.c.h.b16 %v1176
    %v1258 = vunpack.c.l.b16 %v1177
    %v1259 = vunpack.c.h.b16 %v1177
    %v1260 = vunpack.c.l.b16 %v1178
    %v1261 = vunpack.c.h.b16 %v1178
    %v1262 = vunpack.c.l.b16 %v1179
    %v1263 = vunpack.c.h.b16 %v1179
    %v1264 = vunpack.c.l.b16 %v1180
    %v1265 = vunpack.c.h.b16 %v1180
    %v1266 = vunpack.c.l.b16 %v1181
    %v1267 = vunpack.c.h.b16 %v1181
    %v1268 = vunpack.c.l.b16 %v1182
    %v1269 = vunpack.c.h.b16 %v1182
    %v1270 = vunpack.c.l.b16 %v1183
    %v1271 = vunpack.c.h.b16 %v1183
    %v1272 = vunpack.c.l.b16 %v1184
    %v1273 = vunpack.c.h.b16 %v1184
    %v1274 = vunpack.c.l.b16 %v1185
    %v1275 = vunpack.c.h.b16 %v1185
    %v1276 = vunpack.c.l.b16 %v1186
    %v1277 = vunpack.c.h.b16 %v1186
    %v1278 = vunpack.c.l.b16 %v1187
    %v1279 = vunpack.c.h.b16 %v1187
    %v1280 = vunpack.c.l.b16 %v1188
    %v1281 = vunpack.c.h.b16 %v1188
    %v1282 = vunpack.c.l.b16 %v1189
    %v1283 = vunpack.c.h.b16 %v1189
    %v1284 = vunpack.c.l.b16 %v1190
    %v1285 = vunpack.c.h.b16 %v1190
    %v1286 = vunpack.c.l.b16 %v1191
    %v1287 = vunpack.c.h.b16 %v1191
    %v1288 = vpack.c.b16 %v1224, %v1224
    %v1289 = vpack.c.b16 %v1225, %v1225
    %v1290 = vpack.c.b16 %v1226, %v1226
    %v1291 = vpack.c.b16 %v1227, %v1227
    %v1292 = vpack.c.b16 %v1228, %v1228
    %v1293 = vpack.c.b16 %v1229, %v1229
    %v1294 = vpack.c.b16 %v1230, %v1230
    %v1295 = vpack.c.b16 %v1231, %v1231
    %v1296 = vpack.c.b16 %v1232, %v1232
    %v1297 = vpack.c.b16 %v1233, %v1233
    %v1298 = vpack.c.b16 %v1234, %v1234
    %v1299 = vpack.c.b16 %v1235, %v1235
    %v1300 = vpack.c.b16 %v1236, %v1236
    %v1301 = vpack.c.b16 %v1237, %v1237
    %v1302 = vpack.c.b16 %v1238, %v1238
    %v1303 = vpack.c.b16 %v1239, %v1239
    %v1304 = vpack.c.b16 %v1240, %v1240
    %v1305 = vpack.c.b16 %v1241, %v1241
    %v1306 = vpack.c.b16 %v1242, %v1242
    %v1307 = vpack.c.b16 %v1243, %v1243
    %v1308 = vpack.c.b16 %v1244, %v1244
    %v1309 = vpack.c.b16 %v1245, %v1245
    %v1310 = vpack.c.b16 %v1246, %v1246
    %v1311 = vpack.c.b16 %v1247, %v1247
    %v1312 = vpack.c.b16 %v1248, %v1248
    %v1313 = vpack.c.b16 %v1249, %v1249
    %v1314 = vpack.c.b16 %v1250, %v1250
    %v1315 = vpack.c.b16 %v1251, %v1251
    %v1316 = vpack.c.b16 %v1252, %v1252
    %v1317 = vpack.c.b16 %v1253, %v1253
    %v1318 = vpack.c.b16 %v1254, %v1254
    %v1319 = vpack.c.b16 %v1255, %v1255
    %v1320 = vpack.c.b16 %v1256, %v1256
    %v1321 = vpack.c.b16 %v1257, %v1257
    %v1322 = vpack.c.b16 %v1258, %v1258
    %v1323 = vpack.c.b16 %v1259, %v1259
    %v1324 = vpack.c.b16 %v1260, %v1260
    %v1325 = vpack.c.b16 %v1261, %v1261
    %v1326 = vpack.c.b16 %v1262, %v1262
    %v1327 = vpack.c.b16 %v1263, %v1263
    %v1328 = vpack.c.b16 %v1264, %v1264
    %v1329 = vpack.c.b16 %v1265, %v1265
    %v1330 = vpack.c.b16 %v1266, %v1266
    %v1331 = vpack.c.b16 %v1267, %v1267
    %v1332 = vpack.c.b16 %v1268, %v1268
    %v1333 = vpack.c.b16 %v1269, %v1269
    %v1334 = vpack.c.b16 %v1270, %v1270
    %v1335 = vpack.c.b16 %v1271, %v1271
    %v1336 = vpack.c.b16 %v1272, %v1272
    %v1337 = vpack.c.b16 %v1273, %v1273
    %v1338 = vpack.c.b16 %v1274, %v1274
    %v1339 = vpack.c.b16 %v1275, %v1275
    %v1340 = vpack.c.b16 %v1276, %v1276
    %v1341 = vpack.c.b16 %v1277, %v1277
    %v1342 = vpack.c.b16 %v1278, %v1278
    %v1343 = vpack.c.b16 %v1279, %v1279
    %v1344 = vpack.c.b16 %v1280, %v1280
    %v1345 = vpack.c.b16 %v1281, %v1281
    %v1346 = vpack.c.b16 %v1282, %v1282
    %v1347 = vpack.c.b16 %v1283, %v1283
    %v1348 = vpack.c.b16 %v1284, %v1284
    %v1349 = vpack.c.b16 %v1285, %v1285
    %v1350 = vpack.c.b16 %v1286, %v1286
    %v1351 = vpack.c.b16 %v1287, %v1287
    %1416 = vst [vmem:[%s4] sm:$0xf] %v1288
    %1417 = vst [vmem:[%s4 + $0x4] sm:$0xf] %v1289
    %1418 = vst [vmem:[%s4 + $0x8] sm:$0xf] %v1290
    %1419 = vst [vmem:[%s4 + $0xc] sm:$0xf] %v1291
    %1420 = vst [vmem:[%s4 + $0x10] sm:$0xf] %v1292
    %1421 = vst [vmem:[%s4 + $0x14] sm:$0xf] %v1293
    %1422 = vst [vmem:[%s4 + $0x18] sm:$0xf] %v1294
    %1423 = vst [vmem:[%s4 + $0x1c] sm:$0xf] %v1295
    %1424 = vst [vmem:[%s4 + $0x20] sm:$0xf] %v1296
    %1425 = vst [vmem:[%s4 + $0x24] sm:$0xf] %v1297
    %1426 = vst [vmem:[%s4 + $0x28] sm:$0xf] %v1298
    %1427 = vst [vmem:[%s4 + $0x2c] sm:$0xf] %v1299
    %1428 = vst [vmem:[%s4 + $0x30] sm:$0xf] %v1300
    %1429 = vst [vmem:[%s4 + $0x34] sm:$0xf] %v1301
    %1430 = vst [vmem:[%s4 + $0x38] sm:$0xf] %v1302
    %1431 = vst [vmem:[%s4 + $0x3c] sm:$0xf] %v1303
    %1432 = vst [vmem:[%s4 + $0x40] sm:$0xf] %v1304
    %1433 = vst [vmem:[%s4 + $0x44] sm:$0xf] %v1305
    %1434 = vst [vmem:[%s4 + $0x48] sm:$0xf] %v1306
    %1435 = vst [vmem:[%s4 + $0x4c] sm:$0xf] %v1307
    %1436 = vst [vmem:[%s4 + $0x50] sm:$0xf] %v1308
    %1437 = vst [vmem:[%s4 + $0x54] sm:$0xf] %v1309
    %1438 = vst [vmem:[%s4 + $0x58] sm:$0xf] %v1310
    %1439 = vst [vmem:[%s4 + $0x5c] sm:$0xf] %v1311
    %1440 = vst [vmem:[%s4 + $0x60] sm:$0xf] %v1312
    %1441 = vst [vmem:[%s4 + $0x64] sm:$0xf] %v1313
    %1442 = vst [vmem:[%s4 + $0x68] sm:$0xf] %v1314
    %1443 = vst [vmem:[%s4 + $0x6c] sm:$0xf] %v1315
    %1444 = vst [vmem:[%s4 + $0x70] sm:$0xf] %v1316
    %1445 = vst [vmem:[%s4 + $0x74] sm:$0xf] %v1317
    %1446 = vst [vmem:[%s4 + $0x78] sm:$0xf] %v1318
    %1447 = vst [vmem:[%s4 + $0x7c] sm:$0xf] %v1319
    %1448 = vst [vmem:[%s4 + $0x80] sm:$0xf] %v1320
    %1449 = vst [vmem:[%s4 + $0x84] sm:$0xf] %v1321
    %1450 = vst [vmem:[%s4 + $0x88] sm:$0xf] %v1322
    %1451 = vst [vmem:[%s4 + $0x8c] sm:$0xf] %v1323
    %1452 = vst [vmem:[%s4 + $0x90] sm:$0xf] %v1324
    %1453 = vst [vmem:[%s4 + $0x94] sm:$0xf] %v1325
    %1454 = vst [vmem:[%s4 + $0x98] sm:$0xf] %v1326
    %1455 = vst [vmem:[%s4 + $0x9c] sm:$0xf] %v1327
    %1456 = vst [vmem:[%s4 + $0xa0] sm:$0xf] %v1328
    %1457 = vst [vmem:[%s4 + $0xa4] sm:$0xf] %v1329
    %1458 = vst [vmem:[%s4 + $0xa8] sm:$0xf] %v1330
    %1459 = vst [vmem:[%s4 + $0xac] sm:$0xf] %v1331
    %1460 = vst [vmem:[%s4 + $0xb0] sm:$0xf] %v1332
    %1461 = vst [vmem:[%s4 + $0xb4] sm:$0xf] %v1333
    %1462 = vst [vmem:[%s4 + $0xb8] sm:$0xf] %v1334
    %1463 = vst [vmem:[%s4 + $0xbc] sm:$0xf] %v1335
    %1464 = vst [vmem:[%s4 + $0xc0] sm:$0xf] %v1336
    %1465 = vst [vmem:[%s4 + $0xc4] sm:$0xf] %v1337
    %1466 = vst [vmem:[%s4 + $0xc8] sm:$0xf] %v1338
    %1467 = vst [vmem:[%s4 + $0xcc] sm:$0xf] %v1339
    %1468 = vst [vmem:[%s4 + $0xd0] sm:$0xf] %v1340
    %1469 = vst [vmem:[%s4 + $0xd4] sm:$0xf] %v1341
    %1470 = vst [vmem:[%s4 + $0xd8] sm:$0xf] %v1342
    %1471 = vst [vmem:[%s4 + $0xdc] sm:$0xf] %v1343
    %1472 = vst [vmem:[%s4 + $0xe0] sm:$0xf] %v1344
    %1473 = vst [vmem:[%s4 + $0xe4] sm:$0xf] %v1345
    %1474 = vst [vmem:[%s4 + $0xe8] sm:$0xf] %v1346
    %1475 = vst [vmem:[%s4 + $0xec] sm:$0xf] %v1347
    %1476 = vst [vmem:[%s4 + $0xf0] sm:$0xf] %v1348
    %1477 = vst [vmem:[%s4 + $0xf4] sm:$0xf] %v1349
    %1478 = vst [vmem:[%s4 + $0xf8] sm:$0xf] %v1350
    %1479 = vst [vmem:[%s4 + $0xfc] sm:$0xf] %v1351
  $region25: #{decoder_forward.113} parent=0 // pred_fallthru
    _
  // Predicated region
  $region26: #{decoder_forward.113} parent=0 // pred_check
    _
  $region27: #{decoder_forward.113} parent=0 // pred_check_branch
    %1481 = sbr.rel (0) target = $region29
  $region28: #{decoder_forward.113} parent=0 // pred_region
    _
  $region29: #{decoder_forward.113} parent=0 // pred_fallthru
    _
  // Predicated region
  $region30: #{decoder_forward.113} parent=0 // pred_check
    _
  $region31: #{decoder_forward.113} parent=0 // pred_check_branch
    %1483 = sbr.rel (0) target = $region33
  $region32: #{decoder_forward.113} parent=0 // pred_region
    _
  $region33: #{decoder_forward.113} parent=0 // pred_fallthru
    _

// kernel: decoder_forward.117
$region0: #{decoder_forward.117}
  #allocation0 [shape = 'u32[]', space=smem, size = 0x4, offset = 0x4, fixed_abs, tag = 'smem constant byte address 0x4 - core index']
  #allocation1 [shape = 'u32[144,128]{1,0:T(1,128)}', space=vmem, size = 0x12000, scoped, tag = 'internal scratch']
  #allocation2 [shape = 'f32[512,128]{1,0:T(8,128)}', space=vmem, size = 0x40000, scoped, tag = 'scratch operand']
  %s0 = inlined_call_operand.vmem [shape: bf16[2048,128], index: 0, kind: input, shape index: {}]
  %s1 = inlined_call_operand.vmem [shape: bf16[128,128], index: 1, kind: input, shape index: {}]
  %s2 = inlined_call_operand.vmem [shape: f32[1,128], index: 2, kind: input, shape index: {}]
  %s3 = inlined_call_operand.vmem [shape: f32[1,128], index: 3, kind: input, shape index: {}]
  %s4 = inlined_call_operand.vmem [shape: bf16[2048,128], index: 4, kind: output, shape index: {}]
  %s5 = sld [smem:[#allocation0]]
  $region57: #{decoder_forward.117} parent=0
    _
  %s7 = ssub.s32 1, %s5
  %s8 = scalar_select 0, %s7, %s5
  loop: start=0, step=1, limit=6
  $region2: #{decoder_forward.117} parent=0 // loop_pre_header
    _
  $region3: #{decoder_forward.117} parent=0 // loop_header
    %s10 = sphi 0, %s14
    %p11 = scmp.ge.s32.totalorder %s10, 6
    %s17 = sphi 0, %s36
    %s18 = sphi 0, %s32
    %s19 = sphi 0, %s28
    %s20 = sphi 0, %s17
    %s21 = sphi 0, %s18
    %s22 = sphi 0, %s19
    %s23 = sphi 0, %s20
    %s24 = sphi 0, %s21
    %s25 = sphi 0, %s22
    %s41 = sphi 0, %s43
    %s44 = sphi 0, %s41
    %s45 = sphi 0, %s44
    %s61 = sphi 0, %s45
    %s69 = sphi 0, %s71
    %s72 = sphi 0, %s69
    %s73 = sphi 0, %s72
    %s89 = sphi 0, %s73
    %s95 = sphi 0, %s97
    %s98 = sphi 0, %s95
    %s99 = sphi 0, %s98
    %s115 = sphi 0, %s99
    %s121 = sphi 0, %s123
    %s124 = sphi 0, %s121
    %s125 = sphi 0, %s124
    %s141 = sphi 0, %s125
    %s149 = sphi 0, %s151
    %s152 = sphi 0, %s149
    %s153 = sphi 0, %s152
    %s169 = sphi 0, %s153
  $region4: #{decoder_forward.117} parent=0 // loop_header_branch
    %13 = sbr.rel (%p11) target = $region8
  $region5: #{decoder_forward.117} parent=0 // loop_body
    %s15 = ssub.s32 %s10, 1
    %s16 = ssub.s32 %s10, 2
    %s26 = sadd.s32 1, %s19
    %p27 = scmp.ge.s32.totalorder %s26, 1
    %s28 = scalar_select %p27, 0, %s26
    %s29 = sadd.s32 1, %s18
    %s30 = scalar_select %p27, %s29, %s18
    %p31 = scmp.ge.s32.totalorder %s30, 1
    %s32 = scalar_select %p31, 0, %s30
    %s33 = sadd.s32 1, %s17
    %s34 = scalar_select %p31, %s33, %s17
    %p35 = scmp.ge.s32.totalorder %s34, 4
    %s36 = scalar_select %p35, 0, %s34
    %s37 = ssub.s32 %s17, %s36
    %s38 = ssub.s32 %s19, %s28
    %s39 = sor.u32 %s37, %s38
    %p40 = scmp.eq.s32.totalorder %s39, 0
    %s42 = sadd.s32 %s41, 1
    %s43 = scalar_select %p40, %s41, %s42
    %p46 = pneg %p40
    %p47 = scmp.eq.s32.totalorder %s10, 3
    %p48 = por %p46, %p47
    %p49 = scmp.ne.s32.totalorder %s41, %s44
    %p50 = scmp.eq.s32.totalorder %s10, 0
    %p51 = por %p49, %p50
    %p52 = scmp.ne.s32.totalorder %s41, %s44
    %p53 = scmp.eq.s32.totalorder %s15, 3
    %p54 = por %p52, %p53
    %p55 = scmp.ne.s32.totalorder %s44, %s45
    %p56 = scmp.eq.s32.totalorder %s15, 0
    %p57 = por %p55, %p56
    %p58 = scmp.ne.s32.totalorder %s44, %s45
    %p59 = scmp.eq.s32.totalorder %s16, 3
    %p60 = por %p58, %p59
    %p62 = scmp.ne.s32.totalorder %s45, %s61
    %p63 = scmp.eq.s32.totalorder %s16, 0
    %p64 = por %p62, %p63
    %s65 = ssub.s32 %s19, %s28
    %s66 = ssub.s32 %s18, %s32
    %s67 = sor.u32 %s65, %s66
    %p68 = scmp.eq.s32.totalorder %s67, 0
    %s70 = sadd.s32 %s69, 1
    %s71 = scalar_select %p68, %s69, %s70
    %p74 = pneg %p68
    %p75 = scmp.eq.s32.totalorder %s10, 3
    %p76 = por %p74, %p75
    %p77 = scmp.ne.s32.totalorder %s69, %s72
    %p78 = scmp.eq.s32.totalorder %s10, 0
    %p79 = por %p77, %p78
    %p80 = scmp.ne.s32.totalorder %s69, %s72
    %p81 = scmp.eq.s32.totalorder %s15, 3
    %p82 = por %p80, %p81
    %p83 = scmp.ne.s32.totalorder %s72, %s73
    %p84 = scmp.eq.s32.totalorder %s15, 0
    %p85 = por %p83, %p84
    %p86 = scmp.ne.s32.totalorder %s72, %s73
    %p87 = scmp.eq.s32.totalorder %s16, 3
    %p88 = por %p86, %p87
    %p90 = scmp.ne.s32.totalorder %s73, %s89
    %p91 = scmp.eq.s32.totalorder %s16, 0
    %p92 = por %p90, %p91
    %s93 = ssub.s32 %s18, %s32
    %p94 = scmp.eq.s32.totalorder %s93, 0
    %s96 = sadd.s32 %s95, 1
    %s97 = scalar_select %p94, %s95, %s96
    %p100 = pneg %p94
    %p101 = scmp.eq.s32.totalorder %s10, 3
    %p102 = por %p100, %p101
    %p103 = scmp.ne.s32.totalorder %s95, %s98
    %p104 = scmp.eq.s32.totalorder %s10, 0
    %p105 = por %p103, %p104
    %p106 = scmp.ne.s32.totalorder %s95, %s98
    %p107 = scmp.eq.s32.totalorder %s15, 3
    %p108 = por %p106, %p107
    %p109 = scmp.ne.s32.totalorder %s98, %s99
    %p110 = scmp.eq.s32.totalorder %s15, 0
    %p111 = por %p109, %p110
    %p112 = scmp.ne.s32.totalorder %s98, %s99
    %p113 = scmp.eq.s32.totalorder %s16, 3
    %p114 = por %p112, %p113
    %p116 = scmp.ne.s32.totalorder %s99, %s115
    %p117 = scmp.eq.s32.totalorder %s16, 0
    %p118 = por %p116, %p117
    %s119 = ssub.s32 %s18, %s32
    %p120 = scmp.eq.s32.totalorder %s119, 0
    %s122 = sadd.s32 %s121, 1
    %s123 = scalar_select %p120, %s121, %s122
    %p126 = pneg %p120
    %p127 = scmp.eq.s32.totalorder %s10, 3
    %p128 = por %p126, %p127
    %p129 = scmp.ne.s32.totalorder %s121, %s124
    %p130 = scmp.eq.s32.totalorder %s10, 0
    %p131 = por %p129, %p130
    %p132 = scmp.ne.s32.totalorder %s121, %s124
    %p133 = scmp.eq.s32.totalorder %s15, 3
    %p134 = por %p132, %p133
    %p135 = scmp.ne.s32.totalorder %s124, %s125
    %p136 = scmp.eq.s32.totalorder %s15, 0
    %p137 = por %p135, %p136
    %p138 = scmp.ne.s32.totalorder %s124, %s125
    %p139 = scmp.eq.s32.totalorder %s16, 3
    %p140 = por %p138, %p139
    %p142 = scmp.ne.s32.totalorder %s125, %s141
    %p143 = scmp.eq.s32.totalorder %s16, 0
    %p144 = por %p142, %p143
    %s145 = ssub.s32 %s17, %s36
    %s146 = ssub.s32 %s18, %s32
    %s147 = sor.u32 %s145, %s146
    %p148 = scmp.eq.s32.totalorder %s147, 0
    %s150 = sadd.s32 %s149, 1
    %s151 = scalar_select %p148, %s149, %s150
    %p154 = pneg %p148
    %p155 = scmp.eq.s32.totalorder %s10, 3
    %p156 = por %p154, %p155
    %p157 = scmp.ne.s32.totalorder %s149, %s152
    %p158 = scmp.eq.s32.totalorder %s10, 0
    %p159 = por %p157, %p158
    %p160 = scmp.ne.s32.totalorder %s149, %s152
    %p161 = scmp.eq.s32.totalorder %s15, 3
    %p162 = por %p160, %p161
    %p163 = scmp.ne.s32.totalorder %s152, %s153
    %p164 = scmp.eq.s32.totalorder %s15, 0
    %p165 = por %p163, %p164
    %p166 = scmp.ne.s32.totalorder %s152, %s153
    %p167 = scmp.eq.s32.totalorder %s16, 3
    %p168 = por %p166, %p167
    %p170 = scmp.ne.s32.totalorder %s153, %s169
    %p171 = scmp.eq.s32.totalorder %s16, 0
    %p172 = por %p170, %p171
    %p173 = scmp.le.s32.totalorder 1, %s10
    %p174 = scmp.lt.s32.totalorder %s10, 5
    %p175 = pnand %p173, %p174
    %p176 = pneg %p175
    // Predicated region
    $region9: #{decoder_forward.117} parent=5 // pred_check
      _
    $region10: #{decoder_forward.117} parent=5 // pred_check_branch
      %178 = sbr.rel (%p175) target = $region12
    $region11: #{decoder_forward.117} parent=5 // pred_region
      %s179 = ssub.s32 %s10, 1
      // Predicated region
      $region13: #{decoder_forward.117} parent=11 // pred_check
        %p180 = pneg %p85
      $region14: #{decoder_forward.117} parent=11 // pred_check_branch
        %182 = sbr.rel (%p180) target = $region16
      $region15: #{decoder_forward.117} parent=11 // pred_region
        %s183 = smul.u32 16, %s22
        %p184 = scmp.lt.s32.totalorder %s183, 15
        %s185 = scalar_select %p184, %s183, 15
        %p186 = scmp.lt.s32.totalorder %s21, 0
        %s187 = scalar_select %p186, %s21, 0
        %s188 = sadd.s32 %s187, %s185
        %s189 = smul.addr %s188, 4
        %s190 = scalar_lea.vmem %s1, %s189
        %s191 = smul.u32 16, %s22
      $region16: #{decoder_forward.117} parent=11 // pred_fallthru
        _
      // Predicated region
      $region17: #{decoder_forward.117} parent=11 // pred_check
        %p192 = pneg %p111
      $region18: #{decoder_forward.117} parent=11 // pred_check_branch
        %194 = sbr.rel (%p192) target = $region20
      $region19: #{decoder_forward.117} parent=11 // pred_region
        %p195 = scmp.lt.s32.totalorder %s21, 0
        %s196 = scalar_select %p195, %s21, 0
        %s197 = scalar_lea.vmem %s2, %s196
      $region20: #{decoder_forward.117} parent=11 // pred_fallthru
        _
      // Predicated region
      $region21: #{decoder_forward.117} parent=11 // pred_check
        %p198 = pneg %p137
      $region22: #{decoder_forward.117} parent=11 // pred_check_branch
        %200 = sbr.rel (%p198) target = $region24
      $region23: #{decoder_forward.117} parent=11 // pred_region
        %p201 = scmp.lt.s32.totalorder %s21, 0
        %s202 = scalar_select %p201, %s21, 0
        %s203 = scalar_lea.vmem %s3, %s202
      $region24: #{decoder_forward.117} parent=11 // pred_fallthru
        _
    $region12: #{decoder_forward.117} parent=5 // pred_fallthru
      _
    %p204 = scmp.lt.s32.totalorder %s10, 4
    // Predicated region
    $region25: #{decoder_forward.117} parent=5 // pred_check
      %p205 = pneg %p204
    $region26: #{decoder_forward.117} parent=5 // pred_check_branch
      %207 = sbr.rel (%p205) target = $region28
    $region27: #{decoder_forward.117} parent=5 // pred_region
      // Predicated region
      $region29: #{decoder_forward.117} parent=27 // pred_check
        %p208 = pneg %p51
      $region30: #{decoder_forward.117} parent=27 // pred_check_branch
        %210 = sbr.rel (%p208) target = $region32
      $region31: #{decoder_forward.117} parent=27 // pred_region
        %s211 = smul.u32 64, %s17
        %p212 = scmp.lt.s32.totalorder %s211, 255
        %s213 = scalar_select %p212, %s211, 255
        %p214 = scmp.lt.s32.totalorder %s19, 0
        %s215 = scalar_select %p214, %s19, 0
        %s216 = sadd.s32 %s215, %s213
        %s217 = smul.addr %s216, 4
        %s218 = scalar_lea.vmem %s0, %s217
        %s219 = smul.u32 64, %s17
      $region32: #{decoder_forward.117} parent=27 // pred_fallthru
        _
    $region28: #{decoder_forward.117} parent=5 // pred_fallthru
      _
    %p220 = scmp.le.s32.totalorder 1, %s10
    %p221 = scmp.lt.s32.totalorder %s10, 5
    %p222 = pnand %p220, %p221
    %p223 = pneg %p222
    // Predicated region
    $region33: #{decoder_forward.117} parent=5 // pred_check
      _
    $region34: #{decoder_forward.117} parent=5 // pred_check_branch
      %225 = sbr.rel (%p222) target = $region36
    $region35: #{decoder_forward.117} parent=5 // pred_region
      %s226 = ssub.s32 %s10, 1
      %s227 = smul.u32 64, %s20
      %p228 = scmp.lt.s32.totalorder %s227, 255
      %s229 = scalar_select %p228, %s227, 255
      %p230 = scmp.lt.s32.totalorder %s22, 0
      %s231 = scalar_select %p230, %s22, 0
      %s232 = sadd.s32 %s231, %s229
      %s233 = smul.addr %s232, 4
      %s234 = scalar_lea.vmem %s0, %s233
      %p235 = pneg %p57
      %p236 = pneg %p54
      %s237 = smul.u32 16, %s22
      %p238 = scmp.lt.s32.totalorder %s237, 15
      %s239 = scalar_select %p238, %s237, 15
      %p240 = scmp.lt.s32.totalorder %s21, 0
      %s241 = scalar_select %p240, %s21, 0
      %s242 = sadd.s32 %s241, %s239
      %s243 = smul.addr %s242, 4
      %s244 = scalar_lea.vmem %s1, %s243
      %p245 = pneg %p85
      %p246 = pneg %p82
      %p247 = scmp.lt.s32.totalorder %s21, 0
      %s248 = scalar_select %p247, %s21, 0
      %s249 = scalar_lea.vmem %s2, %s248
      %p250 = pneg %p111
      %p251 = pneg %p108
      %p252 = scmp.lt.s32.totalorder %s21, 0
      %s253 = scalar_select %p252, %s21, 0
      %s254 = scalar_lea.vmem %s3, %s253
      %p255 = pneg %p137
      %p256 = pneg %p134
      %p257 = pneg %p165
      %p258 = pneg %p162
      %s259 = smul.u32 64, %s20
      %p260 = scmp.lt.s32.totalorder %s259, 255
      %s261 = scalar_select %p260, %s259, 255
      %p262 = scmp.lt.s32.totalorder %s21, 0
      %s263 = scalar_select %p262, %s21, 0
      %s264 = sadd.s32 %s263, %s261
      %s265 = smul.addr %s264, 4
      %s266 = scalar_lea.vmem %s4, %s265
      %s267 = smul.u32 64, %s20
      %p268 = scmp.lt.s32.totalorder %s267, 255
      %s269 = scalar_select %p268, %s267, 255
      %p270 = scmp.lt.s32.totalorder %s22, 0
      %s271 = scalar_select %p270, %s22, 0
      %s272 = sadd.s32 %s271, %s269
      %s273 = smul.addr %s272, 4
      %s274 = scalar_lea.vmem %s0, %s273
      %s275 = smul.u32 64, %s20
      %s276 = smul.u32 16, %s22
      %p277 = scmp.lt.s32.totalorder %s276, 15
      %s278 = scalar_select %p277, %s276, 15
      %p279 = scmp.lt.s32.totalorder %s21, 0
      %s280 = scalar_select %p279, %s21, 0
      %s281 = sadd.s32 %s280, %s278
      %s282 = smul.addr %s281, 4
      %s283 = scalar_lea.vmem %s1, %s282
      %s284 = smul.u32 16, %s22
      %p285 = scmp.lt.s32.totalorder %s21, 0
      %s286 = scalar_select %p285, %s21, 0
      %s287 = scalar_lea.vmem %s2, %s286
      %p288 = scmp.lt.s32.totalorder %s21, 0
      %s289 = scalar_select %p288, %s21, 0
      %s290 = scalar_lea.vmem %s3, %s289
      %s291 = smul.u32 64, %s20
      %p292 = scmp.lt.s32.totalorder %s291, 255
      %s293 = scalar_select %p292, %s291, 255
      %p294 = scmp.lt.s32.totalorder %s21, 0
      %s295 = scalar_select %p294, %s21, 0
      %s296 = sadd.s32 %s295, %s293
      %s297 = smul.addr %s296, 4
      %s298 = scalar_lea.vmem %s4, %s297
      %s299 = smul.u32 64, %s20
      %p301 = scmp.eq.s32.totalorder %s22, 0
      // Predicated region
      $region37: #{decoder_forward.117} parent=35 // pred_check
        %p302 = pneg %p301
      $region38: #{decoder_forward.117} parent=35 // pred_check_branch
        %304 = sbr.rel (%p302) target = $region40
      $region39: #{decoder_forward.117} parent=35 // pred_region
        %305 = vst [vmem:[#allocation2] sm:$0xff] 0.0
        %306 = vst [vmem:[#allocation2 + $0x8] sm:$0xff] 0.0
        %307 = vst [vmem:[#allocation2 + $0x10] sm:$0xff] 0.0
        %308 = vst [vmem:[#allocation2 + $0x18] sm:$0xff] 0.0
        %309 = vst [vmem:[#allocation2 + $0x20] sm:$0xff] 0.0
        %310 = vst [vmem:[#allocation2 + $0x28] sm:$0xff] 0.0
        %311 = vst [vmem:[#allocation2 + $0x30] sm:$0xff] 0.0
        %312 = vst [vmem:[#allocation2 + $0x38] sm:$0xff] 0.0
        %313 = vst [vmem:[#allocation2 + $0x40] sm:$0xff] 0.0
        %314 = vst [vmem:[#allocation2 + $0x48] sm:$0xff] 0.0
        %315 = vst [vmem:[#allocation2 + $0x50] sm:$0xff] 0.0
        %316 = vst [vmem:[#allocation2 + $0x58] sm:$0xff] 0.0
        %317 = vst [vmem:[#allocation2 + $0x60] sm:$0xff] 0.0
        %318 = vst [vmem:[#allocation2 + $0x68] sm:$0xff] 0.0
        %319 = vst [vmem:[#allocation2 + $0x70] sm:$0xff] 0.0
        %320 = vst [vmem:[#allocation2 + $0x78] sm:$0xff] 0.0
        %321 = vst [vmem:[#allocation2 + $0x80] sm:$0xff] 0.0
        %322 = vst [vmem:[#allocation2 + $0x88] sm:$0xff] 0.0
        %323 = vst [vmem:[#allocation2 + $0x90] sm:$0xff] 0.0
        %324 = vst [vmem:[#allocation2 + $0x98] sm:$0xff] 0.0
        %325 = vst [vmem:[#allocation2 + $0xa0] sm:$0xff] 0.0
        %326 = vst [vmem:[#allocation2 + $0xa8] sm:$0xff] 0.0
        %327 = vst [vmem:[#allocation2 + $0xb0] sm:$0xff] 0.0
        %328 = vst [vmem:[#allocation2 + $0xb8] sm:$0xff] 0.0
        %329 = vst [vmem:[#allocation2 + $0xc0] sm:$0xff] 0.0
        %330 = vst [vmem:[#allocation2 + $0xc8] sm:$0xff] 0.0
        %331 = vst [vmem:[#allocation2 + $0xd0] sm:$0xff] 0.0
        %332 = vst [vmem:[#allocation2 + $0xd8] sm:$0xff] 0.0
        %333 = vst [vmem:[#allocation2 + $0xe0] sm:$0xff] 0.0
        %334 = vst [vmem:[#allocation2 + $0xe8] sm:$0xff] 0.0
        %335 = vst [vmem:[#allocation2 + $0xf0] sm:$0xff] 0.0
        %336 = vst [vmem:[#allocation2 + $0xf8] sm:$0xff] 0.0
        %337 = vst [vmem:[#allocation2 + $0x100] sm:$0xff] 0.0
        %338 = vst [vmem:[#allocation2 + $0x108] sm:$0xff] 0.0
        %339 = vst [vmem:[#allocation2 + $0x110] sm:$0xff] 0.0
        %340 = vst [vmem:[#allocation2 + $0x118] sm:$0xff] 0.0
        %341 = vst [vmem:[#allocation2 + $0x120] sm:$0xff] 0.0
        %342 = vst [vmem:[#allocation2 + $0x128] sm:$0xff] 0.0
        %343 = vst [vmem:[#allocation2 + $0x130] sm:$0xff] 0.0
        %344 = vst [vmem:[#allocation2 + $0x138] sm:$0xff] 0.0
        %345 = vst [vmem:[#allocation2 + $0x140] sm:$0xff] 0.0
        %346 = vst [vmem:[#allocation2 + $0x148] sm:$0xff] 0.0
        %347 = vst [vmem:[#allocation2 + $0x150] sm:$0xff] 0.0
        %348 = vst [vmem:[#allocation2 + $0x158] sm:$0xff] 0.0
        %349 = vst [vmem:[#allocation2 + $0x160] sm:$0xff] 0.0
        %350 = vst [vmem:[#allocation2 + $0x168] sm:$0xff] 0.0
        %351 = vst [vmem:[#allocation2 + $0x170] sm:$0xff] 0.0
        %352 = vst [vmem:[#allocation2 + $0x178] sm:$0xff] 0.0
        %353 = vst [vmem:[#allocation2 + $0x180] sm:$0xff] 0.0
        %354 = vst [vmem:[#allocation2 + $0x188] sm:$0xff] 0.0
        %355 = vst [vmem:[#allocation2 + $0x190] sm:$0xff] 0.0
        %356 = vst [vmem:[#allocation2 + $0x198] sm:$0xff] 0.0
        %357 = vst [vmem:[#allocation2 + $0x1a0] sm:$0xff] 0.0
        %358 = vst [vmem:[#allocation2 + $0x1a8] sm:$0xff] 0.0
        %359 = vst [vmem:[#allocation2 + $0x1b0] sm:$0xff] 0.0
        %360 = vst [vmem:[#allocation2 + $0x1b8] sm:$0xff] 0.0
        %361 = vst [vmem:[#allocation2 + $0x1c0] sm:$0xff] 0.0
        %362 = vst [vmem:[#allocation2 + $0x1c8] sm:$0xff] 0.0
        %363 = vst [vmem:[#allocation2 + $0x1d0] sm:$0xff] 0.0
        %364 = vst [vmem:[#allocation2 + $0x1d8] sm:$0xff] 0.0
        %365 = vst [vmem:[#allocation2 + $0x1e0] sm:$0xff] 0.0
        %366 = vst [vmem:[#allocation2 + $0x1e8] sm:$0xff] 0.0
        %367 = vst [vmem:[#allocation2 + $0x1f0] sm:$0xff] 0.0
        %368 = vst [vmem:[#allocation2 + $0x1f8] sm:$0xff] 0.0
      $region40: #{decoder_forward.117} parent=35 // pred_fallthru
        _
      %v369 = vld [vmem:[#allocation2] sm:$0xff]
      %v370 = vld [vmem:[#allocation2 + $0x8] sm:$0xff]
      %v371 = vld [vmem:[#allocation2 + $0x10] sm:$0xff]
      %v372 = vld [vmem:[#allocation2 + $0x18] sm:$0xff]
      %v373 = vld [vmem:[#allocation2 + $0x20] sm:$0xff]
      %v374 = vld [vmem:[#allocation2 + $0x28] sm:$0xff]
      %v375 = vld [vmem:[#allocation2 + $0x30] sm:$0xff]
      %v376 = vld [vmem:[#allocation2 + $0x38] sm:$0xff]
      %v377 = vld [vmem:[#allocation2 + $0x40] sm:$0xff]
      %v378 = vld [vmem:[#allocation2 + $0x48] sm:$0xff]
      %v379 = vld [vmem:[#allocation2 + $0x50] sm:$0xff]
      %v380 = vld [vmem:[#allocation2 + $0x58] sm:$0xff]
      %v381 = vld [vmem:[#allocation2 + $0x60] sm:$0xff]
      %v382 = vld [vmem:[#allocation2 + $0x68] sm:$0xff]
      %v383 = vld [vmem:[#allocation2 + $0x70] sm:$0xff]
      %v384 = vld [vmem:[#allocation2 + $0x78] sm:$0xff]
      %v385 = vld [vmem:[#allocation2 + $0x80] sm:$0xff]
      %v386 = vld [vmem:[#allocation2 + $0x88] sm:$0xff]
      %v387 = vld [vmem:[#allocation2 + $0x90] sm:$0xff]
      %v388 = vld [vmem:[#allocation2 + $0x98] sm:$0xff]
      %v389 = vld [vmem:[#allocation2 + $0xa0] sm:$0xff]
      %v390 = vld [vmem:[#allocation2 + $0xa8] sm:$0xff]
      %v391 = vld [vmem:[#allocation2 + $0xb0] sm:$0xff]
      %v392 = vld [vmem:[#allocation2 + $0xb8] sm:$0xff]
      %v393 = vld [vmem:[#allocation2 + $0xc0] sm:$0xff]
      %v394 = vld [vmem:[#allocation2 + $0xc8] sm:$0xff]
      %v395 = vld [vmem:[#allocation2 + $0xd0] sm:$0xff]
      %v396 = vld [vmem:[#allocation2 + $0xd8] sm:$0xff]
      %v397 = vld [vmem:[#allocation2 + $0xe0] sm:$0xff]
      %v398 = vld [vmem:[#allocation2 + $0xe8] sm:$0xff]
      %v399 = vld [vmem:[#allocation2 + $0xf0] sm:$0xff]
      %v400 = vld [vmem:[#allocation2 + $0xf8] sm:$0xff]
      %v401 = vld [vmem:[#allocation2 + $0x100] sm:$0xff]
      %v402 = vld [vmem:[#allocation2 + $0x108] sm:$0xff]
      %v403 = vld [vmem:[#allocation2 + $0x110] sm:$0xff]
      %v404 = vld [vmem:[#allocation2 + $0x118] sm:$0xff]
      %v405 = vld [vmem:[#allocation2 + $0x120] sm:$0xff]
      %v406 = vld [vmem:[#allocation2 + $0x128] sm:$0xff]
      %v407 = vld [vmem:[#allocation2 + $0x130] sm:$0xff]
      %v408 = vld [vmem:[#allocation2 + $0x138] sm:$0xff]
      %v409 = vld [vmem:[#allocation2 + $0x140] sm:$0xff]
      %v410 = vld [vmem:[#allocation2 + $0x148] sm:$0xff]
      %v411 = vld [vmem:[#allocation2 + $0x150] sm:$0xff]
      %v412 = vld [vmem:[#allocation2 + $0x158] sm:$0xff]
      %v413 = vld [vmem:[#allocation2 + $0x160] sm:$0xff]
      %v414 = vld [vmem:[#allocation2 + $0x168] sm:$0xff]
      %v415 = vld [vmem:[#allocation2 + $0x170] sm:$0xff]
      %v416 = vld [vmem:[#allocation2 + $0x178] sm:$0xff]
      %v417 = vld [vmem:[#allocation2 + $0x180] sm:$0xff]
      %v418 = vld [vmem:[#allocation2 + $0x188] sm:$0xff]
      %v419 = vld [vmem:[#allocation2 + $0x190] sm:$0xff]
      %v420 = vld [vmem:[#allocation2 + $0x198] sm:$0xff]
      %v421 = vld [vmem:[#allocation2 + $0x1a0] sm:$0xff]
      %v422 = vld [vmem:[#allocation2 + $0x1a8] sm:$0xff]
      %v423 = vld [vmem:[#allocation2 + $0x1b0] sm:$0xff]
      %v424 = vld [vmem:[#allocation2 + $0x1b8] sm:$0xff]
      %v425 = vld [vmem:[#allocation2 + $0x1c0] sm:$0xff]
      %v426 = vld [vmem:[#allocation2 + $0x1c8] sm:$0xff]
      %v427 = vld [vmem:[#allocation2 + $0x1d0] sm:$0xff]
      %v428 = vld [vmem:[#allocation2 + $0x1d8] sm:$0xff]
      %v429 = vld [vmem:[#allocation2 + $0x1e0] sm:$0xff]
      %v430 = vld [vmem:[#allocation2 + $0x1e8] sm:$0xff]
      %v431 = vld [vmem:[#allocation2 + $0x1f0] sm:$0xff]
      %v432 = vld [vmem:[#allocation2 + $0x1f8] sm:$0xff]
      %v433 = vld [vmem:[%s274] sm:$0xf]
      %v434 = vld [vmem:[%s274 + $0x4] sm:$0xf]
      %v435 = vld [vmem:[%s274 + $0x8] sm:$0xf]
      %v436 = vld [vmem:[%s274 + $0xc] sm:$0xf]
      %v437 = vld [vmem:[%s274 + $0x10] sm:$0xf]
      %v438 = vld [vmem:[%s274 + $0x14] sm:$0xf]
      %v439 = vld [vmem:[%s274 + $0x18] sm:$0xf]
      %v440 = vld [vmem:[%s274 + $0x1c] sm:$0xf]
      %v441 = vld [vmem:[%s274 + $0x20] sm:$0xf]
      %v442 = vld [vmem:[%s274 + $0x24] sm:$0xf]
      %v443 = vld [vmem:[%s274 + $0x28] sm:$0xf]
      %v444 = vld [vmem:[%s274 + $0x2c] sm:$0xf]
      %v445 = vld [vmem:[%s274 + $0x30] sm:$0xf]
      %v446 = vld [vmem:[%s274 + $0x34] sm:$0xf]
      %v447 = vld [vmem:[%s274 + $0x38] sm:$0xf]
      %v448 = vld [vmem:[%s274 + $0x3c] sm:$0xf]
      %v449 = vld [vmem:[%s274 + $0x40] sm:$0xf]
      %v450 = vld [vmem:[%s274 + $0x44] sm:$0xf]
      %v451 = vld [vmem:[%s274 + $0x48] sm:$0xf]
      %v452 = vld [vmem:[%s274 + $0x4c] sm:$0xf]
      %v453 = vld [vmem:[%s274 + $0x50] sm:$0xf]
      %v454 = vld [vmem:[%s274 + $0x54] sm:$0xf]
      %v455 = vld [vmem:[%s274 + $0x58] sm:$0xf]
      %v456 = vld [vmem:[%s274 + $0x5c] sm:$0xf]
      %v457 = vld [vmem:[%s274 + $0x60] sm:$0xf]
      %v458 = vld [vmem:[%s274 + $0x64] sm:$0xf]
      %v459 = vld [vmem:[%s274 + $0x68] sm:$0xf]
      %v460 = vld [vmem:[%s274 + $0x6c] sm:$0xf]
      %v461 = vld [vmem:[%s274 + $0x70] sm:$0xf]
      %v462 = vld [vmem:[%s274 + $0x74] sm:$0xf]
      %v463 = vld [vmem:[%s274 + $0x78] sm:$0xf]
      %v464 = vld [vmem:[%s274 + $0x7c] sm:$0xf]
      %v465 = vld [vmem:[%s274 + $0x80] sm:$0xf]
      %v466 = vld [vmem:[%s274 + $0x84] sm:$0xf]
      %v467 = vld [vmem:[%s274 + $0x88] sm:$0xf]
      %v468 = vld [vmem:[%s274 + $0x8c] sm:$0xf]
      %v469 = vld [vmem:[%s274 + $0x90] sm:$0xf]
      %v470 = vld [vmem:[%s274 + $0x94] sm:$0xf]
      %v471 = vld [vmem:[%s274 + $0x98] sm:$0xf]
      %v472 = vld [vmem:[%s274 + $0x9c] sm:$0xf]
      %v473 = vld [vmem:[%s274 + $0xa0] sm:$0xf]
      %v474 = vld [vmem:[%s274 + $0xa4] sm:$0xf]
      %v475 = vld [vmem:[%s274 + $0xa8] sm:$0xf]
      %v476 = vld [vmem:[%s274 + $0xac] sm:$0xf]
      %v477 = vld [vmem:[%s274 + $0xb0] sm:$0xf]
      %v478 = vld [vmem:[%s274 + $0xb4] sm:$0xf]
      %v479 = vld [vmem:[%s274 + $0xb8] sm:$0xf]
      %v480 = vld [vmem:[%s274 + $0xbc] sm:$0xf]
      %v481 = vld [vmem:[%s274 + $0xc0] sm:$0xf]
      %v482 = vld [vmem:[%s274 + $0xc4] sm:$0xf]
      %v483 = vld [vmem:[%s274 + $0xc8] sm:$0xf]
      %v484 = vld [vmem:[%s274 + $0xcc] sm:$0xf]
      %v485 = vld [vmem:[%s274 + $0xd0] sm:$0xf]
      %v486 = vld [vmem:[%s274 + $0xd4] sm:$0xf]
      %v487 = vld [vmem:[%s274 + $0xd8] sm:$0xf]
      %v488 = vld [vmem:[%s274 + $0xdc] sm:$0xf]
      %v489 = vld [vmem:[%s274 + $0xe0] sm:$0xf]
      %v490 = vld [vmem:[%s274 + $0xe4] sm:$0xf]
      %v491 = vld [vmem:[%s274 + $0xe8] sm:$0xf]
      %v492 = vld [vmem:[%s274 + $0xec] sm:$0xf]
      %v493 = vld [vmem:[%s274 + $0xf0] sm:$0xf]
      %v494 = vld [vmem:[%s274 + $0xf4] sm:$0xf]
      %v495 = vld [vmem:[%s274 + $0xf8] sm:$0xf]
      %v496 = vld [vmem:[%s274 + $0xfc] sm:$0xf]
      %v497 = vld [vmem:[%s283] sm:$0xf]
      %v498 = vld [vmem:[%s283 + $0x4] sm:$0xf]
      %v499 = vld [vmem:[%s283 + $0x8] sm:$0xf]
      %v500 = vld [vmem:[%s283 + $0xc] sm:$0xf]
      %v501 = vld [vmem:[%s283 + $0x10] sm:$0xf]
      %v502 = vld [vmem:[%s283 + $0x14] sm:$0xf]
      %v503 = vld [vmem:[%s283 + $0x18] sm:$0xf]
      %v504 = vld [vmem:[%s283 + $0x1c] sm:$0xf]
      %v505 = vld [vmem:[%s283 + $0x20] sm:$0xf]
      %v506 = vld [vmem:[%s283 + $0x24] sm:$0xf]
      %v507 = vld [vmem:[%s283 + $0x28] sm:$0xf]
      %v508 = vld [vmem:[%s283 + $0x2c] sm:$0xf]
      %v509 = vld [vmem:[%s283 + $0x30] sm:$0xf]
      %v510 = vld [vmem:[%s283 + $0x34] sm:$0xf]
      %v511 = vld [vmem:[%s283 + $0x38] sm:$0xf]
      %v512 = vld [vmem:[%s283 + $0x3c] sm:$0xf]
      %v577 = vunpack.c.l.b16 %v433
      %v578 = vunpack.c.l.b16 %v434
      %v579 = vunpack.c.l.b16 %v435
      %v580 = vunpack.c.l.b16 %v436
      %v581 = vunpack.c.l.b16 %v437
      %v582 = vunpack.c.l.b16 %v438
      %v583 = vunpack.c.l.b16 %v439
      %v584 = vunpack.c.l.b16 %v440
      %v585 = vunpack.c.l.b16 %v441
      %v586 = vunpack.c.l.b16 %v442
      %v587 = vunpack.c.l.b16 %v443
      %v588 = vunpack.c.l.b16 %v444
      %v589 = vunpack.c.l.b16 %v445
      %v590 = vunpack.c.l.b16 %v446
      %v591 = vunpack.c.l.b16 %v447
      %v592 = vunpack.c.l.b16 %v448
      %v593 = vunpack.c.l.b16 %v449
      %v594 = vunpack.c.l.b16 %v450
      %v595 = vunpack.c.l.b16 %v451
      %v596 = vunpack.c.l.b16 %v452
      %v597 = vunpack.c.l.b16 %v453
      %v598 = vunpack.c.l.b16 %v454
      %v599 = vunpack.c.l.b16 %v455
      %v600 = vunpack.c.l.b16 %v456
      %v601 = vunpack.c.l.b16 %v457
      %v602 = vunpack.c.l.b16 %v458
      %v603 = vunpack.c.l.b16 %v459
      %v604 = vunpack.c.l.b16 %v460
      %v605 = vunpack.c.l.b16 %v461
      %v606 = vunpack.c.l.b16 %v462
      %v607 = vunpack.c.l.b16 %v463
      %v608 = vunpack.c.l.b16 %v464
      %v609 = vunpack.c.l.b16 %v465
      %v610 = vunpack.c.l.b16 %v466
      %v611 = vunpack.c.l.b16 %v467
      %v612 = vunpack.c.l.b16 %v468
      %v613 = vunpack.c.l.b16 %v469
      %v614 = vunpack.c.l.b16 %v470
      %v615 = vunpack.c.l.b16 %v471
      %v616 = vunpack.c.l.b16 %v472
      %v617 = vunpack.c.l.b16 %v473
      %v618 = vunpack.c.l.b16 %v474
      %v619 = vunpack.c.l.b16 %v475
      %v620 = vunpack.c.l.b16 %v476
      %v621 = vunpack.c.l.b16 %v477
      %v622 = vunpack.c.l.b16 %v478
      %v623 = vunpack.c.l.b16 %v479
      %v624 = vunpack.c.l.b16 %v480
      %v625 = vunpack.c.l.b16 %v481
      %v626 = vunpack.c.l.b16 %v482
      %v627 = vunpack.c.l.b16 %v483
      %v628 = vunpack.c.l.b16 %v484
      %v629 = vunpack.c.l.b16 %v485
      %v630 = vunpack.c.l.b16 %v486
      %v631 = vunpack.c.l.b16 %v487
      %v632 = vunpack.c.l.b16 %v488
      %v633 = vunpack.c.l.b16 %v489
      %v634 = vunpack.c.l.b16 %v490
      %v635 = vunpack.c.l.b16 %v491
      %v636 = vunpack.c.l.b16 %v492
      %v637 = vunpack.c.l.b16 %v493
      %v638 = vunpack.c.l.b16 %v494
      %v639 = vunpack.c.l.b16 %v495
      %v640 = vunpack.c.l.b16 %v496
      %v641 = vpack.c.b16 %v578, %v577
      %v642 = vpack.c.b16 %v580, %v579
      %v643 = vpack.c.b16 %v582, %v581
      %v644 = vpack.c.b16 %v584, %v583
      %v645 = vpack.c.b16 %v586, %v585
      %v646 = vpack.c.b16 %v588, %v587
      %v647 = vpack.c.b16 %v590, %v589
      %v648 = vpack.c.b16 %v592, %v591
      %v649 = vpack.c.b16 %v594, %v593
      %v650 = vpack.c.b16 %v596, %v595
      %v651 = vpack.c.b16 %v598, %v597
      %v652 = vpack.c.b16 %v600, %v599
      %v653 = vpack.c.b16 %v602, %v601
      %v654 = vpack.c.b16 %v604, %v603
      %v655 = vpack.c.b16 %v606, %v605
      %v656 = vpack.c.b16 %v608, %v607
      %v657 = vpack.c.b16 %v610, %v609
      %v658 = vpack.c.b16 %v612, %v611
      %v659 = vpack.c.b16 %v614, %v613
      %v660 = vpack.c.b16 %v616, %v615
      %v661 = vpack.c.b16 %v618, %v617
      %v662 = vpack.c.b16 %v620, %v619
      %v663 = vpack.c.b16 %v622, %v621
      %v664 = vpack.c.b16 %v624, %v623
      %v665 = vpack.c.b16 %v626, %v625
      %v666 = vpack.c.b16 %v628, %v627
      %v667 = vpack.c.b16 %v630, %v629
      %v668 = vpack.c.b16 %v632, %v631
      %v669 = vpack.c.b16 %v634, %v633
      %v670 = vpack.c.b16 %v636, %v635
      %v671 = vpack.c.b16 %v638, %v637
      %v672 = vpack.c.b16 %v640, %v639
      %v721 = vunpack.c.l.b16 %v497
      %v722 = vunpack.c.l.b16 %v498
      %v723 = vunpack.c.l.b16 %v499
      %v724 = vunpack.c.l.b16 %v500
      %v725 = vunpack.c.l.b16 %v501
      %v726 = vunpack.c.l.b16 %v502
      %v727 = vunpack.c.l.b16 %v503
      %v728 = vunpack.c.l.b16 %v504
      %v729 = vunpack.c.l.b16 %v505
      %v730 = vunpack.c.l.b16 %v506
      %v731 = vunpack.c.l.b16 %v507
      %v732 = vunpack.c.l.b16 %v508
      %v733 = vunpack.c.l.b16 %v509
      %v734 = vunpack.c.l.b16 %v510
      %v735 = vunpack.c.l.b16 %v511
      %v736 = vunpack.c.l.b16 %v512
      %v737 = vpack.c.b16 %v722, %v721
      %v738 = vpack.c.b16 %v724, %v723
      %v739 = vpack.c.b16 %v726, %v725
      %v740 = vpack.c.b16 %v728, %v727
      %v741 = vpack.c.b16 %v730, %v729
      %v742 = vpack.c.b16 %v732, %v731
      %v743 = vpack.c.b16 %v734, %v733
      %v744 = vpack.c.b16 %v736, %v735
      %753 = vmatprep.subr.bf16.mxu0 0
      %754 = vmatpush1.bf16.msra.mxu0 %v744
      %755 = vmatprep.subr.bf16.mxu0 0
      %756 = vmatpush1.bf16.msra.mxu0 %v743
      %757 = vmatprep.subr.bf16.mxu0 0
      %758 = vmatpush1.bf16.msra.mxu0 %v742
      %759 = vmatprep.subr.bf16.mxu0 0
      %760 = vmatpush1.bf16.msra.mxu0 %v741
      %761 = vmatprep.subr.bf16.mxu0 0
      %762 = vmatpush1.bf16.msra.mxu0 %v740
      %763 = vmatprep.subr.bf16.mxu0 0
      %764 = vmatpush1.bf16.msra.mxu0 %v739
      %765 = vmatprep.subr.bf16.mxu0 0
      %766 = vmatpush1.bf16.msra.mxu0 %v738
      %767 = vmatprep.subr.bf16.mxu0 0
      %768 = vmatpush1.bf16.msra.mxu0 %v737
      %769 = vmatprep.subr.bf16.mxu0 0
      %770 = vmatpush2.bf16.msra.mxu0 0
      %771 = vmatprep.subr.bf16.mxu0 0
      %772 = vmatpush2.bf16.msra.mxu0 0
      %773 = vmatprep.subr.bf16.mxu0 0
      %774 = vmatpush2.bf16.msra.mxu0 0
      %775 = vmatprep.subr.bf16.mxu0 0
      %776 = vmatpush2.bf16.msra.mxu0 0
      %777 = vmatprep.subr.bf16.mxu0 0
      %778 = vmatpush2.bf16.msra.mxu0 0
      %779 = vmatprep.subr.bf16.mxu0 0
      %780 = vmatpush2.bf16.msra.mxu0 0
      %781 = vmatprep.subr.bf16.mxu0 0
      %782 = vmatpush2.bf16.msra.mxu0 0
      %783 = vmatprep.subr.bf16.mxu0 0
      %784 = vmatpush2.bf16.msra.mxu0 0
      %785 = vmatprep.mubr.bf16.mxu0 0
      %786 = vmatmul.mubr.bf16.gmra.mxu0 %v641
      %v787 = vpop.f32.mrf.mxu0
      %v788 = vadd.f32 0.0, %v787
      %v789 = vpop.f32.mrf.mxu0
      %v790 = vpop.f32.mrf.mxu0
      %v791 = vadd.f32 0.0, %v790
      %v792 = vpop.f32.mrf.mxu0
      %793 = vmatprep.mubr.bf16.mxu0 0
      %794 = vmatmul.mubr.bf16.gmra.mxu0 %v642
      %v795 = vpop.f32.mrf.mxu0
      %v796 = vadd.f32 0.0, %v795
      %v797 = vpop.f32.mrf.mxu0
      %v798 = vpop.f32.mrf.mxu0
      %v799 = vadd.f32 0.0, %v798
      %v800 = vpop.f32.mrf.mxu0
      %801 = vmatprep.mubr.bf16.mxu0 0
      %802 = vmatmul.mubr.bf16.gmra.mxu0 %v643
      %v803 = vpop.f32.mrf.mxu0
      %v804 = vadd.f32 0.0, %v803
      %v805 = vpop.f32.mrf.mxu0
      %v806 = vpop.f32.mrf.mxu0
      %v807 = vadd.f32 0.0, %v806
      %v808 = vpop.f32.mrf.mxu0
      %809 = vmatprep.mubr.bf16.mxu0 0
      %810 = vmatmul.mubr.bf16.gmra.mxu0 %v644
      %v811 = vpop.f32.mrf.mxu0
      %v812 = vadd.f32 0.0, %v811
      %v813 = vpop.f32.mrf.mxu0
      %v814 = vpop.f32.mrf.mxu0
      %v815 = vadd.f32 0.0, %v814
      %v816 = vpop.f32.mrf.mxu0
      %817 = vmatprep.mubr.bf16.mxu0 0
      %818 = vmatmul.mubr.bf16.gmra.mxu0 %v645
      %v819 = vpop.f32.mrf.mxu0
      %v820 = vadd.f32 0.0, %v819
      %v821 = vpop.f32.mrf.mxu0
      %v822 = vpop.f32.mrf.mxu0
      %v823 = vadd.f32 0.0, %v822
      %v824 = vpop.f32.mrf.mxu0
      %825 = vmatprep.mubr.bf16.mxu0 0
      %826 = vmatmul.mubr.bf16.gmra.mxu0 %v646
      %v827 = vpop.f32.mrf.mxu0
      %v828 = vadd.f32 0.0, %v827
      %v829 = vpop.f32.mrf.mxu0
      %v830 = vpop.f32.mrf.mxu0
      %v831 = vadd.f32 0.0, %v830
      %v832 = vpop.f32.mrf.mxu0
      %833 = vmatprep.mubr.bf16.mxu0 0
      %834 = vmatmul.mubr.bf16.gmra.mxu0 %v647
      %v835 = vpop.f32.mrf.mxu0
      %v836 = vadd.f32 0.0, %v835
      %v837 = vpop.f32.mrf.mxu0
      %v838 = vpop.f32.mrf.mxu0
      %v839 = vadd.f32 0.0, %v838
      %v840 = vpop.f32.mrf.mxu0
      %841 = vmatprep.mubr.bf16.mxu0 0
      %842 = vmatmul.mubr.bf16.gmra.mxu0 %v648
      %v843 = vpop.f32.mrf.mxu0
      %v844 = vadd.f32 0.0, %v843
      %v845 = vpop.f32.mrf.mxu0
      %v846 = vpop.f32.mrf.mxu0
      %v847 = vadd.f32 0.0, %v846
      %v848 = vpop.f32.mrf.mxu0
      %849 = vmatprep.mubr.bf16.mxu0 0
      %850 = vmatmul.mubr.bf16.gmra.mxu0 %v649
      %v851 = vpop.f32.mrf.mxu0
      %v852 = vadd.f32 0.0, %v851
      %v853 = vpop.f32.mrf.mxu0
      %v854 = vpop.f32.mrf.mxu0
      %v855 = vadd.f32 0.0, %v854
      %v856 = vpop.f32.mrf.mxu0
      %857 = vmatprep.mubr.bf16.mxu0 0
      %858 = vmatmul.mubr.bf16.gmra.mxu0 %v650
      %v859 = vpop.f32.mrf.mxu0
      %v860 = vadd.f32 0.0, %v859
      %v861 = vpop.f32.mrf.mxu0
      %v862 = vpop.f32.mrf.mxu0
      %v863 = vadd.f32 0.0, %v862
      %v864 = vpop.f32.mrf.mxu0
      %865 = vmatprep.mubr.bf16.mxu0 0
      %866 = vmatmul.mubr.bf16.gmra.mxu0 %v651
      %v867 = vpop.f32.mrf.mxu0
      %v868 = vadd.f32 0.0, %v867
      %v869 = vpop.f32.mrf.mxu0
      %v870 = vpop.f32.mrf.mxu0
      %v871 = vadd.f32 0.0, %v870
      %v872 = vpop.f32.mrf.mxu0
      %873 = vmatprep.mubr.bf16.mxu0 0
      %874 = vmatmul.mubr.bf16.gmra.mxu0 %v652
      %v875 = vpop.f32.mrf.mxu0
      %v876 = vadd.f32 0.0, %v875
      %v877 = vpop.f32.mrf.mxu0
      %v878 = vpop.f32.mrf.mxu0
      %v879 = vadd.f32 0.0, %v878
      %v880 = vpop.f32.mrf.mxu0
      %881 = vmatprep.mubr.bf16.mxu0 0
      %882 = vmatmul.mubr.bf16.gmra.mxu0 %v653
      %v883 = vpop.f32.mrf.mxu0
      %v884 = vadd.f32 0.0, %v883
      %v885 = vpop.f32.mrf.mxu0
      %v886 = vpop.f32.mrf.mxu0
      %v887 = vadd.f32 0.0, %v886
      %v888 = vpop.f32.mrf.mxu0
      %889 = vmatprep.mubr.bf16.mxu0 0
      %890 = vmatmul.mubr.bf16.gmra.mxu0 %v654
      %v891 = vpop.f32.mrf.mxu0
      %v892 = vadd.f32 0.0, %v891
      %v893 = vpop.f32.mrf.mxu0
      %v894 = vpop.f32.mrf.mxu0
      %v895 = vadd.f32 0.0, %v894
      %v896 = vpop.f32.mrf.mxu0
      %897 = vmatprep.mubr.bf16.mxu0 0
      %898 = vmatmul.mubr.bf16.gmra.mxu0 %v655
      %v899 = vpop.f32.mrf.mxu0
      %v900 = vadd.f32 0.0, %v899
      %v901 = vpop.f32.mrf.mxu0
      %v902 = vpop.f32.mrf.mxu0
      %v903 = vadd.f32 0.0, %v902
      %v904 = vpop.f32.mrf.mxu0
      %905 = vmatprep.mubr.bf16.mxu0 0
      %906 = vmatmul.mubr.bf16.gmra.mxu0 %v656
      %v907 = vpop.f32.mrf.mxu0
      %v908 = vadd.f32 0.0, %v907
      %v909 = vpop.f32.mrf.mxu0
      %v910 = vpop.f32.mrf.mxu0
      %v911 = vadd.f32 0.0, %v910
      %v912 = vpop.f32.mrf.mxu0
      %913 = vmatprep.mubr.bf16.mxu0 0
      %914 = vmatmul.mubr.bf16.gmra.mxu0 %v657
      %v915 = vpop.f32.mrf.mxu0
      %v916 = vadd.f32 0.0, %v915
      %v917 = vpop.f32.mrf.mxu0
      %v918 = vpop.f32.mrf.mxu0
      %v919 = vadd.f32 0.0, %v918
      %v920 = vpop.f32.mrf.mxu0
      %921 = vmatprep.mubr.bf16.mxu0 0
      %922 = vmatmul.mubr.bf16.gmra.mxu0 %v658
      %v923 = vpop.f32.mrf.mxu0
      %v924 = vadd.f32 0.0, %v923
      %v925 = vpop.f32.mrf.mxu0
      %v926 = vpop.f32.mrf.mxu0
      %v927 = vadd.f32 0.0, %v926
      %v928 = vpop.f32.mrf.mxu0
      %929 = vmatprep.mubr.bf16.mxu0 0
      %930 = vmatmul.mubr.bf16.gmra.mxu0 %v659
      %v931 = vpop.f32.mrf.mxu0
      %v932 = vadd.f32 0.0, %v931
      %v933 = vpop.f32.mrf.mxu0
      %v934 = vpop.f32.mrf.mxu0
      %v935 = vadd.f32 0.0, %v934
      %v936 = vpop.f32.mrf.mxu0
      %937 = vmatprep.mubr.bf16.mxu0 0
      %938 = vmatmul.mubr.bf16.gmra.mxu0 %v660
      %v939 = vpop.f32.mrf.mxu0
      %v940 = vadd.f32 0.0, %v939
      %v941 = vpop.f32.mrf.mxu0
      %v942 = vpop.f32.mrf.mxu0
      %v943 = vadd.f32 0.0, %v942
      %v944 = vpop.f32.mrf.mxu0
      %945 = vmatprep.mubr.bf16.mxu0 0
      %946 = vmatmul.mubr.bf16.gmra.mxu0 %v661
      %v947 = vpop.f32.mrf.mxu0
      %v948 = vadd.f32 0.0, %v947
      %v949 = vpop.f32.mrf.mxu0
      %v950 = vpop.f32.mrf.mxu0
      %v951 = vadd.f32 0.0, %v950
      %v952 = vpop.f32.mrf.mxu0
      %953 = vmatprep.mubr.bf16.mxu0 0
      %954 = vmatmul.mubr.bf16.gmra.mxu0 %v662
      %v955 = vpop.f32.mrf.mxu0
      %v956 = vadd.f32 0.0, %v955
      %v957 = vpop.f32.mrf.mxu0
      %v958 = vpop.f32.mrf.mxu0
      %v959 = vadd.f32 0.0, %v958
      %v960 = vpop.f32.mrf.mxu0
      %961 = vmatprep.mubr.bf16.mxu0 0
      %962 = vmatmul.mubr.bf16.gmra.mxu0 %v663
      %v963 = vpop.f32.mrf.mxu0
      %v964 = vadd.f32 0.0, %v963
      %v965 = vpop.f32.mrf.mxu0
      %v966 = vpop.f32.mrf.mxu0
      %v967 = vadd.f32 0.0, %v966
      %v968 = vpop.f32.mrf.mxu0
      %969 = vmatprep.mubr.bf16.mxu0 0
      %970 = vmatmul.mubr.bf16.gmra.mxu0 %v664
      %v971 = vpop.f32.mrf.mxu0
      %v972 = vadd.f32 0.0, %v971
      %v973 = vpop.f32.mrf.mxu0
      %v974 = vpop.f32.mrf.mxu0
      %v975 = vadd.f32 0.0, %v974
      %v976 = vpop.f32.mrf.mxu0
      %977 = vmatprep.mubr.bf16.mxu0 0
      %978 = vmatmul.mubr.bf16.gmra.mxu0 %v665
      %v979 = vpop.f32.mrf.mxu0
      %v980 = vadd.f32 0.0, %v979
      %v981 = vpop.f32.mrf.mxu0
      %v982 = vpop.f32.mrf.mxu0
      %v983 = vadd.f32 0.0, %v982
      %v984 = vpop.f32.mrf.mxu0
      %985 = vmatprep.mubr.bf16.mxu0 0
      %986 = vmatmul.mubr.bf16.gmra.mxu0 %v666
      %v987 = vpop.f32.mrf.mxu0
      %v988 = vadd.f32 0.0, %v987
      %v989 = vpop.f32.mrf.mxu0
      %v990 = vpop.f32.mrf.mxu0
      %v991 = vadd.f32 0.0, %v990
      %v992 = vpop.f32.mrf.mxu0
      %993 = vmatprep.mubr.bf16.mxu0 0
      %994 = vmatmul.mubr.bf16.gmra.mxu0 %v667
      %v995 = vpop.f32.mrf.mxu0
      %v996 = vadd.f32 0.0, %v995
      %v997 = vpop.f32.mrf.mxu0
      %v998 = vpop.f32.mrf.mxu0
      %v999 = vadd.f32 0.0, %v998
      %v1000 = vpop.f32.mrf.mxu0
      %1001 = vmatprep.mubr.bf16.mxu0 0
      %1002 = vmatmul.mubr.bf16.gmra.mxu0 %v668
      %v1003 = vpop.f32.mrf.mxu0
      %v1004 = vadd.f32 0.0, %v1003
      %v1005 = vpop.f32.mrf.mxu0
      %v1006 = vpop.f32.mrf.mxu0
      %v1007 = vadd.f32 0.0, %v1006
      %v1008 = vpop.f32.mrf.mxu0
      %1009 = vmatprep.mubr.bf16.mxu0 0
      %1010 = vmatmul.mubr.bf16.gmra.mxu0 %v669
      %v1011 = vpop.f32.mrf.mxu0
      %v1012 = vadd.f32 0.0, %v1011
      %v1013 = vpop.f32.mrf.mxu0
      %v1014 = vpop.f32.mrf.mxu0
      %v1015 = vadd.f32 0.0, %v1014
      %v1016 = vpop.f32.mrf.mxu0
      %1017 = vmatprep.mubr.bf16.mxu0 0
      %1018 = vmatmul.mubr.bf16.gmra.mxu0 %v670
      %v1019 = vpop.f32.mrf.mxu0
      %v1020 = vadd.f32 0.0, %v1019
      %v1021 = vpop.f32.mrf.mxu0
      %v1022 = vpop.f32.mrf.mxu0
      %v1023 = vadd.f32 0.0, %v1022
      %v1024 = vpop.f32.mrf.mxu0
      %1025 = vmatprep.mubr.bf16.mxu0 0
      %1026 = vmatmul.mubr.bf16.gmra.mxu0 %v671
      %v1027 = vpop.f32.mrf.mxu0
      %v1028 = vadd.f32 0.0, %v1027
      %v1029 = vpop.f32.mrf.mxu0
      %v1030 = vpop.f32.mrf.mxu0
      %v1031 = vadd.f32 0.0, %v1030
      %v1032 = vpop.f32.mrf.mxu0
      %1033 = vmatprep.mubr.bf16.mxu0 0
      %1034 = vmatmul.mubr.bf16.gmra.mxu0 %v672
      %v1035 = vpop.f32.mrf.mxu0
      %v1036 = vadd.f32 0.0, %v1035
      %v1037 = vpop.f32.mrf.mxu0
      %v1038 = vpop.f32.mrf.mxu0
      %v1039 = vadd.f32 0.0, %v1038
      %v1040 = vpop.f32.mrf.mxu0
      %1041 = vdwg.mxu0
      %v1042 = vadd.f32 %v369, %v788
      %v1043 = vadd.f32 %v370, %v791
      %v1044 = vadd.f32 %v371, %v796
      %v1045 = vadd.f32 %v372, %v799
      %v1046 = vadd.f32 %v373, %v804
      %v1047 = vadd.f32 %v374, %v807
      %v1048 = vadd.f32 %v375, %v812
      %v1049 = vadd.f32 %v376, %v815
      %v1050 = vadd.f32 %v377, %v820
      %v1051 = vadd.f32 %v378, %v823
      %v1052 = vadd.f32 %v379, %v828
      %v1053 = vadd.f32 %v380, %v831
      %v1054 = vadd.f32 %v381, %v836
      %v1055 = vadd.f32 %v382, %v839
      %v1056 = vadd.f32 %v383, %v844
      %v1057 = vadd.f32 %v384, %v847
      %v1058 = vadd.f32 %v385, %v852
      %v1059 = vadd.f32 %v386, %v855
      %v1060 = vadd.f32 %v387, %v860
      %v1061 = vadd.f32 %v388, %v863
      %v1062 = vadd.f32 %v389, %v868
      %v1063 = vadd.f32 %v390, %v871
      %v1064 = vadd.f32 %v391, %v876
      %v1065 = vadd.f32 %v392, %v879
      %v1066 = vadd.f32 %v393, %v884
      %v1067 = vadd.f32 %v394, %v887
      %v1068 = vadd.f32 %v395, %v892
      %v1069 = vadd.f32 %v396, %v895
      %v1070 = vadd.f32 %v397, %v900
      %v1071 = vadd.f32 %v398, %v903
      %v1072 = vadd.f32 %v399, %v908
      %v1073 = vadd.f32 %v400, %v911
      %v1074 = vadd.f32 %v401, %v916
      %v1075 = vadd.f32 %v402, %v919
      %v1076 = vadd.f32 %v403, %v924
      %v1077 = vadd.f32 %v404, %v927
      %v1078 = vadd.f32 %v405, %v932
      %v1079 = vadd.f32 %v406, %v935
      %v1080 = vadd.f32 %v407, %v940
      %v1081 = vadd.f32 %v408, %v943
      %v1082 = vadd.f32 %v409, %v948
      %v1083 = vadd.f32 %v410, %v951
      %v1084 = vadd.f32 %v411, %v956
      %v1085 = vadd.f32 %v412, %v959
      %v1086 = vadd.f32 %v413, %v964
      %v1087 = vadd.f32 %v414, %v967
      %v1088 = vadd.f32 %v415, %v972
      %v1089 = vadd.f32 %v416, %v975
      %v1090 = vadd.f32 %v417, %v980
      %v1091 = vadd.f32 %v418, %v983
      %v1092 = vadd.f32 %v419, %v988
      %v1093 = vadd.f32 %v420, %v991
      %v1094 = vadd.f32 %v421, %v996
      %v1095 = vadd.f32 %v422, %v999
      %v1096 = vadd.f32 %v423, %v1004
      %v1097 = vadd.f32 %v424, %v1007
      %v1098 = vadd.f32 %v425, %v1012
      %v1099 = vadd.f32 %v426, %v1015
      %v1100 = vadd.f32 %v427, %v1020
      %v1101 = vadd.f32 %v428, %v1023
      %v1102 = vadd.f32 %v429, %v1028
      %v1103 = vadd.f32 %v430, %v1031
      %v1104 = vadd.f32 %v431, %v1036
      %v1105 = vadd.f32 %v432, %v1039
      %1106 = vst [vmem:[#allocation2] sm:$0xff] %v1042
      %1107 = vst [vmem:[#allocation2 + $0x8] sm:$0xff] %v1043
      %1108 = vst [vmem:[#allocation2 + $0x10] sm:$0xff] %v1044
      %1109 = vst [vmem:[#allocation2 + $0x18] sm:$0xff] %v1045
      %1110 = vst [vmem:[#allocation2 + $0x20] sm:$0xff] %v1046
      %1111 = vst [vmem:[#allocation2 + $0x28] sm:$0xff] %v1047
      %1112 = vst [vmem:[#allocation2 + $0x30] sm:$0xff] %v1048
      %1113 = vst [vmem:[#allocation2 + $0x38] sm:$0xff] %v1049
      %1114 = vst [vmem:[#allocation2 + $0x40] sm:$0xff] %v1050
      %1115 = vst [vmem:[#allocation2 + $0x48] sm:$0xff] %v1051
      %1116 = vst [vmem:[#allocation2 + $0x50] sm:$0xff] %v1052
      %1117 = vst [vmem:[#allocation2 + $0x58] sm:$0xff] %v1053
      %1118 = vst [vmem:[#allocation2 + $0x60] sm:$0xff] %v1054
      %1119 = vst [vmem:[#allocation2 + $0x68] sm:$0xff] %v1055
      %1120 = vst [vmem:[#allocation2 + $0x70] sm:$0xff] %v1056
      %1121 = vst [vmem:[#allocation2 + $0x78] sm:$0xff] %v1057
      %1122 = vst [vmem:[#allocation2 + $0x80] sm:$0xff] %v1058
      %1123 = vst [vmem:[#allocation2 + $0x88] sm:$0xff] %v1059
      %1124 = vst [vmem:[#allocation2 + $0x90] sm:$0xff] %v1060
      %1125 = vst [vmem:[#allocation2 + $0x98] sm:$0xff] %v1061
      %1126 = vst [vmem:[#allocation2 + $0xa0] sm:$0xff] %v1062
      %1127 = vst [vmem:[#allocation2 + $0xa8] sm:$0xff] %v1063
      %1128 = vst [vmem:[#allocation2 + $0xb0] sm:$0xff] %v1064
      %1129 = vst [vmem:[#allocation2 + $0xb8] sm:$0xff] %v1065
      %1130 = vst [vmem:[#allocation2 + $0xc0] sm:$0xff] %v1066
      %1131 = vst [vmem:[#allocation2 + $0xc8] sm:$0xff] %v1067
      %1132 = vst [vmem:[#allocation2 + $0xd0] sm:$0xff] %v1068
      %1133 = vst [vmem:[#allocation2 + $0xd8] sm:$0xff] %v1069
      %1134 = vst [vmem:[#allocation2 + $0xe0] sm:$0xff] %v1070
      %1135 = vst [vmem:[#allocation2 + $0xe8] sm:$0xff] %v1071
      %1136 = vst [vmem:[#allocation2 + $0xf0] sm:$0xff] %v1072
      %1137 = vst [vmem:[#allocation2 + $0xf8] sm:$0xff] %v1073
      %1138 = vst [vmem:[#allocation2 + $0x100] sm:$0xff] %v1074
      %1139 = vst [vmem:[#allocation2 + $0x108] sm:$0xff] %v1075
      %1140 = vst [vmem:[#allocation2 + $0x110] sm:$0xff] %v1076
      %1141 = vst [vmem:[#allocation2 + $0x118] sm:$0xff] %v1077
      %1142 = vst [vmem:[#allocation2 + $0x120] sm:$0xff] %v1078
      %1143 = vst [vmem:[#allocation2 + $0x128] sm:$0xff] %v1079
      %1144 = vst [vmem:[#allocation2 + $0x130] sm:$0xff] %v1080
      %1145 = vst [vmem:[#allocation2 + $0x138] sm:$0xff] %v1081
      %1146 = vst [vmem:[#allocation2 + $0x140] sm:$0xff] %v1082
      %1147 = vst [vmem:[#allocation2 + $0x148] sm:$0xff] %v1083
      %1148 = vst [vmem:[#allocation2 + $0x150] sm:$0xff] %v1084
      %1149 = vst [vmem:[#allocation2 + $0x158] sm:$0xff] %v1085
      %1150 = vst [vmem:[#allocation2 + $0x160] sm:$0xff] %v1086
      %1151 = vst [vmem:[#allocation2 + $0x168] sm:$0xff] %v1087
      %1152 = vst [vmem:[#allocation2 + $0x170] sm:$0xff] %v1088
      %1153 = vst [vmem:[#allocation2 + $0x178] sm:$0xff] %v1089
      %1154 = vst [vmem:[#allocation2 + $0x180] sm:$0xff] %v1090
      %1155 = vst [vmem:[#allocation2 + $0x188] sm:$0xff] %v1091
      %1156 = vst [vmem:[#allocation2 + $0x190] sm:$0xff] %v1092
      %1157 = vst [vmem:[#allocation2 + $0x198] sm:$0xff] %v1093
      %1158 = vst [vmem:[#allocation2 + $0x1a0] sm:$0xff] %v1094
      %1159 = vst [vmem:[#allocation2 + $0x1a8] sm:$0xff] %v1095
      %1160 = vst [vmem:[#allocation2 + $0x1b0] sm:$0xff] %v1096
      %1161 = vst [vmem:[#allocation2 + $0x1b8] sm:$0xff] %v1097
      %1162 = vst [vmem:[#allocation2 + $0x1c0] sm:$0xff] %v1098
      %1163 = vst [vmem:[#allocation2 + $0x1c8] sm:$0xff] %v1099
      %1164 = vst [vmem:[#allocation2 + $0x1d0] sm:$0xff] %v1100
      %1165 = vst [vmem:[#allocation2 + $0x1d8] sm:$0xff] %v1101
      %1166 = vst [vmem:[#allocation2 + $0x1e0] sm:$0xff] %v1102
      %1167 = vst [vmem:[#allocation2 + $0x1e8] sm:$0xff] %v1103
      %1168 = vst [vmem:[#allocation2 + $0x1f0] sm:$0xff] %v1104
      %1169 = vst [vmem:[#allocation2 + $0x1f8] sm:$0xff] %v1105
      // Predicated region
      $region41: #{decoder_forward.117} parent=35 // pred_check
        %p1170 = pneg %p301
      $region42: #{decoder_forward.117} parent=35 // pred_check_branch
        %1172 = sbr.rel (%p1170) target = $region44
      $region43: #{decoder_forward.117} parent=35 // pred_region
        %v1173 = vld [vmem:[#allocation2] sm:$0xff]
        %v1174 = vld [vmem:[#allocation2 + $0x8] sm:$0xff]
        %v1175 = vld [vmem:[#allocation2 + $0x10] sm:$0xff]
        %v1176 = vld [vmem:[#allocation2 + $0x18] sm:$0xff]
        %v1177 = vld [vmem:[#allocation2 + $0x20] sm:$0xff]
        %v1178 = vld [vmem:[#allocation2 + $0x28] sm:$0xff]
        %v1179 = vld [vmem:[#allocation2 + $0x30] sm:$0xff]
        %v1180 = vld [vmem:[#allocation2 + $0x38] sm:$0xff]
        %v1181 = vld [vmem:[#allocation2 + $0x40] sm:$0xff]
        %v1182 = vld [vmem:[#allocation2 + $0x48] sm:$0xff]
        %v1183 = vld [vmem:[#allocation2 + $0x50] sm:$0xff]
        %v1184 = vld [vmem:[#allocation2 + $0x58] sm:$0xff]
        %v1185 = vld [vmem:[#allocation2 + $0x60] sm:$0xff]
        %v1186 = vld [vmem:[#allocation2 + $0x68] sm:$0xff]
        %v1187 = vld [vmem:[#allocation2 + $0x70] sm:$0xff]
        %v1188 = vld [vmem:[#allocation2 + $0x78] sm:$0xff]
        %v1189 = vld [vmem:[#allocation2 + $0x80] sm:$0xff]
        %v1190 = vld [vmem:[#allocation2 + $0x88] sm:$0xff]
        %v1191 = vld [vmem:[#allocation2 + $0x90] sm:$0xff]
        %v1192 = vld [vmem:[#allocation2 + $0x98] sm:$0xff]
        %v1193 = vld [vmem:[#allocation2 + $0xa0] sm:$0xff]
        %v1194 = vld [vmem:[#allocation2 + $0xa8] sm:$0xff]
        %v1195 = vld [vmem:[#allocation2 + $0xb0] sm:$0xff]
        %v1196 = vld [vmem:[#allocation2 + $0xb8] sm:$0xff]
        %v1197 = vld [vmem:[#allocation2 + $0xc0] sm:$0xff]
        %v1198 = vld [vmem:[#allocation2 + $0xc8] sm:$0xff]
        %v1199 = vld [vmem:[#allocation2 + $0xd0] sm:$0xff]
        %v1200 = vld [vmem:[#allocation2 + $0xd8] sm:$0xff]
        %v1201 = vld [vmem:[#allocation2 + $0xe0] sm:$0xff]
        %v1202 = vld [vmem:[#allocation2 + $0xe8] sm:$0xff]
        %v1203 = vld [vmem:[#allocation2 + $0xf0] sm:$0xff]
        %v1204 = vld [vmem:[#allocation2 + $0xf8] sm:$0xff]
        %v1205 = vld [vmem:[#allocation2 + $0x100] sm:$0xff]
        %v1206 = vld [vmem:[#allocation2 + $0x108] sm:$0xff]
        %v1207 = vld [vmem:[#allocation2 + $0x110] sm:$0xff]
        %v1208 = vld [vmem:[#allocation2 + $0x118] sm:$0xff]
        %v1209 = vld [vmem:[#allocation2 + $0x120] sm:$0xff]
        %v1210 = vld [vmem:[#allocation2 + $0x128] sm:$0xff]
        %v1211 = vld [vmem:[#allocation2 + $0x130] sm:$0xff]
        %v1212 = vld [vmem:[#allocation2 + $0x138] sm:$0xff]
        %v1213 = vld [vmem:[#allocation2 + $0x140] sm:$0xff]
        %v1214 = vld [vmem:[#allocation2 + $0x148] sm:$0xff]
        %v1215 = vld [vmem:[#allocation2 + $0x150] sm:$0xff]
        %v1216 = vld [vmem:[#allocation2 + $0x158] sm:$0xff]
        %v1217 = vld [vmem:[#allocation2 + $0x160] sm:$0xff]
        %v1218 = vld [vmem:[#allocation2 + $0x168] sm:$0xff]
        %v1219 = vld [vmem:[#allocation2 + $0x170] sm:$0xff]
        %v1220 = vld [vmem:[#allocation2 + $0x178] sm:$0xff]
        %v1221 = vld [vmem:[#allocation2 + $0x180] sm:$0xff]
        %v1222 = vld [vmem:[#allocation2 + $0x188] sm:$0xff]
        %v1223 = vld [vmem:[#allocation2 + $0x190] sm:$0xff]
        %v1224 = vld [vmem:[#allocation2 + $0x198] sm:$0xff]
        %v1225 = vld [vmem:[#allocation2 + $0x1a0] sm:$0xff]
        %v1226 = vld [vmem:[#allocation2 + $0x1a8] sm:$0xff]
        %v1227 = vld [vmem:[#allocation2 + $0x1b0] sm:$0xff]
        %v1228 = vld [vmem:[#allocation2 + $0x1b8] sm:$0xff]
        %v1229 = vld [vmem:[#allocation2 + $0x1c0] sm:$0xff]
        %v1230 = vld [vmem:[#allocation2 + $0x1c8] sm:$0xff]
        %v1231 = vld [vmem:[#allocation2 + $0x1d0] sm:$0xff]
        %v1232 = vld [vmem:[#allocation2 + $0x1d8] sm:$0xff]
        %v1233 = vld [vmem:[#allocation2 + $0x1e0] sm:$0xff]
        %v1234 = vld [vmem:[#allocation2 + $0x1e8] sm:$0xff]
        %v1235 = vld [vmem:[#allocation2 + $0x1f0] sm:$0xff]
        %v1236 = vld [vmem:[#allocation2 + $0x1f8] sm:$0xff]
        %v1237 = vld [vmem:[%s287] sm:$0x1]
        %v1239 = vlaneseq
        %v1240 = vshrl.u32 %v1239, 7
        %v1241 = vsub.s32 0, %v1240
        %v1242 = vrot.slane %v1237, %v1241
        %v1244 = vmul.f32 %v1173, %v1242
        %v1245 = vmul.f32 %v1174, %v1242
        %v1246 = vmul.f32 %v1175, %v1242
        %v1247 = vmul.f32 %v1176, %v1242
        %v1248 = vmul.f32 %v1177, %v1242
        %v1249 = vmul.f32 %v1178, %v1242
        %v1250 = vmul.f32 %v1179, %v1242
        %v1251 = vmul.f32 %v1180, %v1242
        %v1252 = vmul.f32 %v1181, %v1242
        %v1253 = vmul.f32 %v1182, %v1242
        %v1254 = vmul.f32 %v1183, %v1242
        %v1255 = vmul.f32 %v1184, %v1242
        %v1256 = vmul.f32 %v1185, %v1242
        %v1257 = vmul.f32 %v1186, %v1242
        %v1258 = vmul.f32 %v1187, %v1242
        %v1259 = vmul.f32 %v1188, %v1242
        %v1260 = vmul.f32 %v1189, %v1242
        %v1261 = vmul.f32 %v1190, %v1242
        %v1262 = vmul.f32 %v1191, %v1242
        %v1263 = vmul.f32 %v1192, %v1242
        %v1264 = vmul.f32 %v1193, %v1242
        %v1265 = vmul.f32 %v1194, %v1242
        %v1266 = vmul.f32 %v1195, %v1242
        %v1267 = vmul.f32 %v1196, %v1242
        %v1268 = vmul.f32 %v1197, %v1242
        %v1269 = vmul.f32 %v1198, %v1242
        %v1270 = vmul.f32 %v1199, %v1242
        %v1271 = vmul.f32 %v1200, %v1242
        %v1272 = vmul.f32 %v1201, %v1242
        %v1273 = vmul.f32 %v1202, %v1242
        %v1274 = vmul.f32 %v1203, %v1242
        %v1275 = vmul.f32 %v1204, %v1242
        %v1276 = vmul.f32 %v1205, %v1242
        %v1277 = vmul.f32 %v1206, %v1242
        %v1278 = vmul.f32 %v1207, %v1242
        %v1279 = vmul.f32 %v1208, %v1242
        %v1280 = vmul.f32 %v1209, %v1242
        %v1281 = vmul.f32 %v1210, %v1242
        %v1282 = vmul.f32 %v1211, %v1242
        %v1283 = vmul.f32 %v1212, %v1242
        %v1284 = vmul.f32 %v1213, %v1242
        %v1285 = vmul.f32 %v1214, %v1242
        %v1286 = vmul.f32 %v1215, %v1242
        %v1287 = vmul.f32 %v1216, %v1242
        %v1288 = vmul.f32 %v1217, %v1242
        %v1289 = vmul.f32 %v1218, %v1242
        %v1290 = vmul.f32 %v1219, %v1242
        %v1291 = vmul.f32 %v1220, %v1242
        %v1292 = vmul.f32 %v1221, %v1242
        %v1293 = vmul.f32 %v1222, %v1242
        %v1294 = vmul.f32 %v1223, %v1242
        %v1295 = vmul.f32 %v1224, %v1242
        %v1296 = vmul.f32 %v1225, %v1242
        %v1297 = vmul.f32 %v1226, %v1242
        %v1298 = vmul.f32 %v1227, %v1242
        %v1299 = vmul.f32 %v1228, %v1242
        %v1300 = vmul.f32 %v1229, %v1242
        %v1301 = vmul.f32 %v1230, %v1242
        %v1302 = vmul.f32 %v1231, %v1242
        %v1303 = vmul.f32 %v1232, %v1242
        %v1304 = vmul.f32 %v1233, %v1242
        %v1305 = vmul.f32 %v1234, %v1242
        %v1306 = vmul.f32 %v1235, %v1242
        %v1307 = vmul.f32 %v1236, %v1242
        %v1308 = vld [vmem:[%s290] sm:$0x1]
        %v1310 = vlaneseq
        %v1311 = vshrl.u32 %v1310, 7
        %v1312 = vsub.s32 0, %v1311
        %v1313 = vrot.slane %v1308, %v1312
        %v1315 = vadd.f32 %v1244, %v1313
        %v1316 = vadd.f32 %v1245, %v1313
        %v1317 = vadd.f32 %v1246, %v1313
        %v1318 = vadd.f32 %v1247, %v1313
        %v1319 = vadd.f32 %v1248, %v1313
        %v1320 = vadd.f32 %v1249, %v1313
        %v1321 = vadd.f32 %v1250, %v1313
        %v1322 = vadd.f32 %v1251, %v1313
        %v1323 = vadd.f32 %v1252, %v1313
        %v1324 = vadd.f32 %v1253, %v1313
        %v1325 = vadd.f32 %v1254, %v1313
        %v1326 = vadd.f32 %v1255, %v1313
        %v1327 = vadd.f32 %v1256, %v1313
        %v1328 = vadd.f32 %v1257, %v1313
        %v1329 = vadd.f32 %v1258, %v1313
        %v1330 = vadd.f32 %v1259, %v1313
        %v1331 = vadd.f32 %v1260, %v1313
        %v1332 = vadd.f32 %v1261, %v1313
        %v1333 = vadd.f32 %v1262, %v1313
        %v1334 = vadd.f32 %v1263, %v1313
        %v1335 = vadd.f32 %v1264, %v1313
        %v1336 = vadd.f32 %v1265, %v1313
        %v1337 = vadd.f32 %v1266, %v1313
        %v1338 = vadd.f32 %v1267, %v1313
        %v1339 = vadd.f32 %v1268, %v1313
        %v1340 = vadd.f32 %v1269, %v1313
        %v1341 = vadd.f32 %v1270, %v1313
        %v1342 = vadd.f32 %v1271, %v1313
        %v1343 = vadd.f32 %v1272, %v1313
        %v1344 = vadd.f32 %v1273, %v1313
        %v1345 = vadd.f32 %v1274, %v1313
        %v1346 = vadd.f32 %v1275, %v1313
        %v1347 = vadd.f32 %v1276, %v1313
        %v1348 = vadd.f32 %v1277, %v1313
        %v1349 = vadd.f32 %v1278, %v1313
        %v1350 = vadd.f32 %v1279, %v1313
        %v1351 = vadd.f32 %v1280, %v1313
        %v1352 = vadd.f32 %v1281, %v1313
        %v1353 = vadd.f32 %v1282, %v1313
        %v1354 = vadd.f32 %v1283, %v1313
        %v1355 = vadd.f32 %v1284, %v1313
        %v1356 = vadd.f32 %v1285, %v1313
        %v1357 = vadd.f32 %v1286, %v1313
        %v1358 = vadd.f32 %v1287, %v1313
        %v1359 = vadd.f32 %v1288, %v1313
        %v1360 = vadd.f32 %v1289, %v1313
        %v1361 = vadd.f32 %v1290, %v1313
        %v1362 = vadd.f32 %v1291, %v1313
        %v1363 = vadd.f32 %v1292, %v1313
        %v1364 = vadd.f32 %v1293, %v1313
        %v1365 = vadd.f32 %v1294, %v1313
        %v1366 = vadd.f32 %v1295, %v1313
        %v1367 = vadd.f32 %v1296, %v1313
        %v1368 = vadd.f32 %v1297, %v1313
        %v1369 = vadd.f32 %v1298, %v1313
        %v1370 = vadd.f32 %v1299, %v1313
        %v1371 = vadd.f32 %v1300, %v1313
        %v1372 = vadd.f32 %v1301, %v1313
        %v1373 = vadd.f32 %v1302, %v1313
        %v1374 = vadd.f32 %v1303, %v1313
        %v1375 = vadd.f32 %v1304, %v1313
        %v1376 = vadd.f32 %v1305, %v1313
        %v1377 = vadd.f32 %v1306, %v1313
        %v1378 = vadd.f32 %v1307, %v1313
        %v1379 = vmax.f32 %v1315, 0.0
        %v1380 = vmax.f32 %v1316, 0.0
        %v1381 = vmax.f32 %v1317, 0.0
        %v1382 = vmax.f32 %v1318, 0.0
        %v1383 = vmax.f32 %v1319, 0.0
        %v1384 = vmax.f32 %v1320, 0.0
        %v1385 = vmax.f32 %v1321, 0.0
        %v1386 = vmax.f32 %v1322, 0.0
        %v1387 = vmax.f32 %v1323, 0.0
        %v1388 = vmax.f32 %v1324, 0.0
        %v1389 = vmax.f32 %v1325, 0.0
        %v1390 = vmax.f32 %v1326, 0.0
        %v1391 = vmax.f32 %v1327, 0.0
        %v1392 = vmax.f32 %v1328, 0.0
        %v1393 = vmax.f32 %v1329, 0.0
        %v1394 = vmax.f32 %v1330, 0.0
        %v1395 = vmax.f32 %v1331, 0.0
        %v1396 = vmax.f32 %v1332, 0.0
        %v1397 = vmax.f32 %v1333, 0.0
        %v1398 = vmax.f32 %v1334, 0.0
        %v1399 = vmax.f32 %v1335, 0.0
        %v1400 = vmax.f32 %v1336, 0.0
        %v1401 = vmax.f32 %v1337, 0.0
        %v1402 = vmax.f32 %v1338, 0.0
        %v1403 = vmax.f32 %v1339, 0.0
        %v1404 = vmax.f32 %v1340, 0.0
        %v1405 = vmax.f32 %v1341, 0.0
        %v1406 = vmax.f32 %v1342, 0.0
        %v1407 = vmax.f32 %v1343, 0.0
        %v1408 = vmax.f32 %v1344, 0.0
        %v1409 = vmax.f32 %v1345, 0.0
        %v1410 = vmax.f32 %v1346, 0.0
        %v1411 = vmax.f32 %v1347, 0.0
        %v1412 = vmax.f32 %v1348, 0.0
        %v1413 = vmax.f32 %v1349, 0.0
        %v1414 = vmax.f32 %v1350, 0.0
        %v1415 = vmax.f32 %v1351, 0.0
        %v1416 = vmax.f32 %v1352, 0.0
        %v1417 = vmax.f32 %v1353, 0.0
        %v1418 = vmax.f32 %v1354, 0.0
        %v1419 = vmax.f32 %v1355, 0.0
        %v1420 = vmax.f32 %v1356, 0.0
        %v1421 = vmax.f32 %v1357, 0.0
        %v1422 = vmax.f32 %v1358, 0.0
        %v1423 = vmax.f32 %v1359, 0.0
        %v1424 = vmax.f32 %v1360, 0.0
        %v1425 = vmax.f32 %v1361, 0.0
        %v1426 = vmax.f32 %v1362, 0.0
        %v1427 = vmax.f32 %v1363, 0.0
        %v1428 = vmax.f32 %v1364, 0.0
        %v1429 = vmax.f32 %v1365, 0.0
        %v1430 = vmax.f32 %v1366, 0.0
        %v1431 = vmax.f32 %v1367, 0.0
        %v1432 = vmax.f32 %v1368, 0.0
        %v1433 = vmax.f32 %v1369, 0.0
        %v1434 = vmax.f32 %v1370, 0.0
        %v1435 = vmax.f32 %v1371, 0.0
        %v1436 = vmax.f32 %v1372, 0.0
        %v1437 = vmax.f32 %v1373, 0.0
        %v1438 = vmax.f32 %v1374, 0.0
        %v1439 = vmax.f32 %v1375, 0.0
        %v1440 = vmax.f32 %v1376, 0.0
        %v1441 = vmax.f32 %v1377, 0.0
        %v1442 = vmax.f32 %v1378, 0.0
        %v1443 = vpack.c.bf16 %v1380, %v1379
        %v1444 = vpack.c.bf16 %v1382, %v1381
        %v1445 = vpack.c.bf16 %v1384, %v1383
        %v1446 = vpack.c.bf16 %v1386, %v1385
        %v1447 = vpack.c.bf16 %v1388, %v1387
        %v1448 = vpack.c.bf16 %v1390, %v1389
        %v1449 = vpack.c.bf16 %v1392, %v1391
        %v1450 = vpack.c.bf16 %v1394, %v1393
        %v1451 = vpack.c.bf16 %v1396, %v1395
        %v1452 = vpack.c.bf16 %v1398, %v1397
        %v1453 = vpack.c.bf16 %v1400, %v1399
        %v1454 = vpack.c.bf16 %v1402, %v1401
        %v1455 = vpack.c.bf16 %v1404, %v1403
        %v1456 = vpack.c.bf16 %v1406, %v1405
        %v1457 = vpack.c.bf16 %v1408, %v1407
        %v1458 = vpack.c.bf16 %v1410, %v1409
        %v1459 = vpack.c.bf16 %v1412, %v1411
        %v1460 = vpack.c.bf16 %v1414, %v1413
        %v1461 = vpack.c.bf16 %v1416, %v1415
        %v1462 = vpack.c.bf16 %v1418, %v1417
        %v1463 = vpack.c.bf16 %v1420, %v1419
        %v1464 = vpack.c.bf16 %v1422, %v1421
        %v1465 = vpack.c.bf16 %v1424, %v1423
        %v1466 = vpack.c.bf16 %v1426, %v1425
        %v1467 = vpack.c.bf16 %v1428, %v1427
        %v1468 = vpack.c.bf16 %v1430, %v1429
        %v1469 = vpack.c.bf16 %v1432, %v1431
        %v1470 = vpack.c.bf16 %v1434, %v1433
        %v1471 = vpack.c.bf16 %v1436, %v1435
        %v1472 = vpack.c.bf16 %v1438, %v1437
        %v1473 = vpack.c.bf16 %v1440, %v1439
        %v1474 = vpack.c.bf16 %v1442, %v1441
        %v1507 = vunpack.c.l.b16 %v1443
        %v1508 = vunpack.c.h.b16 %v1443
        %v1509 = vunpack.c.l.b16 %v1444
        %v1510 = vunpack.c.h.b16 %v1444
        %v1511 = vunpack.c.l.b16 %v1445
        %v1512 = vunpack.c.h.b16 %v1445
        %v1513 = vunpack.c.l.b16 %v1446
        %v1514 = vunpack.c.h.b16 %v1446
        %v1515 = vunpack.c.l.b16 %v1447
        %v1516 = vunpack.c.h.b16 %v1447
        %v1517 = vunpack.c.l.b16 %v1448
        %v1518 = vunpack.c.h.b16 %v1448
        %v1519 = vunpack.c.l.b16 %v1449
        %v1520 = vunpack.c.h.b16 %v1449
        %v1521 = vunpack.c.l.b16 %v1450
        %v1522 = vunpack.c.h.b16 %v1450
        %v1523 = vunpack.c.l.b16 %v1451
        %v1524 = vunpack.c.h.b16 %v1451
        %v1525 = vunpack.c.l.b16 %v1452
        %v1526 = vunpack.c.h.b16 %v1452
        %v1527 = vunpack.c.l.b16 %v1453
        %v1528 = vunpack.c.h.b16 %v1453
        %v1529 = vunpack.c.l.b16 %v1454
        %v1530 = vunpack.c.h.b16 %v1454
        %v1531 = vunpack.c.l.b16 %v1455
        %v1532 = vunpack.c.h.b16 %v1455
        %v1533 = vunpack.c.l.b16 %v1456
        %v1534 = vunpack.c.h.b16 %v1456
        %v1535 = vunpack.c.l.b16 %v1457
        %v1536 = vunpack.c.h.b16 %v1457
        %v1537 = vunpack.c.l.b16 %v1458
        %v1538 = vunpack.c.h.b16 %v1458
        %v1539 = vunpack.c.l.b16 %v1459
        %v1540 = vunpack.c.h.b16 %v1459
        %v1541 = vunpack.c.l.b16 %v1460
        %v1542 = vunpack.c.h.b16 %v1460
        %v1543 = vunpack.c.l.b16 %v1461
        %v1544 = vunpack.c.h.b16 %v1461
        %v1545 = vunpack.c.l.b16 %v1462
        %v1546 = vunpack.c.h.b16 %v1462
        %v1547 = vunpack.c.l.b16 %v1463
        %v1548 = vunpack.c.h.b16 %v1463
        %v1549 = vunpack.c.l.b16 %v1464
        %v1550 = vunpack.c.h.b16 %v1464
        %v1551 = vunpack.c.l.b16 %v1465
        %v1552 = vunpack.c.h.b16 %v1465
        %v1553 = vunpack.c.l.b16 %v1466
        %v1554 = vunpack.c.h.b16 %v1466
        %v1555 = vunpack.c.l.b16 %v1467
        %v1556 = vunpack.c.h.b16 %v1467
        %v1557 = vunpack.c.l.b16 %v1468
        %v1558 = vunpack.c.h.b16 %v1468
        %v1559 = vunpack.c.l.b16 %v1469
        %v1560 = vunpack.c.h.b16 %v1469
        %v1561 = vunpack.c.l.b16 %v1470
        %v1562 = vunpack.c.h.b16 %v1470
        %v1563 = vunpack.c.l.b16 %v1471
        %v1564 = vunpack.c.h.b16 %v1471
        %v1565 = vunpack.c.l.b16 %v1472
        %v1566 = vunpack.c.h.b16 %v1472
        %v1567 = vunpack.c.l.b16 %v1473
        %v1568 = vunpack.c.h.b16 %v1473
        %v1569 = vunpack.c.l.b16 %v1474
        %v1570 = vunpack.c.h.b16 %v1474
        %v1571 = vpack.c.b16 %v1507, %v1507
        %v1572 = vpack.c.b16 %v1508, %v1508
        %v1573 = vpack.c.b16 %v1509, %v1509
        %v1574 = vpack.c.b16 %v1510, %v1510
        %v1575 = vpack.c.b16 %v1511, %v1511
        %v1576 = vpack.c.b16 %v1512, %v1512
        %v1577 = vpack.c.b16 %v1513, %v1513
        %v1578 = vpack.c.b16 %v1514, %v1514
        %v1579 = vpack.c.b16 %v1515, %v1515
        %v1580 = vpack.c.b16 %v1516, %v1516
        %v1581 = vpack.c.b16 %v1517, %v1517
        %v1582 = vpack.c.b16 %v1518, %v1518
        %v1583 = vpack.c.b16 %v1519, %v1519
        %v1584 = vpack.c.b16 %v1520, %v1520
        %v1585 = vpack.c.b16 %v1521, %v1521
        %v1586 = vpack.c.b16 %v1522, %v1522
        %v1587 = vpack.c.b16 %v1523, %v1523
        %v1588 = vpack.c.b16 %v1524, %v1524
        %v1589 = vpack.c.b16 %v1525, %v1525
        %v1590 = vpack.c.b16 %v1526, %v1526
        %v1591 = vpack.c.b16 %v1527, %v1527
        %v1592 = vpack.c.b16 %v1528, %v1528
        %v1593 = vpack.c.b16 %v1529, %v1529
        %v1594 = vpack.c.b16 %v1530, %v1530
        %v1595 = vpack.c.b16 %v1531, %v1531
        %v1596 = vpack.c.b16 %v1532, %v1532
        %v1597 = vpack.c.b16 %v1533, %v1533
        %v1598 = vpack.c.b16 %v1534, %v1534
        %v1599 = vpack.c.b16 %v1535, %v1535
        %v1600 = vpack.c.b16 %v1536, %v1536
        %v1601 = vpack.c.b16 %v1537, %v1537
        %v1602 = vpack.c.b16 %v1538, %v1538
        %v1603 = vpack.c.b16 %v1539, %v1539
        %v1604 = vpack.c.b16 %v1540, %v1540
        %v1605 = vpack.c.b16 %v1541, %v1541
        %v1606 = vpack.c.b16 %v1542, %v1542
        %v1607 = vpack.c.b16 %v1543, %v1543
        %v1608 = vpack.c.b16 %v1544, %v1544
        %v1609 = vpack.c.b16 %v1545, %v1545
        %v1610 = vpack.c.b16 %v1546, %v1546
        %v1611 = vpack.c.b16 %v1547, %v1547
        %v1612 = vpack.c.b16 %v1548, %v1548
        %v1613 = vpack.c.b16 %v1549, %v1549
        %v1614 = vpack.c.b16 %v1550, %v1550
        %v1615 = vpack.c.b16 %v1551, %v1551
        %v1616 = vpack.c.b16 %v1552, %v1552
        %v1617 = vpack.c.b16 %v1553, %v1553
        %v1618 = vpack.c.b16 %v1554, %v1554
        %v1619 = vpack.c.b16 %v1555, %v1555
        %v1620 = vpack.c.b16 %v1556, %v1556
        %v1621 = vpack.c.b16 %v1557, %v1557
        %v1622 = vpack.c.b16 %v1558, %v1558
        %v1623 = vpack.c.b16 %v1559, %v1559
        %v1624 = vpack.c.b16 %v1560, %v1560
        %v1625 = vpack.c.b16 %v1561, %v1561
        %v1626 = vpack.c.b16 %v1562, %v1562
        %v1627 = vpack.c.b16 %v1563, %v1563
        %v1628 = vpack.c.b16 %v1564, %v1564
        %v1629 = vpack.c.b16 %v1565, %v1565
        %v1630 = vpack.c.b16 %v1566, %v1566
        %v1631 = vpack.c.b16 %v1567, %v1567
        %v1632 = vpack.c.b16 %v1568, %v1568
        %v1633 = vpack.c.b16 %v1569, %v1569
        %v1634 = vpack.c.b16 %v1570, %v1570
        %1699 = vst [vmem:[%s298] sm:$0xf] %v1571
        %1700 = vst [vmem:[%s298 + $0x4] sm:$0xf] %v1572
        %1701 = vst [vmem:[%s298 + $0x8] sm:$0xf] %v1573
        %1702 = vst [vmem:[%s298 + $0xc] sm:$0xf] %v1574
        %1703 = vst [vmem:[%s298 + $0x10] sm:$0xf] %v1575
        %1704 = vst [vmem:[%s298 + $0x14] sm:$0xf] %v1576
        %1705 = vst [vmem:[%s298 + $0x18] sm:$0xf] %v1577
        %1706 = vst [vmem:[%s298 + $0x1c] sm:$0xf] %v1578
        %1707 = vst [vmem:[%s298 + $0x20] sm:$0xf] %v1579
        %1708 = vst [vmem:[%s298 + $0x24] sm:$0xf] %v1580
        %1709 = vst [vmem:[%s298 + $0x28] sm:$0xf] %v1581
        %1710 = vst [vmem:[%s298 + $0x2c] sm:$0xf] %v1582
        %1711 = vst [vmem:[%s298 + $0x30] sm:$0xf] %v1583
        %1712 = vst [vmem:[%s298 + $0x34] sm:$0xf] %v1584
        %1713 = vst [vmem:[%s298 + $0x38] sm:$0xf] %v1585
        %1714 = vst [vmem:[%s298 + $0x3c] sm:$0xf] %v1586
        %1715 = vst [vmem:[%s298 + $0x40] sm:$0xf] %v1587
        %1716 = vst [vmem:[%s298 + $0x44] sm:$0xf] %v1588
        %1717 = vst [vmem:[%s298 + $0x48] sm:$0xf] %v1589
        %1718 = vst [vmem:[%s298 + $0x4c] sm:$0xf] %v1590
        %1719 = vst [vmem:[%s298 + $0x50] sm:$0xf] %v1591
        %1720 = vst [vmem:[%s298 + $0x54] sm:$0xf] %v1592
        %1721 = vst [vmem:[%s298 + $0x58] sm:$0xf] %v1593
        %1722 = vst [vmem:[%s298 + $0x5c] sm:$0xf] %v1594
        %1723 = vst [vmem:[%s298 + $0x60] sm:$0xf] %v1595
        %1724 = vst [vmem:[%s298 + $0x64] sm:$0xf] %v1596
        %1725 = vst [vmem:[%s298 + $0x68] sm:$0xf] %v1597
        %1726 = vst [vmem:[%s298 + $0x6c] sm:$0xf] %v1598
        %1727 = vst [vmem:[%s298 + $0x70] sm:$0xf] %v1599
        %1728 = vst [vmem:[%s298 + $0x74] sm:$0xf] %v1600
        %1729 = vst [vmem:[%s298 + $0x78] sm:$0xf] %v1601
        %1730 = vst [vmem:[%s298 + $0x7c] sm:$0xf] %v1602
        %1731 = vst [vmem:[%s298 + $0x80] sm:$0xf] %v1603
        %1732 = vst [vmem:[%s298 + $0x84] sm:$0xf] %v1604
        %1733 = vst [vmem:[%s298 + $0x88] sm:$0xf] %v1605
        %1734 = vst [vmem:[%s298 + $0x8c] sm:$0xf] %v1606
        %1735 = vst [vmem:[%s298 + $0x90] sm:$0xf] %v1607
        %1736 = vst [vmem:[%s298 + $0x94] sm:$0xf] %v1608
        %1737 = vst [vmem:[%s298 + $0x98] sm:$0xf] %v1609
        %1738 = vst [vmem:[%s298 + $0x9c] sm:$0xf] %v1610
        %1739 = vst [vmem:[%s298 + $0xa0] sm:$0xf] %v1611
        %1740 = vst [vmem:[%s298 + $0xa4] sm:$0xf] %v1612
        %1741 = vst [vmem:[%s298 + $0xa8] sm:$0xf] %v1613
        %1742 = vst [vmem:[%s298 + $0xac] sm:$0xf] %v1614
        %1743 = vst [vmem:[%s298 + $0xb0] sm:$0xf] %v1615
        %1744 = vst [vmem:[%s298 + $0xb4] sm:$0xf] %v1616
        %1745 = vst [vmem:[%s298 + $0xb8] sm:$0xf] %v1617
        %1746 = vst [vmem:[%s298 + $0xbc] sm:$0xf] %v1618
        %1747 = vst [vmem:[%s298 + $0xc0] sm:$0xf] %v1619
        %1748 = vst [vmem:[%s298 + $0xc4] sm:$0xf] %v1620
        %1749 = vst [vmem:[%s298 + $0xc8] sm:$0xf] %v1621
        %1750 = vst [vmem:[%s298 + $0xcc] sm:$0xf] %v1622
        %1751 = vst [vmem:[%s298 + $0xd0] sm:$0xf] %v1623
        %1752 = vst [vmem:[%s298 + $0xd4] sm:$0xf] %v1624
        %1753 = vst [vmem:[%s298 + $0xd8] sm:$0xf] %v1625
        %1754 = vst [vmem:[%s298 + $0xdc] sm:$0xf] %v1626
        %1755 = vst [vmem:[%s298 + $0xe0] sm:$0xf] %v1627
        %1756 = vst [vmem:[%s298 + $0xe4] sm:$0xf] %v1628
        %1757 = vst [vmem:[%s298 + $0xe8] sm:$0xf] %v1629
        %1758 = vst [vmem:[%s298 + $0xec] sm:$0xf] %v1630
        %1759 = vst [vmem:[%s298 + $0xf0] sm:$0xf] %v1631
        %1760 = vst [vmem:[%s298 + $0xf4] sm:$0xf] %v1632
        %1761 = vst [vmem:[%s298 + $0xf8] sm:$0xf] %v1633
        %1762 = vst [vmem:[%s298 + $0xfc] sm:$0xf] %v1634
      $region44: #{decoder_forward.117} parent=35 // pred_fallthru
        _
      %s1763 = smul.u32 64, %s20
      %p1764 = scmp.lt.s32.totalorder %s1763, 255
      %s1765 = scalar_select %p1764, %s1763, 255
      %p1766 = scmp.lt.s32.totalorder %s21, 0
      %s1767 = scalar_select %p1766, %s21, 0
      %s1768 = sadd.s32 %s1767, %s1765
      %s1769 = smul.addr %s1768, 4
      %s1770 = scalar_lea.vmem %s4, %s1769
      // Predicated region
      $region45: #{decoder_forward.117} parent=35 // pred_check
        %p1771 = pneg %p162
      $region46: #{decoder_forward.117} parent=35 // pred_check_branch
        %1773 = sbr.rel (%p1771) target = $region48
      $region47: #{decoder_forward.117} parent=35 // pred_region
        %s1774 = smul.u32 64, %s20
      $region48: #{decoder_forward.117} parent=35 // pred_fallthru
        _
    $region36: #{decoder_forward.117} parent=5 // pred_fallthru
      _
    %p1775 = scmp.le.s32.totalorder 2, %s10
    // Predicated region
    $region49: #{decoder_forward.117} parent=5 // pred_check
      %p1776 = pneg %p1775
    $region50: #{decoder_forward.117} parent=5 // pred_check_branch
      %1778 = sbr.rel (%p1776) target = $region52
    $region51: #{decoder_forward.117} parent=5 // pred_region
      %s1779 = ssub.s32 %s10, 2
      // Predicated region
      $region53: #{decoder_forward.117} parent=51 // pred_check
        %p1780 = pneg %p168
      $region54: #{decoder_forward.117} parent=51 // pred_check_branch
        %1782 = sbr.rel (%p1780) target = $region56
      $region55: #{decoder_forward.117} parent=51 // pred_region
        %s1783 = smul.u32 64, %s23
        %p1784 = scmp.lt.s32.totalorder %s1783, 255
        %s1785 = scalar_select %p1784, %s1783, 255
        %p1786 = scmp.lt.s32.totalorder %s24, 0
        %s1787 = scalar_select %p1786, %s24, 0
        %s1788 = sadd.s32 %s1787, %s1785
        %s1789 = smul.addr %s1788, 4
        %s1790 = scalar_lea.vmem %s4, %s1789
      $region56: #{decoder_forward.117} parent=51 // pred_fallthru
        _
    $region52: #{decoder_forward.117} parent=5 // pred_fallthru
      _
  $region6: #{decoder_forward.117} parent=0 // loop_footer
    %s14 = sadd.s32 1, %s10
  $region7: #{decoder_forward.117} parent=0 // loop_footer_branch
    %9 = sbr.rel target = $region3
  $region8: #{decoder_forward.117} parent=0 // loop_exit
    _

// kernel: decoder_forward.121
$region0: #{decoder_forward.121}
  #allocation0 [shape = 'u32[]', space=smem, size = 0x4, offset = 0x4, fixed_abs, tag = 'smem constant byte address 0x4 - core index']
  #allocation1 [shape = 'u32[144,128]{1,0:T(1,128)}', space=vmem, size = 0x12000, scoped, tag = 'internal scratch']
  #allocation2 [shape = 'f32[512,128]{1,0:T(8,128)}', space=vmem, size = 0x40000, scoped, tag = 'scratch operand']
  %s0 = inlined_call_operand.vmem [shape: bf16[8192,128], index: 0, kind: input, shape index: {}]
  %s1 = inlined_call_operand.vmem [shape: bf16[128,128], index: 1, kind: input, shape index: {}]
  %s2 = inlined_call_operand.vmem [shape: f32[1,128], index: 2, kind: input, shape index: {}]
  %s3 = inlined_call_operand.vmem [shape: f32[1,128], index: 3, kind: input, shape index: {}]
  %s4 = inlined_call_operand.vmem [shape: f32[8192,128], index: 4, kind: output, shape index: {}]
  %s5 = sld [smem:[#allocation0]]
  $region57: #{decoder_forward.121} parent=0
    _
  %s7 = ssub.s32 1, %s5
  %s8 = scalar_select 0, %s7, %s5
  loop: start=0, step=1, limit=18
  $region2: #{decoder_forward.121} parent=0 // loop_pre_header
    _
  $region3: #{decoder_forward.121} parent=0 // loop_header
    %s10 = sphi 0, %s14
    %p11 = scmp.ge.s32.totalorder %s10, 18
    %s17 = sphi 0, %s36
    %s18 = sphi 0, %s32
    %s19 = sphi 0, %s28
    %s20 = sphi 0, %s17
    %s21 = sphi 0, %s18
    %s22 = sphi 0, %s19
    %s23 = sphi 0, %s20
    %s24 = sphi 0, %s21
    %s25 = sphi 0, %s22
    %s41 = sphi 0, %s43
    %s44 = sphi 0, %s41
    %s45 = sphi 0, %s44
    %s61 = sphi 0, %s45
    %s69 = sphi 0, %s71
    %s72 = sphi 0, %s69
    %s73 = sphi 0, %s72
    %s89 = sphi 0, %s73
    %s95 = sphi 0, %s97
    %s98 = sphi 0, %s95
    %s99 = sphi 0, %s98
    %s115 = sphi 0, %s99
    %s121 = sphi 0, %s123
    %s124 = sphi 0, %s121
    %s125 = sphi 0, %s124
    %s141 = sphi 0, %s125
    %s149 = sphi 0, %s151
    %s152 = sphi 0, %s149
    %s153 = sphi 0, %s152
    %s169 = sphi 0, %s153
  $region4: #{decoder_forward.121} parent=0 // loop_header_branch
    %13 = sbr.rel (%p11) target = $region8
  $region5: #{decoder_forward.121} parent=0 // loop_body
    %s15 = ssub.s32 %s10, 1
    %s16 = ssub.s32 %s10, 2
    %s26 = sadd.s32 1, %s19
    %p27 = scmp.ge.s32.totalorder %s26, 1
    %s28 = scalar_select %p27, 0, %s26
    %s29 = sadd.s32 1, %s18
    %s30 = scalar_select %p27, %s29, %s18
    %p31 = scmp.ge.s32.totalorder %s30, 1
    %s32 = scalar_select %p31, 0, %s30
    %s33 = sadd.s32 1, %s17
    %s34 = scalar_select %p31, %s33, %s17
    %p35 = scmp.ge.s32.totalorder %s34, 16
    %s36 = scalar_select %p35, 0, %s34
    %s37 = ssub.s32 %s17, %s36
    %s38 = ssub.s32 %s19, %s28
    %s39 = sor.u32 %s37, %s38
    %p40 = scmp.eq.s32.totalorder %s39, 0
    %s42 = sadd.s32 %s41, 1
    %s43 = scalar_select %p40, %s41, %s42
    %p46 = pneg %p40
    %p47 = scmp.eq.s32.totalorder %s10, 15
    %p48 = por %p46, %p47
    %p49 = scmp.ne.s32.totalorder %s41, %s44
    %p50 = scmp.eq.s32.totalorder %s10, 0
    %p51 = por %p49, %p50
    %p52 = scmp.ne.s32.totalorder %s41, %s44
    %p53 = scmp.eq.s32.totalorder %s15, 15
    %p54 = por %p52, %p53
    %p55 = scmp.ne.s32.totalorder %s44, %s45
    %p56 = scmp.eq.s32.totalorder %s15, 0
    %p57 = por %p55, %p56
    %p58 = scmp.ne.s32.totalorder %s44, %s45
    %p59 = scmp.eq.s32.totalorder %s16, 15
    %p60 = por %p58, %p59
    %p62 = scmp.ne.s32.totalorder %s45, %s61
    %p63 = scmp.eq.s32.totalorder %s16, 0
    %p64 = por %p62, %p63
    %s65 = ssub.s32 %s19, %s28
    %s66 = ssub.s32 %s18, %s32
    %s67 = sor.u32 %s65, %s66
    %p68 = scmp.eq.s32.totalorder %s67, 0
    %s70 = sadd.s32 %s69, 1
    %s71 = scalar_select %p68, %s69, %s70
    %p74 = pneg %p68
    %p75 = scmp.eq.s32.totalorder %s10, 15
    %p76 = por %p74, %p75
    %p77 = scmp.ne.s32.totalorder %s69, %s72
    %p78 = scmp.eq.s32.totalorder %s10, 0
    %p79 = por %p77, %p78
    %p80 = scmp.ne.s32.totalorder %s69, %s72
    %p81 = scmp.eq.s32.totalorder %s15, 15
    %p82 = por %p80, %p81
    %p83 = scmp.ne.s32.totalorder %s72, %s73
    %p84 = scmp.eq.s32.totalorder %s15, 0
    %p85 = por %p83, %p84
    %p86 = scmp.ne.s32.totalorder %s72, %s73
    %p87 = scmp.eq.s32.totalorder %s16, 15
    %p88 = por %p86, %p87
    %p90 = scmp.ne.s32.totalorder %s73, %s89
    %p91 = scmp.eq.s32.totalorder %s16, 0
    %p92 = por %p90, %p91
    %s93 = ssub.s32 %s18, %s32
    %p94 = scmp.eq.s32.totalorder %s93, 0
    %s96 = sadd.s32 %s95, 1
    %s97 = scalar_select %p94, %s95, %s96
    %p100 = pneg %p94
    %p101 = scmp.eq.s32.totalorder %s10, 15
    %p102 = por %p100, %p101
    %p103 = scmp.ne.s32.totalorder %s95, %s98
    %p104 = scmp.eq.s32.totalorder %s10, 0
    %p105 = por %p103, %p104
    %p106 = scmp.ne.s32.totalorder %s95, %s98
    %p107 = scmp.eq.s32.totalorder %s15, 15
    %p108 = por %p106, %p107
    %p109 = scmp.ne.s32.totalorder %s98, %s99
    %p110 = scmp.eq.s32.totalorder %s15, 0
    %p111 = por %p109, %p110
    %p112 = scmp.ne.s32.totalorder %s98, %s99
    %p113 = scmp.eq.s32.totalorder %s16, 15
    %p114 = por %p112, %p113
    %p116 = scmp.ne.s32.totalorder %s99, %s115
    %p117 = scmp.eq.s32.totalorder %s16, 0
    %p118 = por %p116, %p117
    %s119 = ssub.s32 %s18, %s32
    %p120 = scmp.eq.s32.totalorder %s119, 0
    %s122 = sadd.s32 %s121, 1
    %s123 = scalar_select %p120, %s121, %s122
    %p126 = pneg %p120
    %p127 = scmp.eq.s32.totalorder %s10, 15
    %p128 = por %p126, %p127
    %p129 = scmp.ne.s32.totalorder %s121, %s124
    %p130 = scmp.eq.s32.totalorder %s10, 0
    %p131 = por %p129, %p130
    %p132 = scmp.ne.s32.totalorder %s121, %s124
    %p133 = scmp.eq.s32.totalorder %s15, 15
    %p134 = por %p132, %p133
    %p135 = scmp.ne.s32.totalorder %s124, %s125
    %p136 = scmp.eq.s32.totalorder %s15, 0
    %p137 = por %p135, %p136
    %p138 = scmp.ne.s32.totalorder %s124, %s125
    %p139 = scmp.eq.s32.totalorder %s16, 15
    %p140 = por %p138, %p139
    %p142 = scmp.ne.s32.totalorder %s125, %s141
    %p143 = scmp.eq.s32.totalorder %s16, 0
    %p144 = por %p142, %p143
    %s145 = ssub.s32 %s17, %s36
    %s146 = ssub.s32 %s18, %s32
    %s147 = sor.u32 %s145, %s146
    %p148 = scmp.eq.s32.totalorder %s147, 0
    %s150 = sadd.s32 %s149, 1
    %s151 = scalar_select %p148, %s149, %s150
    %p154 = pneg %p148
    %p155 = scmp.eq.s32.totalorder %s10, 15
    %p156 = por %p154, %p155
    %p157 = scmp.ne.s32.totalorder %s149, %s152
    %p158 = scmp.eq.s32.totalorder %s10, 0
    %p159 = por %p157, %p158
    %p160 = scmp.ne.s32.totalorder %s149, %s152
    %p161 = scmp.eq.s32.totalorder %s15, 15
    %p162 = por %p160, %p161
    %p163 = scmp.ne.s32.totalorder %s152, %s153
    %p164 = scmp.eq.s32.totalorder %s15, 0
    %p165 = por %p163, %p164
    %p166 = scmp.ne.s32.totalorder %s152, %s153
    %p167 = scmp.eq.s32.totalorder %s16, 15
    %p168 = por %p166, %p167
    %p170 = scmp.ne.s32.totalorder %s153, %s169
    %p171 = scmp.eq.s32.totalorder %s16, 0
    %p172 = por %p170, %p171
    %p173 = scmp.le.s32.totalorder 1, %s10
    %p174 = scmp.lt.s32.totalorder %s10, 17
    %p175 = pnand %p173, %p174
    %p176 = pneg %p175
    // Predicated region
    $region9: #{decoder_forward.121} parent=5 // pred_check
      _
    $region10: #{decoder_forward.121} parent=5 // pred_check_branch
      %178 = sbr.rel (%p175) target = $region12
    $region11: #{decoder_forward.121} parent=5 // pred_region
      %s179 = ssub.s32 %s10, 1
      // Predicated region
      $region13: #{decoder_forward.121} parent=11 // pred_check
        %p180 = pneg %p85
      $region14: #{decoder_forward.121} parent=11 // pred_check_branch
        %182 = sbr.rel (%p180) target = $region16
      $region15: #{decoder_forward.121} parent=11 // pred_region
        %s183 = smul.u32 16, %s22
        %p184 = scmp.lt.s32.totalorder %s183, 15
        %s185 = scalar_select %p184, %s183, 15
        %p186 = scmp.lt.s32.totalorder %s21, 0
        %s187 = scalar_select %p186, %s21, 0
        %s188 = sadd.s32 %s187, %s185
        %s189 = smul.addr %s188, 4
        %s190 = scalar_lea.vmem %s1, %s189
        %s191 = smul.u32 16, %s22
      $region16: #{decoder_forward.121} parent=11 // pred_fallthru
        _
      // Predicated region
      $region17: #{decoder_forward.121} parent=11 // pred_check
        %p192 = pneg %p111
      $region18: #{decoder_forward.121} parent=11 // pred_check_branch
        %194 = sbr.rel (%p192) target = $region20
      $region19: #{decoder_forward.121} parent=11 // pred_region
        %p195 = scmp.lt.s32.totalorder %s21, 0
        %s196 = scalar_select %p195, %s21, 0
        %s197 = scalar_lea.vmem %s2, %s196
      $region20: #{decoder_forward.121} parent=11 // pred_fallthru
        _
      // Predicated region
      $region21: #{decoder_forward.121} parent=11 // pred_check
        %p198 = pneg %p137
      $region22: #{decoder_forward.121} parent=11 // pred_check_branch
        %200 = sbr.rel (%p198) target = $region24
      $region23: #{decoder_forward.121} parent=11 // pred_region
        %p201 = scmp.lt.s32.totalorder %s21, 0
        %s202 = scalar_select %p201, %s21, 0
        %s203 = scalar_lea.vmem %s3, %s202
      $region24: #{decoder_forward.121} parent=11 // pred_fallthru
        _
    $region12: #{decoder_forward.121} parent=5 // pred_fallthru
      _
    %p204 = scmp.lt.s32.totalorder %s10, 16
    // Predicated region
    $region25: #{decoder_forward.121} parent=5 // pred_check
      %p205 = pneg %p204
    $region26: #{decoder_forward.121} parent=5 // pred_check_branch
      %207 = sbr.rel (%p205) target = $region28
    $region27: #{decoder_forward.121} parent=5 // pred_region
      // Predicated region
      $region29: #{decoder_forward.121} parent=27 // pred_check
        %p208 = pneg %p51
      $region30: #{decoder_forward.121} parent=27 // pred_check_branch
        %210 = sbr.rel (%p208) target = $region32
      $region31: #{decoder_forward.121} parent=27 // pred_region
        %s211 = smul.u32 64, %s17
        %p212 = scmp.lt.s32.totalorder %s211, 1023
        %s213 = scalar_select %p212, %s211, 1023
        %p214 = scmp.lt.s32.totalorder %s19, 0
        %s215 = scalar_select %p214, %s19, 0
        %s216 = sadd.s32 %s215, %s213
        %s217 = smul.addr %s216, 4
        %s218 = scalar_lea.vmem %s0, %s217
        %s219 = smul.u32 64, %s17
      $region32: #{decoder_forward.121} parent=27 // pred_fallthru
        _
    $region28: #{decoder_forward.121} parent=5 // pred_fallthru
      _
    %p220 = scmp.le.s32.totalorder 1, %s10
    %p221 = scmp.lt.s32.totalorder %s10, 17
    %p222 = pnand %p220, %p221
    %p223 = pneg %p222
    // Predicated region
    $region33: #{decoder_forward.121} parent=5 // pred_check
      _
    $region34: #{decoder_forward.121} parent=5 // pred_check_branch
      %225 = sbr.rel (%p222) target = $region36
    $region35: #{decoder_forward.121} parent=5 // pred_region
      %s226 = ssub.s32 %s10, 1
      %s227 = smul.u32 64, %s20
      %p228 = scmp.lt.s32.totalorder %s227, 1023
      %s229 = scalar_select %p228, %s227, 1023
      %p230 = scmp.lt.s32.totalorder %s22, 0
      %s231 = scalar_select %p230, %s22, 0
      %s232 = sadd.s32 %s231, %s229
      %s233 = smul.addr %s232, 4
      %s234 = scalar_lea.vmem %s0, %s233
      %p235 = pneg %p57
      %p236 = pneg %p54
      %s237 = smul.u32 16, %s22
      %p238 = scmp.lt.s32.totalorder %s237, 15
      %s239 = scalar_select %p238, %s237, 15
      %p240 = scmp.lt.s32.totalorder %s21, 0
      %s241 = scalar_select %p240, %s21, 0
      %s242 = sadd.s32 %s241, %s239
      %s243 = smul.addr %s242, 4
      %s244 = scalar_lea.vmem %s1, %s243
      %p245 = pneg %p85
      %p246 = pneg %p82
      %p247 = scmp.lt.s32.totalorder %s21, 0
      %s248 = scalar_select %p247, %s21, 0
      %s249 = scalar_lea.vmem %s2, %s248
      %p250 = pneg %p111
      %p251 = pneg %p108
      %p252 = scmp.lt.s32.totalorder %s21, 0
      %s253 = scalar_select %p252, %s21, 0
      %s254 = scalar_lea.vmem %s3, %s253
      %p255 = pneg %p137
      %p256 = pneg %p134
      %p257 = pneg %p165
      %p258 = pneg %p162
      %s259 = smul.u32 64, %s20
      %p260 = scmp.lt.s32.totalorder %s259, 1023
      %s261 = scalar_select %p260, %s259, 1023
      %p262 = scmp.lt.s32.totalorder %s21, 0
      %s263 = scalar_select %p262, %s21, 0
      %s264 = sadd.s32 %s263, %s261
      %s265 = smul.addr %s264, 8
      %s266 = scalar_lea.vmem %s4, %s265
      %s267 = smul.u32 64, %s20
      %p268 = scmp.lt.s32.totalorder %s267, 1023
      %s269 = scalar_select %p268, %s267, 1023
      %p270 = scmp.lt.s32.totalorder %s22, 0
      %s271 = scalar_select %p270, %s22, 0
      %s272 = sadd.s32 %s271, %s269
      %s273 = smul.addr %s272, 4
      %s274 = scalar_lea.vmem %s0, %s273
      %s275 = smul.u32 64, %s20
      %s276 = smul.u32 16, %s22
      %p277 = scmp.lt.s32.totalorder %s276, 15
      %s278 = scalar_select %p277, %s276, 15
      %p279 = scmp.lt.s32.totalorder %s21, 0
      %s280 = scalar_select %p279, %s21, 0
      %s281 = sadd.s32 %s280, %s278
      %s282 = smul.addr %s281, 4
      %s283 = scalar_lea.vmem %s1, %s282
      %s284 = smul.u32 16, %s22
      %p285 = scmp.lt.s32.totalorder %s21, 0
      %s286 = scalar_select %p285, %s21, 0
      %s287 = scalar_lea.vmem %s2, %s286
      %p288 = scmp.lt.s32.totalorder %s21, 0
      %s289 = scalar_select %p288, %s21, 0
      %s290 = scalar_lea.vmem %s3, %s289
      %s291 = smul.u32 64, %s20
      %p292 = scmp.lt.s32.totalorder %s291, 1023
      %s293 = scalar_select %p292, %s291, 1023
      %p294 = scmp.lt.s32.totalorder %s21, 0
      %s295 = scalar_select %p294, %s21, 0
      %s296 = sadd.s32 %s295, %s293
      %s297 = smul.addr %s296, 8
      %s298 = scalar_lea.vmem %s4, %s297
      %s299 = smul.u32 64, %s20
      %p301 = scmp.eq.s32.totalorder %s22, 0
      // Predicated region
      $region37: #{decoder_forward.121} parent=35 // pred_check
        %p302 = pneg %p301
      $region38: #{decoder_forward.121} parent=35 // pred_check_branch
        %304 = sbr.rel (%p302) target = $region40
      $region39: #{decoder_forward.121} parent=35 // pred_region
        %305 = vst [vmem:[#allocation2] sm:$0xff] 0.0
        %306 = vst [vmem:[#allocation2 + $0x8] sm:$0xff] 0.0
        %307 = vst [vmem:[#allocation2 + $0x10] sm:$0xff] 0.0
        %308 = vst [vmem:[#allocation2 + $0x18] sm:$0xff] 0.0
        %309 = vst [vmem:[#allocation2 + $0x20] sm:$0xff] 0.0
        %310 = vst [vmem:[#allocation2 + $0x28] sm:$0xff] 0.0
        %311 = vst [vmem:[#allocation2 + $0x30] sm:$0xff] 0.0
        %312 = vst [vmem:[#allocation2 + $0x38] sm:$0xff] 0.0
        %313 = vst [vmem:[#allocation2 + $0x40] sm:$0xff] 0.0
        %314 = vst [vmem:[#allocation2 + $0x48] sm:$0xff] 0.0
        %315 = vst [vmem:[#allocation2 + $0x50] sm:$0xff] 0.0
        %316 = vst [vmem:[#allocation2 + $0x58] sm:$0xff] 0.0
        %317 = vst [vmem:[#allocation2 + $0x60] sm:$0xff] 0.0
        %318 = vst [vmem:[#allocation2 + $0x68] sm:$0xff] 0.0
        %319 = vst [vmem:[#allocation2 + $0x70] sm:$0xff] 0.0
        %320 = vst [vmem:[#allocation2 + $0x78] sm:$0xff] 0.0
        %321 = vst [vmem:[#allocation2 + $0x80] sm:$0xff] 0.0
        %322 = vst [vmem:[#allocation2 + $0x88] sm:$0xff] 0.0
        %323 = vst [vmem:[#allocation2 + $0x90] sm:$0xff] 0.0
        %324 = vst [vmem:[#allocation2 + $0x98] sm:$0xff] 0.0
        %325 = vst [vmem:[#allocation2 + $0xa0] sm:$0xff] 0.0
        %326 = vst [vmem:[#allocation2 + $0xa8] sm:$0xff] 0.0
        %327 = vst [vmem:[#allocation2 + $0xb0] sm:$0xff] 0.0
        %328 = vst [vmem:[#allocation2 + $0xb8] sm:$0xff] 0.0
        %329 = vst [vmem:[#allocation2 + $0xc0] sm:$0xff] 0.0
        %330 = vst [vmem:[#allocation2 + $0xc8] sm:$0xff] 0.0
        %331 = vst [vmem:[#allocation2 + $0xd0] sm:$0xff] 0.0
        %332 = vst [vmem:[#allocation2 + $0xd8] sm:$0xff] 0.0
        %333 = vst [vmem:[#allocation2 + $0xe0] sm:$0xff] 0.0
        %334 = vst [vmem:[#allocation2 + $0xe8] sm:$0xff] 0.0
        %335 = vst [vmem:[#allocation2 + $0xf0] sm:$0xff] 0.0
        %336 = vst [vmem:[#allocation2 + $0xf8] sm:$0xff] 0.0
        %337 = vst [vmem:[#allocation2 + $0x100] sm:$0xff] 0.0
        %338 = vst [vmem:[#allocation2 + $0x108] sm:$0xff] 0.0
        %339 = vst [vmem:[#allocation2 + $0x110] sm:$0xff] 0.0
        %340 = vst [vmem:[#allocation2 + $0x118] sm:$0xff] 0.0
        %341 = vst [vmem:[#allocation2 + $0x120] sm:$0xff] 0.0
        %342 = vst [vmem:[#allocation2 + $0x128] sm:$0xff] 0.0
        %343 = vst [vmem:[#allocation2 + $0x130] sm:$0xff] 0.0
        %344 = vst [vmem:[#allocation2 + $0x138] sm:$0xff] 0.0
        %345 = vst [vmem:[#allocation2 + $0x140] sm:$0xff] 0.0
        %346 = vst [vmem:[#allocation2 + $0x148] sm:$0xff] 0.0
        %347 = vst [vmem:[#allocation2 + $0x150] sm:$0xff] 0.0
        %348 = vst [vmem:[#allocation2 + $0x158] sm:$0xff] 0.0
        %349 = vst [vmem:[#allocation2 + $0x160] sm:$0xff] 0.0
        %350 = vst [vmem:[#allocation2 + $0x168] sm:$0xff] 0.0
        %351 = vst [vmem:[#allocation2 + $0x170] sm:$0xff] 0.0
        %352 = vst [vmem:[#allocation2 + $0x178] sm:$0xff] 0.0
        %353 = vst [vmem:[#allocation2 + $0x180] sm:$0xff] 0.0
        %354 = vst [vmem:[#allocation2 + $0x188] sm:$0xff] 0.0
        %355 = vst [vmem:[#allocation2 + $0x190] sm:$0xff] 0.0
        %356 = vst [vmem:[#allocation2 + $0x198] sm:$0xff] 0.0
        %357 = vst [vmem:[#allocation2 + $0x1a0] sm:$0xff] 0.0
        %358 = vst [vmem:[#allocation2 + $0x1a8] sm:$0xff] 0.0
        %359 = vst [vmem:[#allocation2 + $0x1b0] sm:$0xff] 0.0
        %360 = vst [vmem:[#allocation2 + $0x1b8] sm:$0xff] 0.0
        %361 = vst [vmem:[#allocation2 + $0x1c0] sm:$0xff] 0.0
        %362 = vst [vmem:[#allocation2 + $0x1c8] sm:$0xff] 0.0
        %363 = vst [vmem:[#allocation2 + $0x1d0] sm:$0xff] 0.0
        %364 = vst [vmem:[#allocation2 + $0x1d8] sm:$0xff] 0.0
        %365 = vst [vmem:[#allocation2 + $0x1e0] sm:$0xff] 0.0
        %366 = vst [vmem:[#allocation2 + $0x1e8] sm:$0xff] 0.0
        %367 = vst [vmem:[#allocation2 + $0x1f0] sm:$0xff] 0.0
        %368 = vst [vmem:[#allocation2 + $0x1f8] sm:$0xff] 0.0
      $region40: #{decoder_forward.121} parent=35 // pred_fallthru
        _
      %v369 = vld [vmem:[#allocation2] sm:$0xff]
      %v370 = vld [vmem:[#allocation2 + $0x8] sm:$0xff]
      %v371 = vld [vmem:[#allocation2 + $0x10] sm:$0xff]
      %v372 = vld [vmem:[#allocation2 + $0x18] sm:$0xff]
      %v373 = vld [vmem:[#allocation2 + $0x20] sm:$0xff]
      %v374 = vld [vmem:[#allocation2 + $0x28] sm:$0xff]
      %v375 = vld [vmem:[#allocation2 + $0x30] sm:$0xff]
      %v376 = vld [vmem:[#allocation2 + $0x38] sm:$0xff]
      %v377 = vld [vmem:[#allocation2 + $0x40] sm:$0xff]
      %v378 = vld [vmem:[#allocation2 + $0x48] sm:$0xff]
      %v379 = vld [vmem:[#allocation2 + $0x50] sm:$0xff]
      %v380 = vld [vmem:[#allocation2 + $0x58] sm:$0xff]
      %v381 = vld [vmem:[#allocation2 + $0x60] sm:$0xff]
      %v382 = vld [vmem:[#allocation2 + $0x68] sm:$0xff]
      %v383 = vld [vmem:[#allocation2 + $0x70] sm:$0xff]
      %v384 = vld [vmem:[#allocation2 + $0x78] sm:$0xff]
      %v385 = vld [vmem:[#allocation2 + $0x80] sm:$0xff]
      %v386 = vld [vmem:[#allocation2 + $0x88] sm:$0xff]
      %v387 = vld [vmem:[#allocation2 + $0x90] sm:$0xff]
      %v388 = vld [vmem:[#allocation2 + $0x98] sm:$0xff]
      %v389 = vld [vmem:[#allocation2 + $0xa0] sm:$0xff]
      %v390 = vld [vmem:[#allocation2 + $0xa8] sm:$0xff]
      %v391 = vld [vmem:[#allocation2 + $0xb0] sm:$0xff]
      %v392 = vld [vmem:[#allocation2 + $0xb8] sm:$0xff]
      %v393 = vld [vmem:[#allocation2 + $0xc0] sm:$0xff]
      %v394 = vld [vmem:[#allocation2 + $0xc8] sm:$0xff]
      %v395 = vld [vmem:[#allocation2 + $0xd0] sm:$0xff]
      %v396 = vld [vmem:[#allocation2 + $0xd8] sm:$0xff]
      %v397 = vld [vmem:[#allocation2 + $0xe0] sm:$0xff]
      %v398 = vld [vmem:[#allocation2 + $0xe8] sm:$0xff]
      %v399 = vld [vmem:[#allocation2 + $0xf0] sm:$0xff]
      %v400 = vld [vmem:[#allocation2 + $0xf8] sm:$0xff]
      %v401 = vld [vmem:[#allocation2 + $0x100] sm:$0xff]
      %v402 = vld [vmem:[#allocation2 + $0x108] sm:$0xff]
      %v403 = vld [vmem:[#allocation2 + $0x110] sm:$0xff]
      %v404 = vld [vmem:[#allocation2 + $0x118] sm:$0xff]
      %v405 = vld [vmem:[#allocation2 + $0x120] sm:$0xff]
      %v406 = vld [vmem:[#allocation2 + $0x128] sm:$0xff]
      %v407 = vld [vmem:[#allocation2 + $0x130] sm:$0xff]
      %v408 = vld [vmem:[#allocation2 + $0x138] sm:$0xff]
      %v409 = vld [vmem:[#allocation2 + $0x140] sm:$0xff]
      %v410 = vld [vmem:[#allocation2 + $0x148] sm:$0xff]
      %v411 = vld [vmem:[#allocation2 + $0x150] sm:$0xff]
      %v412 = vld [vmem:[#allocation2 + $0x158] sm:$0xff]
      %v413 = vld [vmem:[#allocation2 + $0x160] sm:$0xff]
      %v414 = vld [vmem:[#allocation2 + $0x168] sm:$0xff]
      %v415 = vld [vmem:[#allocation2 + $0x170] sm:$0xff]
      %v416 = vld [vmem:[#allocation2 + $0x178] sm:$0xff]
      %v417 = vld [vmem:[#allocation2 + $0x180] sm:$0xff]
      %v418 = vld [vmem:[#allocation2 + $0x188] sm:$0xff]
      %v419 = vld [vmem:[#allocation2 + $0x190] sm:$0xff]
      %v420 = vld [vmem:[#allocation2 + $0x198] sm:$0xff]
      %v421 = vld [vmem:[#allocation2 + $0x1a0] sm:$0xff]
      %v422 = vld [vmem:[#allocation2 + $0x1a8] sm:$0xff]
      %v423 = vld [vmem:[#allocation2 + $0x1b0] sm:$0xff]
      %v424 = vld [vmem:[#allocation2 + $0x1b8] sm:$0xff]
      %v425 = vld [vmem:[#allocation2 + $0x1c0] sm:$0xff]
      %v426 = vld [vmem:[#allocation2 + $0x1c8] sm:$0xff]
      %v427 = vld [vmem:[#allocation2 + $0x1d0] sm:$0xff]
      %v428 = vld [vmem:[#allocation2 + $0x1d8] sm:$0xff]
      %v429 = vld [vmem:[#allocation2 + $0x1e0] sm:$0xff]
      %v430 = vld [vmem:[#allocation2 + $0x1e8] sm:$0xff]
      %v431 = vld [vmem:[#allocation2 + $0x1f0] sm:$0xff]
      %v432 = vld [vmem:[#allocation2 + $0x1f8] sm:$0xff]
      %v433 = vld [vmem:[%s274] sm:$0xf]
      %v434 = vld [vmem:[%s274 + $0x4] sm:$0xf]
      %v435 = vld [vmem:[%s274 + $0x8] sm:$0xf]
      %v436 = vld [vmem:[%s274 + $0xc] sm:$0xf]
      %v437 = vld [vmem:[%s274 + $0x10] sm:$0xf]
      %v438 = vld [vmem:[%s274 + $0x14] sm:$0xf]
      %v439 = vld [vmem:[%s274 + $0x18] sm:$0xf]
      %v440 = vld [vmem:[%s274 + $0x1c] sm:$0xf]
      %v441 = vld [vmem:[%s274 + $0x20] sm:$0xf]
      %v442 = vld [vmem:[%s274 + $0x24] sm:$0xf]
      %v443 = vld [vmem:[%s274 + $0x28] sm:$0xf]
      %v444 = vld [vmem:[%s274 + $0x2c] sm:$0xf]
      %v445 = vld [vmem:[%s274 + $0x30] sm:$0xf]
      %v446 = vld [vmem:[%s274 + $0x34] sm:$0xf]
      %v447 = vld [vmem:[%s274 + $0x38] sm:$0xf]
      %v448 = vld [vmem:[%s274 + $0x3c] sm:$0xf]
      %v449 = vld [vmem:[%s274 + $0x40] sm:$0xf]
      %v450 = vld [vmem:[%s274 + $0x44] sm:$0xf]
      %v451 = vld [vmem:[%s274 + $0x48] sm:$0xf]
      %v452 = vld [vmem:[%s274 + $0x4c] sm:$0xf]
      %v453 = vld [vmem:[%s274 + $0x50] sm:$0xf]
      %v454 = vld [vmem:[%s274 + $0x54] sm:$0xf]
      %v455 = vld [vmem:[%s274 + $0x58] sm:$0xf]
      %v456 = vld [vmem:[%s274 + $0x5c] sm:$0xf]
      %v457 = vld [vmem:[%s274 + $0x60] sm:$0xf]
      %v458 = vld [vmem:[%s274 + $0x64] sm:$0xf]
      %v459 = vld [vmem:[%s274 + $0x68] sm:$0xf]
      %v460 = vld [vmem:[%s274 + $0x6c] sm:$0xf]
      %v461 = vld [vmem:[%s274 + $0x70] sm:$0xf]
      %v462 = vld [vmem:[%s274 + $0x74] sm:$0xf]
      %v463 = vld [vmem:[%s274 + $0x78] sm:$0xf]
      %v464 = vld [vmem:[%s274 + $0x7c] sm:$0xf]
      %v465 = vld [vmem:[%s274 + $0x80] sm:$0xf]
      %v466 = vld [vmem:[%s274 + $0x84] sm:$0xf]
      %v467 = vld [vmem:[%s274 + $0x88] sm:$0xf]
      %v468 = vld [vmem:[%s274 + $0x8c] sm:$0xf]
      %v469 = vld [vmem:[%s274 + $0x90] sm:$0xf]
      %v470 = vld [vmem:[%s274 + $0x94] sm:$0xf]
      %v471 = vld [vmem:[%s274 + $0x98] sm:$0xf]
      %v472 = vld [vmem:[%s274 + $0x9c] sm:$0xf]
      %v473 = vld [vmem:[%s274 + $0xa0] sm:$0xf]
      %v474 = vld [vmem:[%s274 + $0xa4] sm:$0xf]
      %v475 = vld [vmem:[%s274 + $0xa8] sm:$0xf]
      %v476 = vld [vmem:[%s274 + $0xac] sm:$0xf]
      %v477 = vld [vmem:[%s274 + $0xb0] sm:$0xf]
      %v478 = vld [vmem:[%s274 + $0xb4] sm:$0xf]
      %v479 = vld [vmem:[%s274 + $0xb8] sm:$0xf]
      %v480 = vld [vmem:[%s274 + $0xbc] sm:$0xf]
      %v481 = vld [vmem:[%s274 + $0xc0] sm:$0xf]
      %v482 = vld [vmem:[%s274 + $0xc4] sm:$0xf]
      %v483 = vld [vmem:[%s274 + $0xc8] sm:$0xf]
      %v484 = vld [vmem:[%s274 + $0xcc] sm:$0xf]
      %v485 = vld [vmem:[%s274 + $0xd0] sm:$0xf]
      %v486 = vld [vmem:[%s274 + $0xd4] sm:$0xf]
      %v487 = vld [vmem:[%s274 + $0xd8] sm:$0xf]
      %v488 = vld [vmem:[%s274 + $0xdc] sm:$0xf]
      %v489 = vld [vmem:[%s274 + $0xe0] sm:$0xf]
      %v490 = vld [vmem:[%s274 + $0xe4] sm:$0xf]
      %v491 = vld [vmem:[%s274 + $0xe8] sm:$0xf]
      %v492 = vld [vmem:[%s274 + $0xec] sm:$0xf]
      %v493 = vld [vmem:[%s274 + $0xf0] sm:$0xf]
      %v494 = vld [vmem:[%s274 + $0xf4] sm:$0xf]
      %v495 = vld [vmem:[%s274 + $0xf8] sm:$0xf]
      %v496 = vld [vmem:[%s274 + $0xfc] sm:$0xf]
      %v497 = vld [vmem:[%s283] sm:$0xf]
      %v498 = vld [vmem:[%s283 + $0x4] sm:$0xf]
      %v499 = vld [vmem:[%s283 + $0x8] sm:$0xf]
      %v500 = vld [vmem:[%s283 + $0xc] sm:$0xf]
      %v501 = vld [vmem:[%s283 + $0x10] sm:$0xf]
      %v502 = vld [vmem:[%s283 + $0x14] sm:$0xf]
      %v503 = vld [vmem:[%s283 + $0x18] sm:$0xf]
      %v504 = vld [vmem:[%s283 + $0x1c] sm:$0xf]
      %v505 = vld [vmem:[%s283 + $0x20] sm:$0xf]
      %v506 = vld [vmem:[%s283 + $0x24] sm:$0xf]
      %v507 = vld [vmem:[%s283 + $0x28] sm:$0xf]
      %v508 = vld [vmem:[%s283 + $0x2c] sm:$0xf]
      %v509 = vld [vmem:[%s283 + $0x30] sm:$0xf]
      %v510 = vld [vmem:[%s283 + $0x34] sm:$0xf]
      %v511 = vld [vmem:[%s283 + $0x38] sm:$0xf]
      %v512 = vld [vmem:[%s283 + $0x3c] sm:$0xf]
      %v577 = vunpack.c.l.b16 %v433
      %v578 = vunpack.c.l.b16 %v434
      %v579 = vunpack.c.l.b16 %v435
      %v580 = vunpack.c.l.b16 %v436
      %v581 = vunpack.c.l.b16 %v437
      %v582 = vunpack.c.l.b16 %v438
      %v583 = vunpack.c.l.b16 %v439
      %v584 = vunpack.c.l.b16 %v440
      %v585 = vunpack.c.l.b16 %v441
      %v586 = vunpack.c.l.b16 %v442
      %v587 = vunpack.c.l.b16 %v443
      %v588 = vunpack.c.l.b16 %v444
      %v589 = vunpack.c.l.b16 %v445
      %v590 = vunpack.c.l.b16 %v446
      %v591 = vunpack.c.l.b16 %v447
      %v592 = vunpack.c.l.b16 %v448
      %v593 = vunpack.c.l.b16 %v449
      %v594 = vunpack.c.l.b16 %v450
      %v595 = vunpack.c.l.b16 %v451
      %v596 = vunpack.c.l.b16 %v452
      %v597 = vunpack.c.l.b16 %v453
      %v598 = vunpack.c.l.b16 %v454
      %v599 = vunpack.c.l.b16 %v455
      %v600 = vunpack.c.l.b16 %v456
      %v601 = vunpack.c.l.b16 %v457
      %v602 = vunpack.c.l.b16 %v458
      %v603 = vunpack.c.l.b16 %v459
      %v604 = vunpack.c.l.b16 %v460
      %v605 = vunpack.c.l.b16 %v461
      %v606 = vunpack.c.l.b16 %v462
      %v607 = vunpack.c.l.b16 %v463
      %v608 = vunpack.c.l.b16 %v464
      %v609 = vunpack.c.l.b16 %v465
      %v610 = vunpack.c.l.b16 %v466
      %v611 = vunpack.c.l.b16 %v467
      %v612 = vunpack.c.l.b16 %v468
      %v613 = vunpack.c.l.b16 %v469
      %v614 = vunpack.c.l.b16 %v470
      %v615 = vunpack.c.l.b16 %v471
      %v616 = vunpack.c.l.b16 %v472
      %v617 = vunpack.c.l.b16 %v473
      %v618 = vunpack.c.l.b16 %v474
      %v619 = vunpack.c.l.b16 %v475
      %v620 = vunpack.c.l.b16 %v476
      %v621 = vunpack.c.l.b16 %v477
      %v622 = vunpack.c.l.b16 %v478
      %v623 = vunpack.c.l.b16 %v479
      %v624 = vunpack.c.l.b16 %v480
      %v625 = vunpack.c.l.b16 %v481
      %v626 = vunpack.c.l.b16 %v482
      %v627 = vunpack.c.l.b16 %v483
      %v628 = vunpack.c.l.b16 %v484
      %v629 = vunpack.c.l.b16 %v485
      %v630 = vunpack.c.l.b16 %v486
      %v631 = vunpack.c.l.b16 %v487
      %v632 = vunpack.c.l.b16 %v488
      %v633 = vunpack.c.l.b16 %v489
      %v634 = vunpack.c.l.b16 %v490
      %v635 = vunpack.c.l.b16 %v491
      %v636 = vunpack.c.l.b16 %v492
      %v637 = vunpack.c.l.b16 %v493
      %v638 = vunpack.c.l.b16 %v494
      %v639 = vunpack.c.l.b16 %v495
      %v640 = vunpack.c.l.b16 %v496
      %v641 = vpack.c.b16 %v578, %v577
      %v642 = vpack.c.b16 %v580, %v579
      %v643 = vpack.c.b16 %v582, %v581
      %v644 = vpack.c.b16 %v584, %v583
      %v645 = vpack.c.b16 %v586, %v585
      %v646 = vpack.c.b16 %v588, %v587
      %v647 = vpack.c.b16 %v590, %v589
      %v648 = vpack.c.b16 %v592, %v591
      %v649 = vpack.c.b16 %v594, %v593
      %v650 = vpack.c.b16 %v596, %v595
      %v651 = vpack.c.b16 %v598, %v597
      %v652 = vpack.c.b16 %v600, %v599
      %v653 = vpack.c.b16 %v602, %v601
      %v654 = vpack.c.b16 %v604, %v603
      %v655 = vpack.c.b16 %v606, %v605
      %v656 = vpack.c.b16 %v608, %v607
      %v657 = vpack.c.b16 %v610, %v609
      %v658 = vpack.c.b16 %v612, %v611
      %v659 = vpack.c.b16 %v614, %v613
      %v660 = vpack.c.b16 %v616, %v615
      %v661 = vpack.c.b16 %v618, %v617
      %v662 = vpack.c.b16 %v620, %v619
      %v663 = vpack.c.b16 %v622, %v621
      %v664 = vpack.c.b16 %v624, %v623
      %v665 = vpack.c.b16 %v626, %v625
      %v666 = vpack.c.b16 %v628, %v627
      %v667 = vpack.c.b16 %v630, %v629
      %v668 = vpack.c.b16 %v632, %v631
      %v669 = vpack.c.b16 %v634, %v633
      %v670 = vpack.c.b16 %v636, %v635
      %v671 = vpack.c.b16 %v638, %v637
      %v672 = vpack.c.b16 %v640, %v639
      %v721 = vunpack.c.l.b16 %v497
      %v722 = vunpack.c.l.b16 %v498
      %v723 = vunpack.c.l.b16 %v499
      %v724 = vunpack.c.l.b16 %v500
      %v725 = vunpack.c.l.b16 %v501
      %v726 = vunpack.c.l.b16 %v502
      %v727 = vunpack.c.l.b16 %v503
      %v728 = vunpack.c.l.b16 %v504
      %v729 = vunpack.c.l.b16 %v505
      %v730 = vunpack.c.l.b16 %v506
      %v731 = vunpack.c.l.b16 %v507
      %v732 = vunpack.c.l.b16 %v508
      %v733 = vunpack.c.l.b16 %v509
      %v734 = vunpack.c.l.b16 %v510
      %v735 = vunpack.c.l.b16 %v511
      %v736 = vunpack.c.l.b16 %v512
      %v737 = vpack.c.b16 %v722, %v721
      %v738 = vpack.c.b16 %v724, %v723
      %v739 = vpack.c.b16 %v726, %v725
      %v740 = vpack.c.b16 %v728, %v727
      %v741 = vpack.c.b16 %v730, %v729
      %v742 = vpack.c.b16 %v732, %v731
      %v743 = vpack.c.b16 %v734, %v733
      %v744 = vpack.c.b16 %v736, %v735
      %753 = vmatprep.subr.bf16.mxu0 0
      %754 = vmatpush1.bf16.msra.mxu0 %v744
      %755 = vmatprep.subr.bf16.mxu0 0
      %756 = vmatpush1.bf16.msra.mxu0 %v743
      %757 = vmatprep.subr.bf16.mxu0 0
      %758 = vmatpush1.bf16.msra.mxu0 %v742
      %759 = vmatprep.subr.bf16.mxu0 0
      %760 = vmatpush1.bf16.msra.mxu0 %v741
      %761 = vmatprep.subr.bf16.mxu0 0
      %762 = vmatpush1.bf16.msra.mxu0 %v740
      %763 = vmatprep.subr.bf16.mxu0 0
      %764 = vmatpush1.bf16.msra.mxu0 %v739
      %765 = vmatprep.subr.bf16.mxu0 0
      %766 = vmatpush1.bf16.msra.mxu0 %v738
      %767 = vmatprep.subr.bf16.mxu0 0
      %768 = vmatpush1.bf16.msra.mxu0 %v737
      %769 = vmatprep.subr.bf16.mxu0 0
      %770 = vmatpush2.bf16.msra.mxu0 0
      %771 = vmatprep.subr.bf16.mxu0 0
      %772 = vmatpush2.bf16.msra.mxu0 0
      %773 = vmatprep.subr.bf16.mxu0 0
      %774 = vmatpush2.bf16.msra.mxu0 0
      %775 = vmatprep.subr.bf16.mxu0 0
      %776 = vmatpush2.bf16.msra.mxu0 0
      %777 = vmatprep.subr.bf16.mxu0 0
      %778 = vmatpush2.bf16.msra.mxu0 0
      %779 = vmatprep.subr.bf16.mxu0 0
      %780 = vmatpush2.bf16.msra.mxu0 0
      %781 = vmatprep.subr.bf16.mxu0 0
      %782 = vmatpush2.bf16.msra.mxu0 0
      %783 = vmatprep.subr.bf16.mxu0 0
      %784 = vmatpush2.bf16.msra.mxu0 0
      %785 = vmatprep.mubr.bf16.mxu0 0
      %786 = vmatmul.mubr.bf16.gmra.mxu0 %v641
      %v787 = vpop.f32.mrf.mxu0
      %v788 = vadd.f32 0.0, %v787
      %v789 = vpop.f32.mrf.mxu0
      %v790 = vpop.f32.mrf.mxu0
      %v791 = vadd.f32 0.0, %v790
      %v792 = vpop.f32.mrf.mxu0
      %793 = vmatprep.mubr.bf16.mxu0 0
      %794 = vmatmul.mubr.bf16.gmra.mxu0 %v642
      %v795 = vpop.f32.mrf.mxu0
      %v796 = vadd.f32 0.0, %v795
      %v797 = vpop.f32.mrf.mxu0
      %v798 = vpop.f32.mrf.mxu0
      %v799 = vadd.f32 0.0, %v798
      %v800 = vpop.f32.mrf.mxu0
      %801 = vmatprep.mubr.bf16.mxu0 0
      %802 = vmatmul.mubr.bf16.gmra.mxu0 %v643
      %v803 = vpop.f32.mrf.mxu0
      %v804 = vadd.f32 0.0, %v803
      %v805 = vpop.f32.mrf.mxu0
      %v806 = vpop.f32.mrf.mxu0
      %v807 = vadd.f32 0.0, %v806
      %v808 = vpop.f32.mrf.mxu0
      %809 = vmatprep.mubr.bf16.mxu0 0
      %810 = vmatmul.mubr.bf16.gmra.mxu0 %v644
      %v811 = vpop.f32.mrf.mxu0
      %v812 = vadd.f32 0.0, %v811
      %v813 = vpop.f32.mrf.mxu0
      %v814 = vpop.f32.mrf.mxu0
      %v815 = vadd.f32 0.0, %v814
      %v816 = vpop.f32.mrf.mxu0
      %817 = vmatprep.mubr.bf16.mxu0 0
      %818 = vmatmul.mubr.bf16.gmra.mxu0 %v645
      %v819 = vpop.f32.mrf.mxu0
      %v820 = vadd.f32 0.0, %v819
      %v821 = vpop.f32.mrf.mxu0
      %v822 = vpop.f32.mrf.mxu0
      %v823 = vadd.f32 0.0, %v822
      %v824 = vpop.f32.mrf.mxu0
      %825 = vmatprep.mubr.bf16.mxu0 0
      %826 = vmatmul.mubr.bf16.gmra.mxu0 %v646
      %v827 = vpop.f32.mrf.mxu0
      %v828 = vadd.f32 0.0, %v827
      %v829 = vpop.f32.mrf.mxu0
      %v830 = vpop.f32.mrf.mxu0
      %v831 = vadd.f32 0.0, %v830
      %v832 = vpop.f32.mrf.mxu0
      %833 = vmatprep.mubr.bf16.mxu0 0
      %834 = vmatmul.mubr.bf16.gmra.mxu0 %v647
      %v835 = vpop.f32.mrf.mxu0
      %v836 = vadd.f32 0.0, %v835
      %v837 = vpop.f32.mrf.mxu0
      %v838 = vpop.f32.mrf.mxu0
      %v839 = vadd.f32 0.0, %v838
      %v840 = vpop.f32.mrf.mxu0
      %841 = vmatprep.mubr.bf16.mxu0 0
      %842 = vmatmul.mubr.bf16.gmra.mxu0 %v648
      %v843 = vpop.f32.mrf.mxu0
      %v844 = vadd.f32 0.0, %v843
      %v845 = vpop.f32.mrf.mxu0
      %v846 = vpop.f32.mrf.mxu0
      %v847 = vadd.f32 0.0, %v846
      %v848 = vpop.f32.mrf.mxu0
      %849 = vmatprep.mubr.bf16.mxu0 0
      %850 = vmatmul.mubr.bf16.gmra.mxu0 %v649
      %v851 = vpop.f32.mrf.mxu0
      %v852 = vadd.f32 0.0, %v851
      %v853 = vpop.f32.mrf.mxu0
      %v854 = vpop.f32.mrf.mxu0
      %v855 = vadd.f32 0.0, %v854
      %v856 = vpop.f32.mrf.mxu0
      %857 = vmatprep.mubr.bf16.mxu0 0
      %858 = vmatmul.mubr.bf16.gmra.mxu0 %v650
      %v859 = vpop.f32.mrf.mxu0
      %v860 = vadd.f32 0.0, %v859
      %v861 = vpop.f32.mrf.mxu0
      %v862 = vpop.f32.mrf.mxu0
      %v863 = vadd.f32 0.0, %v862
      %v864 = vpop.f32.mrf.mxu0
      %865 = vmatprep.mubr.bf16.mxu0 0
      %866 = vmatmul.mubr.bf16.gmra.mxu0 %v651
      %v867 = vpop.f32.mrf.mxu0
      %v868 = vadd.f32 0.0, %v867
      %v869 = vpop.f32.mrf.mxu0
      %v870 = vpop.f32.mrf.mxu0
      %v871 = vadd.f32 0.0, %v870
      %v872 = vpop.f32.mrf.mxu0
      %873 = vmatprep.mubr.bf16.mxu0 0
      %874 = vmatmul.mubr.bf16.gmra.mxu0 %v652
      %v875 = vpop.f32.mrf.mxu0
      %v876 = vadd.f32 0.0, %v875
      %v877 = vpop.f32.mrf.mxu0
      %v878 = vpop.f32.mrf.mxu0
      %v879 = vadd.f32 0.0, %v878
      %v880 = vpop.f32.mrf.mxu0
      %881 = vmatprep.mubr.bf16.mxu0 0
      %882 = vmatmul.mubr.bf16.gmra.mxu0 %v653
      %v883 = vpop.f32.mrf.mxu0
      %v884 = vadd.f32 0.0, %v883
      %v885 = vpop.f32.mrf.mxu0
      %v886 = vpop.f32.mrf.mxu0
      %v887 = vadd.f32 0.0, %v886
      %v888 = vpop.f32.mrf.mxu0
      %889 = vmatprep.mubr.bf16.mxu0 0
      %890 = vmatmul.mubr.bf16.gmra.mxu0 %v654
      %v891 = vpop.f32.mrf.mxu0
      %v892 = vadd.f32 0.0, %v891
      %v893 = vpop.f32.mrf.mxu0
      %v894 = vpop.f32.mrf.mxu0
      %v895 = vadd.f32 0.0, %v894
      %v896 = vpop.f32.mrf.mxu0
      %897 = vmatprep.mubr.bf16.mxu0 0
      %898 = vmatmul.mubr.bf16.gmra.mxu0 %v655
      %v899 = vpop.f32.mrf.mxu0
      %v900 = vadd.f32 0.0, %v899
      %v901 = vpop.f32.mrf.mxu0
      %v902 = vpop.f32.mrf.mxu0
      %v903 = vadd.f32 0.0, %v902
      %v904 = vpop.f32.mrf.mxu0
      %905 = vmatprep.mubr.bf16.mxu0 0
      %906 = vmatmul.mubr.bf16.gmra.mxu0 %v656
      %v907 = vpop.f32.mrf.mxu0
      %v908 = vadd.f32 0.0, %v907
      %v909 = vpop.f32.mrf.mxu0
      %v910 = vpop.f32.mrf.mxu0
      %v911 = vadd.f32 0.0, %v910
      %v912 = vpop.f32.mrf.mxu0
      %913 = vmatprep.mubr.bf16.mxu0 0
      %914 = vmatmul.mubr.bf16.gmra.mxu0 %v657
      %v915 = vpop.f32.mrf.mxu0
      %v916 = vadd.f32 0.0, %v915
      %v917 = vpop.f32.mrf.mxu0
      %v918 = vpop.f32.mrf.mxu0
      %v919 = vadd.f32 0.0, %v918
      %v920 = vpop.f32.mrf.mxu0
      %921 = vmatprep.mubr.bf16.mxu0 0
      %922 = vmatmul.mubr.bf16.gmra.mxu0 %v658
      %v923 = vpop.f32.mrf.mxu0
      %v924 = vadd.f32 0.0, %v923
      %v925 = vpop.f32.mrf.mxu0
      %v926 = vpop.f32.mrf.mxu0
      %v927 = vadd.f32 0.0, %v926
      %v928 = vpop.f32.mrf.mxu0
      %929 = vmatprep.mubr.bf16.mxu0 0
      %930 = vmatmul.mubr.bf16.gmra.mxu0 %v659
      %v931 = vpop.f32.mrf.mxu0
      %v932 = vadd.f32 0.0, %v931
      %v933 = vpop.f32.mrf.mxu0
      %v934 = vpop.f32.mrf.mxu0
      %v935 = vadd.f32 0.0, %v934
      %v936 = vpop.f32.mrf.mxu0
      %937 = vmatprep.mubr.bf16.mxu0 0
      %938 = vmatmul.mubr.bf16.gmra.mxu0 %v660
      %v939 = vpop.f32.mrf.mxu0
      %v940 = vadd.f32 0.0, %v939
      %v941 = vpop.f32.mrf.mxu0
      %v942 = vpop.f32.mrf.mxu0
      %v943 = vadd.f32 0.0, %v942
      %v944 = vpop.f32.mrf.mxu0
      %945 = vmatprep.mubr.bf16.mxu0 0
      %946 = vmatmul.mubr.bf16.gmra.mxu0 %v661
      %v947 = vpop.f32.mrf.mxu0
      %v948 = vadd.f32 0.0, %v947
      %v949 = vpop.f32.mrf.mxu0
      %v950 = vpop.f32.mrf.mxu0
      %v951 = vadd.f32 0.0, %v950
      %v952 = vpop.f32.mrf.mxu0
      %953 = vmatprep.mubr.bf16.mxu0 0
      %954 = vmatmul.mubr.bf16.gmra.mxu0 %v662
      %v955 = vpop.f32.mrf.mxu0
      %v956 = vadd.f32 0.0, %v955
      %v957 = vpop.f32.mrf.mxu0
      %v958 = vpop.f32.mrf.mxu0
      %v959 = vadd.f32 0.0, %v958
      %v960 = vpop.f32.mrf.mxu0
      %961 = vmatprep.mubr.bf16.mxu0 0
      %962 = vmatmul.mubr.bf16.gmra.mxu0 %v663
      %v963 = vpop.f32.mrf.mxu0
      %v964 = vadd.f32 0.0, %v963
      %v965 = vpop.f32.mrf.mxu0
      %v966 = vpop.f32.mrf.mxu0
      %v967 = vadd.f32 0.0, %v966
      %v968 = vpop.f32.mrf.mxu0
      %969 = vmatprep.mubr.bf16.mxu0 0
      %970 = vmatmul.mubr.bf16.gmra.mxu0 %v664
      %v971 = vpop.f32.mrf.mxu0
      %v972 = vadd.f32 0.0, %v971
      %v973 = vpop.f32.mrf.mxu0
      %v974 = vpop.f32.mrf.mxu0
      %v975 = vadd.f32 0.0, %v974
      %v976 = vpop.f32.mrf.mxu0
      %977 = vmatprep.mubr.bf16.mxu0 0
      %978 = vmatmul.mubr.bf16.gmra.mxu0 %v665
      %v979 = vpop.f32.mrf.mxu0
      %v980 = vadd.f32 0.0, %v979
      %v981 = vpop.f32.mrf.mxu0
      %v982 = vpop.f32.mrf.mxu0
      %v983 = vadd.f32 0.0, %v982
      %v984 = vpop.f32.mrf.mxu0
      %985 = vmatprep.mubr.bf16.mxu0 0
      %986 = vmatmul.mubr.bf16.gmra.mxu0 %v666
      %v987 = vpop.f32.mrf.mxu0
      %v988 = vadd.f32 0.0, %v987
      %v989 = vpop.f32.mrf.mxu0
      %v990 = vpop.f32.mrf.mxu0
      %v991 = vadd.f32 0.0, %v990
      %v992 = vpop.f32.mrf.mxu0
      %993 = vmatprep.mubr.bf16.mxu0 0
      %994 = vmatmul.mubr.bf16.gmra.mxu0 %v667
      %v995 = vpop.f32.mrf.mxu0
      %v996 = vadd.f32 0.0, %v995
      %v997 = vpop.f32.mrf.mxu0
      %v998 = vpop.f32.mrf.mxu0
      %v999 = vadd.f32 0.0, %v998
      %v1000 = vpop.f32.mrf.mxu0
      %1001 = vmatprep.mubr.bf16.mxu0 0
      %1002 = vmatmul.mubr.bf16.gmra.mxu0 %v668
      %v1003 = vpop.f32.mrf.mxu0
      %v1004 = vadd.f32 0.0, %v1003
      %v1005 = vpop.f32.mrf.mxu0
      %v1006 = vpop.f32.mrf.mxu0
      %v1007 = vadd.f32 0.0, %v1006
      %v1008 = vpop.f32.mrf.mxu0
      %1009 = vmatprep.mubr.bf16.mxu0 0
      %1010 = vmatmul.mubr.bf16.gmra.mxu0 %v669
      %v1011 = vpop.f32.mrf.mxu0
      %v1012 = vadd.f32 0.0, %v1011
      %v1013 = vpop.f32.mrf.mxu0
      %v1014 = vpop.f32.mrf.mxu0
      %v1015 = vadd.f32 0.0, %v1014
      %v1016 = vpop.f32.mrf.mxu0
      %1017 = vmatprep.mubr.bf16.mxu0 0
      %1018 = vmatmul.mubr.bf16.gmra.mxu0 %v670
      %v1019 = vpop.f32.mrf.mxu0
      %v1020 = vadd.f32 0.0, %v1019
      %v1021 = vpop.f32.mrf.mxu0
      %v1022 = vpop.f32.mrf.mxu0
      %v1023 = vadd.f32 0.0, %v1022
      %v1024 = vpop.f32.mrf.mxu0
      %1025 = vmatprep.mubr.bf16.mxu0 0
      %1026 = vmatmul.mubr.bf16.gmra.mxu0 %v671
      %v1027 = vpop.f32.mrf.mxu0
      %v1028 = vadd.f32 0.0, %v1027
      %v1029 = vpop.f32.mrf.mxu0
      %v1030 = vpop.f32.mrf.mxu0
      %v1031 = vadd.f32 0.0, %v1030
      %v1032 = vpop.f32.mrf.mxu0
      %1033 = vmatprep.mubr.bf16.mxu0 0
      %1034 = vmatmul.mubr.bf16.gmra.mxu0 %v672
      %v1035 = vpop.f32.mrf.mxu0
      %v1036 = vadd.f32 0.0, %v1035
      %v1037 = vpop.f32.mrf.mxu0
      %v1038 = vpop.f32.mrf.mxu0
      %v1039 = vadd.f32 0.0, %v1038
      %v1040 = vpop.f32.mrf.mxu0
      %1041 = vdwg.mxu0
      %v1042 = vadd.f32 %v369, %v788
      %v1043 = vadd.f32 %v370, %v791
      %v1044 = vadd.f32 %v371, %v796
      %v1045 = vadd.f32 %v372, %v799
      %v1046 = vadd.f32 %v373, %v804
      %v1047 = vadd.f32 %v374, %v807
      %v1048 = vadd.f32 %v375, %v812
      %v1049 = vadd.f32 %v376, %v815
      %v1050 = vadd.f32 %v377, %v820
      %v1051 = vadd.f32 %v378, %v823
      %v1052 = vadd.f32 %v379, %v828
      %v1053 = vadd.f32 %v380, %v831
      %v1054 = vadd.f32 %v381, %v836
      %v1055 = vadd.f32 %v382, %v839
      %v1056 = vadd.f32 %v383, %v844
      %v1057 = vadd.f32 %v384, %v847
      %v1058 = vadd.f32 %v385, %v852
      %v1059 = vadd.f32 %v386, %v855
      %v1060 = vadd.f32 %v387, %v860
      %v1061 = vadd.f32 %v388, %v863
      %v1062 = vadd.f32 %v389, %v868
      %v1063 = vadd.f32 %v390, %v871
      %v1064 = vadd.f32 %v391, %v876
      %v1065 = vadd.f32 %v392, %v879
      %v1066 = vadd.f32 %v393, %v884
      %v1067 = vadd.f32 %v394, %v887
      %v1068 = vadd.f32 %v395, %v892
      %v1069 = vadd.f32 %v396, %v895
      %v1070 = vadd.f32 %v397, %v900
      %v1071 = vadd.f32 %v398, %v903
      %v1072 = vadd.f32 %v399, %v908
      %v1073 = vadd.f32 %v400, %v911
      %v1074 = vadd.f32 %v401, %v916
      %v1075 = vadd.f32 %v402, %v919
      %v1076 = vadd.f32 %v403, %v924
      %v1077 = vadd.f32 %v404, %v927
      %v1078 = vadd.f32 %v405, %v932
      %v1079 = vadd.f32 %v406, %v935
      %v1080 = vadd.f32 %v407, %v940
      %v1081 = vadd.f32 %v408, %v943
      %v1082 = vadd.f32 %v409, %v948
      %v1083 = vadd.f32 %v410, %v951
      %v1084 = vadd.f32 %v411, %v956
      %v1085 = vadd.f32 %v412, %v959
      %v1086 = vadd.f32 %v413, %v964
      %v1087 = vadd.f32 %v414, %v967
      %v1088 = vadd.f32 %v415, %v972
      %v1089 = vadd.f32 %v416, %v975
      %v1090 = vadd.f32 %v417, %v980
      %v1091 = vadd.f32 %v418, %v983
      %v1092 = vadd.f32 %v419, %v988
      %v1093 = vadd.f32 %v420, %v991
      %v1094 = vadd.f32 %v421, %v996
      %v1095 = vadd.f32 %v422, %v999
      %v1096 = vadd.f32 %v423, %v1004
      %v1097 = vadd.f32 %v424, %v1007
      %v1098 = vadd.f32 %v425, %v1012
      %v1099 = vadd.f32 %v426, %v1015
      %v1100 = vadd.f32 %v427, %v1020
      %v1101 = vadd.f32 %v428, %v1023
      %v1102 = vadd.f32 %v429, %v1028
      %v1103 = vadd.f32 %v430, %v1031
      %v1104 = vadd.f32 %v431, %v1036
      %v1105 = vadd.f32 %v432, %v1039
      %1106 = vst [vmem:[#allocation2] sm:$0xff] %v1042
      %1107 = vst [vmem:[#allocation2 + $0x8] sm:$0xff] %v1043
      %1108 = vst [vmem:[#allocation2 + $0x10] sm:$0xff] %v1044
      %1109 = vst [vmem:[#allocation2 + $0x18] sm:$0xff] %v1045
      %1110 = vst [vmem:[#allocation2 + $0x20] sm:$0xff] %v1046
      %1111 = vst [vmem:[#allocation2 + $0x28] sm:$0xff] %v1047
      %1112 = vst [vmem:[#allocation2 + $0x30] sm:$0xff] %v1048
      %1113 = vst [vmem:[#allocation2 + $0x38] sm:$0xff] %v1049
      %1114 = vst [vmem:[#allocation2 + $0x40] sm:$0xff] %v1050
      %1115 = vst [vmem:[#allocation2 + $0x48] sm:$0xff] %v1051
      %1116 = vst [vmem:[#allocation2 + $0x50] sm:$0xff] %v1052
      %1117 = vst [vmem:[#allocation2 + $0x58] sm:$0xff] %v1053
      %1118 = vst [vmem:[#allocation2 + $0x60] sm:$0xff] %v1054
      %1119 = vst [vmem:[#allocation2 + $0x68] sm:$0xff] %v1055
      %1120 = vst [vmem:[#allocation2 + $0x70] sm:$0xff] %v1056
      %1121 = vst [vmem:[#allocation2 + $0x78] sm:$0xff] %v1057
      %1122 = vst [vmem:[#allocation2 + $0x80] sm:$0xff] %v1058
      %1123 = vst [vmem:[#allocation2 + $0x88] sm:$0xff] %v1059
      %1124 = vst [vmem:[#allocation2 + $0x90] sm:$0xff] %v1060
      %1125 = vst [vmem:[#allocation2 + $0x98] sm:$0xff] %v1061
      %1126 = vst [vmem:[#allocation2 + $0xa0] sm:$0xff] %v1062
      %1127 = vst [vmem:[#allocation2 + $0xa8] sm:$0xff] %v1063
      %1128 = vst [vmem:[#allocation2 + $0xb0] sm:$0xff] %v1064
      %1129 = vst [vmem:[#allocation2 + $0xb8] sm:$0xff] %v1065
      %1130 = vst [vmem:[#allocation2 + $0xc0] sm:$0xff] %v1066
      %1131 = vst [vmem:[#allocation2 + $0xc8] sm:$0xff] %v1067
      %1132 = vst [vmem:[#allocation2 + $0xd0] sm:$0xff] %v1068
      %1133 = vst [vmem:[#allocation2 + $0xd8] sm:$0xff] %v1069
      %1134 = vst [vmem:[#allocation2 + $0xe0] sm:$0xff] %v1070
      %1135 = vst [vmem:[#allocation2 + $0xe8] sm:$0xff] %v1071
      %1136 = vst [vmem:[#allocation2 + $0xf0] sm:$0xff] %v1072
      %1137 = vst [vmem:[#allocation2 + $0xf8] sm:$0xff] %v1073
      %1138 = vst [vmem:[#allocation2 + $0x100] sm:$0xff] %v1074
      %1139 = vst [vmem:[#allocation2 + $0x108] sm:$0xff] %v1075
      %1140 = vst [vmem:[#allocation2 + $0x110] sm:$0xff] %v1076
      %1141 = vst [vmem:[#allocation2 + $0x118] sm:$0xff] %v1077
      %1142 = vst [vmem:[#allocation2 + $0x120] sm:$0xff] %v1078
      %1143 = vst [vmem:[#allocation2 + $0x128] sm:$0xff] %v1079
      %1144 = vst [vmem:[#allocation2 + $0x130] sm:$0xff] %v1080
      %1145 = vst [vmem:[#allocation2 + $0x138] sm:$0xff] %v1081
      %1146 = vst [vmem:[#allocation2 + $0x140] sm:$0xff] %v1082
      %1147 = vst [vmem:[#allocation2 + $0x148] sm:$0xff] %v1083
      %1148 = vst [vmem:[#allocation2 + $0x150] sm:$0xff] %v1084
      %1149 = vst [vmem:[#allocation2 + $0x158] sm:$0xff] %v1085
      %1150 = vst [vmem:[#allocation2 + $0x160] sm:$0xff] %v1086
      %1151 = vst [vmem:[#allocation2 + $0x168] sm:$0xff] %v1087
      %1152 = vst [vmem:[#allocation2 + $0x170] sm:$0xff] %v1088
      %1153 = vst [vmem:[#allocation2 + $0x178] sm:$0xff] %v1089
      %1154 = vst [vmem:[#allocation2 + $0x180] sm:$0xff] %v1090
      %1155 = vst [vmem:[#allocation2 + $0x188] sm:$0xff] %v1091
      %1156 = vst [vmem:[#allocation2 + $0x190] sm:$0xff] %v1092
      %1157 = vst [vmem:[#allocation2 + $0x198] sm:$0xff] %v1093
      %1158 = vst [vmem:[#allocation2 + $0x1a0] sm:$0xff] %v1094
      %1159 = vst [vmem:[#allocation2 + $0x1a8] sm:$0xff] %v1095
      %1160 = vst [vmem:[#allocation2 + $0x1b0] sm:$0xff] %v1096
      %1161 = vst [vmem:[#allocation2 + $0x1b8] sm:$0xff] %v1097
      %1162 = vst [vmem:[#allocation2 + $0x1c0] sm:$0xff] %v1098
      %1163 = vst [vmem:[#allocation2 + $0x1c8] sm:$0xff] %v1099
      %1164 = vst [vmem:[#allocation2 + $0x1d0] sm:$0xff] %v1100
      %1165 = vst [vmem:[#allocation2 + $0x1d8] sm:$0xff] %v1101
      %1166 = vst [vmem:[#allocation2 + $0x1e0] sm:$0xff] %v1102
      %1167 = vst [vmem:[#allocation2 + $0x1e8] sm:$0xff] %v1103
      %1168 = vst [vmem:[#allocation2 + $0x1f0] sm:$0xff] %v1104
      %1169 = vst [vmem:[#allocation2 + $0x1f8] sm:$0xff] %v1105
      // Predicated region
      $region41: #{decoder_forward.121} parent=35 // pred_check
        %p1170 = pneg %p301
      $region42: #{decoder_forward.121} parent=35 // pred_check_branch
        %1172 = sbr.rel (%p1170) target = $region44
      $region43: #{decoder_forward.121} parent=35 // pred_region
        %v1173 = vld [vmem:[#allocation2] sm:$0xff]
        %v1174 = vld [vmem:[#allocation2 + $0x8] sm:$0xff]
        %v1175 = vld [vmem:[#allocation2 + $0x10] sm:$0xff]
        %v1176 = vld [vmem:[#allocation2 + $0x18] sm:$0xff]
        %v1177 = vld [vmem:[#allocation2 + $0x20] sm:$0xff]
        %v1178 = vld [vmem:[#allocation2 + $0x28] sm:$0xff]
        %v1179 = vld [vmem:[#allocation2 + $0x30] sm:$0xff]
        %v1180 = vld [vmem:[#allocation2 + $0x38] sm:$0xff]
        %v1181 = vld [vmem:[#allocation2 + $0x40] sm:$0xff]
        %v1182 = vld [vmem:[#allocation2 + $0x48] sm:$0xff]
        %v1183 = vld [vmem:[#allocation2 + $0x50] sm:$0xff]
        %v1184 = vld [vmem:[#allocation2 + $0x58] sm:$0xff]
        %v1185 = vld [vmem:[#allocation2 + $0x60] sm:$0xff]
        %v1186 = vld [vmem:[#allocation2 + $0x68] sm:$0xff]
        %v1187 = vld [vmem:[#allocation2 + $0x70] sm:$0xff]
        %v1188 = vld [vmem:[#allocation2 + $0x78] sm:$0xff]
        %v1189 = vld [vmem:[#allocation2 + $0x80] sm:$0xff]
        %v1190 = vld [vmem:[#allocation2 + $0x88] sm:$0xff]
        %v1191 = vld [vmem:[#allocation2 + $0x90] sm:$0xff]
        %v1192 = vld [vmem:[#allocation2 + $0x98] sm:$0xff]
        %v1193 = vld [vmem:[#allocation2 + $0xa0] sm:$0xff]
        %v1194 = vld [vmem:[#allocation2 + $0xa8] sm:$0xff]
        %v1195 = vld [vmem:[#allocation2 + $0xb0] sm:$0xff]
        %v1196 = vld [vmem:[#allocation2 + $0xb8] sm:$0xff]
        %v1197 = vld [vmem:[#allocation2 + $0xc0] sm:$0xff]
        %v1198 = vld [vmem:[#allocation2 + $0xc8] sm:$0xff]
        %v1199 = vld [vmem:[#allocation2 + $0xd0] sm:$0xff]
        %v1200 = vld [vmem:[#allocation2 + $0xd8] sm:$0xff]
        %v1201 = vld [vmem:[#allocation2 + $0xe0] sm:$0xff]
        %v1202 = vld [vmem:[#allocation2 + $0xe8] sm:$0xff]
        %v1203 = vld [vmem:[#allocation2 + $0xf0] sm:$0xff]
        %v1204 = vld [vmem:[#allocation2 + $0xf8] sm:$0xff]
        %v1205 = vld [vmem:[#allocation2 + $0x100] sm:$0xff]
        %v1206 = vld [vmem:[#allocation2 + $0x108] sm:$0xff]
        %v1207 = vld [vmem:[#allocation2 + $0x110] sm:$0xff]
        %v1208 = vld [vmem:[#allocation2 + $0x118] sm:$0xff]
        %v1209 = vld [vmem:[#allocation2 + $0x120] sm:$0xff]
        %v1210 = vld [vmem:[#allocation2 + $0x128] sm:$0xff]
        %v1211 = vld [vmem:[#allocation2 + $0x130] sm:$0xff]
        %v1212 = vld [vmem:[#allocation2 + $0x138] sm:$0xff]
        %v1213 = vld [vmem:[#allocation2 + $0x140] sm:$0xff]
        %v1214 = vld [vmem:[#allocation2 + $0x148] sm:$0xff]
        %v1215 = vld [vmem:[#allocation2 + $0x150] sm:$0xff]
        %v1216 = vld [vmem:[#allocation2 + $0x158] sm:$0xff]
        %v1217 = vld [vmem:[#allocation2 + $0x160] sm:$0xff]
        %v1218 = vld [vmem:[#allocation2 + $0x168] sm:$0xff]
        %v1219 = vld [vmem:[#allocation2 + $0x170] sm:$0xff]
        %v1220 = vld [vmem:[#allocation2 + $0x178] sm:$0xff]
        %v1221 = vld [vmem:[#allocation2 + $0x180] sm:$0xff]
        %v1222 = vld [vmem:[#allocation2 + $0x188] sm:$0xff]
        %v1223 = vld [vmem:[#allocation2 + $0x190] sm:$0xff]
        %v1224 = vld [vmem:[#allocation2 + $0x198] sm:$0xff]
        %v1225 = vld [vmem:[#allocation2 + $0x1a0] sm:$0xff]
        %v1226 = vld [vmem:[#allocation2 + $0x1a8] sm:$0xff]
        %v1227 = vld [vmem:[#allocation2 + $0x1b0] sm:$0xff]
        %v1228 = vld [vmem:[#allocation2 + $0x1b8] sm:$0xff]
        %v1229 = vld [vmem:[#allocation2 + $0x1c0] sm:$0xff]
        %v1230 = vld [vmem:[#allocation2 + $0x1c8] sm:$0xff]
        %v1231 = vld [vmem:[#allocation2 + $0x1d0] sm:$0xff]
        %v1232 = vld [vmem:[#allocation2 + $0x1d8] sm:$0xff]
        %v1233 = vld [vmem:[#allocation2 + $0x1e0] sm:$0xff]
        %v1234 = vld [vmem:[#allocation2 + $0x1e8] sm:$0xff]
        %v1235 = vld [vmem:[#allocation2 + $0x1f0] sm:$0xff]
        %v1236 = vld [vmem:[#allocation2 + $0x1f8] sm:$0xff]
        %v1237 = vld [vmem:[%s287] sm:$0x1]
        %v1239 = vlaneseq
        %v1240 = vshrl.u32 %v1239, 7
        %v1241 = vsub.s32 0, %v1240
        %v1242 = vrot.slane %v1237, %v1241
        %v1244 = vmul.f32 %v1173, %v1242
        %v1245 = vmul.f32 %v1174, %v1242
        %v1246 = vmul.f32 %v1175, %v1242
        %v1247 = vmul.f32 %v1176, %v1242
        %v1248 = vmul.f32 %v1177, %v1242
        %v1249 = vmul.f32 %v1178, %v1242
        %v1250 = vmul.f32 %v1179, %v1242
        %v1251 = vmul.f32 %v1180, %v1242
        %v1252 = vmul.f32 %v1181, %v1242
        %v1253 = vmul.f32 %v1182, %v1242
        %v1254 = vmul.f32 %v1183, %v1242
        %v1255 = vmul.f32 %v1184, %v1242
        %v1256 = vmul.f32 %v1185, %v1242
        %v1257 = vmul.f32 %v1186, %v1242
        %v1258 = vmul.f32 %v1187, %v1242
        %v1259 = vmul.f32 %v1188, %v1242
        %v1260 = vmul.f32 %v1189, %v1242
        %v1261 = vmul.f32 %v1190, %v1242
        %v1262 = vmul.f32 %v1191, %v1242
        %v1263 = vmul.f32 %v1192, %v1242
        %v1264 = vmul.f32 %v1193, %v1242
        %v1265 = vmul.f32 %v1194, %v1242
        %v1266 = vmul.f32 %v1195, %v1242
        %v1267 = vmul.f32 %v1196, %v1242
        %v1268 = vmul.f32 %v1197, %v1242
        %v1269 = vmul.f32 %v1198, %v1242
        %v1270 = vmul.f32 %v1199, %v1242
        %v1271 = vmul.f32 %v1200, %v1242
        %v1272 = vmul.f32 %v1201, %v1242
        %v1273 = vmul.f32 %v1202, %v1242
        %v1274 = vmul.f32 %v1203, %v1242
        %v1275 = vmul.f32 %v1204, %v1242
        %v1276 = vmul.f32 %v1205, %v1242
        %v1277 = vmul.f32 %v1206, %v1242
        %v1278 = vmul.f32 %v1207, %v1242
        %v1279 = vmul.f32 %v1208, %v1242
        %v1280 = vmul.f32 %v1209, %v1242
        %v1281 = vmul.f32 %v1210, %v1242
        %v1282 = vmul.f32 %v1211, %v1242
        %v1283 = vmul.f32 %v1212, %v1242
        %v1284 = vmul.f32 %v1213, %v1242
        %v1285 = vmul.f32 %v1214, %v1242
        %v1286 = vmul.f32 %v1215, %v1242
        %v1287 = vmul.f32 %v1216, %v1242
        %v1288 = vmul.f32 %v1217, %v1242
        %v1289 = vmul.f32 %v1218, %v1242
        %v1290 = vmul.f32 %v1219, %v1242
        %v1291 = vmul.f32 %v1220, %v1242
        %v1292 = vmul.f32 %v1221, %v1242
        %v1293 = vmul.f32 %v1222, %v1242
        %v1294 = vmul.f32 %v1223, %v1242
        %v1295 = vmul.f32 %v1224, %v1242
        %v1296 = vmul.f32 %v1225, %v1242
        %v1297 = vmul.f32 %v1226, %v1242
        %v1298 = vmul.f32 %v1227, %v1242
        %v1299 = vmul.f32 %v1228, %v1242
        %v1300 = vmul.f32 %v1229, %v1242
        %v1301 = vmul.f32 %v1230, %v1242
        %v1302 = vmul.f32 %v1231, %v1242
        %v1303 = vmul.f32 %v1232, %v1242
        %v1304 = vmul.f32 %v1233, %v1242
        %v1305 = vmul.f32 %v1234, %v1242
        %v1306 = vmul.f32 %v1235, %v1242
        %v1307 = vmul.f32 %v1236, %v1242
        %v1308 = vld [vmem:[%s290] sm:$0x1]
        %v1310 = vlaneseq
        %v1311 = vshrl.u32 %v1310, 7
        %v1312 = vsub.s32 0, %v1311
        %v1313 = vrot.slane %v1308, %v1312
        %v1315 = vadd.f32 %v1244, %v1313
        %v1316 = vadd.f32 %v1245, %v1313
        %v1317 = vadd.f32 %v1246, %v1313
        %v1318 = vadd.f32 %v1247, %v1313
        %v1319 = vadd.f32 %v1248, %v1313
        %v1320 = vadd.f32 %v1249, %v1313
        %v1321 = vadd.f32 %v1250, %v1313
        %v1322 = vadd.f32 %v1251, %v1313
        %v1323 = vadd.f32 %v1252, %v1313
        %v1324 = vadd.f32 %v1253, %v1313
        %v1325 = vadd.f32 %v1254, %v1313
        %v1326 = vadd.f32 %v1255, %v1313
        %v1327 = vadd.f32 %v1256, %v1313
        %v1328 = vadd.f32 %v1257, %v1313
        %v1329 = vadd.f32 %v1258, %v1313
        %v1330 = vadd.f32 %v1259, %v1313
        %v1331 = vadd.f32 %v1260, %v1313
        %v1332 = vadd.f32 %v1261, %v1313
        %v1333 = vadd.f32 %v1262, %v1313
        %v1334 = vadd.f32 %v1263, %v1313
        %v1335 = vadd.f32 %v1264, %v1313
        %v1336 = vadd.f32 %v1265, %v1313
        %v1337 = vadd.f32 %v1266, %v1313
        %v1338 = vadd.f32 %v1267, %v1313
        %v1339 = vadd.f32 %v1268, %v1313
        %v1340 = vadd.f32 %v1269, %v1313
        %v1341 = vadd.f32 %v1270, %v1313
        %v1342 = vadd.f32 %v1271, %v1313
        %v1343 = vadd.f32 %v1272, %v1313
        %v1344 = vadd.f32 %v1273, %v1313
        %v1345 = vadd.f32 %v1274, %v1313
        %v1346 = vadd.f32 %v1275, %v1313
        %v1347 = vadd.f32 %v1276, %v1313
        %v1348 = vadd.f32 %v1277, %v1313
        %v1349 = vadd.f32 %v1278, %v1313
        %v1350 = vadd.f32 %v1279, %v1313
        %v1351 = vadd.f32 %v1280, %v1313
        %v1352 = vadd.f32 %v1281, %v1313
        %v1353 = vadd.f32 %v1282, %v1313
        %v1354 = vadd.f32 %v1283, %v1313
        %v1355 = vadd.f32 %v1284, %v1313
        %v1356 = vadd.f32 %v1285, %v1313
        %v1357 = vadd.f32 %v1286, %v1313
        %v1358 = vadd.f32 %v1287, %v1313
        %v1359 = vadd.f32 %v1288, %v1313
        %v1360 = vadd.f32 %v1289, %v1313
        %v1361 = vadd.f32 %v1290, %v1313
        %v1362 = vadd.f32 %v1291, %v1313
        %v1363 = vadd.f32 %v1292, %v1313
        %v1364 = vadd.f32 %v1293, %v1313
        %v1365 = vadd.f32 %v1294, %v1313
        %v1366 = vadd.f32 %v1295, %v1313
        %v1367 = vadd.f32 %v1296, %v1313
        %v1368 = vadd.f32 %v1297, %v1313
        %v1369 = vadd.f32 %v1298, %v1313
        %v1370 = vadd.f32 %v1299, %v1313
        %v1371 = vadd.f32 %v1300, %v1313
        %v1372 = vadd.f32 %v1301, %v1313
        %v1373 = vadd.f32 %v1302, %v1313
        %v1374 = vadd.f32 %v1303, %v1313
        %v1375 = vadd.f32 %v1304, %v1313
        %v1376 = vadd.f32 %v1305, %v1313
        %v1377 = vadd.f32 %v1306, %v1313
        %v1378 = vadd.f32 %v1307, %v1313
        %1379 = vst [vmem:[%s298] sm:$0xff] %v1315
        %1380 = vst [vmem:[%s298 + $0x8] sm:$0xff] %v1316
        %1381 = vst [vmem:[%s298 + $0x10] sm:$0xff] %v1317
        %1382 = vst [vmem:[%s298 + $0x18] sm:$0xff] %v1318
        %1383 = vst [vmem:[%s298 + $0x20] sm:$0xff] %v1319
        %1384 = vst [vmem:[%s298 + $0x28] sm:$0xff] %v1320
        %1385 = vst [vmem:[%s298 + $0x30] sm:$0xff] %v1321
        %1386 = vst [vmem:[%s298 + $0x38] sm:$0xff] %v1322
        %1387 = vst [vmem:[%s298 + $0x40] sm:$0xff] %v1323
        %1388 = vst [vmem:[%s298 + $0x48] sm:$0xff] %v1324
        %1389 = vst [vmem:[%s298 + $0x50] sm:$0xff] %v1325
        %1390 = vst [vmem:[%s298 + $0x58] sm:$0xff] %v1326
        %1391 = vst [vmem:[%s298 + $0x60] sm:$0xff] %v1327
        %1392 = vst [vmem:[%s298 + $0x68] sm:$0xff] %v1328
        %1393 = vst [vmem:[%s298 + $0x70] sm:$0xff] %v1329
        %1394 = vst [vmem:[%s298 + $0x78] sm:$0xff] %v1330
        %1395 = vst [vmem:[%s298 + $0x80] sm:$0xff] %v1331
        %1396 = vst [vmem:[%s298 + $0x88] sm:$0xff] %v1332
        %1397 = vst [vmem:[%s298 + $0x90] sm:$0xff] %v1333
        %1398 = vst [vmem:[%s298 + $0x98] sm:$0xff] %v1334
        %1399 = vst [vmem:[%s298 + $0xa0] sm:$0xff] %v1335
        %1400 = vst [vmem:[%s298 + $0xa8] sm:$0xff] %v1336
        %1401 = vst [vmem:[%s298 + $0xb0] sm:$0xff] %v1337
        %1402 = vst [vmem:[%s298 + $0xb8] sm:$0xff] %v1338
        %1403 = vst [vmem:[%s298 + $0xc0] sm:$0xff] %v1339
        %1404 = vst [vmem:[%s298 + $0xc8] sm:$0xff] %v1340
        %1405 = vst [vmem:[%s298 + $0xd0] sm:$0xff] %v1341
        %1406 = vst [vmem:[%s298 + $0xd8] sm:$0xff] %v1342
        %1407 = vst [vmem:[%s298 + $0xe0] sm:$0xff] %v1343
        %1408 = vst [vmem:[%s298 + $0xe8] sm:$0xff] %v1344
        %1409 = vst [vmem:[%s298 + $0xf0] sm:$0xff] %v1345
        %1410 = vst [vmem:[%s298 + $0xf8] sm:$0xff] %v1346
        %1411 = vst [vmem:[%s298 + $0x100] sm:$0xff] %v1347
        %1412 = vst [vmem:[%s298 + $0x108] sm:$0xff] %v1348
        %1413 = vst [vmem:[%s298 + $0x110] sm:$0xff] %v1349
        %1414 = vst [vmem:[%s298 + $0x118] sm:$0xff] %v1350
        %1415 = vst [vmem:[%s298 + $0x120] sm:$0xff] %v1351
        %1416 = vst [vmem:[%s298 + $0x128] sm:$0xff] %v1352
        %1417 = vst [vmem:[%s298 + $0x130] sm:$0xff] %v1353
        %1418 = vst [vmem:[%s298 + $0x138] sm:$0xff] %v1354
        %1419 = vst [vmem:[%s298 + $0x140] sm:$0xff] %v1355
        %1420 = vst [vmem:[%s298 + $0x148] sm:$0xff] %v1356
        %1421 = vst [vmem:[%s298 + $0x150] sm:$0xff] %v1357
        %1422 = vst [vmem:[%s298 + $0x158] sm:$0xff] %v1358
        %1423 = vst [vmem:[%s298 + $0x160] sm:$0xff] %v1359
        %1424 = vst [vmem:[%s298 + $0x168] sm:$0xff] %v1360
        %1425 = vst [vmem:[%s298 + $0x170] sm:$0xff] %v1361
        %1426 = vst [vmem:[%s298 + $0x178] sm:$0xff] %v1362
        %1427 = vst [vmem:[%s298 + $0x180] sm:$0xff] %v1363
        %1428 = vst [vmem:[%s298 + $0x188] sm:$0xff] %v1364
        %1429 = vst [vmem:[%s298 + $0x190] sm:$0xff] %v1365
        %1430 = vst [vmem:[%s298 + $0x198] sm:$0xff] %v1366
        %1431 = vst [vmem:[%s298 + $0x1a0] sm:$0xff] %v1367
        %1432 = vst [vmem:[%s298 + $0x1a8] sm:$0xff] %v1368
        %1433 = vst [vmem:[%s298 + $0x1b0] sm:$0xff] %v1369
        %1434 = vst [vmem:[%s298 + $0x1b8] sm:$0xff] %v1370
        %1435 = vst [vmem:[%s298 + $0x1c0] sm:$0xff] %v1371
        %1436 = vst [vmem:[%s298 + $0x1c8] sm:$0xff] %v1372
        %1437 = vst [vmem:[%s298 + $0x1d0] sm:$0xff] %v1373
        %1438 = vst [vmem:[%s298 + $0x1d8] sm:$0xff] %v1374
        %1439 = vst [vmem:[%s298 + $0x1e0] sm:$0xff] %v1375
        %1440 = vst [vmem:[%s298 + $0x1e8] sm:$0xff] %v1376
        %1441 = vst [vmem:[%s298 + $0x1f0] sm:$0xff] %v1377
        %1442 = vst [vmem:[%s298 + $0x1f8] sm:$0xff] %v1378
      $region44: #{decoder_forward.121} parent=35 // pred_fallthru
        _
      %s1443 = smul.u32 64, %s20
      %p1444 = scmp.lt.s32.totalorder %s1443, 1023
      %s1445 = scalar_select %p1444, %s1443, 1023
      %p1446 = scmp.lt.s32.totalorder %s21, 0
      %s1447 = scalar_select %p1446, %s21, 0
      %s1448 = sadd.s32 %s1447, %s1445
      %s1449 = smul.addr %s1448, 8
      %s1450 = scalar_lea.vmem %s4, %s1449
      // Predicated region
      $region45: #{decoder_forward.121} parent=35 // pred_check
        %p1451 = pneg %p162
      $region46: #{decoder_forward.121} parent=35 // pred_check_branch
        %1453 = sbr.rel (%p1451) target = $region48
      $region47: #{decoder_forward.121} parent=35 // pred_region
        %s1454 = smul.u32 64, %s20
      $region48: #{decoder_forward.121} parent=35 // pred_fallthru
        _
    $region36: #{decoder_forward.121} parent=5 // pred_fallthru
      _
    %p1455 = scmp.le.s32.totalorder 2, %s10
    // Predicated region
    $region49: #{decoder_forward.121} parent=5 // pred_check
      %p1456 = pneg %p1455
    $region50: #{decoder_forward.121} parent=5 // pred_check_branch
      %1458 = sbr.rel (%p1456) target = $region52
    $region51: #{decoder_forward.121} parent=5 // pred_region
      %s1459 = ssub.s32 %s10, 2
      // Predicated region
      $region53: #{decoder_forward.121} parent=51 // pred_check
        %p1460 = pneg %p168
      $region54: #{decoder_forward.121} parent=51 // pred_check_branch
        %1462 = sbr.rel (%p1460) target = $region56
      $region55: #{decoder_forward.121} parent=51 // pred_region
        %s1463 = smul.u32 64, %s23
        %p1464 = scmp.lt.s32.totalorder %s1463, 1023
        %s1465 = scalar_select %p1464, %s1463, 1023
        %p1466 = scmp.lt.s32.totalorder %s24, 0
        %s1467 = scalar_select %p1466, %s24, 0
        %s1468 = sadd.s32 %s1467, %s1465
        %s1469 = smul.addr %s1468, 8
        %s1470 = scalar_lea.vmem %s4, %s1469
      $region56: #{decoder_forward.121} parent=51 // pred_fallthru
        _
    $region52: #{decoder_forward.121} parent=5 // pred_fallthru
      _
  $region6: #{decoder_forward.121} parent=0 // loop_footer
    %s14 = sadd.s32 1, %s10
  $region7: #{decoder_forward.121} parent=0 // loop_footer_branch
    %9 = sbr.rel target = $region3
  $region8: #{decoder_forward.121} parent=0 // loop_exit
    _

</llo_original>
